<compile_context>
chip_gen: v5e
topology: v5e:2x2
jax: 0.10.0
libtpu: 0.0.40
codegen_flags: <defaults>
</compile_context>

<pallas_src>
import functools

import jax
import jax.numpy as jnp
from jax.experimental import pallas as pl
from jax.experimental.pallas import tpu as pltpu


# ---------------------------------------------------------------------------
# Padded-flat geometry helpers.
#
# An H x W image with C channels is held in VMEM as a 2D (L, C) buffer:
#   rows [halo, halo + Hp*Wp) hold the zero-padded image (Hp=H+2, Wp=W+2),
#   flattened row-major; pixel (h, w) sits at row halo + (h+1)*Wp + (w+1).
#   The extra `halo = Wp+1` zero rows on each side let every 3x3 tap be a
#   contiguous static slice of length Hp*Wp at offset di*Wp + dj.
# ---------------------------------------------------------------------------
def _geom(H, W):
    Hp, Wp = H + 2, W + 2
    M = Hp * Wp
    halo = Wp + 1
    L = M + 2 * halo
    return Hp, Wp, M, halo, L


def _interior_mask(H, W):
    """(M, 1) f32 constant: 1 on real-pixel rows of the padded-flat layout."""
    _, Wp, M, _, _ = _geom(H, W)
    p = jnp.arange(M, dtype=jnp.int32)
    ph, pw = p // Wp, p % Wp
    inside = (ph >= 1) & (ph <= H) & (pw >= 1) & (pw <= W)
    return inside.astype(jnp.float32).reshape(M, 1)


def _pool_select_mats(W):
    """0/1 selection matrices (bf16): Se[w2, 2*w2] = 1, So[w2, 2*w2 + 1] = 1.
    Smaller widths reuse the top-left sub-blocks of these matrices."""
    W2 = W // 2
    i = jnp.arange(W2)
    se = jnp.zeros((W2, W), jnp.float32).at[i, 2 * i].set(1.0)
    so = jnp.zeros((W2, W), jnp.float32).at[i, 2 * i + 1].set(1.0)
    return se.astype(jnp.bfloat16), so.astype(jnp.bfloat16)


# ---------------------------------------------------------------------------
# In-kernel building blocks (bf16 on the MXU, f32 accumulate / epilogue)
# ---------------------------------------------------------------------------
def _conv3x3_from(load, w_ref, b_ref, H, W):
    """3x3 'same' conv + bias + ReLU via 9 tap-accumulated MXU dots.

    load(off, m) returns the (m, Cin) bf16 slice starting `off` rows into the
    halo-extended padded-flat buffer.  Returns (Hp*Wp, Cout) f32 (border rows
    are garbage and must be masked or ignored by the caller)."""
    _, Wp, M, _, _ = _geom(H, W)
    cout = w_ref.shape[-1]
    acc = jnp.zeros((M, cout), jnp.float32)
    for di in range(3):
        for dj in range(3):
            off = di * Wp + dj
            acc = acc + jnp.dot(load(off, M), w_ref[di * 3 + dj],
                                preferred_element_type=jnp.float32)
    return jnp.maximum(acc + b_ref[...], 0.0)


def _conv3x3(scr_ref, w_ref, b_ref, H, W):
    cin = w_ref.shape[1]
    return _conv3x3_from(lambda off, m: scr_ref[off:off + m, 0:cin],
                         w_ref, b_ref, H, W)


def _conv1x1(scr_ref, w_ref, b_ref, H, W):
    """1x1 conv + bias + ReLU on the padded-flat buffer (borders garbage)."""
    _, _, M, halo, _ = _geom(H, W)
    cin = w_ref.shape[0]
    x = scr_ref[halo:halo + M, 0:cin]
    y = jnp.dot(x, w_ref[...], preferred_element_type=jnp.float32) + b_ref[...]
    return jnp.maximum(y, 0.0)


def _writeback(scr_ref, y, mask, H, W):
    """Write the (M, C) f32 conv result back into the padded-flat scratch,
    zeroing its border rows (mask) so later 3x3 taps see true zero padding."""
    _, _, M, halo, _ = _geom(H, W)
    scr_ref[halo:halo + M, 0:y.shape[-1]] = (y * mask).astype(scr_ref.dtype)


def _pool_into(y, scr_ref, se_ref, so_ref, H, W):
    """Fused 2x2 max-pool of the padded-flat (Hp*Wp, C) f32 value `y` at
    resolution HxW into the interior of the (zero-bordered) padded-flat
    scratch at resolution H/2 x W/2.

    Per output row: the vertical pair is a maximum of two contiguous slices,
    the horizontal pairing is two 0/1 selection-matrix MXU dots (only
    contiguous slices / maximum / dot are used -> safe lowering, MXU slack)."""
    _, Wp, _, _, _ = _geom(H, W)
    H2, W2 = H // 2, W // 2
    _, W2p, _, halo2, _ = _geom(H2, W2)
    C = y.shape[-1]
    se = se_ref[0:W2, 0:W]
    so = so_ref[0:W2, 0:W]
    for h2 in range(H2):
        r0 = (2 * h2 + 1) * Wp + 1                       # image row 2*h2, col 0
        vm = jnp.maximum(y[r0:r0 + W, :],
                         y[r0 + Wp:r0 + Wp + W, :]).astype(jnp.bfloat16)
        pooled = jnp.maximum(
            jnp.dot(se, vm, preferred_element_type=jnp.float32),
            jnp.dot(so, vm, preferred_element_type=jnp.float32))   # (W2, C)
        dst = halo2 + (h2 + 1) * W2p + 1
        scr_ref[dst:dst + W2, 0:C] = pooled.astype(scr_ref.dtype)


# ---------------------------------------------------------------------------
# The single fused kernel (one grid step == one image, whole network)
# ---------------------------------------------------------------------------
def _fused_kernel(*refs, H, W):
    (x_ref, se_ref, so_ref, m3_ref, m4_ref,
     w1, b1, w2, b2,
     w31, b31, w32, b32, w33, b33, w34, b34,
     w41, b41, w42, b42, w43, b43, w44, b44, w45, b45, w46, b46,
     wl1, bl1, wl2, bl2,
     o_ref, scr2, scr3, scr4) = refs

    H2, W2 = H // 2, W // 2
    H3, W3 = H // 4, W // 4
    H4, W4 = H // 8, W // 8

    # Zero the padded-flat scratches: halo + border rows must read as true
    # zero padding for every 3x3 conv below (cheap: < 40 KiB of VMEM stores).
    scr2[...] = jnp.zeros(scr2.shape, scr2.dtype)
    scr3[...] = jnp.zeros(scr3.shape, scr3.dtype)
    scr4[...] = jnp.zeros(scr4.shape, scr4.dtype)

    # conv1 + ReLU at (H, W); maxpool2 fused into the write to scr2.
    y = _conv3x3_from(lambda off, m: x_ref[0, off:off + m, :], w1, b1, H, W)
    _pool_into(y, scr2, se_ref, so_ref, H, W)

    # conv2 + ReLU at (H/2, W/2); maxpool3 fused into the write to scr3.
    y = _conv3x3(scr2, w2, b2, H2, W2)
    _pool_into(y, scr3, se_ref, so_ref, H2, W2)

    # conv31 / conv32 / conv33 / conv34 (+ReLU) at (H/4, W/4); maxpool4 -> scr4.
    mask3 = m3_ref[...]
    _writeback(scr3, _conv1x1(scr3, w31, b31, H3, W3), mask3, H3, W3)
    _writeback(scr3, _conv3x3(scr3, w32, b32, H3, W3), mask3, H3, W3)
    _writeback(scr3, _conv1x1(scr3, w33, b33, H3, W3), mask3, H3, W3)
    y = _conv3x3(scr3, w34, b34, H3, W3)
    _pool_into(y, scr4, se_ref, so_ref, H3, W3)

    # conv41 .. conv46 (+ReLU) at (H/8, W/8).
    mask4 = m4_ref[...]
    _writeback(scr4, _conv1x1(scr4, w41, b41, H4, W4), mask4, H4, W4)
    _writeback(scr4, _conv3x3(scr4, w42, b42, H4, W4), mask4, H4, W4)
    _writeback(scr4, _conv1x1(scr4, w43, b43, H4, W4), mask4, H4, W4)
    _writeback(scr4, _conv3x3(scr4, w44, b44, H4, W4), mask4, H4, W4)
    _writeback(scr4, _conv1x1(scr4, w45, b45, H4, W4), mask4, H4, W4)
    y = _conv3x3(scr4, w46, b46, H4, W4) * mask4

    # AdaptiveAvgPool2d((1,1)) + Flatten: borders are zero, so sum all rows.
    pooled = jnp.sum(y, axis=0, keepdims=True) * (1.0 / (H4 * W4))   # (1, 64) f32
    # TODO(synk): Dropout2d / Dropout layers run as identity (inference mode).
    z = jnp.dot(pooled.astype(jnp.bfloat16), wl1[...],
                preferred_element_type=jnp.float32) + bl1[...]
    z = jnp.maximum(z, 0.0)
    z = jnp.dot(z.astype(jnp.bfloat16), wl2[...],
                preferred_element_type=jnp.float32) + bl2[...]
    o_ref[0] = z.astype(o_ref.dtype)


# ---------------------------------------------------------------------------
# pallas_call wrapper
# ---------------------------------------------------------------------------
def _bcast_spec(arr):
    nd = arr.ndim
    return pl.BlockSpec(arr.shape, lambda n, _nd=nd: (0,) * _nd)


WEIGHT_ORDER = ("conv1", "conv2", "conv31", "conv32", "conv33", "conv34",
                "conv41", "conv42", "conv43", "conv44", "conv45", "conv46",
                "linear51", "linear52")


def forward(params, x_nchw):
    N, cin, H, W = x_nchw.shape
    assert H % 8 == 0 and W % 8 == 0, "three 2x2 max-pools require H, W % 8 == 0"

    # NCHW -> NHWC, zero-pad spatially, flatten row-major, add the halo rows.
    x = jnp.transpose(x_nchw, (0, 2, 3, 1)).astype(jnp.bfloat16)
    _, _, M, halo, L = _geom(H, W)
    xp = jnp.pad(x, ((0, 0), (1, 1), (1, 1), (0, 0)))
    xh = jnp.pad(xp.reshape(N, M, cin), ((0, 0), (halo, halo), (0, 0)))

    se, so = _pool_select_mats(W)
    m3 = _interior_mask(H // 4, W // 4)
    m4 = _interior_mask(H // 8, W // 8)

    flat = []
    for name in WEIGHT_ORDER:
        flat += [params[name][0], params[name][1]]
    operands = [xh, se, so, m3, m4] + flat

    _, _, _, _, L2 = _geom(H // 2, W // 2)
    _, _, _, _, L3 = _geom(H // 4, W // 4)
    _, _, _, _, L4 = _geom(H // 8, W // 8)

    out = pl.pallas_call(
        functools.partial(_fused_kernel, H=H, W=W),
        out_shape=jax.ShapeDtypeStruct((N, 1, 2), jnp.float32),
        grid=(N,),
        in_specs=[pl.BlockSpec((1, L, cin), lambda n: (n, 0, 0))]
                 + [_bcast_spec(a) for a in operands[1:]],
        out_specs=pl.BlockSpec((1, 1, 2), lambda n: (n, 0, 0)),
        scratch_shapes=[pltpu.VMEM((L2, 32), jnp.bfloat16),
                        pltpu.VMEM((L3, 32), jnp.bfloat16),
                        pltpu.VMEM((L4, 64), jnp.bfloat16)],
        compiler_params=pltpu.CompilerParams(
            dimension_semantics=("parallel",)),
    )(*operands)
    return out.reshape(N, 2)


# ---------------------------------------------------------------------------
# Parameters (deterministic, synthetic; matches the module's layer shapes)
# ---------------------------------------------------------------------------
CONV_DEFS = [
    ("conv1", 3, 3, 32), ("conv2", 3, 32, 16),
    ("conv31", 1, 16, 16), ("conv32", 3, 16, 32),
    ("conv33", 1, 32, 32), ("conv34", 3, 32, 64),
    ("conv41", 1, 64, 32), ("conv42", 3, 32, 64),
    ("conv43", 1, 64, 32), ("conv44", 3, 32, 64),
    ("conv45", 1, 64, 32), ("conv46", 3, 32, 64),
]


def init_params(key):
    params = {}
    for name, k, cin, cout in CONV_DEFS:
        key, wk, bk = jax.random.split(key, 3)
        fan_in = k * k * cin
        w = jax.random.normal(wk, (k, k, cin, cout), jnp.float32) * jnp.sqrt(2.0 / fan_in)
        w = w.reshape(k * k, cin, cout) if k == 3 else w.reshape(cin, cout)
        b = 0.1 * jax.random.normal(bk, (1, cout), jnp.float32)
        params[name] = (w.astype(jnp.bfloat16), b)
    key, k1, k2, k3, k4 = jax.random.split(key, 5)
    params["linear51"] = (
        (jax.random.normal(k1, (64, 16), jnp.float32) * 0.01).astype(jnp.bfloat16),
        0.1 * jax.random.normal(k3, (1, 16), jnp.float32))
    params["linear52"] = (
        (jax.random.normal(k2, (16, 2), jnp.float32) * 0.01).astype(jnp.bfloat16),
        0.1 * jax.random.normal(k4, (1, 2), jnp.float32))
    return params


# ---------------------------------------------------------------------------
# Pure-XLA reference with matching bf16 activation quantization (for checking)
# ---------------------------------------------------------------------------
def _ref_forward(params, x_nchw):
    a = jnp.transpose(x_nchw, (0, 2, 3, 1)).astype(jnp.bfloat16)

    def conv(a, name, k):
        w, b = params[name]
        wk = (w.reshape(3, 3, w.shape[1], w.shape[2]) if k == 3
              else w.reshape(1, 1, w.shape[0], w.shape[1]))
        y = jax.lax.conv_general_dilated(
            a.astype(jnp.bfloat16), wk, (1, 1), "SAME" if k == 3 else "VALID",
            dimension_numbers=("NHWC", "HWIO", "NHWC"),
            preferred_element_type=jnp.float32)
        return jnp.maximum(y + b.reshape(1, 1, 1, -1), 0.0).astype(jnp.bfloat16)

    def pool(a):
        n, h, w, c = a.shape
        return a.reshape(n, h // 2, 2, w // 2, 2, c).max(axis=(2, 4))

    a = pool(conv(a, "conv1", 3))
    a = pool(conv(a, "conv2", 3))
    for name, k in (("conv31", 1), ("conv32", 3), ("conv33", 1), ("conv34", 3)):
        a = conv(a, name, k)
    a = pool(a)
    for name, k in (("conv41", 1), ("conv42", 3), ("conv43", 1), ("conv44", 3),
                    ("conv45", 1), ("conv46", 3)):
        a = conv(a, name, k)
    feat = jnp.mean(a.astype(jnp.float32), axis=(1, 2))              # (N, 64)
    wl1, bl1 = params["linear51"]
    wl2, bl2 = params["linear52"]
    z = jnp.dot(feat.astype(jnp.bfloat16), wl1,
                preferred_element_type=jnp.float32) + bl1
    z = jnp.maximum(z, 0.0)
    z = jnp.dot(z.astype(jnp.bfloat16), wl2,
                preferred_element_type=jnp.float32) + bl2
    return z


if __name__ == "__main__":
    key = jax.random.PRNGKey(0)
    pkey, xkey = jax.random.split(key)
    params = init_params(pkey)

    # Small NCHW input consistent with the module (in_channels=3, spatial=16).
    x = jax.random.normal(xkey, (2, 3, 16, 16), jnp.float32)

    out = jax.block_until_ready(jax.jit(forward)(params, x))
    assert out.shape == (2, 2), out.shape
    assert bool(jnp.all(jnp.isfinite(out)))

    # Correctness check against the pure-XLA reference (same bf16 casts).
    ref = jax.block_until_ready(jax.jit(_ref_forward)(params, x))
    err = float(jnp.max(jnp.abs(out - ref.astype(jnp.float32))))
    assert err < 2e-2, f"max |kernel - reference| = {err}"

    print("KERNEL_OK")
</pallas_src>

<mosaic_0001>
module attributes {stable_mosaic.version = 11 : i64} {
  func.func @_fused_kernel(%arg0: i32, %arg1: memref<1x362x3xbf16, #tpu.memory_space<vmem>>, %arg2: memref<8x16xbf16, #tpu.memory_space<vmem>>, %arg3: memref<8x16xbf16, #tpu.memory_space<vmem>>, %arg4: memref<36x1xf32, #tpu.memory_space<vmem>>, %arg5: memref<16x1xf32, #tpu.memory_space<vmem>>, %arg6: memref<9x3x32xbf16, #tpu.memory_space<vmem>>, %arg7: memref<1x32xf32, #tpu.memory_space<vmem>>, %arg8: memref<9x32x16xbf16, #tpu.memory_space<vmem>>, %arg9: memref<1x16xf32, #tpu.memory_space<vmem>>, %arg10: memref<16x16xbf16, #tpu.memory_space<vmem>>, %arg11: memref<1x16xf32, #tpu.memory_space<vmem>>, %arg12: memref<9x16x32xbf16, #tpu.memory_space<vmem>>, %arg13: memref<1x32xf32, #tpu.memory_space<vmem>>, %arg14: memref<32x32xbf16, #tpu.memory_space<vmem>>, %arg15: memref<1x32xf32, #tpu.memory_space<vmem>>, %arg16: memref<9x32x64xbf16, #tpu.memory_space<vmem>>, %arg17: memref<1x64xf32, #tpu.memory_space<vmem>>, %arg18: memref<64x32xbf16, #tpu.memory_space<vmem>>, %arg19: memref<1x32xf32, #tpu.memory_space<vmem>>, %arg20: memref<9x32x64xbf16, #tpu.memory_space<vmem>>, %arg21: memref<1x64xf32, #tpu.memory_space<vmem>>, %arg22: memref<64x32xbf16, #tpu.memory_space<vmem>>, %arg23: memref<1x32xf32, #tpu.memory_space<vmem>>, %arg24: memref<9x32x64xbf16, #tpu.memory_space<vmem>>, %arg25: memref<1x64xf32, #tpu.memory_space<vmem>>, %arg26: memref<64x32xbf16, #tpu.memory_space<vmem>>, %arg27: memref<1x32xf32, #tpu.memory_space<vmem>>, %arg28: memref<9x32x64xbf16, #tpu.memory_space<vmem>>, %arg29: memref<1x64xf32, #tpu.memory_space<vmem>>, %arg30: memref<64x16xbf16, #tpu.memory_space<vmem>>, %arg31: memref<1x16xf32, #tpu.memory_space<vmem>>, %arg32: memref<16x2xbf16, #tpu.memory_space<vmem>>, %arg33: memref<1x2xf32, #tpu.memory_space<vmem>>, %arg34: memref<1x1x2xf32, #tpu.memory_space<vmem>>, %arg35: memref<122x32xbf16, #tpu.memory_space<vmem>>, %arg36: memref<50x32xbf16, #tpu.memory_space<vmem>>, %arg37: memref<26x64xbf16, #tpu.memory_space<vmem>>) attributes {dimension_semantics = [#tpu.dimension_semantics<parallel>], iteration_bounds = array<i64: 2>, scalar_prefetch = 0 : i64, scratch_operands = 3 : i64, tpu.core_type = #tpu.core_type<tc>, window_params = [{transform_indices = @transform_0, window_bounds = array<i64: 1, 362, 3>}, {pipeline_mode = #tpu.pipeline_mode<synchronous>, transform_indices = @transform_1, window_bounds = array<i64: 8, 16>}, {pipeline_mode = #tpu.pipeline_mode<synchronous>, transform_indices = @transform_2, window_bounds = array<i64: 8, 16>}, {pipeline_mode = #tpu.pipeline_mode<synchronous>, transform_indices = @transform_3, window_bounds = array<i64: 36, 1>}, {pipeline_mode = #tpu.pipeline_mode<synchronous>, transform_indices = @transform_4, window_bounds = array<i64: 16, 1>}, {pipeline_mode = #tpu.pipeline_mode<synchronous>, transform_indices = @transform_5, window_bounds = array<i64: 9, 3, 32>}, {pipeline_mode = #tpu.pipeline_mode<synchronous>, transform_indices = @transform_6, window_bounds = array<i64: 1, 32>}, {pipeline_mode = #tpu.pipeline_mode<synchronous>, transform_indices = @transform_7, window_bounds = array<i64: 9, 32, 16>}, {pipeline_mode = #tpu.pipeline_mode<synchronous>, transform_indices = @transform_8, window_bounds = array<i64: 1, 16>}, {pipeline_mode = #tpu.pipeline_mode<synchronous>, transform_indices = @transform_9, window_bounds = array<i64: 16, 16>}, {pipeline_mode = #tpu.pipeline_mode<synchronous>, transform_indices = @transform_10, window_bounds = array<i64: 1, 16>}, {pipeline_mode = #tpu.pipeline_mode<synchronous>, transform_indices = @transform_11, window_bounds = array<i64: 9, 16, 32>}, {pipeline_mode = #tpu.pipeline_mode<synchronous>, transform_indices = @transform_12, window_bounds = array<i64: 1, 32>}, {pipeline_mode = #tpu.pipeline_mode<synchronous>, transform_indices = @transform_13, window_bounds = array<i64: 32, 32>}, {pipeline_mode = #tpu.pipeline_mode<synchronous>, transform_indices = @transform_14, window_bounds = array<i64: 1, 32>}, {pipeline_mode = #tpu.pipeline_mode<synchronous>, transform_indices = @transform_15, window_bounds = array<i64: 9, 32, 64>}, {pipeline_mode = #tpu.pipeline_mode<synchronous>, transform_indices = @transform_16, window_bounds = array<i64: 1, 64>}, {pipeline_mode = #tpu.pipeline_mode<synchronous>, transform_indices = @transform_17, window_bounds = array<i64: 64, 32>}, {pipeline_mode = #tpu.pipeline_mode<synchronous>, transform_indices = @transform_18, window_bounds = array<i64: 1, 32>}, {pipeline_mode = #tpu.pipeline_mode<synchronous>, transform_indices = @transform_19, window_bounds = array<i64: 9, 32, 64>}, {pipeline_mode = #tpu.pipeline_mode<synchronous>, transform_indices = @transform_20, window_bounds = array<i64: 1, 64>}, {pipeline_mode = #tpu.pipeline_mode<synchronous>, transform_indices = @transform_21, window_bounds = array<i64: 64, 32>}, {pipeline_mode = #tpu.pipeline_mode<synchronous>, transform_indices = @transform_22, window_bounds = array<i64: 1, 32>}, {pipeline_mode = #tpu.pipeline_mode<synchronous>, transform_indices = @transform_23, window_bounds = array<i64: 9, 32, 64>}, {pipeline_mode = #tpu.pipeline_mode<synchronous>, transform_indices = @transform_24, window_bounds = array<i64: 1, 64>}, {pipeline_mode = #tpu.pipeline_mode<synchronous>, transform_indices = @transform_25, window_bounds = array<i64: 64, 32>}, {pipeline_mode = #tpu.pipeline_mode<synchronous>, transform_indices = @transform_26, window_bounds = array<i64: 1, 32>}, {pipeline_mode = #tpu.pipeline_mode<synchronous>, transform_indices = @transform_27, window_bounds = array<i64: 9, 32, 64>}, {pipeline_mode = #tpu.pipeline_mode<synchronous>, transform_indices = @transform_28, window_bounds = array<i64: 1, 64>}, {pipeline_mode = #tpu.pipeline_mode<synchronous>, transform_indices = @transform_29, window_bounds = array<i64: 64, 16>}, {pipeline_mode = #tpu.pipeline_mode<synchronous>, transform_indices = @transform_30, window_bounds = array<i64: 1, 16>}, {pipeline_mode = #tpu.pipeline_mode<synchronous>, transform_indices = @transform_31, window_bounds = array<i64: 16, 2>}, {pipeline_mode = #tpu.pipeline_mode<synchronous>, transform_indices = @transform_32, window_bounds = array<i64: 1, 2>}, {transform_indices = @transform_33, window_bounds = array<i64: 1, 1, 2>}]} {
    %cst = arith.constant 0.000000e+00 : bf16
    %0 = vector.broadcast %cst : bf16 to vector<122x32xbf16>
    %c0 = arith.constant 0 : index
    %c0_0 = arith.constant 0 : index
    %1 = vector.load %arg35[%c0, %c0_0] : memref<122x32xbf16, #tpu.memory_space<vmem>>, vector<122x32xbf16>
    tpu.vector_store %arg35[%c0, %c0_0], %0 {strides = array<i32>} : memref<122x32xbf16, #tpu.memory_space<vmem>>, vector<122x32xbf16>,
    %cst_1 = arith.constant 0.000000e+00 : bf16
    %2 = vector.broadcast %cst_1 : bf16 to vector<50x32xbf16>
    %c0_2 = arith.constant 0 : index
    %c0_3 = arith.constant 0 : index
    %3 = vector.load %arg36[%c0_2, %c0_3] : memref<50x32xbf16, #tpu.memory_space<vmem>>, vector<50x32xbf16>
    tpu.vector_store %arg36[%c0_2, %c0_3], %2 {strides = array<i32>} : memref<50x32xbf16, #tpu.memory_space<vmem>>, vector<50x32xbf16>,
    %cst_4 = arith.constant 0.000000e+00 : bf16
    %4 = vector.broadcast %cst_4 : bf16 to vector<26x64xbf16>
    %c0_5 = arith.constant 0 : index
    %c0_6 = arith.constant 0 : index
    %5 = vector.load %arg37[%c0_5, %c0_6] : memref<26x64xbf16, #tpu.memory_space<vmem>>, vector<26x64xbf16>
    tpu.vector_store %arg37[%c0_5, %c0_6], %4 {strides = array<i32>} : memref<26x64xbf16, #tpu.memory_space<vmem>>, vector<26x64xbf16>,
    %cst_7 = arith.constant 0.000000e+00 : f32
    %6 = vector.broadcast %cst_7 : f32 to vector<324x32xf32>
    %c0_8 = arith.constant 0 : index
    %c0_9 = arith.constant 0 : index
    %c0_10 = arith.constant 0 : index
    %7 = vector.load %arg1[%c0_8, %c0_9, %c0_10] : memref<1x362x3xbf16, #tpu.memory_space<vmem>>, vector<1x324x3xbf16>
    %8 = vector.shape_cast %7 : vector<1x324x3xbf16> to vector<324x3xbf16>
    %c0_11 = arith.constant 0 : index
    %c0_12 = arith.constant 0 : index
    %c0_13 = arith.constant 0 : index
    %9 = vector.load %arg6[%c0_11, %c0_12, %c0_13] : memref<9x3x32xbf16, #tpu.memory_space<vmem>>, vector<1x3x32xbf16>
    %10 = vector.shape_cast %9 : vector<1x3x32xbf16> to vector<3x32xbf16>
    %cst_14 = arith.constant dense<0.000000e+00> : vector<324x32xf32>
    %11 = tpu.matmul %8, %10, %cst_14 {dimension_numbers = #tpu.dot_dimension_numbers<[1], [0], [0], [1], [0, 0, 1, 1], [], []>} : vector<324x3xbf16>, vector<3x32xbf16>, vector<324x32xf32> -> vector<324x32xf32>
    %12 = arith.addf %6, %11 : vector<324x32xf32>
    %c0_15 = arith.constant 0 : index
    %c1 = arith.constant 1 : index
    %c0_16 = arith.constant 0 : index
    %13 = vector.load %arg1[%c0_15, %c1, %c0_16] : memref<1x362x3xbf16, #tpu.memory_space<vmem>>, vector<1x324x3xbf16>
    %14 = vector.shape_cast %13 : vector<1x324x3xbf16> to vector<324x3xbf16>
    %c1_17 = arith.constant 1 : index
    %c0_18 = arith.constant 0 : index
    %c0_19 = arith.constant 0 : index
    %15 = vector.load %arg6[%c1_17, %c0_18, %c0_19] : memref<9x3x32xbf16, #tpu.memory_space<vmem>>, vector<1x3x32xbf16>
    %16 = vector.shape_cast %15 : vector<1x3x32xbf16> to vector<3x32xbf16>
    %cst_20 = arith.constant dense<0.000000e+00> : vector<324x32xf32>
    %17 = tpu.matmul %14, %16, %cst_20 {dimension_numbers = #tpu.dot_dimension_numbers<[1], [0], [0], [1], [0, 0, 1, 1], [], []>} : vector<324x3xbf16>, vector<3x32xbf16>, vector<324x32xf32> -> vector<324x32xf32>
    %18 = arith.addf %12, %17 : vector<324x32xf32>
    %c0_21 = arith.constant 0 : index
    %c2 = arith.constant 2 : index
    %c0_22 = arith.constant 0 : index
    %19 = vector.load %arg1[%c0_21, %c2, %c0_22] : memref<1x362x3xbf16, #tpu.memory_space<vmem>>, vector<1x324x3xbf16>
    %20 = vector.shape_cast %19 : vector<1x324x3xbf16> to vector<324x3xbf16>
    %c2_23 = arith.constant 2 : index
    %c0_24 = arith.constant 0 : index
    %c0_25 = arith.constant 0 : index
    %21 = vector.load %arg6[%c2_23, %c0_24, %c0_25] : memref<9x3x32xbf16, #tpu.memory_space<vmem>>, vector<1x3x32xbf16>
    %22 = vector.shape_cast %21 : vector<1x3x32xbf16> to vector<3x32xbf16>
    %cst_26 = arith.constant dense<0.000000e+00> : vector<324x32xf32>
    %23 = tpu.matmul %20, %22, %cst_26 {dimension_numbers = #tpu.dot_dimension_numbers<[1], [0], [0], [1], [0, 0, 1, 1], [], []>} : vector<324x3xbf16>, vector<3x32xbf16>, vector<324x32xf32> -> vector<324x32xf32>
    %24 = arith.addf %18, %23 : vector<324x32xf32>
    %c0_27 = arith.constant 0 : index
    %c18 = arith.constant 18 : index
    %c0_28 = arith.constant 0 : index
    %25 = vector.load %arg1[%c0_27, %c18, %c0_28] : memref<1x362x3xbf16, #tpu.memory_space<vmem>>, vector<1x324x3xbf16>
    %26 = vector.shape_cast %25 : vector<1x324x3xbf16> to vector<324x3xbf16>
    %c3 = arith.constant 3 : index
    %c0_29 = arith.constant 0 : index
    %c0_30 = arith.constant 0 : index
    %27 = vector.load %arg6[%c3, %c0_29, %c0_30] : memref<9x3x32xbf16, #tpu.memory_space<vmem>>, vector<1x3x32xbf16>
    %28 = vector.shape_cast %27 : vector<1x3x32xbf16> to vector<3x32xbf16>
    %cst_31 = arith.constant dense<0.000000e+00> : vector<324x32xf32>
    %29 = tpu.matmul %26, %28, %cst_31 {dimension_numbers = #tpu.dot_dimension_numbers<[1], [0], [0], [1], [0, 0, 1, 1], [], []>} : vector<324x3xbf16>, vector<3x32xbf16>, vector<324x32xf32> -> vector<324x32xf32>
    %30 = arith.addf %24, %29 : vector<324x32xf32>
    %c0_32 = arith.constant 0 : index
    %c19 = arith.constant 19 : index
    %c0_33 = arith.constant 0 : index
    %31 = vector.load %arg1[%c0_32, %c19, %c0_33] : memref<1x362x3xbf16, #tpu.memory_space<vmem>>, vector<1x324x3xbf16>
    %32 = vector.shape_cast %31 : vector<1x324x3xbf16> to vector<324x3xbf16>
    %c4 = arith.constant 4 : index
    %c0_34 = arith.constant 0 : index
    %c0_35 = arith.constant 0 : index
    %33 = vector.load %arg6[%c4, %c0_34, %c0_35] : memref<9x3x32xbf16, #tpu.memory_space<vmem>>, vector<1x3x32xbf16>
    %34 = vector.shape_cast %33 : vector<1x3x32xbf16> to vector<3x32xbf16>
    %cst_36 = arith.constant dense<0.000000e+00> : vector<324x32xf32>
    %35 = tpu.matmul %32, %34, %cst_36 {dimension_numbers = #tpu.dot_dimension_numbers<[1], [0], [0], [1], [0, 0, 1, 1], [], []>} : vector<324x3xbf16>, vector<3x32xbf16>, vector<324x32xf32> -> vector<324x32xf32>
    %36 = arith.addf %30, %35 : vector<324x32xf32>
    %c0_37 = arith.constant 0 : index
    %c20 = arith.constant 20 : index
    %c0_38 = arith.constant 0 : index
    %37 = vector.load %arg1[%c0_37, %c20, %c0_38] : memref<1x362x3xbf16, #tpu.memory_space<vmem>>, vector<1x324x3xbf16>
    %38 = vector.shape_cast %37 : vector<1x324x3xbf16> to vector<324x3xbf16>
    %c5 = arith.constant 5 : index
    %c0_39 = arith.constant 0 : index
    %c0_40 = arith.constant 0 : index
    %39 = vector.load %arg6[%c5, %c0_39, %c0_40] : memref<9x3x32xbf16, #tpu.memory_space<vmem>>, vector<1x3x32xbf16>
    %40 = vector.shape_cast %39 : vector<1x3x32xbf16> to vector<3x32xbf16>
    %cst_41 = arith.constant dense<0.000000e+00> : vector<324x32xf32>
    %41 = tpu.matmul %38, %40, %cst_41 {dimension_numbers = #tpu.dot_dimension_numbers<[1], [0], [0], [1], [0, 0, 1, 1], [], []>} : vector<324x3xbf16>, vector<3x32xbf16>, vector<324x32xf32> -> vector<324x32xf32>
    %42 = arith.addf %36, %41 : vector<324x32xf32>
    %c0_42 = arith.constant 0 : index
    %c36 = arith.constant 36 : index
    %c0_43 = arith.constant 0 : index
    %43 = vector.load %arg1[%c0_42, %c36, %c0_43] : memref<1x362x3xbf16, #tpu.memory_space<vmem>>, vector<1x324x3xbf16>
    %44 = vector.shape_cast %43 : vector<1x324x3xbf16> to vector<324x3xbf16>
    %c6 = arith.constant 6 : index
    %c0_44 = arith.constant 0 : index
    %c0_45 = arith.constant 0 : index
    %45 = vector.load %arg6[%c6, %c0_44, %c0_45] : memref<9x3x32xbf16, #tpu.memory_space<vmem>>, vector<1x3x32xbf16>
    %46 = vector.shape_cast %45 : vector<1x3x32xbf16> to vector<3x32xbf16>
    %cst_46 = arith.constant dense<0.000000e+00> : vector<324x32xf32>
    %47 = tpu.matmul %44, %46, %cst_46 {dimension_numbers = #tpu.dot_dimension_numbers<[1], [0], [0], [1], [0, 0, 1, 1], [], []>} : vector<324x3xbf16>, vector<3x32xbf16>, vector<324x32xf32> -> vector<324x32xf32>
    %48 = arith.addf %42, %47 : vector<324x32xf32>
    %c0_47 = arith.constant 0 : index
    %c37 = arith.constant 37 : index
    %c0_48 = arith.constant 0 : index
    %49 = vector.load %arg1[%c0_47, %c37, %c0_48] : memref<1x362x3xbf16, #tpu.memory_space<vmem>>, vector<1x324x3xbf16>
    %50 = vector.shape_cast %49 : vector<1x324x3xbf16> to vector<324x3xbf16>
    %c7 = arith.constant 7 : index
    %c0_49 = arith.constant 0 : index
    %c0_50 = arith.constant 0 : index
    %51 = vector.load %arg6[%c7, %c0_49, %c0_50] : memref<9x3x32xbf16, #tpu.memory_space<vmem>>, vector<1x3x32xbf16>
    %52 = vector.shape_cast %51 : vector<1x3x32xbf16> to vector<3x32xbf16>
    %cst_51 = arith.constant dense<0.000000e+00> : vector<324x32xf32>
    %53 = tpu.matmul %50, %52, %cst_51 {dimension_numbers = #tpu.dot_dimension_numbers<[1], [0], [0], [1], [0, 0, 1, 1], [], []>} : vector<324x3xbf16>, vector<3x32xbf16>, vector<324x32xf32> -> vector<324x32xf32>
    %54 = arith.addf %48, %53 : vector<324x32xf32>
    %c0_52 = arith.constant 0 : index
    %c38 = arith.constant 38 : index
    %c0_53 = arith.constant 0 : index
    %55 = vector.load %arg1[%c0_52, %c38, %c0_53] : memref<1x362x3xbf16, #tpu.memory_space<vmem>>, vector<1x324x3xbf16>
    %56 = vector.shape_cast %55 : vector<1x324x3xbf16> to vector<324x3xbf16>
    %c8 = arith.constant 8 : index
    %c0_54 = arith.constant 0 : index
    %c0_55 = arith.constant 0 : index
    %57 = vector.load %arg6[%c8, %c0_54, %c0_55] : memref<9x3x32xbf16, #tpu.memory_space<vmem>>, vector<1x3x32xbf16>
    %58 = vector.shape_cast %57 : vector<1x3x32xbf16> to vector<3x32xbf16>
    %cst_56 = arith.constant dense<0.000000e+00> : vector<324x32xf32>
    %59 = tpu.matmul %56, %58, %cst_56 {dimension_numbers = #tpu.dot_dimension_numbers<[1], [0], [0], [1], [0, 0, 1, 1], [], []>} : vector<324x3xbf16>, vector<3x32xbf16>, vector<324x32xf32> -> vector<324x32xf32>
    %60 = arith.addf %54, %59 : vector<324x32xf32>
    %c0_57 = arith.constant 0 : index
    %c0_58 = arith.constant 0 : index
    %61 = vector.load %arg7[%c0_57, %c0_58] : memref<1x32xf32, #tpu.memory_space<vmem>>, vector<1x32xf32>
    %62 = vector.broadcast %61 : vector<1x32xf32> to vector<324x32xf32>
    %63 = arith.addf %60, %62 : vector<324x32xf32>
    %cst_59 = arith.constant 0.000000e+00 : f32
    %64 = vector.broadcast %cst_59 : f32 to vector<324x32xf32>
    %65 = arith.maximumf %63, %64 : vector<324x32xf32>
    %c0_60 = arith.constant 0 : index
    %c0_61 = arith.constant 0 : index
    %66 = vector.load %arg2[%c0_60, %c0_61] : memref<8x16xbf16, #tpu.memory_space<vmem>>, vector<8x16xbf16>
    %c0_62 = arith.constant 0 : index
    %c0_63 = arith.constant 0 : index
    %67 = vector.load %arg3[%c0_62, %c0_63] : memref<8x16xbf16, #tpu.memory_space<vmem>>, vector<8x16xbf16>
    %68 = vector.extract_strided_slice %65 {offsets = [19, 0], sizes = [16, 32], strides = [1, 1]} : vector<324x32xf32> to vector<16x32xf32>
    %69 = vector.extract_strided_slice %65 {offsets = [37, 0], sizes = [16, 32], strides = [1, 1]} : vector<324x32xf32> to vector<16x32xf32>
    %70 = arith.maximumf %68, %69 : vector<16x32xf32>
    %71 = arith.truncf %70 : vector<16x32xf32> to vector<16x32xbf16>
    %cst_64 = arith.constant dense<0.000000e+00> : vector<8x32xf32>
    %72 = tpu.matmul %66, %71, %cst_64 {dimension_numbers = #tpu.dot_dimension_numbers<[1], [0], [0], [1], [0, 0, 1, 1], [], []>} : vector<8x16xbf16>, vector<16x32xbf16>, vector<8x32xf32> -> vector<8x32xf32>
    %cst_65 = arith.constant dense<0.000000e+00> : vector<8x32xf32>
    %73 = tpu.matmul %67, %71, %cst_65 {dimension_numbers = #tpu.dot_dimension_numbers<[1], [0], [0], [1], [0, 0, 1, 1], [], []>} : vector<8x16xbf16>, vector<16x32xbf16>, vector<8x32xf32> -> vector<8x32xf32>
    %74 = arith.maximumf %72, %73 : vector<8x32xf32>
    %75 = arith.truncf %74 : vector<8x32xf32> to vector<8x32xbf16>
    %c22 = arith.constant 22 : index
    %c0_66 = arith.constant 0 : index
    %76 = vector.load %arg35[%c22, %c0_66] : memref<122x32xbf16, #tpu.memory_space<vmem>>, vector<8x32xbf16>
    tpu.vector_store %arg35[%c22, %c0_66], %75 {strides = array<i32>} : memref<122x32xbf16, #tpu.memory_space<vmem>>, vector<8x32xbf16>,
    %77 = vector.extract_strided_slice %65 {offsets = [55, 0], sizes = [16, 32], strides = [1, 1]} : vector<324x32xf32> to vector<16x32xf32>
    %78 = vector.extract_strided_slice %65 {offsets = [73, 0], sizes = [16, 32], strides = [1, 1]} : vector<324x32xf32> to vector<16x32xf32>
    %79 = arith.maximumf %77, %78 : vector<16x32xf32>
    %80 = arith.truncf %79 : vector<16x32xf32> to vector<16x32xbf16>
    %cst_67 = arith.constant dense<0.000000e+00> : vector<8x32xf32>
    %81 = tpu.matmul %66, %80, %cst_67 {dimension_numbers = #tpu.dot_dimension_numbers<[1], [0], [0], [1], [0, 0, 1, 1], [], []>} : vector<8x16xbf16>, vector<16x32xbf16>, vector<8x32xf32> -> vector<8x32xf32>
    %cst_68 = arith.constant dense<0.000000e+00> : vector<8x32xf32>
    %82 = tpu.matmul %67, %80, %cst_68 {dimension_numbers = #tpu.dot_dimension_numbers<[1], [0], [0], [1], [0, 0, 1, 1], [], []>} : vector<8x16xbf16>, vector<16x32xbf16>, vector<8x32xf32> -> vector<8x32xf32>
    %83 = arith.maximumf %81, %82 : vector<8x32xf32>
    %84 = arith.truncf %83 : vector<8x32xf32> to vector<8x32xbf16>
    %c32 = arith.constant 32 : index
    %c0_69 = arith.constant 0 : index
    %85 = vector.load %arg35[%c32, %c0_69] : memref<122x32xbf16, #tpu.memory_space<vmem>>, vector<8x32xbf16>
    tpu.vector_store %arg35[%c32, %c0_69], %84 {strides = array<i32>} : memref<122x32xbf16, #tpu.memory_space<vmem>>, vector<8x32xbf16>,
    %86 = vector.extract_strided_slice %65 {offsets = [91, 0], sizes = [16, 32], strides = [1, 1]} : vector<324x32xf32> to vector<16x32xf32>
    %87 = vector.extract_strided_slice %65 {offsets = [109, 0], sizes = [16, 32], strides = [1, 1]} : vector<324x32xf32> to vector<16x32xf32>
    %88 = arith.maximumf %86, %87 : vector<16x32xf32>
    %89 = arith.truncf %88 : vector<16x32xf32> to vector<16x32xbf16>
    %cst_70 = arith.constant dense<0.000000e+00> : vector<8x32xf32>
    %90 = tpu.matmul %66, %89, %cst_70 {dimension_numbers = #tpu.dot_dimension_numbers<[1], [0], [0], [1], [0, 0, 1, 1], [], []>} : vector<8x16xbf16>, vector<16x32xbf16>, vector<8x32xf32> -> vector<8x32xf32>
    %cst_71 = arith.constant dense<0.000000e+00> : vector<8x32xf32>
    %91 = tpu.matmul %67, %89, %cst_71 {dimension_numbers = #tpu.dot_dimension_numbers<[1], [0], [0], [1], [0, 0, 1, 1], [], []>} : vector<8x16xbf16>, vector<16x32xbf16>, vector<8x32xf32> -> vector<8x32xf32>
    %92 = arith.maximumf %90, %91 : vector<8x32xf32>
    %93 = arith.truncf %92 : vector<8x32xf32> to vector<8x32xbf16>
    %c42 = arith.constant 42 : index
    %c0_72 = arith.constant 0 : index
    %94 = vector.load %arg35[%c42, %c0_72] : memref<122x32xbf16, #tpu.memory_space<vmem>>, vector<8x32xbf16>
    tpu.vector_store %arg35[%c42, %c0_72], %93 {strides = array<i32>} : memref<122x32xbf16, #tpu.memory_space<vmem>>, vector<8x32xbf16>,
    %95 = vector.extract_strided_slice %65 {offsets = [127, 0], sizes = [16, 32], strides = [1, 1]} : vector<324x32xf32> to vector<16x32xf32>
    %96 = vector.extract_strided_slice %65 {offsets = [145, 0], sizes = [16, 32], strides = [1, 1]} : vector<324x32xf32> to vector<16x32xf32>
    %97 = arith.maximumf %95, %96 : vector<16x32xf32>
    %98 = arith.truncf %97 : vector<16x32xf32> to vector<16x32xbf16>
    %cst_73 = arith.constant dense<0.000000e+00> : vector<8x32xf32>
    %99 = tpu.matmul %66, %98, %cst_73 {dimension_numbers = #tpu.dot_dimension_numbers<[1], [0], [0], [1], [0, 0, 1, 1], [], []>} : vector<8x16xbf16>, vector<16x32xbf16>, vector<8x32xf32> -> vector<8x32xf32>
    %cst_74 = arith.constant dense<0.000000e+00> : vector<8x32xf32>
    %100 = tpu.matmul %67, %98, %cst_74 {dimension_numbers = #tpu.dot_dimension_numbers<[1], [0], [0], [1], [0, 0, 1, 1], [], []>} : vector<8x16xbf16>, vector<16x32xbf16>, vector<8x32xf32> -> vector<8x32xf32>
    %101 = arith.maximumf %99, %100 : vector<8x32xf32>
    %102 = arith.truncf %101 : vector<8x32xf32> to vector<8x32xbf16>
    %c52 = arith.constant 52 : index
    %c0_75 = arith.constant 0 : index
    %103 = vector.load %arg35[%c52, %c0_75] : memref<122x32xbf16, #tpu.memory_space<vmem>>, vector<8x32xbf16>
    tpu.vector_store %arg35[%c52, %c0_75], %102 {strides = array<i32>} : memref<122x32xbf16, #tpu.memory_space<vmem>>, vector<8x32xbf16>,
    %104 = vector.extract_strided_slice %65 {offsets = [163, 0], sizes = [16, 32], strides = [1, 1]} : vector<324x32xf32> to vector<16x32xf32>
    %105 = vector.extract_strided_slice %65 {offsets = [181, 0], sizes = [16, 32], strides = [1, 1]} : vector<324x32xf32> to vector<16x32xf32>
    %106 = arith.maximumf %104, %105 : vector<16x32xf32>
    %107 = arith.truncf %106 : vector<16x32xf32> to vector<16x32xbf16>
    %cst_76 = arith.constant dense<0.000000e+00> : vector<8x32xf32>
    %108 = tpu.matmul %66, %107, %cst_76 {dimension_numbers = #tpu.dot_dimension_numbers<[1], [0], [0], [1], [0, 0, 1, 1], [], []>} : vector<8x16xbf16>, vector<16x32xbf16>, vector<8x32xf32> -> vector<8x32xf32>
    %cst_77 = arith.constant dense<0.000000e+00> : vector<8x32xf32>
    %109 = tpu.matmul %67, %107, %cst_77 {dimension_numbers = #tpu.dot_dimension_numbers<[1], [0], [0], [1], [0, 0, 1, 1], [], []>} : vector<8x16xbf16>, vector<16x32xbf16>, vector<8x32xf32> -> vector<8x32xf32>
    %110 = arith.maximumf %108, %109 : vector<8x32xf32>
    %111 = arith.truncf %110 : vector<8x32xf32> to vector<8x32xbf16>
    %c62 = arith.constant 62 : index
    %c0_78 = arith.constant 0 : index
    %112 = vector.load %arg35[%c62, %c0_78] : memref<122x32xbf16, #tpu.memory_space<vmem>>, vector<8x32xbf16>
    tpu.vector_store %arg35[%c62, %c0_78], %111 {strides = array<i32>} : memref<122x32xbf16, #tpu.memory_space<vmem>>, vector<8x32xbf16>,
    %113 = vector.extract_strided_slice %65 {offsets = [199, 0], sizes = [16, 32], strides = [1, 1]} : vector<324x32xf32> to vector<16x32xf32>
    %114 = vector.extract_strided_slice %65 {offsets = [217, 0], sizes = [16, 32], strides = [1, 1]} : vector<324x32xf32> to vector<16x32xf32>
    %115 = arith.maximumf %113, %114 : vector<16x32xf32>
    %116 = arith.truncf %115 : vector<16x32xf32> to vector<16x32xbf16>
    %cst_79 = arith.constant dense<0.000000e+00> : vector<8x32xf32>
    %117 = tpu.matmul %66, %116, %cst_79 {dimension_numbers = #tpu.dot_dimension_numbers<[1], [0], [0], [1], [0, 0, 1, 1], [], []>} : vector<8x16xbf16>, vector<16x32xbf16>, vector<8x32xf32> -> vector<8x32xf32>
    %cst_80 = arith.constant dense<0.000000e+00> : vector<8x32xf32>
    %118 = tpu.matmul %67, %116, %cst_80 {dimension_numbers = #tpu.dot_dimension_numbers<[1], [0], [0], [1], [0, 0, 1, 1], [], []>} : vector<8x16xbf16>, vector<16x32xbf16>, vector<8x32xf32> -> vector<8x32xf32>
    %119 = arith.maximumf %117, %118 : vector<8x32xf32>
    %120 = arith.truncf %119 : vector<8x32xf32> to vector<8x32xbf16>
    %c72 = arith.constant 72 : index
    %c0_81 = arith.constant 0 : index
    %121 = vector.load %arg35[%c72, %c0_81] : memref<122x32xbf16, #tpu.memory_space<vmem>>, vector<8x32xbf16>
    tpu.vector_store %arg35[%c72, %c0_81], %120 {strides = array<i32>} : memref<122x32xbf16, #tpu.memory_space<vmem>>, vector<8x32xbf16>,
    %122 = vector.extract_strided_slice %65 {offsets = [235, 0], sizes = [16, 32], strides = [1, 1]} : vector<324x32xf32> to vector<16x32xf32>
    %123 = vector.extract_strided_slice %65 {offsets = [253, 0], sizes = [16, 32], strides = [1, 1]} : vector<324x32xf32> to vector<16x32xf32>
    %124 = arith.maximumf %122, %123 : vector<16x32xf32>
    %125 = arith.truncf %124 : vector<16x32xf32> to vector<16x32xbf16>
    %cst_82 = arith.constant dense<0.000000e+00> : vector<8x32xf32>
    %126 = tpu.matmul %66, %125, %cst_82 {dimension_numbers = #tpu.dot_dimension_numbers<[1], [0], [0], [1], [0, 0, 1, 1], [], []>} : vector<8x16xbf16>, vector<16x32xbf16>, vector<8x32xf32> -> vector<8x32xf32>
    %cst_83 = arith.constant dense<0.000000e+00> : vector<8x32xf32>
    %127 = tpu.matmul %67, %125, %cst_83 {dimension_numbers = #tpu.dot_dimension_numbers<[1], [0], [0], [1], [0, 0, 1, 1], [], []>} : vector<8x16xbf16>, vector<16x32xbf16>, vector<8x32xf32> -> vector<8x32xf32>
    %128 = arith.maximumf %126, %127 : vector<8x32xf32>
    %129 = arith.truncf %128 : vector<8x32xf32> to vector<8x32xbf16>
    %c82 = arith.constant 82 : index
    %c0_84 = arith.constant 0 : index
    %130 = vector.load %arg35[%c82, %c0_84] : memref<122x32xbf16, #tpu.memory_space<vmem>>, vector<8x32xbf16>
    tpu.vector_store %arg35[%c82, %c0_84], %129 {strides = array<i32>} : memref<122x32xbf16, #tpu.memory_space<vmem>>, vector<8x32xbf16>,
    %131 = vector.extract_strided_slice %65 {offsets = [271, 0], sizes = [16, 32], strides = [1, 1]} : vector<324x32xf32> to vector<16x32xf32>
    %132 = vector.extract_strided_slice %65 {offsets = [289, 0], sizes = [16, 32], strides = [1, 1]} : vector<324x32xf32> to vector<16x32xf32>
    %133 = arith.maximumf %131, %132 : vector<16x32xf32>
    %134 = arith.truncf %133 : vector<16x32xf32> to vector<16x32xbf16>
    %cst_85 = arith.constant dense<0.000000e+00> : vector<8x32xf32>
    %135 = tpu.matmul %66, %134, %cst_85 {dimension_numbers = #tpu.dot_dimension_numbers<[1], [0], [0], [1], [0, 0, 1, 1], [], []>} : vector<8x16xbf16>, vector<16x32xbf16>, vector<8x32xf32> -> vector<8x32xf32>
    %cst_86 = arith.constant dense<0.000000e+00> : vector<8x32xf32>
    %136 = tpu.matmul %67, %134, %cst_86 {dimension_numbers = #tpu.dot_dimension_numbers<[1], [0], [0], [1], [0, 0, 1, 1], [], []>} : vector<8x16xbf16>, vector<16x32xbf16>, vector<8x32xf32> -> vector<8x32xf32>
    %137 = arith.maximumf %135, %136 : vector<8x32xf32>
    %138 = arith.truncf %137 : vector<8x32xf32> to vector<8x32xbf16>
    %c92 = arith.constant 92 : index
    %c0_87 = arith.constant 0 : index
    %139 = vector.load %arg35[%c92, %c0_87] : memref<122x32xbf16, #tpu.memory_space<vmem>>, vector<8x32xbf16>
    tpu.vector_store %arg35[%c92, %c0_87], %138 {strides = array<i32>} : memref<122x32xbf16, #tpu.memory_space<vmem>>, vector<8x32xbf16>,
    %cst_88 = arith.constant 0.000000e+00 : f32
    %140 = vector.broadcast %cst_88 : f32 to vector<100x16xf32>
    %c0_89 = arith.constant 0 : index
    %c0_90 = arith.constant 0 : index
    %141 = vector.load %arg35[%c0_89, %c0_90] : memref<122x32xbf16, #tpu.memory_space<vmem>>, vector<100x32xbf16>
    %c0_91 = arith.constant 0 : index
    %c0_92 = arith.constant 0 : index
    %c0_93 = arith.constant 0 : index
    %142 = vector.load %arg8[%c0_91, %c0_92, %c0_93] : memref<9x32x16xbf16, #tpu.memory_space<vmem>>, vector<1x32x16xbf16>
    %143 = vector.shape_cast %142 : vector<1x32x16xbf16> to vector<32x16xbf16>
    %cst_94 = arith.constant dense<0.000000e+00> : vector<100x16xf32>
    %144 = tpu.matmul %141, %143, %cst_94 {dimension_numbers = #tpu.dot_dimension_numbers<[1], [0], [0], [1], [0, 0, 1, 1], [], []>} : vector<100x32xbf16>, vector<32x16xbf16>, vector<100x16xf32> -> vector<100x16xf32>
    %145 = arith.addf %140, %144 : vector<100x16xf32>
    %c1_95 = arith.constant 1 : index
    %c0_96 = arith.constant 0 : index
    %146 = vector.load %arg35[%c1_95, %c0_96] : memref<122x32xbf16, #tpu.memory_space<vmem>>, vector<100x32xbf16>
    %c1_97 = arith.constant 1 : index
    %c0_98 = arith.constant 0 : index
    %c0_99 = arith.constant 0 : index
    %147 = vector.load %arg8[%c1_97, %c0_98, %c0_99] : memref<9x32x16xbf16, #tpu.memory_space<vmem>>, vector<1x32x16xbf16>
    %148 = vector.shape_cast %147 : vector<1x32x16xbf16> to vector<32x16xbf16>
    %cst_100 = arith.constant dense<0.000000e+00> : vector<100x16xf32>
    %149 = tpu.matmul %146, %148, %cst_100 {dimension_numbers = #tpu.dot_dimension_numbers<[1], [0], [0], [1], [0, 0, 1, 1], [], []>} : vector<100x32xbf16>, vector<32x16xbf16>, vector<100x16xf32> -> vector<100x16xf32>
    %150 = arith.addf %145, %149 : vector<100x16xf32>
    %c2_101 = arith.constant 2 : index
    %c0_102 = arith.constant 0 : index
    %151 = vector.load %arg35[%c2_101, %c0_102] : memref<122x32xbf16, #tpu.memory_space<vmem>>, vector<100x32xbf16>
    %c2_103 = arith.constant 2 : index
    %c0_104 = arith.constant 0 : index
    %c0_105 = arith.constant 0 : index
    %152 = vector.load %arg8[%c2_103, %c0_104, %c0_105] : memref<9x32x16xbf16, #tpu.memory_space<vmem>>, vector<1x32x16xbf16>
    %153 = vector.shape_cast %152 : vector<1x32x16xbf16> to vector<32x16xbf16>
    %cst_106 = arith.constant dense<0.000000e+00> : vector<100x16xf32>
    %154 = tpu.matmul %151, %153, %cst_106 {dimension_numbers = #tpu.dot_dimension_numbers<[1], [0], [0], [1], [0, 0, 1, 1], [], []>} : vector<100x32xbf16>, vector<32x16xbf16>, vector<100x16xf32> -> vector<100x16xf32>
    %155 = arith.addf %150, %154 : vector<100x16xf32>
    %c10 = arith.constant 10 : index
    %c0_107 = arith.constant 0 : index
    %156 = vector.load %arg35[%c10, %c0_107] : memref<122x32xbf16, #tpu.memory_space<vmem>>, vector<100x32xbf16>
    %c3_108 = arith.constant 3 : index
    %c0_109 = arith.constant 0 : index
    %c0_110 = arith.constant 0 : index
    %157 = vector.load %arg8[%c3_108, %c0_109, %c0_110] : memref<9x32x16xbf16, #tpu.memory_space<vmem>>, vector<1x32x16xbf16>
    %158 = vector.shape_cast %157 : vector<1x32x16xbf16> to vector<32x16xbf16>
    %cst_111 = arith.constant dense<0.000000e+00> : vector<100x16xf32>
    %159 = tpu.matmul %156, %158, %cst_111 {dimension_numbers = #tpu.dot_dimension_numbers<[1], [0], [0], [1], [0, 0, 1, 1], [], []>} : vector<100x32xbf16>, vector<32x16xbf16>, vector<100x16xf32> -> vector<100x16xf32>
    %160 = arith.addf %155, %159 : vector<100x16xf32>
    %c11 = arith.constant 11 : index
    %c0_112 = arith.constant 0 : index
    %161 = vector.load %arg35[%c11, %c0_112] : memref<122x32xbf16, #tpu.memory_space<vmem>>, vector<100x32xbf16>
    %c4_113 = arith.constant 4 : index
    %c0_114 = arith.constant 0 : index
    %c0_115 = arith.constant 0 : index
    %162 = vector.load %arg8[%c4_113, %c0_114, %c0_115] : memref<9x32x16xbf16, #tpu.memory_space<vmem>>, vector<1x32x16xbf16>
    %163 = vector.shape_cast %162 : vector<1x32x16xbf16> to vector<32x16xbf16>
    %cst_116 = arith.constant dense<0.000000e+00> : vector<100x16xf32>
    %164 = tpu.matmul %161, %163, %cst_116 {dimension_numbers = #tpu.dot_dimension_numbers<[1], [0], [0], [1], [0, 0, 1, 1], [], []>} : vector<100x32xbf16>, vector<32x16xbf16>, vector<100x16xf32> -> vector<100x16xf32>
    %165 = arith.addf %160, %164 : vector<100x16xf32>
    %c12 = arith.constant 12 : index
    %c0_117 = arith.constant 0 : index
    %166 = vector.load %arg35[%c12, %c0_117] : memref<122x32xbf16, #tpu.memory_space<vmem>>, vector<100x32xbf16>
    %c5_118 = arith.constant 5 : index
    %c0_119 = arith.constant 0 : index
    %c0_120 = arith.constant 0 : index
    %167 = vector.load %arg8[%c5_118, %c0_119, %c0_120] : memref<9x32x16xbf16, #tpu.memory_space<vmem>>, vector<1x32x16xbf16>
    %168 = vector.shape_cast %167 : vector<1x32x16xbf16> to vector<32x16xbf16>
    %cst_121 = arith.constant dense<0.000000e+00> : vector<100x16xf32>
    %169 = tpu.matmul %166, %168, %cst_121 {dimension_numbers = #tpu.dot_dimension_numbers<[1], [0], [0], [1], [0, 0, 1, 1], [], []>} : vector<100x32xbf16>, vector<32x16xbf16>, vector<100x16xf32> -> vector<100x16xf32>
    %170 = arith.addf %165, %169 : vector<100x16xf32>
    %c20_122 = arith.constant 20 : index
    %c0_123 = arith.constant 0 : index
    %171 = vector.load %arg35[%c20_122, %c0_123] : memref<122x32xbf16, #tpu.memory_space<vmem>>, vector<100x32xbf16>
    %c6_124 = arith.constant 6 : index
    %c0_125 = arith.constant 0 : index
    %c0_126 = arith.constant 0 : index
    %172 = vector.load %arg8[%c6_124, %c0_125, %c0_126] : memref<9x32x16xbf16, #tpu.memory_space<vmem>>, vector<1x32x16xbf16>
    %173 = vector.shape_cast %172 : vector<1x32x16xbf16> to vector<32x16xbf16>
    %cst_127 = arith.constant dense<0.000000e+00> : vector<100x16xf32>
    %174 = tpu.matmul %171, %173, %cst_127 {dimension_numbers = #tpu.dot_dimension_numbers<[1], [0], [0], [1], [0, 0, 1, 1], [], []>} : vector<100x32xbf16>, vector<32x16xbf16>, vector<100x16xf32> -> vector<100x16xf32>
    %175 = arith.addf %170, %174 : vector<100x16xf32>
    %c21 = arith.constant 21 : index
    %c0_128 = arith.constant 0 : index
    %176 = vector.load %arg35[%c21, %c0_128] : memref<122x32xbf16, #tpu.memory_space<vmem>>, vector<100x32xbf16>
    %c7_129 = arith.constant 7 : index
    %c0_130 = arith.constant 0 : index
    %c0_131 = arith.constant 0 : index
    %177 = vector.load %arg8[%c7_129, %c0_130, %c0_131] : memref<9x32x16xbf16, #tpu.memory_space<vmem>>, vector<1x32x16xbf16>
    %178 = vector.shape_cast %177 : vector<1x32x16xbf16> to vector<32x16xbf16>
    %cst_132 = arith.constant dense<0.000000e+00> : vector<100x16xf32>
    %179 = tpu.matmul %176, %178, %cst_132 {dimension_numbers = #tpu.dot_dimension_numbers<[1], [0], [0], [1], [0, 0, 1, 1], [], []>} : vector<100x32xbf16>, vector<32x16xbf16>, vector<100x16xf32> -> vector<100x16xf32>
    %180 = arith.addf %175, %179 : vector<100x16xf32>
    %c22_133 = arith.constant 22 : index
    %c0_134 = arith.constant 0 : index
    %181 = vector.load %arg35[%c22_133, %c0_134] : memref<122x32xbf16, #tpu.memory_space<vmem>>, vector<100x32xbf16>
    %c8_135 = arith.constant 8 : index
    %c0_136 = arith.constant 0 : index
    %c0_137 = arith.constant 0 : index
    %182 = vector.load %arg8[%c8_135, %c0_136, %c0_137] : memref<9x32x16xbf16, #tpu.memory_space<vmem>>, vector<1x32x16xbf16>
    %183 = vector.shape_cast %182 : vector<1x32x16xbf16> to vector<32x16xbf16>
    %cst_138 = arith.constant dense<0.000000e+00> : vector<100x16xf32>
    %184 = tpu.matmul %181, %183, %cst_138 {dimension_numbers = #tpu.dot_dimension_numbers<[1], [0], [0], [1], [0, 0, 1, 1], [], []>} : vector<100x32xbf16>, vector<32x16xbf16>, vector<100x16xf32> -> vector<100x16xf32>
    %185 = arith.addf %180, %184 : vector<100x16xf32>
    %c0_139 = arith.constant 0 : index
    %c0_140 = arith.constant 0 : index
    %186 = vector.load %arg9[%c0_139, %c0_140] : memref<1x16xf32, #tpu.memory_space<vmem>>, vector<1x16xf32>
    %187 = vector.broadcast %186 : vector<1x16xf32> to vector<100x16xf32>
    %188 = arith.addf %185, %187 : vector<100x16xf32>
    %cst_141 = arith.constant 0.000000e+00 : f32
    %189 = vector.broadcast %cst_141 : f32 to vector<100x16xf32>
    %190 = arith.maximumf %188, %189 : vector<100x16xf32>
    %c0_142 = arith.constant 0 : index
    %c0_143 = arith.constant 0 : index
    %191 = vector.load %arg2[%c0_142, %c0_143] : memref<8x16xbf16, #tpu.memory_space<vmem>>, vector<4x8xbf16>
    %c0_144 = arith.constant 0 : index
    %c0_145 = arith.constant 0 : index
    %192 = vector.load %arg3[%c0_144, %c0_145] : memref<8x16xbf16, #tpu.memory_space<vmem>>, vector<4x8xbf16>
    %193 = vector.extract_strided_slice %190 {offsets = [11, 0], sizes = [8, 16], strides = [1, 1]} : vector<100x16xf32> to vector<8x16xf32>
    %194 = vector.extract_strided_slice %190 {offsets = [21, 0], sizes = [8, 16], strides = [1, 1]} : vector<100x16xf32> to vector<8x16xf32>
    %195 = arith.maximumf %193, %194 : vector<8x16xf32>
    %196 = arith.truncf %195 : vector<8x16xf32> to vector<8x16xbf16>
    %cst_146 = arith.constant dense<0.000000e+00> : vector<4x16xf32>
    %197 = tpu.matmul %191, %196, %cst_146 {dimension_numbers = #tpu.dot_dimension_numbers<[1], [0], [0], [1], [0, 0, 1, 1], [], []>} : vector<4x8xbf16>, vector<8x16xbf16>, vector<4x16xf32> -> vector<4x16xf32>
    %cst_147 = arith.constant dense<0.000000e+00> : vector<4x16xf32>
    %198 = tpu.matmul %192, %196, %cst_147 {dimension_numbers = #tpu.dot_dimension_numbers<[1], [0], [0], [1], [0, 0, 1, 1], [], []>} : vector<4x8xbf16>, vector<8x16xbf16>, vector<4x16xf32> -> vector<4x16xf32>
    %199 = arith.maximumf %197, %198 : vector<4x16xf32>
    %200 = arith.truncf %199 : vector<4x16xf32> to vector<4x16xbf16>
    %c14 = arith.constant 14 : index
    %c0_148 = arith.constant 0 : index
    %201 = vector.load %arg36[%c14, %c0_148] : memref<50x32xbf16, #tpu.memory_space<vmem>>, vector<4x16xbf16>
    tpu.vector_store %arg36[%c14, %c0_148], %200 {strides = array<i32>} : memref<50x32xbf16, #tpu.memory_space<vmem>>, vector<4x16xbf16>,
    %202 = vector.extract_strided_slice %190 {offsets = [31, 0], sizes = [8, 16], strides = [1, 1]} : vector<100x16xf32> to vector<8x16xf32>
    %203 = vector.extract_strided_slice %190 {offsets = [41, 0], sizes = [8, 16], strides = [1, 1]} : vector<100x16xf32> to vector<8x16xf32>
    %204 = arith.maximumf %202, %203 : vector<8x16xf32>
    %205 = arith.truncf %204 : vector<8x16xf32> to vector<8x16xbf16>
    %cst_149 = arith.constant dense<0.000000e+00> : vector<4x16xf32>
    %206 = tpu.matmul %191, %205, %cst_149 {dimension_numbers = #tpu.dot_dimension_numbers<[1], [0], [0], [1], [0, 0, 1, 1], [], []>} : vector<4x8xbf16>, vector<8x16xbf16>, vector<4x16xf32> -> vector<4x16xf32>
    %cst_150 = arith.constant dense<0.000000e+00> : vector<4x16xf32>
    %207 = tpu.matmul %192, %205, %cst_150 {dimension_numbers = #tpu.dot_dimension_numbers<[1], [0], [0], [1], [0, 0, 1, 1], [], []>} : vector<4x8xbf16>, vector<8x16xbf16>, vector<4x16xf32> -> vector<4x16xf32>
    %208 = arith.maximumf %206, %207 : vector<4x16xf32>
    %209 = arith.truncf %208 : vector<4x16xf32> to vector<4x16xbf16>
    %c20_151 = arith.constant 20 : index
    %c0_152 = arith.constant 0 : index
    %210 = vector.load %arg36[%c20_151, %c0_152] : memref<50x32xbf16, #tpu.memory_space<vmem>>, vector<4x16xbf16>
    tpu.vector_store %arg36[%c20_151, %c0_152], %209 {strides = array<i32>} : memref<50x32xbf16, #tpu.memory_space<vmem>>, vector<4x16xbf16>,
    %211 = vector.extract_strided_slice %190 {offsets = [51, 0], sizes = [8, 16], strides = [1, 1]} : vector<100x16xf32> to vector<8x16xf32>
    %212 = vector.extract_strided_slice %190 {offsets = [61, 0], sizes = [8, 16], strides = [1, 1]} : vector<100x16xf32> to vector<8x16xf32>
    %213 = arith.maximumf %211, %212 : vector<8x16xf32>
    %214 = arith.truncf %213 : vector<8x16xf32> to vector<8x16xbf16>
    %cst_153 = arith.constant dense<0.000000e+00> : vector<4x16xf32>
    %215 = tpu.matmul %191, %214, %cst_153 {dimension_numbers = #tpu.dot_dimension_numbers<[1], [0], [0], [1], [0, 0, 1, 1], [], []>} : vector<4x8xbf16>, vector<8x16xbf16>, vector<4x16xf32> -> vector<4x16xf32>
    %cst_154 = arith.constant dense<0.000000e+00> : vector<4x16xf32>
    %216 = tpu.matmul %192, %214, %cst_154 {dimension_numbers = #tpu.dot_dimension_numbers<[1], [0], [0], [1], [0, 0, 1, 1], [], []>} : vector<4x8xbf16>, vector<8x16xbf16>, vector<4x16xf32> -> vector<4x16xf32>
    %217 = arith.maximumf %215, %216 : vector<4x16xf32>
    %218 = arith.truncf %217 : vector<4x16xf32> to vector<4x16xbf16>
    %c26 = arith.constant 26 : index
    %c0_155 = arith.constant 0 : index
    %219 = vector.load %arg36[%c26, %c0_155] : memref<50x32xbf16, #tpu.memory_space<vmem>>, vector<4x16xbf16>
    tpu.vector_store %arg36[%c26, %c0_155], %218 {strides = array<i32>} : memref<50x32xbf16, #tpu.memory_space<vmem>>, vector<4x16xbf16>,
    %220 = vector.extract_strided_slice %190 {offsets = [71, 0], sizes = [8, 16], strides = [1, 1]} : vector<100x16xf32> to vector<8x16xf32>
    %221 = vector.extract_strided_slice %190 {offsets = [81, 0], sizes = [8, 16], strides = [1, 1]} : vector<100x16xf32> to vector<8x16xf32>
    %222 = arith.maximumf %220, %221 : vector<8x16xf32>
    %223 = arith.truncf %222 : vector<8x16xf32> to vector<8x16xbf16>
    %cst_156 = arith.constant dense<0.000000e+00> : vector<4x16xf32>
    %224 = tpu.matmul %191, %223, %cst_156 {dimension_numbers = #tpu.dot_dimension_numbers<[1], [0], [0], [1], [0, 0, 1, 1], [], []>} : vector<4x8xbf16>, vector<8x16xbf16>, vector<4x16xf32> -> vector<4x16xf32>
    %cst_157 = arith.constant dense<0.000000e+00> : vector<4x16xf32>
    %225 = tpu.matmul %192, %223, %cst_157 {dimension_numbers = #tpu.dot_dimension_numbers<[1], [0], [0], [1], [0, 0, 1, 1], [], []>} : vector<4x8xbf16>, vector<8x16xbf16>, vector<4x16xf32> -> vector<4x16xf32>
    %226 = arith.maximumf %224, %225 : vector<4x16xf32>
    %227 = arith.truncf %226 : vector<4x16xf32> to vector<4x16xbf16>
    %c32_158 = arith.constant 32 : index
    %c0_159 = arith.constant 0 : index
    %228 = vector.load %arg36[%c32_158, %c0_159] : memref<50x32xbf16, #tpu.memory_space<vmem>>, vector<4x16xbf16>
    tpu.vector_store %arg36[%c32_158, %c0_159], %227 {strides = array<i32>} : memref<50x32xbf16, #tpu.memory_space<vmem>>, vector<4x16xbf16>,
    %c0_160 = arith.constant 0 : index
    %c0_161 = arith.constant 0 : index
    %229 = vector.load %arg4[%c0_160, %c0_161] : memref<36x1xf32, #tpu.memory_space<vmem>>, vector<36x1xf32>
    %c7_162 = arith.constant 7 : index
    %c0_163 = arith.constant 0 : index
    %230 = vector.load %arg36[%c7_162, %c0_163] : memref<50x32xbf16, #tpu.memory_space<vmem>>, vector<36x16xbf16>
    %c0_164 = arith.constant 0 : index
    %c0_165 = arith.constant 0 : index
    %231 = vector.load %arg10[%c0_164, %c0_165] : memref<16x16xbf16, #tpu.memory_space<vmem>>, vector<16x16xbf16>
    %cst_166 = arith.constant dense<0.000000e+00> : vector<36x16xf32>
    %232 = tpu.matmul %230, %231, %cst_166 {dimension_numbers = #tpu.dot_dimension_numbers<[1], [0], [0], [1], [0, 0, 1, 1], [], []>} : vector<36x16xbf16>, vector<16x16xbf16>, vector<36x16xf32> -> vector<36x16xf32>
    %c0_167 = arith.constant 0 : index
    %c0_168 = arith.constant 0 : index
    %233 = vector.load %arg11[%c0_167, %c0_168] : memref<1x16xf32, #tpu.memory_space<vmem>>, vector<1x16xf32>
    %234 = vector.broadcast %233 : vector<1x16xf32> to vector<36x16xf32>
    %235 = arith.addf %232, %234 : vector<36x16xf32>
    %cst_169 = arith.constant 0.000000e+00 : f32
    %236 = vector.broadcast %cst_169 : f32 to vector<36x16xf32>
    %237 = arith.maximumf %235, %236 : vector<36x16xf32>
    %238 = vector.broadcast %229 : vector<36x1xf32> to vector<36x16xf32>
    %239 = arith.mulf %237, %238 : vector<36x16xf32>
    %240 = arith.truncf %239 : vector<36x16xf32> to vector<36x16xbf16>
    %c7_170 = arith.constant 7 : index
    %c0_171 = arith.constant 0 : index
    %241 = vector.load %arg36[%c7_170, %c0_171] : memref<50x32xbf16, #tpu.memory_space<vmem>>, vector<36x16xbf16>
    tpu.vector_store %arg36[%c7_170, %c0_171], %240 {strides = array<i32>} : memref<50x32xbf16, #tpu.memory_space<vmem>>, vector<36x16xbf16>,
    %cst_172 = arith.constant 0.000000e+00 : f32
    %242 = vector.broadcast %cst_172 : f32 to vector<36x32xf32>
    %c0_173 = arith.constant 0 : index
    %c0_174 = arith.constant 0 : index
    %243 = vector.load %arg36[%c0_173, %c0_174] : memref<50x32xbf16, #tpu.memory_space<vmem>>, vector<36x16xbf16>
    %c0_175 = arith.constant 0 : index
    %c0_176 = arith.constant 0 : index
    %c0_177 = arith.constant 0 : index
    %244 = vector.load %arg12[%c0_175, %c0_176, %c0_177] : memref<9x16x32xbf16, #tpu.memory_space<vmem>>, vector<1x16x32xbf16>
    %245 = vector.shape_cast %244 : vector<1x16x32xbf16> to vector<16x32xbf16>
    %cst_178 = arith.constant dense<0.000000e+00> : vector<36x32xf32>
    %246 = tpu.matmul %243, %245, %cst_178 {dimension_numbers = #tpu.dot_dimension_numbers<[1], [0], [0], [1], [0, 0, 1, 1], [], []>} : vector<36x16xbf16>, vector<16x32xbf16>, vector<36x32xf32> -> vector<36x32xf32>
    %247 = arith.addf %242, %246 : vector<36x32xf32>
    %c1_179 = arith.constant 1 : index
    %c0_180 = arith.constant 0 : index
    %248 = vector.load %arg36[%c1_179, %c0_180] : memref<50x32xbf16, #tpu.memory_space<vmem>>, vector<36x16xbf16>
    %c1_181 = arith.constant 1 : index
    %c0_182 = arith.constant 0 : index
    %c0_183 = arith.constant 0 : index
    %249 = vector.load %arg12[%c1_181, %c0_182, %c0_183] : memref<9x16x32xbf16, #tpu.memory_space<vmem>>, vector<1x16x32xbf16>
    %250 = vector.shape_cast %249 : vector<1x16x32xbf16> to vector<16x32xbf16>
    %cst_184 = arith.constant dense<0.000000e+00> : vector<36x32xf32>
    %251 = tpu.matmul %248, %250, %cst_184 {dimension_numbers = #tpu.dot_dimension_numbers<[1], [0], [0], [1], [0, 0, 1, 1], [], []>} : vector<36x16xbf16>, vector<16x32xbf16>, vector<36x32xf32> -> vector<36x32xf32>
    %252 = arith.addf %247, %251 : vector<36x32xf32>
    %c2_185 = arith.constant 2 : index
    %c0_186 = arith.constant 0 : index
    %253 = vector.load %arg36[%c2_185, %c0_186] : memref<50x32xbf16, #tpu.memory_space<vmem>>, vector<36x16xbf16>
    %c2_187 = arith.constant 2 : index
    %c0_188 = arith.constant 0 : index
    %c0_189 = arith.constant 0 : index
    %254 = vector.load %arg12[%c2_187, %c0_188, %c0_189] : memref<9x16x32xbf16, #tpu.memory_space<vmem>>, vector<1x16x32xbf16>
    %255 = vector.shape_cast %254 : vector<1x16x32xbf16> to vector<16x32xbf16>
    %cst_190 = arith.constant dense<0.000000e+00> : vector<36x32xf32>
    %256 = tpu.matmul %253, %255, %cst_190 {dimension_numbers = #tpu.dot_dimension_numbers<[1], [0], [0], [1], [0, 0, 1, 1], [], []>} : vector<36x16xbf16>, vector<16x32xbf16>, vector<36x32xf32> -> vector<36x32xf32>
    %257 = arith.addf %252, %256 : vector<36x32xf32>
    %c6_191 = arith.constant 6 : index
    %c0_192 = arith.constant 0 : index
    %258 = vector.load %arg36[%c6_191, %c0_192] : memref<50x32xbf16, #tpu.memory_space<vmem>>, vector<36x16xbf16>
    %c3_193 = arith.constant 3 : index
    %c0_194 = arith.constant 0 : index
    %c0_195 = arith.constant 0 : index
    %259 = vector.load %arg12[%c3_193, %c0_194, %c0_195] : memref<9x16x32xbf16, #tpu.memory_space<vmem>>, vector<1x16x32xbf16>
    %260 = vector.shape_cast %259 : vector<1x16x32xbf16> to vector<16x32xbf16>
    %cst_196 = arith.constant dense<0.000000e+00> : vector<36x32xf32>
    %261 = tpu.matmul %258, %260, %cst_196 {dimension_numbers = #tpu.dot_dimension_numbers<[1], [0], [0], [1], [0, 0, 1, 1], [], []>} : vector<36x16xbf16>, vector<16x32xbf16>, vector<36x32xf32> -> vector<36x32xf32>
    %262 = arith.addf %257, %261 : vector<36x32xf32>
    %c7_197 = arith.constant 7 : index
    %c0_198 = arith.constant 0 : index
    %263 = vector.load %arg36[%c7_197, %c0_198] : memref<50x32xbf16, #tpu.memory_space<vmem>>, vector<36x16xbf16>
    %c4_199 = arith.constant 4 : index
    %c0_200 = arith.constant 0 : index
    %c0_201 = arith.constant 0 : index
    %264 = vector.load %arg12[%c4_199, %c0_200, %c0_201] : memref<9x16x32xbf16, #tpu.memory_space<vmem>>, vector<1x16x32xbf16>
    %265 = vector.shape_cast %264 : vector<1x16x32xbf16> to vector<16x32xbf16>
    %cst_202 = arith.constant dense<0.000000e+00> : vector<36x32xf32>
    %266 = tpu.matmul %263, %265, %cst_202 {dimension_numbers = #tpu.dot_dimension_numbers<[1], [0], [0], [1], [0, 0, 1, 1], [], []>} : vector<36x16xbf16>, vector<16x32xbf16>, vector<36x32xf32> -> vector<36x32xf32>
    %267 = arith.addf %262, %266 : vector<36x32xf32>
    %c8_203 = arith.constant 8 : index
    %c0_204 = arith.constant 0 : index
    %268 = vector.load %arg36[%c8_203, %c0_204] : memref<50x32xbf16, #tpu.memory_space<vmem>>, vector<36x16xbf16>
    %c5_205 = arith.constant 5 : index
    %c0_206 = arith.constant 0 : index
    %c0_207 = arith.constant 0 : index
    %269 = vector.load %arg12[%c5_205, %c0_206, %c0_207] : memref<9x16x32xbf16, #tpu.memory_space<vmem>>, vector<1x16x32xbf16>
    %270 = vector.shape_cast %269 : vector<1x16x32xbf16> to vector<16x32xbf16>
    %cst_208 = arith.constant dense<0.000000e+00> : vector<36x32xf32>
    %271 = tpu.matmul %268, %270, %cst_208 {dimension_numbers = #tpu.dot_dimension_numbers<[1], [0], [0], [1], [0, 0, 1, 1], [], []>} : vector<36x16xbf16>, vector<16x32xbf16>, vector<36x32xf32> -> vector<36x32xf32>
    %272 = arith.addf %267, %271 : vector<36x32xf32>
    %c12_209 = arith.constant 12 : index
    %c0_210 = arith.constant 0 : index
    %273 = vector.load %arg36[%c12_209, %c0_210] : memref<50x32xbf16, #tpu.memory_space<vmem>>, vector<36x16xbf16>
    %c6_211 = arith.constant 6 : index
    %c0_212 = arith.constant 0 : index
    %c0_213 = arith.constant 0 : index
    %274 = vector.load %arg12[%c6_211, %c0_212, %c0_213] : memref<9x16x32xbf16, #tpu.memory_space<vmem>>, vector<1x16x32xbf16>
    %275 = vector.shape_cast %274 : vector<1x16x32xbf16> to vector<16x32xbf16>
    %cst_214 = arith.constant dense<0.000000e+00> : vector<36x32xf32>
    %276 = tpu.matmul %273, %275, %cst_214 {dimension_numbers = #tpu.dot_dimension_numbers<[1], [0], [0], [1], [0, 0, 1, 1], [], []>} : vector<36x16xbf16>, vector<16x32xbf16>, vector<36x32xf32> -> vector<36x32xf32>
    %277 = arith.addf %272, %276 : vector<36x32xf32>
    %c13 = arith.constant 13 : index
    %c0_215 = arith.constant 0 : index
    %278 = vector.load %arg36[%c13, %c0_215] : memref<50x32xbf16, #tpu.memory_space<vmem>>, vector<36x16xbf16>
    %c7_216 = arith.constant 7 : index
    %c0_217 = arith.constant 0 : index
    %c0_218 = arith.constant 0 : index
    %279 = vector.load %arg12[%c7_216, %c0_217, %c0_218] : memref<9x16x32xbf16, #tpu.memory_space<vmem>>, vector<1x16x32xbf16>
    %280 = vector.shape_cast %279 : vector<1x16x32xbf16> to vector<16x32xbf16>
    %cst_219 = arith.constant dense<0.000000e+00> : vector<36x32xf32>
    %281 = tpu.matmul %278, %280, %cst_219 {dimension_numbers = #tpu.dot_dimension_numbers<[1], [0], [0], [1], [0, 0, 1, 1], [], []>} : vector<36x16xbf16>, vector<16x32xbf16>, vector<36x32xf32> -> vector<36x32xf32>
    %282 = arith.addf %277, %281 : vector<36x32xf32>
    %c14_220 = arith.constant 14 : index
    %c0_221 = arith.constant 0 : index
    %283 = vector.load %arg36[%c14_220, %c0_221] : memref<50x32xbf16, #tpu.memory_space<vmem>>, vector<36x16xbf16>
    %c8_222 = arith.constant 8 : index
    %c0_223 = arith.constant 0 : index
    %c0_224 = arith.constant 0 : index
    %284 = vector.load %arg12[%c8_222, %c0_223, %c0_224] : memref<9x16x32xbf16, #tpu.memory_space<vmem>>, vector<1x16x32xbf16>
    %285 = vector.shape_cast %284 : vector<1x16x32xbf16> to vector<16x32xbf16>
    %cst_225 = arith.constant dense<0.000000e+00> : vector<36x32xf32>
    %286 = tpu.matmul %283, %285, %cst_225 {dimension_numbers = #tpu.dot_dimension_numbers<[1], [0], [0], [1], [0, 0, 1, 1], [], []>} : vector<36x16xbf16>, vector<16x32xbf16>, vector<36x32xf32> -> vector<36x32xf32>
    %287 = arith.addf %282, %286 : vector<36x32xf32>
    %c0_226 = arith.constant 0 : index
    %c0_227 = arith.constant 0 : index
    %288 = vector.load %arg13[%c0_226, %c0_227] : memref<1x32xf32, #tpu.memory_space<vmem>>, vector<1x32xf32>
    %289 = vector.broadcast %288 : vector<1x32xf32> to vector<36x32xf32>
    %290 = arith.addf %287, %289 : vector<36x32xf32>
    %cst_228 = arith.constant 0.000000e+00 : f32
    %291 = vector.broadcast %cst_228 : f32 to vector<36x32xf32>
    %292 = arith.maximumf %290, %291 : vector<36x32xf32>
    %293 = vector.broadcast %229 : vector<36x1xf32> to vector<36x32xf32>
    %294 = arith.mulf %292, %293 : vector<36x32xf32>
    %295 = arith.truncf %294 : vector<36x32xf32> to vector<36x32xbf16>
    %c7_229 = arith.constant 7 : index
    %c0_230 = arith.constant 0 : index
    %296 = vector.load %arg36[%c7_229, %c0_230] : memref<50x32xbf16, #tpu.memory_space<vmem>>, vector<36x32xbf16>
    tpu.vector_store %arg36[%c7_229, %c0_230], %295 {strides = array<i32>} : memref<50x32xbf16, #tpu.memory_space<vmem>>, vector<36x32xbf16>,
    %c7_231 = arith.constant 7 : index
    %c0_232 = arith.constant 0 : index
    %297 = vector.load %arg36[%c7_231, %c0_232] : memref<50x32xbf16, #tpu.memory_space<vmem>>, vector<36x32xbf16>
    %c0_233 = arith.constant 0 : index
    %c0_234 = arith.constant 0 : index
    %298 = vector.load %arg14[%c0_233, %c0_234] : memref<32x32xbf16, #tpu.memory_space<vmem>>, vector<32x32xbf16>
    %cst_235 = arith.constant dense<0.000000e+00> : vector<36x32xf32>
    %299 = tpu.matmul %297, %298, %cst_235 {dimension_numbers = #tpu.dot_dimension_numbers<[1], [0], [0], [1], [0, 0, 1, 1], [], []>} : vector<36x32xbf16>, vector<32x32xbf16>, vector<36x32xf32> -> vector<36x32xf32>
    %c0_236 = arith.constant 0 : index
    %c0_237 = arith.constant 0 : index
    %300 = vector.load %arg15[%c0_236, %c0_237] : memref<1x32xf32, #tpu.memory_space<vmem>>, vector<1x32xf32>
    %301 = vector.broadcast %300 : vector<1x32xf32> to vector<36x32xf32>
    %302 = arith.addf %299, %301 : vector<36x32xf32>
    %cst_238 = arith.constant 0.000000e+00 : f32
    %303 = vector.broadcast %cst_238 : f32 to vector<36x32xf32>
    %304 = arith.maximumf %302, %303 : vector<36x32xf32>
    %305 = vector.broadcast %229 : vector<36x1xf32> to vector<36x32xf32>
    %306 = arith.mulf %304, %305 : vector<36x32xf32>
    %307 = arith.truncf %306 : vector<36x32xf32> to vector<36x32xbf16>
    %c7_239 = arith.constant 7 : index
    %c0_240 = arith.constant 0 : index
    %308 = vector.load %arg36[%c7_239, %c0_240] : memref<50x32xbf16, #tpu.memory_space<vmem>>, vector<36x32xbf16>
    tpu.vector_store %arg36[%c7_239, %c0_240], %307 {strides = array<i32>} : memref<50x32xbf16, #tpu.memory_space<vmem>>, vector<36x32xbf16>,
    %cst_241 = arith.constant 0.000000e+00 : f32
    %309 = vector.broadcast %cst_241 : f32 to vector<36x64xf32>
    %c0_242 = arith.constant 0 : index
    %c0_243 = arith.constant 0 : index
    %310 = vector.load %arg36[%c0_242, %c0_243] : memref<50x32xbf16, #tpu.memory_space<vmem>>, vector<36x32xbf16>
    %c0_244 = arith.constant 0 : index
    %c0_245 = arith.constant 0 : index
    %c0_246 = arith.constant 0 : index
    %311 = vector.load %arg16[%c0_244, %c0_245, %c0_246] : memref<9x32x64xbf16, #tpu.memory_space<vmem>>, vector<1x32x64xbf16>
    %312 = vector.shape_cast %311 : vector<1x32x64xbf16> to vector<32x64xbf16>
    %cst_247 = arith.constant dense<0.000000e+00> : vector<36x64xf32>
    %313 = tpu.matmul %310, %312, %cst_247 {dimension_numbers = #tpu.dot_dimension_numbers<[1], [0], [0], [1], [0, 0, 1, 1], [], []>} : vector<36x32xbf16>, vector<32x64xbf16>, vector<36x64xf32> -> vector<36x64xf32>
    %314 = arith.addf %309, %313 : vector<36x64xf32>
    %c1_248 = arith.constant 1 : index
    %c0_249 = arith.constant 0 : index
    %315 = vector.load %arg36[%c1_248, %c0_249] : memref<50x32xbf16, #tpu.memory_space<vmem>>, vector<36x32xbf16>
    %c1_250 = arith.constant 1 : index
    %c0_251 = arith.constant 0 : index
    %c0_252 = arith.constant 0 : index
    %316 = vector.load %arg16[%c1_250, %c0_251, %c0_252] : memref<9x32x64xbf16, #tpu.memory_space<vmem>>, vector<1x32x64xbf16>
    %317 = vector.shape_cast %316 : vector<1x32x64xbf16> to vector<32x64xbf16>
    %cst_253 = arith.constant dense<0.000000e+00> : vector<36x64xf32>
    %318 = tpu.matmul %315, %317, %cst_253 {dimension_numbers = #tpu.dot_dimension_numbers<[1], [0], [0], [1], [0, 0, 1, 1], [], []>} : vector<36x32xbf16>, vector<32x64xbf16>, vector<36x64xf32> -> vector<36x64xf32>
    %319 = arith.addf %314, %318 : vector<36x64xf32>
    %c2_254 = arith.constant 2 : index
    %c0_255 = arith.constant 0 : index
    %320 = vector.load %arg36[%c2_254, %c0_255] : memref<50x32xbf16, #tpu.memory_space<vmem>>, vector<36x32xbf16>
    %c2_256 = arith.constant 2 : index
    %c0_257 = arith.constant 0 : index
    %c0_258 = arith.constant 0 : index
    %321 = vector.load %arg16[%c2_256, %c0_257, %c0_258] : memref<9x32x64xbf16, #tpu.memory_space<vmem>>, vector<1x32x64xbf16>
    %322 = vector.shape_cast %321 : vector<1x32x64xbf16> to vector<32x64xbf16>
    %cst_259 = arith.constant dense<0.000000e+00> : vector<36x64xf32>
    %323 = tpu.matmul %320, %322, %cst_259 {dimension_numbers = #tpu.dot_dimension_numbers<[1], [0], [0], [1], [0, 0, 1, 1], [], []>} : vector<36x32xbf16>, vector<32x64xbf16>, vector<36x64xf32> -> vector<36x64xf32>
    %324 = arith.addf %319, %323 : vector<36x64xf32>
    %c6_260 = arith.constant 6 : index
    %c0_261 = arith.constant 0 : index
    %325 = vector.load %arg36[%c6_260, %c0_261] : memref<50x32xbf16, #tpu.memory_space<vmem>>, vector<36x32xbf16>
    %c3_262 = arith.constant 3 : index
    %c0_263 = arith.constant 0 : index
    %c0_264 = arith.constant 0 : index
    %326 = vector.load %arg16[%c3_262, %c0_263, %c0_264] : memref<9x32x64xbf16, #tpu.memory_space<vmem>>, vector<1x32x64xbf16>
    %327 = vector.shape_cast %326 : vector<1x32x64xbf16> to vector<32x64xbf16>
    %cst_265 = arith.constant dense<0.000000e+00> : vector<36x64xf32>
    %328 = tpu.matmul %325, %327, %cst_265 {dimension_numbers = #tpu.dot_dimension_numbers<[1], [0], [0], [1], [0, 0, 1, 1], [], []>} : vector<36x32xbf16>, vector<32x64xbf16>, vector<36x64xf32> -> vector<36x64xf32>
    %329 = arith.addf %324, %328 : vector<36x64xf32>
    %c7_266 = arith.constant 7 : index
    %c0_267 = arith.constant 0 : index
    %330 = vector.load %arg36[%c7_266, %c0_267] : memref<50x32xbf16, #tpu.memory_space<vmem>>, vector<36x32xbf16>
    %c4_268 = arith.constant 4 : index
    %c0_269 = arith.constant 0 : index
    %c0_270 = arith.constant 0 : index
    %331 = vector.load %arg16[%c4_268, %c0_269, %c0_270] : memref<9x32x64xbf16, #tpu.memory_space<vmem>>, vector<1x32x64xbf16>
    %332 = vector.shape_cast %331 : vector<1x32x64xbf16> to vector<32x64xbf16>
    %cst_271 = arith.constant dense<0.000000e+00> : vector<36x64xf32>
    %333 = tpu.matmul %330, %332, %cst_271 {dimension_numbers = #tpu.dot_dimension_numbers<[1], [0], [0], [1], [0, 0, 1, 1], [], []>} : vector<36x32xbf16>, vector<32x64xbf16>, vector<36x64xf32> -> vector<36x64xf32>
    %334 = arith.addf %329, %333 : vector<36x64xf32>
    %c8_272 = arith.constant 8 : index
    %c0_273 = arith.constant 0 : index
    %335 = vector.load %arg36[%c8_272, %c0_273] : memref<50x32xbf16, #tpu.memory_space<vmem>>, vector<36x32xbf16>
    %c5_274 = arith.constant 5 : index
    %c0_275 = arith.constant 0 : index
    %c0_276 = arith.constant 0 : index
    %336 = vector.load %arg16[%c5_274, %c0_275, %c0_276] : memref<9x32x64xbf16, #tpu.memory_space<vmem>>, vector<1x32x64xbf16>
    %337 = vector.shape_cast %336 : vector<1x32x64xbf16> to vector<32x64xbf16>
    %cst_277 = arith.constant dense<0.000000e+00> : vector<36x64xf32>
    %338 = tpu.matmul %335, %337, %cst_277 {dimension_numbers = #tpu.dot_dimension_numbers<[1], [0], [0], [1], [0, 0, 1, 1], [], []>} : vector<36x32xbf16>, vector<32x64xbf16>, vector<36x64xf32> -> vector<36x64xf32>
    %339 = arith.addf %334, %338 : vector<36x64xf32>
    %c12_278 = arith.constant 12 : index
    %c0_279 = arith.constant 0 : index
    %340 = vector.load %arg36[%c12_278, %c0_279] : memref<50x32xbf16, #tpu.memory_space<vmem>>, vector<36x32xbf16>
    %c6_280 = arith.constant 6 : index
    %c0_281 = arith.constant 0 : index
    %c0_282 = arith.constant 0 : index
    %341 = vector.load %arg16[%c6_280, %c0_281, %c0_282] : memref<9x32x64xbf16, #tpu.memory_space<vmem>>, vector<1x32x64xbf16>
    %342 = vector.shape_cast %341 : vector<1x32x64xbf16> to vector<32x64xbf16>
    %cst_283 = arith.constant dense<0.000000e+00> : vector<36x64xf32>
    %343 = tpu.matmul %340, %342, %cst_283 {dimension_numbers = #tpu.dot_dimension_numbers<[1], [0], [0], [1], [0, 0, 1, 1], [], []>} : vector<36x32xbf16>, vector<32x64xbf16>, vector<36x64xf32> -> vector<36x64xf32>
    %344 = arith.addf %339, %343 : vector<36x64xf32>
    %c13_284 = arith.constant 13 : index
    %c0_285 = arith.constant 0 : index
    %345 = vector.load %arg36[%c13_284, %c0_285] : memref<50x32xbf16, #tpu.memory_space<vmem>>, vector<36x32xbf16>
    %c7_286 = arith.constant 7 : index
    %c0_287 = arith.constant 0 : index
    %c0_288 = arith.constant 0 : index
    %346 = vector.load %arg16[%c7_286, %c0_287, %c0_288] : memref<9x32x64xbf16, #tpu.memory_space<vmem>>, vector<1x32x64xbf16>
    %347 = vector.shape_cast %346 : vector<1x32x64xbf16> to vector<32x64xbf16>
    %cst_289 = arith.constant dense<0.000000e+00> : vector<36x64xf32>
    %348 = tpu.matmul %345, %347, %cst_289 {dimension_numbers = #tpu.dot_dimension_numbers<[1], [0], [0], [1], [0, 0, 1, 1], [], []>} : vector<36x32xbf16>, vector<32x64xbf16>, vector<36x64xf32> -> vector<36x64xf32>
    %349 = arith.addf %344, %348 : vector<36x64xf32>
    %c14_290 = arith.constant 14 : index
    %c0_291 = arith.constant 0 : index
    %350 = vector.load %arg36[%c14_290, %c0_291] : memref<50x32xbf16, #tpu.memory_space<vmem>>, vector<36x32xbf16>
    %c8_292 = arith.constant 8 : index
    %c0_293 = arith.constant 0 : index
    %c0_294 = arith.constant 0 : index
    %351 = vector.load %arg16[%c8_292, %c0_293, %c0_294] : memref<9x32x64xbf16, #tpu.memory_space<vmem>>, vector<1x32x64xbf16>
    %352 = vector.shape_cast %351 : vector<1x32x64xbf16> to vector<32x64xbf16>
    %cst_295 = arith.constant dense<0.000000e+00> : vector<36x64xf32>
    %353 = tpu.matmul %350, %352, %cst_295 {dimension_numbers = #tpu.dot_dimension_numbers<[1], [0], [0], [1], [0, 0, 1, 1], [], []>} : vector<36x32xbf16>, vector<32x64xbf16>, vector<36x64xf32> -> vector<36x64xf32>
    %354 = arith.addf %349, %353 : vector<36x64xf32>
    %c0_296 = arith.constant 0 : index
    %c0_297 = arith.constant 0 : index
    %355 = vector.load %arg17[%c0_296, %c0_297] : memref<1x64xf32, #tpu.memory_space<vmem>>, vector<1x64xf32>
    %356 = vector.broadcast %355 : vector<1x64xf32> to vector<36x64xf32>
    %357 = arith.addf %354, %356 : vector<36x64xf32>
    %cst_298 = arith.constant 0.000000e+00 : f32
    %358 = vector.broadcast %cst_298 : f32 to vector<36x64xf32>
    %359 = arith.maximumf %357, %358 : vector<36x64xf32>
    %c0_299 = arith.constant 0 : index
    %c0_300 = arith.constant 0 : index
    %360 = vector.load %arg2[%c0_299, %c0_300] : memref<8x16xbf16, #tpu.memory_space<vmem>>, vector<2x4xbf16>
    %c0_301 = arith.constant 0 : index
    %c0_302 = arith.constant 0 : index
    %361 = vector.load %arg3[%c0_301, %c0_302] : memref<8x16xbf16, #tpu.memory_space<vmem>>, vector<2x4xbf16>
    %362 = vector.extract_strided_slice %359 {offsets = [7, 0], sizes = [4, 64], strides = [1, 1]} : vector<36x64xf32> to vector<4x64xf32>
    %363 = vector.extract_strided_slice %359 {offsets = [13, 0], sizes = [4, 64], strides = [1, 1]} : vector<36x64xf32> to vector<4x64xf32>
    %364 = arith.maximumf %362, %363 : vector<4x64xf32>
    %365 = arith.truncf %364 : vector<4x64xf32> to vector<4x64xbf16>
    %cst_303 = arith.constant dense<0.000000e+00> : vector<2x64xf32>
    %366 = tpu.matmul %360, %365, %cst_303 {dimension_numbers = #tpu.dot_dimension_numbers<[1], [0], [0], [1], [0, 0, 1, 1], [], []>} : vector<2x4xbf16>, vector<4x64xbf16>, vector<2x64xf32> -> vector<2x64xf32>
    %cst_304 = arith.constant dense<0.000000e+00> : vector<2x64xf32>
    %367 = tpu.matmul %361, %365, %cst_304 {dimension_numbers = #tpu.dot_dimension_numbers<[1], [0], [0], [1], [0, 0, 1, 1], [], []>} : vector<2x4xbf16>, vector<4x64xbf16>, vector<2x64xf32> -> vector<2x64xf32>
    %368 = arith.maximumf %366, %367 : vector<2x64xf32>
    %369 = arith.truncf %368 : vector<2x64xf32> to vector<2x64xbf16>
    %c10_305 = arith.constant 10 : index
    %c0_306 = arith.constant 0 : index
    %370 = vector.load %arg37[%c10_305, %c0_306] : memref<26x64xbf16, #tpu.memory_space<vmem>>, vector<2x64xbf16>
    tpu.vector_store %arg37[%c10_305, %c0_306], %369 {strides = array<i32>} : memref<26x64xbf16, #tpu.memory_space<vmem>>, vector<2x64xbf16>,
    %371 = vector.extract_strided_slice %359 {offsets = [19, 0], sizes = [4, 64], strides = [1, 1]} : vector<36x64xf32> to vector<4x64xf32>
    %372 = vector.extract_strided_slice %359 {offsets = [25, 0], sizes = [4, 64], strides = [1, 1]} : vector<36x64xf32> to vector<4x64xf32>
    %373 = arith.maximumf %371, %372 : vector<4x64xf32>
    %374 = arith.truncf %373 : vector<4x64xf32> to vector<4x64xbf16>
    %cst_307 = arith.constant dense<0.000000e+00> : vector<2x64xf32>
    %375 = tpu.matmul %360, %374, %cst_307 {dimension_numbers = #tpu.dot_dimension_numbers<[1], [0], [0], [1], [0, 0, 1, 1], [], []>} : vector<2x4xbf16>, vector<4x64xbf16>, vector<2x64xf32> -> vector<2x64xf32>
    %cst_308 = arith.constant dense<0.000000e+00> : vector<2x64xf32>
    %376 = tpu.matmul %361, %374, %cst_308 {dimension_numbers = #tpu.dot_dimension_numbers<[1], [0], [0], [1], [0, 0, 1, 1], [], []>} : vector<2x4xbf16>, vector<4x64xbf16>, vector<2x64xf32> -> vector<2x64xf32>
    %377 = arith.maximumf %375, %376 : vector<2x64xf32>
    %378 = arith.truncf %377 : vector<2x64xf32> to vector<2x64xbf16>
    %c14_309 = arith.constant 14 : index
    %c0_310 = arith.constant 0 : index
    %379 = vector.load %arg37[%c14_309, %c0_310] : memref<26x64xbf16, #tpu.memory_space<vmem>>, vector<2x64xbf16>
    tpu.vector_store %arg37[%c14_309, %c0_310], %378 {strides = array<i32>} : memref<26x64xbf16, #tpu.memory_space<vmem>>, vector<2x64xbf16>,
    %c0_311 = arith.constant 0 : index
    %c0_312 = arith.constant 0 : index
    %380 = vector.load %arg5[%c0_311, %c0_312] : memref<16x1xf32, #tpu.memory_space<vmem>>, vector<16x1xf32>
    %c5_313 = arith.constant 5 : index
    %c0_314 = arith.constant 0 : index
    %381 = vector.load %arg37[%c5_313, %c0_314] : memref<26x64xbf16, #tpu.memory_space<vmem>>, vector<16x64xbf16>
    %c0_315 = arith.constant 0 : index
    %c0_316 = arith.constant 0 : index
    %382 = vector.load %arg18[%c0_315, %c0_316] : memref<64x32xbf16, #tpu.memory_space<vmem>>, vector<64x32xbf16>
    %cst_317 = arith.constant dense<0.000000e+00> : vector<16x32xf32>
    %383 = tpu.matmul %381, %382, %cst_317 {dimension_numbers = #tpu.dot_dimension_numbers<[1], [0], [0], [1], [0, 0, 1, 1], [], []>} : vector<16x64xbf16>, vector<64x32xbf16>, vector<16x32xf32> -> vector<16x32xf32>
    %c0_318 = arith.constant 0 : index
    %c0_319 = arith.constant 0 : index
    %384 = vector.load %arg19[%c0_318, %c0_319] : memref<1x32xf32, #tpu.memory_space<vmem>>, vector<1x32xf32>
    %385 = vector.broadcast %384 : vector<1x32xf32> to vector<16x32xf32>
    %386 = arith.addf %383, %385 : vector<16x32xf32>
    %cst_320 = arith.constant 0.000000e+00 : f32
    %387 = vector.broadcast %cst_320 : f32 to vector<16x32xf32>
    %388 = arith.maximumf %386, %387 : vector<16x32xf32>
    %389 = vector.broadcast %380 : vector<16x1xf32> to vector<16x32xf32>
    %390 = arith.mulf %388, %389 : vector<16x32xf32>
    %391 = arith.truncf %390 : vector<16x32xf32> to vector<16x32xbf16>
    %c5_321 = arith.constant 5 : index
    %c0_322 = arith.constant 0 : index
    %392 = vector.load %arg37[%c5_321, %c0_322] : memref<26x64xbf16, #tpu.memory_space<vmem>>, vector<16x32xbf16>
    tpu.vector_store %arg37[%c5_321, %c0_322], %391 {strides = array<i32>} : memref<26x64xbf16, #tpu.memory_space<vmem>>, vector<16x32xbf16>,
    %cst_323 = arith.constant 0.000000e+00 : f32
    %393 = vector.broadcast %cst_323 : f32 to vector<16x64xf32>
    %c0_324 = arith.constant 0 : index
    %c0_325 = arith.constant 0 : index
    %394 = vector.load %arg37[%c0_324, %c0_325] : memref<26x64xbf16, #tpu.memory_space<vmem>>, vector<16x32xbf16>
    %c0_326 = arith.constant 0 : index
    %c0_327 = arith.constant 0 : index
    %c0_328 = arith.constant 0 : index
    %395 = vector.load %arg20[%c0_326, %c0_327, %c0_328] : memref<9x32x64xbf16, #tpu.memory_space<vmem>>, vector<1x32x64xbf16>
    %396 = vector.shape_cast %395 : vector<1x32x64xbf16> to vector<32x64xbf16>
    %cst_329 = arith.constant dense<0.000000e+00> : vector<16x64xf32>
    %397 = tpu.matmul %394, %396, %cst_329 {dimension_numbers = #tpu.dot_dimension_numbers<[1], [0], [0], [1], [0, 0, 1, 1], [], []>} : vector<16x32xbf16>, vector<32x64xbf16>, vector<16x64xf32> -> vector<16x64xf32>
    %398 = arith.addf %393, %397 : vector<16x64xf32>
    %c1_330 = arith.constant 1 : index
    %c0_331 = arith.constant 0 : index
    %399 = vector.load %arg37[%c1_330, %c0_331] : memref<26x64xbf16, #tpu.memory_space<vmem>>, vector<16x32xbf16>
    %c1_332 = arith.constant 1 : index
    %c0_333 = arith.constant 0 : index
    %c0_334 = arith.constant 0 : index
    %400 = vector.load %arg20[%c1_332, %c0_333, %c0_334] : memref<9x32x64xbf16, #tpu.memory_space<vmem>>, vector<1x32x64xbf16>
    %401 = vector.shape_cast %400 : vector<1x32x64xbf16> to vector<32x64xbf16>
    %cst_335 = arith.constant dense<0.000000e+00> : vector<16x64xf32>
    %402 = tpu.matmul %399, %401, %cst_335 {dimension_numbers = #tpu.dot_dimension_numbers<[1], [0], [0], [1], [0, 0, 1, 1], [], []>} : vector<16x32xbf16>, vector<32x64xbf16>, vector<16x64xf32> -> vector<16x64xf32>
    %403 = arith.addf %398, %402 : vector<16x64xf32>
    %c2_336 = arith.constant 2 : index
    %c0_337 = arith.constant 0 : index
    %404 = vector.load %arg37[%c2_336, %c0_337] : memref<26x64xbf16, #tpu.memory_space<vmem>>, vector<16x32xbf16>
    %c2_338 = arith.constant 2 : index
    %c0_339 = arith.constant 0 : index
    %c0_340 = arith.constant 0 : index
    %405 = vector.load %arg20[%c2_338, %c0_339, %c0_340] : memref<9x32x64xbf16, #tpu.memory_space<vmem>>, vector<1x32x64xbf16>
    %406 = vector.shape_cast %405 : vector<1x32x64xbf16> to vector<32x64xbf16>
    %cst_341 = arith.constant dense<0.000000e+00> : vector<16x64xf32>
    %407 = tpu.matmul %404, %406, %cst_341 {dimension_numbers = #tpu.dot_dimension_numbers<[1], [0], [0], [1], [0, 0, 1, 1], [], []>} : vector<16x32xbf16>, vector<32x64xbf16>, vector<16x64xf32> -> vector<16x64xf32>
    %408 = arith.addf %403, %407 : vector<16x64xf32>
    %c4_342 = arith.constant 4 : index
    %c0_343 = arith.constant 0 : index
    %409 = vector.load %arg37[%c4_342, %c0_343] : memref<26x64xbf16, #tpu.memory_space<vmem>>, vector<16x32xbf16>
    %c3_344 = arith.constant 3 : index
    %c0_345 = arith.constant 0 : index
    %c0_346 = arith.constant 0 : index
    %410 = vector.load %arg20[%c3_344, %c0_345, %c0_346] : memref<9x32x64xbf16, #tpu.memory_space<vmem>>, vector<1x32x64xbf16>
    %411 = vector.shape_cast %410 : vector<1x32x64xbf16> to vector<32x64xbf16>
    %cst_347 = arith.constant dense<0.000000e+00> : vector<16x64xf32>
    %412 = tpu.matmul %409, %411, %cst_347 {dimension_numbers = #tpu.dot_dimension_numbers<[1], [0], [0], [1], [0, 0, 1, 1], [], []>} : vector<16x32xbf16>, vector<32x64xbf16>, vector<16x64xf32> -> vector<16x64xf32>
    %413 = arith.addf %408, %412 : vector<16x64xf32>
    %c5_348 = arith.constant 5 : index
    %c0_349 = arith.constant 0 : index
    %414 = vector.load %arg37[%c5_348, %c0_349] : memref<26x64xbf16, #tpu.memory_space<vmem>>, vector<16x32xbf16>
    %c4_350 = arith.constant 4 : index
    %c0_351 = arith.constant 0 : index
    %c0_352 = arith.constant 0 : index
    %415 = vector.load %arg20[%c4_350, %c0_351, %c0_352] : memref<9x32x64xbf16, #tpu.memory_space<vmem>>, vector<1x32x64xbf16>
    %416 = vector.shape_cast %415 : vector<1x32x64xbf16> to vector<32x64xbf16>
    %cst_353 = arith.constant dense<0.000000e+00> : vector<16x64xf32>
    %417 = tpu.matmul %414, %416, %cst_353 {dimension_numbers = #tpu.dot_dimension_numbers<[1], [0], [0], [1], [0, 0, 1, 1], [], []>} : vector<16x32xbf16>, vector<32x64xbf16>, vector<16x64xf32> -> vector<16x64xf32>
    %418 = arith.addf %413, %417 : vector<16x64xf32>
    %c6_354 = arith.constant 6 : index
    %c0_355 = arith.constant 0 : index
    %419 = vector.load %arg37[%c6_354, %c0_355] : memref<26x64xbf16, #tpu.memory_space<vmem>>, vector<16x32xbf16>
    %c5_356 = arith.constant 5 : index
    %c0_357 = arith.constant 0 : index
    %c0_358 = arith.constant 0 : index
    %420 = vector.load %arg20[%c5_356, %c0_357, %c0_358] : memref<9x32x64xbf16, #tpu.memory_space<vmem>>, vector<1x32x64xbf16>
    %421 = vector.shape_cast %420 : vector<1x32x64xbf16> to vector<32x64xbf16>
    %cst_359 = arith.constant dense<0.000000e+00> : vector<16x64xf32>
    %422 = tpu.matmul %419, %421, %cst_359 {dimension_numbers = #tpu.dot_dimension_numbers<[1], [0], [0], [1], [0, 0, 1, 1], [], []>} : vector<16x32xbf16>, vector<32x64xbf16>, vector<16x64xf32> -> vector<16x64xf32>
    %423 = arith.addf %418, %422 : vector<16x64xf32>
    %c8_360 = arith.constant 8 : index
    %c0_361 = arith.constant 0 : index
    %424 = vector.load %arg37[%c8_360, %c0_361] : memref<26x64xbf16, #tpu.memory_space<vmem>>, vector<16x32xbf16>
    %c6_362 = arith.constant 6 : index
    %c0_363 = arith.constant 0 : index
    %c0_364 = arith.constant 0 : index
    %425 = vector.load %arg20[%c6_362, %c0_363, %c0_364] : memref<9x32x64xbf16, #tpu.memory_space<vmem>>, vector<1x32x64xbf16>
    %426 = vector.shape_cast %425 : vector<1x32x64xbf16> to vector<32x64xbf16>
    %cst_365 = arith.constant dense<0.000000e+00> : vector<16x64xf32>
    %427 = tpu.matmul %424, %426, %cst_365 {dimension_numbers = #tpu.dot_dimension_numbers<[1], [0], [0], [1], [0, 0, 1, 1], [], []>} : vector<16x32xbf16>, vector<32x64xbf16>, vector<16x64xf32> -> vector<16x64xf32>
    %428 = arith.addf %423, %427 : vector<16x64xf32>
    %c9 = arith.constant 9 : index
    %c0_366 = arith.constant 0 : index
    %429 = vector.load %arg37[%c9, %c0_366] : memref<26x64xbf16, #tpu.memory_space<vmem>>, vector<16x32xbf16>
    %c7_367 = arith.constant 7 : index
    %c0_368 = arith.constant 0 : index
    %c0_369 = arith.constant 0 : index
    %430 = vector.load %arg20[%c7_367, %c0_368, %c0_369] : memref<9x32x64xbf16, #tpu.memory_space<vmem>>, vector<1x32x64xbf16>
    %431 = vector.shape_cast %430 : vector<1x32x64xbf16> to vector<32x64xbf16>
    %cst_370 = arith.constant dense<0.000000e+00> : vector<16x64xf32>
    %432 = tpu.matmul %429, %431, %cst_370 {dimension_numbers = #tpu.dot_dimension_numbers<[1], [0], [0], [1], [0, 0, 1, 1], [], []>} : vector<16x32xbf16>, vector<32x64xbf16>, vector<16x64xf32> -> vector<16x64xf32>
    %433 = arith.addf %428, %432 : vector<16x64xf32>
    %c10_371 = arith.constant 10 : index
    %c0_372 = arith.constant 0 : index
    %434 = vector.load %arg37[%c10_371, %c0_372] : memref<26x64xbf16, #tpu.memory_space<vmem>>, vector<16x32xbf16>
    %c8_373 = arith.constant 8 : index
    %c0_374 = arith.constant 0 : index
    %c0_375 = arith.constant 0 : index
    %435 = vector.load %arg20[%c8_373, %c0_374, %c0_375] : memref<9x32x64xbf16, #tpu.memory_space<vmem>>, vector<1x32x64xbf16>
    %436 = vector.shape_cast %435 : vector<1x32x64xbf16> to vector<32x64xbf16>
    %cst_376 = arith.constant dense<0.000000e+00> : vector<16x64xf32>
    %437 = tpu.matmul %434, %436, %cst_376 {dimension_numbers = #tpu.dot_dimension_numbers<[1], [0], [0], [1], [0, 0, 1, 1], [], []>} : vector<16x32xbf16>, vector<32x64xbf16>, vector<16x64xf32> -> vector<16x64xf32>
    %438 = arith.addf %433, %437 : vector<16x64xf32>
    %c0_377 = arith.constant 0 : index
    %c0_378 = arith.constant 0 : index
    %439 = vector.load %arg21[%c0_377, %c0_378] : memref<1x64xf32, #tpu.memory_space<vmem>>, vector<1x64xf32>
    %440 = vector.broadcast %439 : vector<1x64xf32> to vector<16x64xf32>
    %441 = arith.addf %438, %440 : vector<16x64xf32>
    %cst_379 = arith.constant 0.000000e+00 : f32
    %442 = vector.broadcast %cst_379 : f32 to vector<16x64xf32>
    %443 = arith.maximumf %441, %442 : vector<16x64xf32>
    %444 = vector.broadcast %380 : vector<16x1xf32> to vector<16x64xf32>
    %445 = arith.mulf %443, %444 : vector<16x64xf32>
    %446 = arith.truncf %445 : vector<16x64xf32> to vector<16x64xbf16>
    %c5_380 = arith.constant 5 : index
    %c0_381 = arith.constant 0 : index
    %447 = vector.load %arg37[%c5_380, %c0_381] : memref<26x64xbf16, #tpu.memory_space<vmem>>, vector<16x64xbf16>
    tpu.vector_store %arg37[%c5_380, %c0_381], %446 {strides = array<i32>} : memref<26x64xbf16, #tpu.memory_space<vmem>>, vector<16x64xbf16>,
    %c5_382 = arith.constant 5 : index
    %c0_383 = arith.constant 0 : index
    %448 = vector.load %arg37[%c5_382, %c0_383] : memref<26x64xbf16, #tpu.memory_space<vmem>>, vector<16x64xbf16>
    %c0_384 = arith.constant 0 : index
    %c0_385 = arith.constant 0 : index
    %449 = vector.load %arg22[%c0_384, %c0_385] : memref<64x32xbf16, #tpu.memory_space<vmem>>, vector<64x32xbf16>
    %cst_386 = arith.constant dense<0.000000e+00> : vector<16x32xf32>
    %450 = tpu.matmul %448, %449, %cst_386 {dimension_numbers = #tpu.dot_dimension_numbers<[1], [0], [0], [1], [0, 0, 1, 1], [], []>} : vector<16x64xbf16>, vector<64x32xbf16>, vector<16x32xf32> -> vector<16x32xf32>
    %c0_387 = arith.constant 0 : index
    %c0_388 = arith.constant 0 : index
    %451 = vector.load %arg23[%c0_387, %c0_388] : memref<1x32xf32, #tpu.memory_space<vmem>>, vector<1x32xf32>
    %452 = vector.broadcast %451 : vector<1x32xf32> to vector<16x32xf32>
    %453 = arith.addf %450, %452 : vector<16x32xf32>
    %cst_389 = arith.constant 0.000000e+00 : f32
    %454 = vector.broadcast %cst_389 : f32 to vector<16x32xf32>
    %455 = arith.maximumf %453, %454 : vector<16x32xf32>
    %456 = vector.broadcast %380 : vector<16x1xf32> to vector<16x32xf32>
    %457 = arith.mulf %455, %456 : vector<16x32xf32>
    %458 = arith.truncf %457 : vector<16x32xf32> to vector<16x32xbf16>
    %c5_390 = arith.constant 5 : index
    %c0_391 = arith.constant 0 : index
    %459 = vector.load %arg37[%c5_390, %c0_391] : memref<26x64xbf16, #tpu.memory_space<vmem>>, vector<16x32xbf16>
    tpu.vector_store %arg37[%c5_390, %c0_391], %458 {strides = array<i32>} : memref<26x64xbf16, #tpu.memory_space<vmem>>, vector<16x32xbf16>,
    %cst_392 = arith.constant 0.000000e+00 : f32
    %460 = vector.broadcast %cst_392 : f32 to vector<16x64xf32>
    %c0_393 = arith.constant 0 : index
    %c0_394 = arith.constant 0 : index
    %461 = vector.load %arg37[%c0_393, %c0_394] : memref<26x64xbf16, #tpu.memory_space<vmem>>, vector<16x32xbf16>
    %c0_395 = arith.constant 0 : index
    %c0_396 = arith.constant 0 : index
    %c0_397 = arith.constant 0 : index
    %462 = vector.load %arg24[%c0_395, %c0_396, %c0_397] : memref<9x32x64xbf16, #tpu.memory_space<vmem>>, vector<1x32x64xbf16>
    %463 = vector.shape_cast %462 : vector<1x32x64xbf16> to vector<32x64xbf16>
    %cst_398 = arith.constant dense<0.000000e+00> : vector<16x64xf32>
    %464 = tpu.matmul %461, %463, %cst_398 {dimension_numbers = #tpu.dot_dimension_numbers<[1], [0], [0], [1], [0, 0, 1, 1], [], []>} : vector<16x32xbf16>, vector<32x64xbf16>, vector<16x64xf32> -> vector<16x64xf32>
    %465 = arith.addf %460, %464 : vector<16x64xf32>
    %c1_399 = arith.constant 1 : index
    %c0_400 = arith.constant 0 : index
    %466 = vector.load %arg37[%c1_399, %c0_400] : memref<26x64xbf16, #tpu.memory_space<vmem>>, vector<16x32xbf16>
    %c1_401 = arith.constant 1 : index
    %c0_402 = arith.constant 0 : index
    %c0_403 = arith.constant 0 : index
    %467 = vector.load %arg24[%c1_401, %c0_402, %c0_403] : memref<9x32x64xbf16, #tpu.memory_space<vmem>>, vector<1x32x64xbf16>
    %468 = vector.shape_cast %467 : vector<1x32x64xbf16> to vector<32x64xbf16>
    %cst_404 = arith.constant dense<0.000000e+00> : vector<16x64xf32>
    %469 = tpu.matmul %466, %468, %cst_404 {dimension_numbers = #tpu.dot_dimension_numbers<[1], [0], [0], [1], [0, 0, 1, 1], [], []>} : vector<16x32xbf16>, vector<32x64xbf16>, vector<16x64xf32> -> vector<16x64xf32>
    %470 = arith.addf %465, %469 : vector<16x64xf32>
    %c2_405 = arith.constant 2 : index
    %c0_406 = arith.constant 0 : index
    %471 = vector.load %arg37[%c2_405, %c0_406] : memref<26x64xbf16, #tpu.memory_space<vmem>>, vector<16x32xbf16>
    %c2_407 = arith.constant 2 : index
    %c0_408 = arith.constant 0 : index
    %c0_409 = arith.constant 0 : index
    %472 = vector.load %arg24[%c2_407, %c0_408, %c0_409] : memref<9x32x64xbf16, #tpu.memory_space<vmem>>, vector<1x32x64xbf16>
    %473 = vector.shape_cast %472 : vector<1x32x64xbf16> to vector<32x64xbf16>
    %cst_410 = arith.constant dense<0.000000e+00> : vector<16x64xf32>
    %474 = tpu.matmul %471, %473, %cst_410 {dimension_numbers = #tpu.dot_dimension_numbers<[1], [0], [0], [1], [0, 0, 1, 1], [], []>} : vector<16x32xbf16>, vector<32x64xbf16>, vector<16x64xf32> -> vector<16x64xf32>
    %475 = arith.addf %470, %474 : vector<16x64xf32>
    %c4_411 = arith.constant 4 : index
    %c0_412 = arith.constant 0 : index
    %476 = vector.load %arg37[%c4_411, %c0_412] : memref<26x64xbf16, #tpu.memory_space<vmem>>, vector<16x32xbf16>
    %c3_413 = arith.constant 3 : index
    %c0_414 = arith.constant 0 : index
    %c0_415 = arith.constant 0 : index
    %477 = vector.load %arg24[%c3_413, %c0_414, %c0_415] : memref<9x32x64xbf16, #tpu.memory_space<vmem>>, vector<1x32x64xbf16>
    %478 = vector.shape_cast %477 : vector<1x32x64xbf16> to vector<32x64xbf16>
    %cst_416 = arith.constant dense<0.000000e+00> : vector<16x64xf32>
    %479 = tpu.matmul %476, %478, %cst_416 {dimension_numbers = #tpu.dot_dimension_numbers<[1], [0], [0], [1], [0, 0, 1, 1], [], []>} : vector<16x32xbf16>, vector<32x64xbf16>, vector<16x64xf32> -> vector<16x64xf32>
    %480 = arith.addf %475, %479 : vector<16x64xf32>
    %c5_417 = arith.constant 5 : index
    %c0_418 = arith.constant 0 : index
    %481 = vector.load %arg37[%c5_417, %c0_418] : memref<26x64xbf16, #tpu.memory_space<vmem>>, vector<16x32xbf16>
    %c4_419 = arith.constant 4 : index
    %c0_420 = arith.constant 0 : index
    %c0_421 = arith.constant 0 : index
    %482 = vector.load %arg24[%c4_419, %c0_420, %c0_421] : memref<9x32x64xbf16, #tpu.memory_space<vmem>>, vector<1x32x64xbf16>
    %483 = vector.shape_cast %482 : vector<1x32x64xbf16> to vector<32x64xbf16>
    %cst_422 = arith.constant dense<0.000000e+00> : vector<16x64xf32>
    %484 = tpu.matmul %481, %483, %cst_422 {dimension_numbers = #tpu.dot_dimension_numbers<[1], [0], [0], [1], [0, 0, 1, 1], [], []>} : vector<16x32xbf16>, vector<32x64xbf16>, vector<16x64xf32> -> vector<16x64xf32>
    %485 = arith.addf %480, %484 : vector<16x64xf32>
    %c6_423 = arith.constant 6 : index
    %c0_424 = arith.constant 0 : index
    %486 = vector.load %arg37[%c6_423, %c0_424] : memref<26x64xbf16, #tpu.memory_space<vmem>>, vector<16x32xbf16>
    %c5_425 = arith.constant 5 : index
    %c0_426 = arith.constant 0 : index
    %c0_427 = arith.constant 0 : index
    %487 = vector.load %arg24[%c5_425, %c0_426, %c0_427] : memref<9x32x64xbf16, #tpu.memory_space<vmem>>, vector<1x32x64xbf16>
    %488 = vector.shape_cast %487 : vector<1x32x64xbf16> to vector<32x64xbf16>
    %cst_428 = arith.constant dense<0.000000e+00> : vector<16x64xf32>
    %489 = tpu.matmul %486, %488, %cst_428 {dimension_numbers = #tpu.dot_dimension_numbers<[1], [0], [0], [1], [0, 0, 1, 1], [], []>} : vector<16x32xbf16>, vector<32x64xbf16>, vector<16x64xf32> -> vector<16x64xf32>
    %490 = arith.addf %485, %489 : vector<16x64xf32>
    %c8_429 = arith.constant 8 : index
    %c0_430 = arith.constant 0 : index
    %491 = vector.load %arg37[%c8_429, %c0_430] : memref<26x64xbf16, #tpu.memory_space<vmem>>, vector<16x32xbf16>
    %c6_431 = arith.constant 6 : index
    %c0_432 = arith.constant 0 : index
    %c0_433 = arith.constant 0 : index
    %492 = vector.load %arg24[%c6_431, %c0_432, %c0_433] : memref<9x32x64xbf16, #tpu.memory_space<vmem>>, vector<1x32x64xbf16>
    %493 = vector.shape_cast %492 : vector<1x32x64xbf16> to vector<32x64xbf16>
    %cst_434 = arith.constant dense<0.000000e+00> : vector<16x64xf32>
    %494 = tpu.matmul %491, %493, %cst_434 {dimension_numbers = #tpu.dot_dimension_numbers<[1], [0], [0], [1], [0, 0, 1, 1], [], []>} : vector<16x32xbf16>, vector<32x64xbf16>, vector<16x64xf32> -> vector<16x64xf32>
    %495 = arith.addf %490, %494 : vector<16x64xf32>
    %c9_435 = arith.constant 9 : index
    %c0_436 = arith.constant 0 : index
    %496 = vector.load %arg37[%c9_435, %c0_436] : memref<26x64xbf16, #tpu.memory_space<vmem>>, vector<16x32xbf16>
    %c7_437 = arith.constant 7 : index
    %c0_438 = arith.constant 0 : index
    %c0_439 = arith.constant 0 : index
    %497 = vector.load %arg24[%c7_437, %c0_438, %c0_439] : memref<9x32x64xbf16, #tpu.memory_space<vmem>>, vector<1x32x64xbf16>
    %498 = vector.shape_cast %497 : vector<1x32x64xbf16> to vector<32x64xbf16>
    %cst_440 = arith.constant dense<0.000000e+00> : vector<16x64xf32>
    %499 = tpu.matmul %496, %498, %cst_440 {dimension_numbers = #tpu.dot_dimension_numbers<[1], [0], [0], [1], [0, 0, 1, 1], [], []>} : vector<16x32xbf16>, vector<32x64xbf16>, vector<16x64xf32> -> vector<16x64xf32>
    %500 = arith.addf %495, %499 : vector<16x64xf32>
    %c10_441 = arith.constant 10 : index
    %c0_442 = arith.constant 0 : index
    %501 = vector.load %arg37[%c10_441, %c0_442] : memref<26x64xbf16, #tpu.memory_space<vmem>>, vector<16x32xbf16>
    %c8_443 = arith.constant 8 : index
    %c0_444 = arith.constant 0 : index
    %c0_445 = arith.constant 0 : index
    %502 = vector.load %arg24[%c8_443, %c0_444, %c0_445] : memref<9x32x64xbf16, #tpu.memory_space<vmem>>, vector<1x32x64xbf16>
    %503 = vector.shape_cast %502 : vector<1x32x64xbf16> to vector<32x64xbf16>
    %cst_446 = arith.constant dense<0.000000e+00> : vector<16x64xf32>
    %504 = tpu.matmul %501, %503, %cst_446 {dimension_numbers = #tpu.dot_dimension_numbers<[1], [0], [0], [1], [0, 0, 1, 1], [], []>} : vector<16x32xbf16>, vector<32x64xbf16>, vector<16x64xf32> -> vector<16x64xf32>
    %505 = arith.addf %500, %504 : vector<16x64xf32>
    %c0_447 = arith.constant 0 : index
    %c0_448 = arith.constant 0 : index
    %506 = vector.load %arg25[%c0_447, %c0_448] : memref<1x64xf32, #tpu.memory_space<vmem>>, vector<1x64xf32>
    %507 = vector.broadcast %506 : vector<1x64xf32> to vector<16x64xf32>
    %508 = arith.addf %505, %507 : vector<16x64xf32>
    %cst_449 = arith.constant 0.000000e+00 : f32
    %509 = vector.broadcast %cst_449 : f32 to vector<16x64xf32>
    %510 = arith.maximumf %508, %509 : vector<16x64xf32>
    %511 = vector.broadcast %380 : vector<16x1xf32> to vector<16x64xf32>
    %512 = arith.mulf %510, %511 : vector<16x64xf32>
    %513 = arith.truncf %512 : vector<16x64xf32> to vector<16x64xbf16>
    %c5_450 = arith.constant 5 : index
    %c0_451 = arith.constant 0 : index
    %514 = vector.load %arg37[%c5_450, %c0_451] : memref<26x64xbf16, #tpu.memory_space<vmem>>, vector<16x64xbf16>
    tpu.vector_store %arg37[%c5_450, %c0_451], %513 {strides = array<i32>} : memref<26x64xbf16, #tpu.memory_space<vmem>>, vector<16x64xbf16>,
    %c5_452 = arith.constant 5 : index
    %c0_453 = arith.constant 0 : index
    %515 = vector.load %arg37[%c5_452, %c0_453] : memref<26x64xbf16, #tpu.memory_space<vmem>>, vector<16x64xbf16>
    %c0_454 = arith.constant 0 : index
    %c0_455 = arith.constant 0 : index
    %516 = vector.load %arg26[%c0_454, %c0_455] : memref<64x32xbf16, #tpu.memory_space<vmem>>, vector<64x32xbf16>
    %cst_456 = arith.constant dense<0.000000e+00> : vector<16x32xf32>
    %517 = tpu.matmul %515, %516, %cst_456 {dimension_numbers = #tpu.dot_dimension_numbers<[1], [0], [0], [1], [0, 0, 1, 1], [], []>} : vector<16x64xbf16>, vector<64x32xbf16>, vector<16x32xf32> -> vector<16x32xf32>
    %c0_457 = arith.constant 0 : index
    %c0_458 = arith.constant 0 : index
    %518 = vector.load %arg27[%c0_457, %c0_458] : memref<1x32xf32, #tpu.memory_space<vmem>>, vector<1x32xf32>
    %519 = vector.broadcast %518 : vector<1x32xf32> to vector<16x32xf32>
    %520 = arith.addf %517, %519 : vector<16x32xf32>
    %cst_459 = arith.constant 0.000000e+00 : f32
    %521 = vector.broadcast %cst_459 : f32 to vector<16x32xf32>
    %522 = arith.maximumf %520, %521 : vector<16x32xf32>
    %523 = vector.broadcast %380 : vector<16x1xf32> to vector<16x32xf32>
    %524 = arith.mulf %522, %523 : vector<16x32xf32>
    %525 = arith.truncf %524 : vector<16x32xf32> to vector<16x32xbf16>
    %c5_460 = arith.constant 5 : index
    %c0_461 = arith.constant 0 : index
    %526 = vector.load %arg37[%c5_460, %c0_461] : memref<26x64xbf16, #tpu.memory_space<vmem>>, vector<16x32xbf16>
    tpu.vector_store %arg37[%c5_460, %c0_461], %525 {strides = array<i32>} : memref<26x64xbf16, #tpu.memory_space<vmem>>, vector<16x32xbf16>,
    %cst_462 = arith.constant 0.000000e+00 : f32
    %527 = vector.broadcast %cst_462 : f32 to vector<16x64xf32>
    %c0_463 = arith.constant 0 : index
    %c0_464 = arith.constant 0 : index
    %528 = vector.load %arg37[%c0_463, %c0_464] : memref<26x64xbf16, #tpu.memory_space<vmem>>, vector<16x32xbf16>
    %c0_465 = arith.constant 0 : index
    %c0_466 = arith.constant 0 : index
    %c0_467 = arith.constant 0 : index
    %529 = vector.load %arg28[%c0_465, %c0_466, %c0_467] : memref<9x32x64xbf16, #tpu.memory_space<vmem>>, vector<1x32x64xbf16>
    %530 = vector.shape_cast %529 : vector<1x32x64xbf16> to vector<32x64xbf16>
    %cst_468 = arith.constant dense<0.000000e+00> : vector<16x64xf32>
    %531 = tpu.matmul %528, %530, %cst_468 {dimension_numbers = #tpu.dot_dimension_numbers<[1], [0], [0], [1], [0, 0, 1, 1], [], []>} : vector<16x32xbf16>, vector<32x64xbf16>, vector<16x64xf32> -> vector<16x64xf32>
    %532 = arith.addf %527, %531 : vector<16x64xf32>
    %c1_469 = arith.constant 1 : index
    %c0_470 = arith.constant 0 : index
    %533 = vector.load %arg37[%c1_469, %c0_470] : memref<26x64xbf16, #tpu.memory_space<vmem>>, vector<16x32xbf16>
    %c1_471 = arith.constant 1 : index
    %c0_472 = arith.constant 0 : index
    %c0_473 = arith.constant 0 : index
    %534 = vector.load %arg28[%c1_471, %c0_472, %c0_473] : memref<9x32x64xbf16, #tpu.memory_space<vmem>>, vector<1x32x64xbf16>
    %535 = vector.shape_cast %534 : vector<1x32x64xbf16> to vector<32x64xbf16>
    %cst_474 = arith.constant dense<0.000000e+00> : vector<16x64xf32>
    %536 = tpu.matmul %533, %535, %cst_474 {dimension_numbers = #tpu.dot_dimension_numbers<[1], [0], [0], [1], [0, 0, 1, 1], [], []>} : vector<16x32xbf16>, vector<32x64xbf16>, vector<16x64xf32> -> vector<16x64xf32>
    %537 = arith.addf %532, %536 : vector<16x64xf32>
    %c2_475 = arith.constant 2 : index
    %c0_476 = arith.constant 0 : index
    %538 = vector.load %arg37[%c2_475, %c0_476] : memref<26x64xbf16, #tpu.memory_space<vmem>>, vector<16x32xbf16>
    %c2_477 = arith.constant 2 : index
    %c0_478 = arith.constant 0 : index
    %c0_479 = arith.constant 0 : index
    %539 = vector.load %arg28[%c2_477, %c0_478, %c0_479] : memref<9x32x64xbf16, #tpu.memory_space<vmem>>, vector<1x32x64xbf16>
    %540 = vector.shape_cast %539 : vector<1x32x64xbf16> to vector<32x64xbf16>
    %cst_480 = arith.constant dense<0.000000e+00> : vector<16x64xf32>
    %541 = tpu.matmul %538, %540, %cst_480 {dimension_numbers = #tpu.dot_dimension_numbers<[1], [0], [0], [1], [0, 0, 1, 1], [], []>} : vector<16x32xbf16>, vector<32x64xbf16>, vector<16x64xf32> -> vector<16x64xf32>
    %542 = arith.addf %537, %541 : vector<16x64xf32>
    %c4_481 = arith.constant 4 : index
    %c0_482 = arith.constant 0 : index
    %543 = vector.load %arg37[%c4_481, %c0_482] : memref<26x64xbf16, #tpu.memory_space<vmem>>, vector<16x32xbf16>
    %c3_483 = arith.constant 3 : index
    %c0_484 = arith.constant 0 : index
    %c0_485 = arith.constant 0 : index
    %544 = vector.load %arg28[%c3_483, %c0_484, %c0_485] : memref<9x32x64xbf16, #tpu.memory_space<vmem>>, vector<1x32x64xbf16>
    %545 = vector.shape_cast %544 : vector<1x32x64xbf16> to vector<32x64xbf16>
    %cst_486 = arith.constant dense<0.000000e+00> : vector<16x64xf32>
    %546 = tpu.matmul %543, %545, %cst_486 {dimension_numbers = #tpu.dot_dimension_numbers<[1], [0], [0], [1], [0, 0, 1, 1], [], []>} : vector<16x32xbf16>, vector<32x64xbf16>, vector<16x64xf32> -> vector<16x64xf32>
    %547 = arith.addf %542, %546 : vector<16x64xf32>
    %c5_487 = arith.constant 5 : index
    %c0_488 = arith.constant 0 : index
    %548 = vector.load %arg37[%c5_487, %c0_488] : memref<26x64xbf16, #tpu.memory_space<vmem>>, vector<16x32xbf16>
    %c4_489 = arith.constant 4 : index
    %c0_490 = arith.constant 0 : index
    %c0_491 = arith.constant 0 : index
    %549 = vector.load %arg28[%c4_489, %c0_490, %c0_491] : memref<9x32x64xbf16, #tpu.memory_space<vmem>>, vector<1x32x64xbf16>
    %550 = vector.shape_cast %549 : vector<1x32x64xbf16> to vector<32x64xbf16>
    %cst_492 = arith.constant dense<0.000000e+00> : vector<16x64xf32>
    %551 = tpu.matmul %548, %550, %cst_492 {dimension_numbers = #tpu.dot_dimension_numbers<[1], [0], [0], [1], [0, 0, 1, 1], [], []>} : vector<16x32xbf16>, vector<32x64xbf16>, vector<16x64xf32> -> vector<16x64xf32>
    %552 = arith.addf %547, %551 : vector<16x64xf32>
    %c6_493 = arith.constant 6 : index
    %c0_494 = arith.constant 0 : index
    %553 = vector.load %arg37[%c6_493, %c0_494] : memref<26x64xbf16, #tpu.memory_space<vmem>>, vector<16x32xbf16>
    %c5_495 = arith.constant 5 : index
    %c0_496 = arith.constant 0 : index
    %c0_497 = arith.constant 0 : index
    %554 = vector.load %arg28[%c5_495, %c0_496, %c0_497] : memref<9x32x64xbf16, #tpu.memory_space<vmem>>, vector<1x32x64xbf16>
    %555 = vector.shape_cast %554 : vector<1x32x64xbf16> to vector<32x64xbf16>
    %cst_498 = arith.constant dense<0.000000e+00> : vector<16x64xf32>
    %556 = tpu.matmul %553, %555, %cst_498 {dimension_numbers = #tpu.dot_dimension_numbers<[1], [0], [0], [1], [0, 0, 1, 1], [], []>} : vector<16x32xbf16>, vector<32x64xbf16>, vector<16x64xf32> -> vector<16x64xf32>
    %557 = arith.addf %552, %556 : vector<16x64xf32>
    %c8_499 = arith.constant 8 : index
    %c0_500 = arith.constant 0 : index
    %558 = vector.load %arg37[%c8_499, %c0_500] : memref<26x64xbf16, #tpu.memory_space<vmem>>, vector<16x32xbf16>
    %c6_501 = arith.constant 6 : index
    %c0_502 = arith.constant 0 : index
    %c0_503 = arith.constant 0 : index
    %559 = vector.load %arg28[%c6_501, %c0_502, %c0_503] : memref<9x32x64xbf16, #tpu.memory_space<vmem>>, vector<1x32x64xbf16>
    %560 = vector.shape_cast %559 : vector<1x32x64xbf16> to vector<32x64xbf16>
    %cst_504 = arith.constant dense<0.000000e+00> : vector<16x64xf32>
    %561 = tpu.matmul %558, %560, %cst_504 {dimension_numbers = #tpu.dot_dimension_numbers<[1], [0], [0], [1], [0, 0, 1, 1], [], []>} : vector<16x32xbf16>, vector<32x64xbf16>, vector<16x64xf32> -> vector<16x64xf32>
    %562 = arith.addf %557, %561 : vector<16x64xf32>
    %c9_505 = arith.constant 9 : index
    %c0_506 = arith.constant 0 : index
    %563 = vector.load %arg37[%c9_505, %c0_506] : memref<26x64xbf16, #tpu.memory_space<vmem>>, vector<16x32xbf16>
    %c7_507 = arith.constant 7 : index
    %c0_508 = arith.constant 0 : index
    %c0_509 = arith.constant 0 : index
    %564 = vector.load %arg28[%c7_507, %c0_508, %c0_509] : memref<9x32x64xbf16, #tpu.memory_space<vmem>>, vector<1x32x64xbf16>
    %565 = vector.shape_cast %564 : vector<1x32x64xbf16> to vector<32x64xbf16>
    %cst_510 = arith.constant dense<0.000000e+00> : vector<16x64xf32>
    %566 = tpu.matmul %563, %565, %cst_510 {dimension_numbers = #tpu.dot_dimension_numbers<[1], [0], [0], [1], [0, 0, 1, 1], [], []>} : vector<16x32xbf16>, vector<32x64xbf16>, vector<16x64xf32> -> vector<16x64xf32>
    %567 = arith.addf %562, %566 : vector<16x64xf32>
    %c10_511 = arith.constant 10 : index
    %c0_512 = arith.constant 0 : index
    %568 = vector.load %arg37[%c10_511, %c0_512] : memref<26x64xbf16, #tpu.memory_space<vmem>>, vector<16x32xbf16>
    %c8_513 = arith.constant 8 : index
    %c0_514 = arith.constant 0 : index
    %c0_515 = arith.constant 0 : index
    %569 = vector.load %arg28[%c8_513, %c0_514, %c0_515] : memref<9x32x64xbf16, #tpu.memory_space<vmem>>, vector<1x32x64xbf16>
    %570 = vector.shape_cast %569 : vector<1x32x64xbf16> to vector<32x64xbf16>
    %cst_516 = arith.constant dense<0.000000e+00> : vector<16x64xf32>
    %571 = tpu.matmul %568, %570, %cst_516 {dimension_numbers = #tpu.dot_dimension_numbers<[1], [0], [0], [1], [0, 0, 1, 1], [], []>} : vector<16x32xbf16>, vector<32x64xbf16>, vector<16x64xf32> -> vector<16x64xf32>
    %572 = arith.addf %567, %571 : vector<16x64xf32>
    %c0_517 = arith.constant 0 : index
    %c0_518 = arith.constant 0 : index
    %573 = vector.load %arg29[%c0_517, %c0_518] : memref<1x64xf32, #tpu.memory_space<vmem>>, vector<1x64xf32>
    %574 = vector.broadcast %573 : vector<1x64xf32> to vector<16x64xf32>
    %575 = arith.addf %572, %574 : vector<16x64xf32>
    %cst_519 = arith.constant 0.000000e+00 : f32
    %576 = vector.broadcast %cst_519 : f32 to vector<16x64xf32>
    %577 = arith.maximumf %575, %576 : vector<16x64xf32>
    %578 = vector.broadcast %380 : vector<16x1xf32> to vector<16x64xf32>
    %579 = arith.mulf %577, %578 : vector<16x64xf32>
    %cst_520 = arith.constant dense<0.000000e+00> : vector<64xf32>
    %580 = vector.multi_reduction <add>, %579, %cst_520 [0] : vector<16x64xf32> to vector<64xf32>
    %581 = vector.shape_cast %580 : vector<64xf32> to vector<1x64xf32>
    %cst_521 = arith.constant 2.500000e-01 : f32
    %582 = vector.broadcast %cst_521 : f32 to vector<1x64xf32>
    %583 = arith.mulf %581, %582 : vector<1x64xf32>
    %584 = arith.truncf %583 : vector<1x64xf32> to vector<1x64xbf16>
    %c0_522 = arith.constant 0 : index
    %c0_523 = arith.constant 0 : index
    %585 = vector.load %arg30[%c0_522, %c0_523] : memref<64x16xbf16, #tpu.memory_space<vmem>>, vector<64x16xbf16>
    %cst_524 = arith.constant dense<0.000000e+00> : vector<1x16xf32>
    %586 = tpu.matmul %584, %585, %cst_524 {dimension_numbers = #tpu.dot_dimension_numbers<[1], [0], [0], [1], [0, 0, 1, 1], [], []>} : vector<1x64xbf16>, vector<64x16xbf16>, vector<1x16xf32> -> vector<1x16xf32>
    %c0_525 = arith.constant 0 : index
    %c0_526 = arith.constant 0 : index
    %587 = vector.load %arg31[%c0_525, %c0_526] : memref<1x16xf32, #tpu.memory_space<vmem>>, vector<1x16xf32>
    %588 = arith.addf %586, %587 : vector<1x16xf32>
    %cst_527 = arith.constant 0.000000e+00 : f32
    %589 = vector.broadcast %cst_527 : f32 to vector<1x16xf32>
    %590 = arith.maximumf %588, %589 : vector<1x16xf32>
    %591 = arith.truncf %590 : vector<1x16xf32> to vector<1x16xbf16>
    %c0_528 = arith.constant 0 : index
    %c0_529 = arith.constant 0 : index
    %592 = vector.load %arg32[%c0_528, %c0_529] : memref<16x2xbf16, #tpu.memory_space<vmem>>, vector<16x2xbf16>
    %cst_530 = arith.constant dense<0.000000e+00> : vector<1x2xf32>
    %593 = tpu.matmul %591, %592, %cst_530 {dimension_numbers = #tpu.dot_dimension_numbers<[1], [0], [0], [1], [0, 0, 1, 1], [], []>} : vector<1x16xbf16>, vector<16x2xbf16>, vector<1x2xf32> -> vector<1x2xf32>
    %c0_531 = arith.constant 0 : index
    %c0_532 = arith.constant 0 : index
    %594 = vector.load %arg33[%c0_531, %c0_532] : memref<1x2xf32, #tpu.memory_space<vmem>>, vector<1x2xf32>
    %595 = arith.addf %593, %594 : vector<1x2xf32>
    %c0_533 = arith.constant 0 : index
    %c0_534 = arith.constant 0 : index
    %c0_535 = arith.constant 0 : index
    %596 = vector.load %arg34[%c0_533, %c0_534, %c0_535] : memref<1x1x2xf32, #tpu.memory_space<vmem>>, vector<1x1x2xf32>
    %597 = vector.shape_cast %596 : vector<1x1x2xf32> to vector<1x2xf32>
    %598 = vector.shape_cast %595 : vector<1x2xf32> to vector<1x1x2xf32>
    tpu.vector_store %arg34[%c0_533, %c0_534, %c0_535], %598 {strides = array<i32>} : memref<1x1x2xf32, #tpu.memory_space<vmem>>, vector<1x1x2xf32>,
    return
  }
  func.func @transform_0(%arg0: i32) -> (i32, i32, i32) {
    %c0_i32 = arith.constant 0 : i32
    %c0_i32_0 = arith.constant 0 : i32
    %c0_i32_1 = arith.constant 0 : i32
    return %arg0, %c0_i32, %c0_i32_0 : i32, i32, i32
  }
  func.func @transform_1(%arg0: i32) -> (i32, i32) {
    %c0_i32 = arith.constant 0 : i32
    %c0_i32_0 = arith.constant 0 : i32
    %c0_i32_1 = arith.constant 0 : i32
    return %c0_i32, %c0_i32_0 : i32, i32
  }
  func.func @transform_2(%arg0: i32) -> (i32, i32) {
    %c0_i32 = arith.constant 0 : i32
    %c0_i32_0 = arith.constant 0 : i32
    %c0_i32_1 = arith.constant 0 : i32
    return %c0_i32, %c0_i32_0 : i32, i32
  }
  func.func @transform_3(%arg0: i32) -> (i32, i32) {
    %c0_i32 = arith.constant 0 : i32
    %c0_i32_0 = arith.constant 0 : i32
    %c0_i32_1 = arith.constant 0 : i32
    return %c0_i32, %c0_i32_0 : i32, i32
  }
  func.func @transform_4(%arg0: i32) -> (i32, i32) {
    %c0_i32 = arith.constant 0 : i32
    %c0_i32_0 = arith.constant 0 : i32
    %c0_i32_1 = arith.constant 0 : i32
    return %c0_i32, %c0_i32_0 : i32, i32
  }
  func.func @transform_5(%arg0: i32) -> (i32, i32, i32) {
    %c0_i32 = arith.constant 0 : i32
    %c0_i32_0 = arith.constant 0 : i32
    %c0_i32_1 = arith.constant 0 : i32
    %c0_i32_2 = arith.constant 0 : i32
    return %c0_i32, %c0_i32_0, %c0_i32_1 : i32, i32, i32
  }
  func.func @transform_6(%arg0: i32) -> (i32, i32) {
    %c0_i32 = arith.constant 0 : i32
    %c0_i32_0 = arith.constant 0 : i32
    %c0_i32_1 = arith.constant 0 : i32
    return %c0_i32, %c0_i32_0 : i32, i32
  }
  func.func @transform_7(%arg0: i32) -> (i32, i32, i32) {
    %c0_i32 = arith.constant 0 : i32
    %c0_i32_0 = arith.constant 0 : i32
    %c0_i32_1 = arith.constant 0 : i32
    %c0_i32_2 = arith.constant 0 : i32
    return %c0_i32, %c0_i32_0, %c0_i32_1 : i32, i32, i32
  }
  func.func @transform_8(%arg0: i32) -> (i32, i32) {
    %c0_i32 = arith.constant 0 : i32
    %c0_i32_0 = arith.constant 0 : i32
    %c0_i32_1 = arith.constant 0 : i32
    return %c0_i32, %c0_i32_0 : i32, i32
  }
  func.func @transform_9(%arg0: i32) -> (i32, i32) {
    %c0_i32 = arith.constant 0 : i32
    %c0_i32_0 = arith.constant 0 : i32
    %c0_i32_1 = arith.constant 0 : i32
    return %c0_i32, %c0_i32_0 : i32, i32
  }
  func.func @transform_10(%arg0: i32) -> (i32, i32) {
    %c0_i32 = arith.constant 0 : i32
    %c0_i32_0 = arith.constant 0 : i32
    %c0_i32_1 = arith.constant 0 : i32
    return %c0_i32, %c0_i32_0 : i32, i32
  }
  func.func @transform_11(%arg0: i32) -> (i32, i32, i32) {
    %c0_i32 = arith.constant 0 : i32
    %c0_i32_0 = arith.constant 0 : i32
    %c0_i32_1 = arith.constant 0 : i32
    %c0_i32_2 = arith.constant 0 : i32
    return %c0_i32, %c0_i32_0, %c0_i32_1 : i32, i32, i32
  }
  func.func @transform_12(%arg0: i32) -> (i32, i32) {
    %c0_i32 = arith.constant 0 : i32
    %c0_i32_0 = arith.constant 0 : i32
    %c0_i32_1 = arith.constant 0 : i32
    return %c0_i32, %c0_i32_0 : i32, i32
  }
  func.func @transform_13(%arg0: i32) -> (i32, i32) {
    %c0_i32 = arith.constant 0 : i32
    %c0_i32_0 = arith.constant 0 : i32
    %c0_i32_1 = arith.constant 0 : i32
    return %c0_i32, %c0_i32_0 : i32, i32
  }
  func.func @transform_14(%arg0: i32) -> (i32, i32) {
    %c0_i32 = arith.constant 0 : i32
    %c0_i32_0 = arith.constant 0 : i32
    %c0_i32_1 = arith.constant 0 : i32
    return %c0_i32, %c0_i32_0 : i32, i32
  }
  func.func @transform_15(%arg0: i32) -> (i32, i32, i32) {
    %c0_i32 = arith.constant 0 : i32
    %c0_i32_0 = arith.constant 0 : i32
    %c0_i32_1 = arith.constant 0 : i32
    %c0_i32_2 = arith.constant 0 : i32
    return %c0_i32, %c0_i32_0, %c0_i32_1 : i32, i32, i32
  }
  func.func @transform_16(%arg0: i32) -> (i32, i32) {
    %c0_i32 = arith.constant 0 : i32
    %c0_i32_0 = arith.constant 0 : i32
    %c0_i32_1 = arith.constant 0 : i32
    return %c0_i32, %c0_i32_0 : i32, i32
  }
  func.func @transform_17(%arg0: i32) -> (i32, i32) {
    %c0_i32 = arith.constant 0 : i32
    %c0_i32_0 = arith.constant 0 : i32
    %c0_i32_1 = arith.constant 0 : i32
    return %c0_i32, %c0_i32_0 : i32, i32
  }
  func.func @transform_18(%arg0: i32) -> (i32, i32) {
    %c0_i32 = arith.constant 0 : i32
    %c0_i32_0 = arith.constant 0 : i32
    %c0_i32_1 = arith.constant 0 : i32
    return %c0_i32, %c0_i32_0 : i32, i32
  }
  func.func @transform_19(%arg0: i32) -> (i32, i32, i32) {
    %c0_i32 = arith.constant 0 : i32
    %c0_i32_0 = arith.constant 0 : i32
    %c0_i32_1 = arith.constant 0 : i32
    %c0_i32_2 = arith.constant 0 : i32
    return %c0_i32, %c0_i32_0, %c0_i32_1 : i32, i32, i32
  }
  func.func @transform_20(%arg0: i32) -> (i32, i32) {
    %c0_i32 = arith.constant 0 : i32
    %c0_i32_0 = arith.constant 0 : i32
    %c0_i32_1 = arith.constant 0 : i32
    return %c0_i32, %c0_i32_0 : i32, i32
  }
  func.func @transform_21(%arg0: i32) -> (i32, i32) {
    %c0_i32 = arith.constant 0 : i32
    %c0_i32_0 = arith.constant 0 : i32
    %c0_i32_1 = arith.constant 0 : i32
    return %c0_i32, %c0_i32_0 : i32, i32
  }
  func.func @transform_22(%arg0: i32) -> (i32, i32) {
    %c0_i32 = arith.constant 0 : i32
    %c0_i32_0 = arith.constant 0 : i32
    %c0_i32_1 = arith.constant 0 : i32
    return %c0_i32, %c0_i32_0 : i32, i32
  }
  func.func @transform_23(%arg0: i32) -> (i32, i32, i32) {
    %c0_i32 = arith.constant 0 : i32
    %c0_i32_0 = arith.constant 0 : i32
    %c0_i32_1 = arith.constant 0 : i32
    %c0_i32_2 = arith.constant 0 : i32
    return %c0_i32, %c0_i32_0, %c0_i32_1 : i32, i32, i32
  }
  func.func @transform_24(%arg0: i32) -> (i32, i32) {
    %c0_i32 = arith.constant 0 : i32
    %c0_i32_0 = arith.constant 0 : i32
    %c0_i32_1 = arith.constant 0 : i32
    return %c0_i32, %c0_i32_0 : i32, i32
  }
  func.func @transform_25(%arg0: i32) -> (i32, i32) {
    %c0_i32 = arith.constant 0 : i32
    %c0_i32_0 = arith.constant 0 : i32
    %c0_i32_1 = arith.constant 0 : i32
    return %c0_i32, %c0_i32_0 : i32, i32
  }
  func.func @transform_26(%arg0: i32) -> (i32, i32) {
    %c0_i32 = arith.constant 0 : i32
    %c0_i32_0 = arith.constant 0 : i32
    %c0_i32_1 = arith.constant 0 : i32
    return %c0_i32, %c0_i32_0 : i32, i32
  }
  func.func @transform_27(%arg0: i32) -> (i32, i32, i32) {
    %c0_i32 = arith.constant 0 : i32
    %c0_i32_0 = arith.constant 0 : i32
    %c0_i32_1 = arith.constant 0 : i32
    %c0_i32_2 = arith.constant 0 : i32
    return %c0_i32, %c0_i32_0, %c0_i32_1 : i32, i32, i32
  }
  func.func @transform_28(%arg0: i32) -> (i32, i32) {
    %c0_i32 = arith.constant 0 : i32
    %c0_i32_0 = arith.constant 0 : i32
    %c0_i32_1 = arith.constant 0 : i32
    return %c0_i32, %c0_i32_0 : i32, i32
  }
  func.func @transform_29(%arg0: i32) -> (i32, i32) {
    %c0_i32 = arith.constant 0 : i32
    %c0_i32_0 = arith.constant 0 : i32
    %c0_i32_1 = arith.constant 0 : i32
    return %c0_i32, %c0_i32_0 : i32, i32
  }
  func.func @transform_30(%arg0: i32) -> (i32, i32) {
    %c0_i32 = arith.constant 0 : i32
    %c0_i32_0 = arith.constant 0 : i32
    %c0_i32_1 = arith.constant 0 : i32
    return %c0_i32, %c0_i32_0 : i32, i32
  }
  func.func @transform_31(%arg0: i32) -> (i32, i32) {
    %c0_i32 = arith.constant 0 : i32
    %c0_i32_0 = arith.constant 0 : i32
    %c0_i32_1 = arith.constant 0 : i32
    return %c0_i32, %c0_i32_0 : i32, i32
  }
  func.func @transform_32(%arg0: i32) -> (i32, i32) {
    %c0_i32 = arith.constant 0 : i32
    %c0_i32_0 = arith.constant 0 : i32
    %c0_i32_1 = arith.constant 0 : i32
    return %c0_i32, %c0_i32_0 : i32, i32
  }
  func.func @transform_33(%arg0: i32) -> (i32, i32, i32) {
    %c0_i32 = arith.constant 0 : i32
    %c0_i32_0 = arith.constant 0 : i32
    %c0_i32_1 = arith.constant 0 : i32
    return %arg0, %c0_i32, %c0_i32_0 : i32, i32, i32
  }
}

</mosaic_0001>

<llo_original>
// kernel: forward.1
$region0: #{forward.1}
  #allocation0 [shape = 'u32[]', space=smem, size = 0x4, offset = 0x4, fixed_abs, tag = 'smem constant byte address 0x4 - core index']
  #allocation1 [shape = 'u32[72,128]{1,0:T(1,128)}', space=vmem, size = 0x9000, scoped, tag = 'internal scratch']
  #allocation2 [shape = 'bf16[122,32]{1,0:T(8,128)(2,1)}', space=vmem, size = 0x8000, scoped, tag = 'scratch operand']
  #allocation3 [shape = 'bf16[50,32]{1,0:T(8,128)(2,1)}', space=vmem, size = 0x3800, scoped, tag = 'scratch operand']
  #allocation4 [shape = 'bf16[26,64]{1,0:T(8,128)(2,1)}', space=vmem, size = 0x2000, scoped, tag = 'scratch operand']
  %s0 = inlined_call_operand.smem [shape: u32[34], index: -1, kind: input, shape index: {}]
  %s1 = sld [smem:[%s0]]
  %s2 = scalar_lea.smem %s0, 1
  %s3 = sld [smem:[%s2]]
  %s4 = scalar_lea.smem %s0, 2
  %s5 = sld [smem:[%s4]]
  %s6 = scalar_lea.smem %s0, 3
  %s7 = sld [smem:[%s6]]
  %s8 = scalar_lea.smem %s0, 4
  %s9 = sld [smem:[%s8]]
  %s10 = scalar_lea.smem %s0, 5
  %s11 = sld [smem:[%s10]]
  %s12 = scalar_lea.smem %s0, 6
  %s13 = sld [smem:[%s12]]
  %s14 = scalar_lea.smem %s0, 7
  %s15 = sld [smem:[%s14]]
  %s16 = scalar_lea.smem %s0, 8
  %s17 = sld [smem:[%s16]]
  %s18 = scalar_lea.smem %s0, 9
  %s19 = sld [smem:[%s18]]
  %s20 = scalar_lea.smem %s0, 10
  %s21 = sld [smem:[%s20]]
  %s22 = scalar_lea.smem %s0, 11
  %s23 = sld [smem:[%s22]]
  %s24 = scalar_lea.smem %s0, 12
  %s25 = sld [smem:[%s24]]
  %s26 = scalar_lea.smem %s0, 13
  %s27 = sld [smem:[%s26]]
  %s28 = scalar_lea.smem %s0, 14
  %s29 = sld [smem:[%s28]]
  %s30 = scalar_lea.smem %s0, 15
  %s31 = sld [smem:[%s30]]
  %s32 = scalar_lea.smem %s0, 16
  %s33 = sld [smem:[%s32]]
  %s34 = scalar_lea.smem %s0, 17
  %s35 = sld [smem:[%s34]]
  %s36 = scalar_lea.smem %s0, 18
  %s37 = sld [smem:[%s36]]
  %s38 = scalar_lea.smem %s0, 19
  %s39 = sld [smem:[%s38]]
  %s40 = scalar_lea.smem %s0, 20
  %s41 = sld [smem:[%s40]]
  %s42 = scalar_lea.smem %s0, 21
  %s43 = sld [smem:[%s42]]
  %s44 = scalar_lea.smem %s0, 22
  %s45 = sld [smem:[%s44]]
  %s46 = scalar_lea.smem %s0, 23
  %s47 = sld [smem:[%s46]]
  %s48 = scalar_lea.smem %s0, 24
  %s49 = sld [smem:[%s48]]
  %s50 = scalar_lea.smem %s0, 25
  %s51 = sld [smem:[%s50]]
  %s52 = scalar_lea.smem %s0, 26
  %s53 = sld [smem:[%s52]]
  %s54 = scalar_lea.smem %s0, 27
  %s55 = sld [smem:[%s54]]
  %s56 = scalar_lea.smem %s0, 28
  %s57 = sld [smem:[%s56]]
  %s58 = scalar_lea.smem %s0, 29
  %s59 = sld [smem:[%s58]]
  %s60 = scalar_lea.smem %s0, 30
  %s61 = sld [smem:[%s60]]
  %s62 = scalar_lea.smem %s0, 31
  %s63 = sld [smem:[%s62]]
  %s64 = scalar_lea.smem %s0, 32
  %s65 = sld [smem:[%s64]]
  %s66 = scalar_lea.smem %s0, 33
  %s67 = sld [smem:[%s66]]
  %s68 = sld [smem:[#allocation0]]
  $region165: #{forward.1} parent=0
    _
  %s70 = ssub.s32 1, %s68
  %s71 = scalar_select 0, %s70, %s68
  $region1: #{forward.1} parent=0
    #allocation5 [shape = 'u8[1024]{0}', space=vmem, size = 0x400, scoped, tag = 'output window, operand 0']
    #allocation6 [shape = 's32[2]{0}', space=sflag, size = 0x8, scoped, tag = 'scoped memory for forward.1']
    %72 = vsyncpa [#allocation6], 0
    %s73 = scalar_lea.sflag [#allocation6], 1
    %74 = vsyncpa %s73, 0
    loop: start=0, step=1, limit=4
    $region2: #{forward.1} parent=1 // loop_pre_header
      _
    $region3: #{forward.1} parent=1 // loop_header
      %s76 = sphi 0, %s80
      %p77 = scmp.ge.s32.totalorder %s76, 4
      %s86 = sphi 0, %s88
      %s89 = sphi 0, %s86
      %s90 = sphi 0, %s89
      %s106 = sphi 0, %s90
      %s110 = sphi 0, %s110
      %s112 = sphi 0, %s110
      %s113 = sphi 0, %s112
      %s127 = sphi 0, %s113
      %s131 = sphi 0, %s131
      %s133 = sphi 0, %s131
      %s134 = sphi 0, %s133
      %s148 = sphi 0, %s134
      %s152 = sphi 0, %s152
      %s154 = sphi 0, %s152
      %s155 = sphi 0, %s154
      %s169 = sphi 0, %s155
      %s173 = sphi 0, %s173
      %s175 = sphi 0, %s173
      %s176 = sphi 0, %s175
      %s190 = sphi 0, %s176
      %s194 = sphi 0, %s194
      %s196 = sphi 0, %s194
      %s197 = sphi 0, %s196
      %s211 = sphi 0, %s197
      %s215 = sphi 0, %s215
      %s217 = sphi 0, %s215
      %s218 = sphi 0, %s217
      %s232 = sphi 0, %s218
      %s236 = sphi 0, %s236
      %s238 = sphi 0, %s236
      %s239 = sphi 0, %s238
      %s253 = sphi 0, %s239
      %s257 = sphi 0, %s257
      %s259 = sphi 0, %s257
      %s260 = sphi 0, %s259
      %s274 = sphi 0, %s260
      %s278 = sphi 0, %s278
      %s280 = sphi 0, %s278
      %s281 = sphi 0, %s280
      %s295 = sphi 0, %s281
      %s299 = sphi 0, %s299
      %s301 = sphi 0, %s299
      %s302 = sphi 0, %s301
      %s316 = sphi 0, %s302
      %s320 = sphi 0, %s320
      %s322 = sphi 0, %s320
      %s323 = sphi 0, %s322
      %s337 = sphi 0, %s323
      %s341 = sphi 0, %s341
      %s343 = sphi 0, %s341
      %s344 = sphi 0, %s343
      %s358 = sphi 0, %s344
      %s362 = sphi 0, %s362
      %s364 = sphi 0, %s362
      %s365 = sphi 0, %s364
      %s379 = sphi 0, %s365
      %s383 = sphi 0, %s383
      %s385 = sphi 0, %s383
      %s386 = sphi 0, %s385
      %s400 = sphi 0, %s386
      %s404 = sphi 0, %s404
      %s406 = sphi 0, %s404
      %s407 = sphi 0, %s406
      %s421 = sphi 0, %s407
      %s425 = sphi 0, %s425
      %s427 = sphi 0, %s425
      %s428 = sphi 0, %s427
      %s442 = sphi 0, %s428
      %s446 = sphi 0, %s446
      %s448 = sphi 0, %s446
      %s449 = sphi 0, %s448
      %s463 = sphi 0, %s449
      %s467 = sphi 0, %s467
      %s469 = sphi 0, %s467
      %s470 = sphi 0, %s469
      %s484 = sphi 0, %s470
      %s488 = sphi 0, %s488
      %s490 = sphi 0, %s488
      %s491 = sphi 0, %s490
      %s505 = sphi 0, %s491
      %s509 = sphi 0, %s509
      %s511 = sphi 0, %s509
      %s512 = sphi 0, %s511
      %s526 = sphi 0, %s512
      %s530 = sphi 0, %s530
      %s532 = sphi 0, %s530
      %s533 = sphi 0, %s532
      %s547 = sphi 0, %s533
      %s551 = sphi 0, %s551
      %s553 = sphi 0, %s551
      %s554 = sphi 0, %s553
      %s568 = sphi 0, %s554
      %s572 = sphi 0, %s572
      %s574 = sphi 0, %s572
      %s575 = sphi 0, %s574
      %s589 = sphi 0, %s575
      %s593 = sphi 0, %s593
      %s595 = sphi 0, %s593
      %s596 = sphi 0, %s595
      %s610 = sphi 0, %s596
      %s614 = sphi 0, %s614
      %s616 = sphi 0, %s614
      %s617 = sphi 0, %s616
      %s631 = sphi 0, %s617
      %s635 = sphi 0, %s635
      %s637 = sphi 0, %s635
      %s638 = sphi 0, %s637
      %s652 = sphi 0, %s638
      %s656 = sphi 0, %s656
      %s658 = sphi 0, %s656
      %s659 = sphi 0, %s658
      %s673 = sphi 0, %s659
      %s677 = sphi 0, %s677
      %s679 = sphi 0, %s677
      %s680 = sphi 0, %s679
      %s694 = sphi 0, %s680
      %s698 = sphi 0, %s698
      %s700 = sphi 0, %s698
      %s701 = sphi 0, %s700
      %s715 = sphi 0, %s701
      %s719 = sphi 0, %s719
      %s721 = sphi 0, %s719
      %s722 = sphi 0, %s721
      %s736 = sphi 0, %s722
      %s740 = sphi 0, %s740
      %s742 = sphi 0, %s740
      %s743 = sphi 0, %s742
      %s757 = sphi 0, %s743
      %s761 = sphi 0, %s761
      %s763 = sphi 0, %s761
      %s764 = sphi 0, %s763
      %s778 = sphi 0, %s764
      %s784 = sphi 0, %s786
      %s787 = sphi 0, %s784
      %s788 = sphi 0, %s787
      %s804 = sphi 0, %s788
    $region4: #{forward.1} parent=1 // loop_header_branch
      %79 = sbr.rel (%p77) target = $region8
    $region5: #{forward.1} parent=1 // loop_body
      %s81 = ssub.s32 %s76, 1
      %s82 = ssub.s32 %s76, 2
      %s83 = sadd.s32 %s76, 1
      %s84 = ssub.s32 %s76, %s83
      %p85 = scmp.eq.s32.totalorder %s84, 0
      %s87 = sadd.s32 %s86, 1
      %s88 = scalar_select %p85, %s86, %s87
      %p91 = pneg %p85
      %p92 = scmp.eq.s32.totalorder %s76, 1
      %p93 = por %p91, %p92
      %p94 = scmp.ne.s32.totalorder %s86, %s89
      %p95 = scmp.eq.s32.totalorder %s76, 0
      %p96 = por %p94, %p95
      %p97 = scmp.ne.s32.totalorder %s86, %s89
      %p98 = scmp.eq.s32.totalorder %s81, 1
      %p99 = por %p97, %p98
      %p100 = scmp.ne.s32.totalorder %s89, %s90
      %p101 = scmp.eq.s32.totalorder %s81, 0
      %p102 = por %p100, %p101
      %p103 = scmp.ne.s32.totalorder %s89, %s90
      %p104 = scmp.eq.s32.totalorder %s82, 1
      %p105 = por %p103, %p104
      %p107 = scmp.ne.s32.totalorder %s90, %s106
      %p108 = scmp.eq.s32.totalorder %s82, 0
      %p109 = por %p107, %p108
      %s111 = sadd.s32 %s110, 1
      %p114 = scmp.eq.s32.totalorder %s76, 1
      %p115 = scmp.ne.s32.totalorder %s110, %s112
      %p116 = scmp.eq.s32.totalorder %s76, 0
      %p117 = por %p115, %p116
      %p118 = scmp.ne.s32.totalorder %s110, %s112
      %p119 = scmp.eq.s32.totalorder %s81, 1
      %p120 = por %p118, %p119
      %p121 = scmp.ne.s32.totalorder %s112, %s113
      %p122 = scmp.eq.s32.totalorder %s81, 0
      %p123 = por %p121, %p122
      %p124 = scmp.ne.s32.totalorder %s112, %s113
      %p125 = scmp.eq.s32.totalorder %s82, 1
      %p126 = por %p124, %p125
      %p128 = scmp.ne.s32.totalorder %s113, %s127
      %p129 = scmp.eq.s32.totalorder %s82, 0
      %p130 = por %p128, %p129
      %s132 = sadd.s32 %s131, 1
      %p135 = scmp.eq.s32.totalorder %s76, 1
      %p136 = scmp.ne.s32.totalorder %s131, %s133
      %p137 = scmp.eq.s32.totalorder %s76, 0
      %p138 = por %p136, %p137
      %p139 = scmp.ne.s32.totalorder %s131, %s133
      %p140 = scmp.eq.s32.totalorder %s81, 1
      %p141 = por %p139, %p140
      %p142 = scmp.ne.s32.totalorder %s133, %s134
      %p143 = scmp.eq.s32.totalorder %s81, 0
      %p144 = por %p142, %p143
      %p145 = scmp.ne.s32.totalorder %s133, %s134
      %p146 = scmp.eq.s32.totalorder %s82, 1
      %p147 = por %p145, %p146
      %p149 = scmp.ne.s32.totalorder %s134, %s148
      %p150 = scmp.eq.s32.totalorder %s82, 0
      %p151 = por %p149, %p150
      %s153 = sadd.s32 %s152, 1
      %p156 = scmp.eq.s32.totalorder %s76, 1
      %p157 = scmp.ne.s32.totalorder %s152, %s154
      %p158 = scmp.eq.s32.totalorder %s76, 0
      %p159 = por %p157, %p158
      %p160 = scmp.ne.s32.totalorder %s152, %s154
      %p161 = scmp.eq.s32.totalorder %s81, 1
      %p162 = por %p160, %p161
      %p163 = scmp.ne.s32.totalorder %s154, %s155
      %p164 = scmp.eq.s32.totalorder %s81, 0
      %p165 = por %p163, %p164
      %p166 = scmp.ne.s32.totalorder %s154, %s155
      %p167 = scmp.eq.s32.totalorder %s82, 1
      %p168 = por %p166, %p167
      %p170 = scmp.ne.s32.totalorder %s155, %s169
      %p171 = scmp.eq.s32.totalorder %s82, 0
      %p172 = por %p170, %p171
      %s174 = sadd.s32 %s173, 1
      %p177 = scmp.eq.s32.totalorder %s76, 1
      %p178 = scmp.ne.s32.totalorder %s173, %s175
      %p179 = scmp.eq.s32.totalorder %s76, 0
      %p180 = por %p178, %p179
      %p181 = scmp.ne.s32.totalorder %s173, %s175
      %p182 = scmp.eq.s32.totalorder %s81, 1
      %p183 = por %p181, %p182
      %p184 = scmp.ne.s32.totalorder %s175, %s176
      %p185 = scmp.eq.s32.totalorder %s81, 0
      %p186 = por %p184, %p185
      %p187 = scmp.ne.s32.totalorder %s175, %s176
      %p188 = scmp.eq.s32.totalorder %s82, 1
      %p189 = por %p187, %p188
      %p191 = scmp.ne.s32.totalorder %s176, %s190
      %p192 = scmp.eq.s32.totalorder %s82, 0
      %p193 = por %p191, %p192
      %s195 = sadd.s32 %s194, 1
      %p198 = scmp.eq.s32.totalorder %s76, 1
      %p199 = scmp.ne.s32.totalorder %s194, %s196
      %p200 = scmp.eq.s32.totalorder %s76, 0
      %p201 = por %p199, %p200
      %p202 = scmp.ne.s32.totalorder %s194, %s196
      %p203 = scmp.eq.s32.totalorder %s81, 1
      %p204 = por %p202, %p203
      %p205 = scmp.ne.s32.totalorder %s196, %s197
      %p206 = scmp.eq.s32.totalorder %s81, 0
      %p207 = por %p205, %p206
      %p208 = scmp.ne.s32.totalorder %s196, %s197
      %p209 = scmp.eq.s32.totalorder %s82, 1
      %p210 = por %p208, %p209
      %p212 = scmp.ne.s32.totalorder %s197, %s211
      %p213 = scmp.eq.s32.totalorder %s82, 0
      %p214 = por %p212, %p213
      %s216 = sadd.s32 %s215, 1
      %p219 = scmp.eq.s32.totalorder %s76, 1
      %p220 = scmp.ne.s32.totalorder %s215, %s217
      %p221 = scmp.eq.s32.totalorder %s76, 0
      %p222 = por %p220, %p221
      %p223 = scmp.ne.s32.totalorder %s215, %s217
      %p224 = scmp.eq.s32.totalorder %s81, 1
      %p225 = por %p223, %p224
      %p226 = scmp.ne.s32.totalorder %s217, %s218
      %p227 = scmp.eq.s32.totalorder %s81, 0
      %p228 = por %p226, %p227
      %p229 = scmp.ne.s32.totalorder %s217, %s218
      %p230 = scmp.eq.s32.totalorder %s82, 1
      %p231 = por %p229, %p230
      %p233 = scmp.ne.s32.totalorder %s218, %s232
      %p234 = scmp.eq.s32.totalorder %s82, 0
      %p235 = por %p233, %p234
      %s237 = sadd.s32 %s236, 1
      %p240 = scmp.eq.s32.totalorder %s76, 1
      %p241 = scmp.ne.s32.totalorder %s236, %s238
      %p242 = scmp.eq.s32.totalorder %s76, 0
      %p243 = por %p241, %p242
      %p244 = scmp.ne.s32.totalorder %s236, %s238
      %p245 = scmp.eq.s32.totalorder %s81, 1
      %p246 = por %p244, %p245
      %p247 = scmp.ne.s32.totalorder %s238, %s239
      %p248 = scmp.eq.s32.totalorder %s81, 0
      %p249 = por %p247, %p248
      %p250 = scmp.ne.s32.totalorder %s238, %s239
      %p251 = scmp.eq.s32.totalorder %s82, 1
      %p252 = por %p250, %p251
      %p254 = scmp.ne.s32.totalorder %s239, %s253
      %p255 = scmp.eq.s32.totalorder %s82, 0
      %p256 = por %p254, %p255
      %s258 = sadd.s32 %s257, 1
      %p261 = scmp.eq.s32.totalorder %s76, 1
      %p262 = scmp.ne.s32.totalorder %s257, %s259
      %p263 = scmp.eq.s32.totalorder %s76, 0
      %p264 = por %p262, %p263
      %p265 = scmp.ne.s32.totalorder %s257, %s259
      %p266 = scmp.eq.s32.totalorder %s81, 1
      %p267 = por %p265, %p266
      %p268 = scmp.ne.s32.totalorder %s259, %s260
      %p269 = scmp.eq.s32.totalorder %s81, 0
      %p270 = por %p268, %p269
      %p271 = scmp.ne.s32.totalorder %s259, %s260
      %p272 = scmp.eq.s32.totalorder %s82, 1
      %p273 = por %p271, %p272
      %p275 = scmp.ne.s32.totalorder %s260, %s274
      %p276 = scmp.eq.s32.totalorder %s82, 0
      %p277 = por %p275, %p276
      %s279 = sadd.s32 %s278, 1
      %p282 = scmp.eq.s32.totalorder %s76, 1
      %p283 = scmp.ne.s32.totalorder %s278, %s280
      %p284 = scmp.eq.s32.totalorder %s76, 0
      %p285 = por %p283, %p284
      %p286 = scmp.ne.s32.totalorder %s278, %s280
      %p287 = scmp.eq.s32.totalorder %s81, 1
      %p288 = por %p286, %p287
      %p289 = scmp.ne.s32.totalorder %s280, %s281
      %p290 = scmp.eq.s32.totalorder %s81, 0
      %p291 = por %p289, %p290
      %p292 = scmp.ne.s32.totalorder %s280, %s281
      %p293 = scmp.eq.s32.totalorder %s82, 1
      %p294 = por %p292, %p293
      %p296 = scmp.ne.s32.totalorder %s281, %s295
      %p297 = scmp.eq.s32.totalorder %s82, 0
      %p298 = por %p296, %p297
      %s300 = sadd.s32 %s299, 1
      %p303 = scmp.eq.s32.totalorder %s76, 1
      %p304 = scmp.ne.s32.totalorder %s299, %s301
      %p305 = scmp.eq.s32.totalorder %s76, 0
      %p306 = por %p304, %p305
      %p307 = scmp.ne.s32.totalorder %s299, %s301
      %p308 = scmp.eq.s32.totalorder %s81, 1
      %p309 = por %p307, %p308
      %p310 = scmp.ne.s32.totalorder %s301, %s302
      %p311 = scmp.eq.s32.totalorder %s81, 0
      %p312 = por %p310, %p311
      %p313 = scmp.ne.s32.totalorder %s301, %s302
      %p314 = scmp.eq.s32.totalorder %s82, 1
      %p315 = por %p313, %p314
      %p317 = scmp.ne.s32.totalorder %s302, %s316
      %p318 = scmp.eq.s32.totalorder %s82, 0
      %p319 = por %p317, %p318
      %s321 = sadd.s32 %s320, 1
      %p324 = scmp.eq.s32.totalorder %s76, 1
      %p325 = scmp.ne.s32.totalorder %s320, %s322
      %p326 = scmp.eq.s32.totalorder %s76, 0
      %p327 = por %p325, %p326
      %p328 = scmp.ne.s32.totalorder %s320, %s322
      %p329 = scmp.eq.s32.totalorder %s81, 1
      %p330 = por %p328, %p329
      %p331 = scmp.ne.s32.totalorder %s322, %s323
      %p332 = scmp.eq.s32.totalorder %s81, 0
      %p333 = por %p331, %p332
      %p334 = scmp.ne.s32.totalorder %s322, %s323
      %p335 = scmp.eq.s32.totalorder %s82, 1
      %p336 = por %p334, %p335
      %p338 = scmp.ne.s32.totalorder %s323, %s337
      %p339 = scmp.eq.s32.totalorder %s82, 0
      %p340 = por %p338, %p339
      %s342 = sadd.s32 %s341, 1
      %p345 = scmp.eq.s32.totalorder %s76, 1
      %p346 = scmp.ne.s32.totalorder %s341, %s343
      %p347 = scmp.eq.s32.totalorder %s76, 0
      %p348 = por %p346, %p347
      %p349 = scmp.ne.s32.totalorder %s341, %s343
      %p350 = scmp.eq.s32.totalorder %s81, 1
      %p351 = por %p349, %p350
      %p352 = scmp.ne.s32.totalorder %s343, %s344
      %p353 = scmp.eq.s32.totalorder %s81, 0
      %p354 = por %p352, %p353
      %p355 = scmp.ne.s32.totalorder %s343, %s344
      %p356 = scmp.eq.s32.totalorder %s82, 1
      %p357 = por %p355, %p356
      %p359 = scmp.ne.s32.totalorder %s344, %s358
      %p360 = scmp.eq.s32.totalorder %s82, 0
      %p361 = por %p359, %p360
      %s363 = sadd.s32 %s362, 1
      %p366 = scmp.eq.s32.totalorder %s76, 1
      %p367 = scmp.ne.s32.totalorder %s362, %s364
      %p368 = scmp.eq.s32.totalorder %s76, 0
      %p369 = por %p367, %p368
      %p370 = scmp.ne.s32.totalorder %s362, %s364
      %p371 = scmp.eq.s32.totalorder %s81, 1
      %p372 = por %p370, %p371
      %p373 = scmp.ne.s32.totalorder %s364, %s365
      %p374 = scmp.eq.s32.totalorder %s81, 0
      %p375 = por %p373, %p374
      %p376 = scmp.ne.s32.totalorder %s364, %s365
      %p377 = scmp.eq.s32.totalorder %s82, 1
      %p378 = por %p376, %p377
      %p380 = scmp.ne.s32.totalorder %s365, %s379
      %p381 = scmp.eq.s32.totalorder %s82, 0
      %p382 = por %p380, %p381
      %s384 = sadd.s32 %s383, 1
      %p387 = scmp.eq.s32.totalorder %s76, 1
      %p388 = scmp.ne.s32.totalorder %s383, %s385
      %p389 = scmp.eq.s32.totalorder %s76, 0
      %p390 = por %p388, %p389
      %p391 = scmp.ne.s32.totalorder %s383, %s385
      %p392 = scmp.eq.s32.totalorder %s81, 1
      %p393 = por %p391, %p392
      %p394 = scmp.ne.s32.totalorder %s385, %s386
      %p395 = scmp.eq.s32.totalorder %s81, 0
      %p396 = por %p394, %p395
      %p397 = scmp.ne.s32.totalorder %s385, %s386
      %p398 = scmp.eq.s32.totalorder %s82, 1
      %p399 = por %p397, %p398
      %p401 = scmp.ne.s32.totalorder %s386, %s400
      %p402 = scmp.eq.s32.totalorder %s82, 0
      %p403 = por %p401, %p402
      %s405 = sadd.s32 %s404, 1
      %p408 = scmp.eq.s32.totalorder %s76, 1
      %p409 = scmp.ne.s32.totalorder %s404, %s406
      %p410 = scmp.eq.s32.totalorder %s76, 0
      %p411 = por %p409, %p410
      %p412 = scmp.ne.s32.totalorder %s404, %s406
      %p413 = scmp.eq.s32.totalorder %s81, 1
      %p414 = por %p412, %p413
      %p415 = scmp.ne.s32.totalorder %s406, %s407
      %p416 = scmp.eq.s32.totalorder %s81, 0
      %p417 = por %p415, %p416
      %p418 = scmp.ne.s32.totalorder %s406, %s407
      %p419 = scmp.eq.s32.totalorder %s82, 1
      %p420 = por %p418, %p419
      %p422 = scmp.ne.s32.totalorder %s407, %s421
      %p423 = scmp.eq.s32.totalorder %s82, 0
      %p424 = por %p422, %p423
      %s426 = sadd.s32 %s425, 1
      %p429 = scmp.eq.s32.totalorder %s76, 1
      %p430 = scmp.ne.s32.totalorder %s425, %s427
      %p431 = scmp.eq.s32.totalorder %s76, 0
      %p432 = por %p430, %p431
      %p433 = scmp.ne.s32.totalorder %s425, %s427
      %p434 = scmp.eq.s32.totalorder %s81, 1
      %p435 = por %p433, %p434
      %p436 = scmp.ne.s32.totalorder %s427, %s428
      %p437 = scmp.eq.s32.totalorder %s81, 0
      %p438 = por %p436, %p437
      %p439 = scmp.ne.s32.totalorder %s427, %s428
      %p440 = scmp.eq.s32.totalorder %s82, 1
      %p441 = por %p439, %p440
      %p443 = scmp.ne.s32.totalorder %s428, %s442
      %p444 = scmp.eq.s32.totalorder %s82, 0
      %p445 = por %p443, %p444
      %s447 = sadd.s32 %s446, 1
      %p450 = scmp.eq.s32.totalorder %s76, 1
      %p451 = scmp.ne.s32.totalorder %s446, %s448
      %p452 = scmp.eq.s32.totalorder %s76, 0
      %p453 = por %p451, %p452
      %p454 = scmp.ne.s32.totalorder %s446, %s448
      %p455 = scmp.eq.s32.totalorder %s81, 1
      %p456 = por %p454, %p455
      %p457 = scmp.ne.s32.totalorder %s448, %s449
      %p458 = scmp.eq.s32.totalorder %s81, 0
      %p459 = por %p457, %p458
      %p460 = scmp.ne.s32.totalorder %s448, %s449
      %p461 = scmp.eq.s32.totalorder %s82, 1
      %p462 = por %p460, %p461
      %p464 = scmp.ne.s32.totalorder %s449, %s463
      %p465 = scmp.eq.s32.totalorder %s82, 0
      %p466 = por %p464, %p465
      %s468 = sadd.s32 %s467, 1
      %p471 = scmp.eq.s32.totalorder %s76, 1
      %p472 = scmp.ne.s32.totalorder %s467, %s469
      %p473 = scmp.eq.s32.totalorder %s76, 0
      %p474 = por %p472, %p473
      %p475 = scmp.ne.s32.totalorder %s467, %s469
      %p476 = scmp.eq.s32.totalorder %s81, 1
      %p477 = por %p475, %p476
      %p478 = scmp.ne.s32.totalorder %s469, %s470
      %p479 = scmp.eq.s32.totalorder %s81, 0
      %p480 = por %p478, %p479
      %p481 = scmp.ne.s32.totalorder %s469, %s470
      %p482 = scmp.eq.s32.totalorder %s82, 1
      %p483 = por %p481, %p482
      %p485 = scmp.ne.s32.totalorder %s470, %s484
      %p486 = scmp.eq.s32.totalorder %s82, 0
      %p487 = por %p485, %p486
      %s489 = sadd.s32 %s488, 1
      %p492 = scmp.eq.s32.totalorder %s76, 1
      %p493 = scmp.ne.s32.totalorder %s488, %s490
      %p494 = scmp.eq.s32.totalorder %s76, 0
      %p495 = por %p493, %p494
      %p496 = scmp.ne.s32.totalorder %s488, %s490
      %p497 = scmp.eq.s32.totalorder %s81, 1
      %p498 = por %p496, %p497
      %p499 = scmp.ne.s32.totalorder %s490, %s491
      %p500 = scmp.eq.s32.totalorder %s81, 0
      %p501 = por %p499, %p500
      %p502 = scmp.ne.s32.totalorder %s490, %s491
      %p503 = scmp.eq.s32.totalorder %s82, 1
      %p504 = por %p502, %p503
      %p506 = scmp.ne.s32.totalorder %s491, %s505
      %p507 = scmp.eq.s32.totalorder %s82, 0
      %p508 = por %p506, %p507
      %s510 = sadd.s32 %s509, 1
      %p513 = scmp.eq.s32.totalorder %s76, 1
      %p514 = scmp.ne.s32.totalorder %s509, %s511
      %p515 = scmp.eq.s32.totalorder %s76, 0
      %p516 = por %p514, %p515
      %p517 = scmp.ne.s32.totalorder %s509, %s511
      %p518 = scmp.eq.s32.totalorder %s81, 1
      %p519 = por %p517, %p518
      %p520 = scmp.ne.s32.totalorder %s511, %s512
      %p521 = scmp.eq.s32.totalorder %s81, 0
      %p522 = por %p520, %p521
      %p523 = scmp.ne.s32.totalorder %s511, %s512
      %p524 = scmp.eq.s32.totalorder %s82, 1
      %p525 = por %p523, %p524
      %p527 = scmp.ne.s32.totalorder %s512, %s526
      %p528 = scmp.eq.s32.totalorder %s82, 0
      %p529 = por %p527, %p528
      %s531 = sadd.s32 %s530, 1
      %p534 = scmp.eq.s32.totalorder %s76, 1
      %p535 = scmp.ne.s32.totalorder %s530, %s532
      %p536 = scmp.eq.s32.totalorder %s76, 0
      %p537 = por %p535, %p536
      %p538 = scmp.ne.s32.totalorder %s530, %s532
      %p539 = scmp.eq.s32.totalorder %s81, 1
      %p540 = por %p538, %p539
      %p541 = scmp.ne.s32.totalorder %s532, %s533
      %p542 = scmp.eq.s32.totalorder %s81, 0
      %p543 = por %p541, %p542
      %p544 = scmp.ne.s32.totalorder %s532, %s533
      %p545 = scmp.eq.s32.totalorder %s82, 1
      %p546 = por %p544, %p545
      %p548 = scmp.ne.s32.totalorder %s533, %s547
      %p549 = scmp.eq.s32.totalorder %s82, 0
      %p550 = por %p548, %p549
      %s552 = sadd.s32 %s551, 1
      %p555 = scmp.eq.s32.totalorder %s76, 1
      %p556 = scmp.ne.s32.totalorder %s551, %s553
      %p557 = scmp.eq.s32.totalorder %s76, 0
      %p558 = por %p556, %p557
      %p559 = scmp.ne.s32.totalorder %s551, %s553
      %p560 = scmp.eq.s32.totalorder %s81, 1
      %p561 = por %p559, %p560
      %p562 = scmp.ne.s32.totalorder %s553, %s554
      %p563 = scmp.eq.s32.totalorder %s81, 0
      %p564 = por %p562, %p563
      %p565 = scmp.ne.s32.totalorder %s553, %s554
      %p566 = scmp.eq.s32.totalorder %s82, 1
      %p567 = por %p565, %p566
      %p569 = scmp.ne.s32.totalorder %s554, %s568
      %p570 = scmp.eq.s32.totalorder %s82, 0
      %p571 = por %p569, %p570
      %s573 = sadd.s32 %s572, 1
      %p576 = scmp.eq.s32.totalorder %s76, 1
      %p577 = scmp.ne.s32.totalorder %s572, %s574
      %p578 = scmp.eq.s32.totalorder %s76, 0
      %p579 = por %p577, %p578
      %p580 = scmp.ne.s32.totalorder %s572, %s574
      %p581 = scmp.eq.s32.totalorder %s81, 1
      %p582 = por %p580, %p581
      %p583 = scmp.ne.s32.totalorder %s574, %s575
      %p584 = scmp.eq.s32.totalorder %s81, 0
      %p585 = por %p583, %p584
      %p586 = scmp.ne.s32.totalorder %s574, %s575
      %p587 = scmp.eq.s32.totalorder %s82, 1
      %p588 = por %p586, %p587
      %p590 = scmp.ne.s32.totalorder %s575, %s589
      %p591 = scmp.eq.s32.totalorder %s82, 0
      %p592 = por %p590, %p591
      %s594 = sadd.s32 %s593, 1
      %p597 = scmp.eq.s32.totalorder %s76, 1
      %p598 = scmp.ne.s32.totalorder %s593, %s595
      %p599 = scmp.eq.s32.totalorder %s76, 0
      %p600 = por %p598, %p599
      %p601 = scmp.ne.s32.totalorder %s593, %s595
      %p602 = scmp.eq.s32.totalorder %s81, 1
      %p603 = por %p601, %p602
      %p604 = scmp.ne.s32.totalorder %s595, %s596
      %p605 = scmp.eq.s32.totalorder %s81, 0
      %p606 = por %p604, %p605
      %p607 = scmp.ne.s32.totalorder %s595, %s596
      %p608 = scmp.eq.s32.totalorder %s82, 1
      %p609 = por %p607, %p608
      %p611 = scmp.ne.s32.totalorder %s596, %s610
      %p612 = scmp.eq.s32.totalorder %s82, 0
      %p613 = por %p611, %p612
      %s615 = sadd.s32 %s614, 1
      %p618 = scmp.eq.s32.totalorder %s76, 1
      %p619 = scmp.ne.s32.totalorder %s614, %s616
      %p620 = scmp.eq.s32.totalorder %s76, 0
      %p621 = por %p619, %p620
      %p622 = scmp.ne.s32.totalorder %s614, %s616
      %p623 = scmp.eq.s32.totalorder %s81, 1
      %p624 = por %p622, %p623
      %p625 = scmp.ne.s32.totalorder %s616, %s617
      %p626 = scmp.eq.s32.totalorder %s81, 0
      %p627 = por %p625, %p626
      %p628 = scmp.ne.s32.totalorder %s616, %s617
      %p629 = scmp.eq.s32.totalorder %s82, 1
      %p630 = por %p628, %p629
      %p632 = scmp.ne.s32.totalorder %s617, %s631
      %p633 = scmp.eq.s32.totalorder %s82, 0
      %p634 = por %p632, %p633
      %s636 = sadd.s32 %s635, 1
      %p639 = scmp.eq.s32.totalorder %s76, 1
      %p640 = scmp.ne.s32.totalorder %s635, %s637
      %p641 = scmp.eq.s32.totalorder %s76, 0
      %p642 = por %p640, %p641
      %p643 = scmp.ne.s32.totalorder %s635, %s637
      %p644 = scmp.eq.s32.totalorder %s81, 1
      %p645 = por %p643, %p644
      %p646 = scmp.ne.s32.totalorder %s637, %s638
      %p647 = scmp.eq.s32.totalorder %s81, 0
      %p648 = por %p646, %p647
      %p649 = scmp.ne.s32.totalorder %s637, %s638
      %p650 = scmp.eq.s32.totalorder %s82, 1
      %p651 = por %p649, %p650
      %p653 = scmp.ne.s32.totalorder %s638, %s652
      %p654 = scmp.eq.s32.totalorder %s82, 0
      %p655 = por %p653, %p654
      %s657 = sadd.s32 %s656, 1
      %p660 = scmp.eq.s32.totalorder %s76, 1
      %p661 = scmp.ne.s32.totalorder %s656, %s658
      %p662 = scmp.eq.s32.totalorder %s76, 0
      %p663 = por %p661, %p662
      %p664 = scmp.ne.s32.totalorder %s656, %s658
      %p665 = scmp.eq.s32.totalorder %s81, 1
      %p666 = por %p664, %p665
      %p667 = scmp.ne.s32.totalorder %s658, %s659
      %p668 = scmp.eq.s32.totalorder %s81, 0
      %p669 = por %p667, %p668
      %p670 = scmp.ne.s32.totalorder %s658, %s659
      %p671 = scmp.eq.s32.totalorder %s82, 1
      %p672 = por %p670, %p671
      %p674 = scmp.ne.s32.totalorder %s659, %s673
      %p675 = scmp.eq.s32.totalorder %s82, 0
      %p676 = por %p674, %p675
      %s678 = sadd.s32 %s677, 1
      %p681 = scmp.eq.s32.totalorder %s76, 1
      %p682 = scmp.ne.s32.totalorder %s677, %s679
      %p683 = scmp.eq.s32.totalorder %s76, 0
      %p684 = por %p682, %p683
      %p685 = scmp.ne.s32.totalorder %s677, %s679
      %p686 = scmp.eq.s32.totalorder %s81, 1
      %p687 = por %p685, %p686
      %p688 = scmp.ne.s32.totalorder %s679, %s680
      %p689 = scmp.eq.s32.totalorder %s81, 0
      %p690 = por %p688, %p689
      %p691 = scmp.ne.s32.totalorder %s679, %s680
      %p692 = scmp.eq.s32.totalorder %s82, 1
      %p693 = por %p691, %p692
      %p695 = scmp.ne.s32.totalorder %s680, %s694
      %p696 = scmp.eq.s32.totalorder %s82, 0
      %p697 = por %p695, %p696
      %s699 = sadd.s32 %s698, 1
      %p702 = scmp.eq.s32.totalorder %s76, 1
      %p703 = scmp.ne.s32.totalorder %s698, %s700
      %p704 = scmp.eq.s32.totalorder %s76, 0
      %p705 = por %p703, %p704
      %p706 = scmp.ne.s32.totalorder %s698, %s700
      %p707 = scmp.eq.s32.totalorder %s81, 1
      %p708 = por %p706, %p707
      %p709 = scmp.ne.s32.totalorder %s700, %s701
      %p710 = scmp.eq.s32.totalorder %s81, 0
      %p711 = por %p709, %p710
      %p712 = scmp.ne.s32.totalorder %s700, %s701
      %p713 = scmp.eq.s32.totalorder %s82, 1
      %p714 = por %p712, %p713
      %p716 = scmp.ne.s32.totalorder %s701, %s715
      %p717 = scmp.eq.s32.totalorder %s82, 0
      %p718 = por %p716, %p717
      %s720 = sadd.s32 %s719, 1
      %p723 = scmp.eq.s32.totalorder %s76, 1
      %p724 = scmp.ne.s32.totalorder %s719, %s721
      %p725 = scmp.eq.s32.totalorder %s76, 0
      %p726 = por %p724, %p725
      %p727 = scmp.ne.s32.totalorder %s719, %s721
      %p728 = scmp.eq.s32.totalorder %s81, 1
      %p729 = por %p727, %p728
      %p730 = scmp.ne.s32.totalorder %s721, %s722
      %p731 = scmp.eq.s32.totalorder %s81, 0
      %p732 = por %p730, %p731
      %p733 = scmp.ne.s32.totalorder %s721, %s722
      %p734 = scmp.eq.s32.totalorder %s82, 1
      %p735 = por %p733, %p734
      %p737 = scmp.ne.s32.totalorder %s722, %s736
      %p738 = scmp.eq.s32.totalorder %s82, 0
      %p739 = por %p737, %p738
      %s741 = sadd.s32 %s740, 1
      %p744 = scmp.eq.s32.totalorder %s76, 1
      %p745 = scmp.ne.s32.totalorder %s740, %s742
      %p746 = scmp.eq.s32.totalorder %s76, 0
      %p747 = por %p745, %p746
      %p748 = scmp.ne.s32.totalorder %s740, %s742
      %p749 = scmp.eq.s32.totalorder %s81, 1
      %p750 = por %p748, %p749
      %p751 = scmp.ne.s32.totalorder %s742, %s743
      %p752 = scmp.eq.s32.totalorder %s81, 0
      %p753 = por %p751, %p752
      %p754 = scmp.ne.s32.totalorder %s742, %s743
      %p755 = scmp.eq.s32.totalorder %s82, 1
      %p756 = por %p754, %p755
      %p758 = scmp.ne.s32.totalorder %s743, %s757
      %p759 = scmp.eq.s32.totalorder %s82, 0
      %p760 = por %p758, %p759
      %s762 = sadd.s32 %s761, 1
      %p765 = scmp.eq.s32.totalorder %s76, 1
      %p766 = scmp.ne.s32.totalorder %s761, %s763
      %p767 = scmp.eq.s32.totalorder %s76, 0
      %p768 = por %p766, %p767
      %p769 = scmp.ne.s32.totalorder %s761, %s763
      %p770 = scmp.eq.s32.totalorder %s81, 1
      %p771 = por %p769, %p770
      %p772 = scmp.ne.s32.totalorder %s763, %s764
      %p773 = scmp.eq.s32.totalorder %s81, 0
      %p774 = por %p772, %p773
      %p775 = scmp.ne.s32.totalorder %s763, %s764
      %p776 = scmp.eq.s32.totalorder %s82, 1
      %p777 = por %p775, %p776
      %p779 = scmp.ne.s32.totalorder %s764, %s778
      %p780 = scmp.eq.s32.totalorder %s82, 0
      %p781 = por %p779, %p780
      %s782 = ssub.s32 %s76, %s83
      %p783 = scmp.eq.s32.totalorder %s782, 0
      %s785 = sadd.s32 %s784, 1
      %s786 = scalar_select %p783, %s784, %s785
      %p789 = pneg %p783
      %p790 = scmp.eq.s32.totalorder %s76, 1
      %p791 = por %p789, %p790
      %p792 = scmp.ne.s32.totalorder %s784, %s787
      %p793 = scmp.eq.s32.totalorder %s76, 0
      %p794 = por %p792, %p793
      %p795 = scmp.ne.s32.totalorder %s784, %s787
      %p796 = scmp.eq.s32.totalorder %s81, 1
      %p797 = por %p795, %p796
      %p798 = scmp.ne.s32.totalorder %s787, %s788
      %p799 = scmp.eq.s32.totalorder %s81, 0
      %p800 = por %p798, %p799
      %p801 = scmp.ne.s32.totalorder %s787, %s788
      %p802 = scmp.eq.s32.totalorder %s82, 1
      %p803 = por %p801, %p802
      %p805 = scmp.ne.s32.totalorder %s788, %s804
      %p806 = scmp.eq.s32.totalorder %s82, 0
      %p807 = por %p805, %p806
      %p808 = scmp.le.s32.totalorder 1, %s76
      %p809 = scmp.lt.s32.totalorder %s76, 3
      %p810 = pnand %p808, %p809
      %p811 = pneg %p810
      // Predicated region
      $region9: #{forward.1} parent=5 // pred_check
        _
      $region10: #{forward.1} parent=5 // pred_check_branch
        %813 = sbr.rel (%p810) target = $region12
      $region11: #{forward.1} parent=5 // pred_region
        %s814 = ssub.s32 %s76, 1
        // Predicated region
        $region13: #{forward.1} parent=11 // pred_check
          %p815 = pneg %p123
        $region14: #{forward.1} parent=11 // pred_check_branch
          %817 = sbr.rel (%p815) target = $region16
        $region15: #{forward.1} parent=11 // pred_region
          _
        $region16: #{forward.1} parent=11 // pred_fallthru
          _
        // Predicated region
        $region17: #{forward.1} parent=11 // pred_check
          %p818 = pneg %p144
        $region18: #{forward.1} parent=11 // pred_check_branch
          %820 = sbr.rel (%p818) target = $region20
        $region19: #{forward.1} parent=11 // pred_region
          _
        $region20: #{forward.1} parent=11 // pred_fallthru
          _
        // Predicated region
        $region21: #{forward.1} parent=11 // pred_check
          %p821 = pneg %p165
        $region22: #{forward.1} parent=11 // pred_check_branch
          %823 = sbr.rel (%p821) target = $region24
        $region23: #{forward.1} parent=11 // pred_region
          _
        $region24: #{forward.1} parent=11 // pred_fallthru
          _
        // Predicated region
        $region25: #{forward.1} parent=11 // pred_check
          %p824 = pneg %p186
        $region26: #{forward.1} parent=11 // pred_check_branch
          %826 = sbr.rel (%p824) target = $region28
        $region27: #{forward.1} parent=11 // pred_region
          _
        $region28: #{forward.1} parent=11 // pred_fallthru
          _
        // Predicated region
        $region29: #{forward.1} parent=11 // pred_check
          %p827 = pneg %p207
        $region30: #{forward.1} parent=11 // pred_check_branch
          %829 = sbr.rel (%p827) target = $region32
        $region31: #{forward.1} parent=11 // pred_region
          _
        $region32: #{forward.1} parent=11 // pred_fallthru
          _
        // Predicated region
        $region33: #{forward.1} parent=11 // pred_check
          %p830 = pneg %p228
        $region34: #{forward.1} parent=11 // pred_check_branch
          %832 = sbr.rel (%p830) target = $region36
        $region35: #{forward.1} parent=11 // pred_region
          _
        $region36: #{forward.1} parent=11 // pred_fallthru
          _
        // Predicated region
        $region37: #{forward.1} parent=11 // pred_check
          %p833 = pneg %p249
        $region38: #{forward.1} parent=11 // pred_check_branch
          %835 = sbr.rel (%p833) target = $region40
        $region39: #{forward.1} parent=11 // pred_region
          _
        $region40: #{forward.1} parent=11 // pred_fallthru
          _
        // Predicated region
        $region41: #{forward.1} parent=11 // pred_check
          %p836 = pneg %p270
        $region42: #{forward.1} parent=11 // pred_check_branch
          %838 = sbr.rel (%p836) target = $region44
        $region43: #{forward.1} parent=11 // pred_region
          _
        $region44: #{forward.1} parent=11 // pred_fallthru
          _
        // Predicated region
        $region45: #{forward.1} parent=11 // pred_check
          %p839 = pneg %p291
        $region46: #{forward.1} parent=11 // pred_check_branch
          %841 = sbr.rel (%p839) target = $region48
        $region47: #{forward.1} parent=11 // pred_region
          _
        $region48: #{forward.1} parent=11 // pred_fallthru
          _
        // Predicated region
        $region49: #{forward.1} parent=11 // pred_check
          %p842 = pneg %p312
        $region50: #{forward.1} parent=11 // pred_check_branch
          %844 = sbr.rel (%p842) target = $region52
        $region51: #{forward.1} parent=11 // pred_region
          _
        $region52: #{forward.1} parent=11 // pred_fallthru
          _
        // Predicated region
        $region53: #{forward.1} parent=11 // pred_check
          %p845 = pneg %p333
        $region54: #{forward.1} parent=11 // pred_check_branch
          %847 = sbr.rel (%p845) target = $region56
        $region55: #{forward.1} parent=11 // pred_region
          _
        $region56: #{forward.1} parent=11 // pred_fallthru
          _
        // Predicated region
        $region57: #{forward.1} parent=11 // pred_check
          %p848 = pneg %p354
        $region58: #{forward.1} parent=11 // pred_check_branch
          %850 = sbr.rel (%p848) target = $region60
        $region59: #{forward.1} parent=11 // pred_region
          _
        $region60: #{forward.1} parent=11 // pred_fallthru
          _
        // Predicated region
        $region61: #{forward.1} parent=11 // pred_check
          %p851 = pneg %p375
        $region62: #{forward.1} parent=11 // pred_check_branch
          %853 = sbr.rel (%p851) target = $region64
        $region63: #{forward.1} parent=11 // pred_region
          _
        $region64: #{forward.1} parent=11 // pred_fallthru
          _
        // Predicated region
        $region65: #{forward.1} parent=11 // pred_check
          %p854 = pneg %p396
        $region66: #{forward.1} parent=11 // pred_check_branch
          %856 = sbr.rel (%p854) target = $region68
        $region67: #{forward.1} parent=11 // pred_region
          _
        $region68: #{forward.1} parent=11 // pred_fallthru
          _
        // Predicated region
        $region69: #{forward.1} parent=11 // pred_check
          %p857 = pneg %p417
        $region70: #{forward.1} parent=11 // pred_check_branch
          %859 = sbr.rel (%p857) target = $region72
        $region71: #{forward.1} parent=11 // pred_region
          _
        $region72: #{forward.1} parent=11 // pred_fallthru
          _
        // Predicated region
        $region73: #{forward.1} parent=11 // pred_check
          %p860 = pneg %p438
        $region74: #{forward.1} parent=11 // pred_check_branch
          %862 = sbr.rel (%p860) target = $region76
        $region75: #{forward.1} parent=11 // pred_region
          _
        $region76: #{forward.1} parent=11 // pred_fallthru
          _
        // Predicated region
        $region77: #{forward.1} parent=11 // pred_check
          %p863 = pneg %p459
        $region78: #{forward.1} parent=11 // pred_check_branch
          %865 = sbr.rel (%p863) target = $region80
        $region79: #{forward.1} parent=11 // pred_region
          _
        $region80: #{forward.1} parent=11 // pred_fallthru
          _
        // Predicated region
        $region81: #{forward.1} parent=11 // pred_check
          %p866 = pneg %p480
        $region82: #{forward.1} parent=11 // pred_check_branch
          %868 = sbr.rel (%p866) target = $region84
        $region83: #{forward.1} parent=11 // pred_region
          _
        $region84: #{forward.1} parent=11 // pred_fallthru
          _
        // Predicated region
        $region85: #{forward.1} parent=11 // pred_check
          %p869 = pneg %p501
        $region86: #{forward.1} parent=11 // pred_check_branch
          %871 = sbr.rel (%p869) target = $region88
        $region87: #{forward.1} parent=11 // pred_region
          _
        $region88: #{forward.1} parent=11 // pred_fallthru
          _
        // Predicated region
        $region89: #{forward.1} parent=11 // pred_check
          %p872 = pneg %p522
        $region90: #{forward.1} parent=11 // pred_check_branch
          %874 = sbr.rel (%p872) target = $region92
        $region91: #{forward.1} parent=11 // pred_region
          _
        $region92: #{forward.1} parent=11 // pred_fallthru
          _
        // Predicated region
        $region93: #{forward.1} parent=11 // pred_check
          %p875 = pneg %p543
        $region94: #{forward.1} parent=11 // pred_check_branch
          %877 = sbr.rel (%p875) target = $region96
        $region95: #{forward.1} parent=11 // pred_region
          _
        $region96: #{forward.1} parent=11 // pred_fallthru
          _
        // Predicated region
        $region97: #{forward.1} parent=11 // pred_check
          %p878 = pneg %p564
        $region98: #{forward.1} parent=11 // pred_check_branch
          %880 = sbr.rel (%p878) target = $region100
        $region99: #{forward.1} parent=11 // pred_region
          _
        $region100: #{forward.1} parent=11 // pred_fallthru
          _
        // Predicated region
        $region101: #{forward.1} parent=11 // pred_check
          %p881 = pneg %p585
        $region102: #{forward.1} parent=11 // pred_check_branch
          %883 = sbr.rel (%p881) target = $region104
        $region103: #{forward.1} parent=11 // pred_region
          _
        $region104: #{forward.1} parent=11 // pred_fallthru
          _
        // Predicated region
        $region105: #{forward.1} parent=11 // pred_check
          %p884 = pneg %p606
        $region106: #{forward.1} parent=11 // pred_check_branch
          %886 = sbr.rel (%p884) target = $region108
        $region107: #{forward.1} parent=11 // pred_region
          _
        $region108: #{forward.1} parent=11 // pred_fallthru
          _
        // Predicated region
        $region109: #{forward.1} parent=11 // pred_check
          %p887 = pneg %p627
        $region110: #{forward.1} parent=11 // pred_check_branch
          %889 = sbr.rel (%p887) target = $region112
        $region111: #{forward.1} parent=11 // pred_region
          _
        $region112: #{forward.1} parent=11 // pred_fallthru
          _
        // Predicated region
        $region113: #{forward.1} parent=11 // pred_check
          %p890 = pneg %p648
        $region114: #{forward.1} parent=11 // pred_check_branch
          %892 = sbr.rel (%p890) target = $region116
        $region115: #{forward.1} parent=11 // pred_region
          _
        $region116: #{forward.1} parent=11 // pred_fallthru
          _
        // Predicated region
        $region117: #{forward.1} parent=11 // pred_check
          %p893 = pneg %p669
        $region118: #{forward.1} parent=11 // pred_check_branch
          %895 = sbr.rel (%p893) target = $region120
        $region119: #{forward.1} parent=11 // pred_region
          _
        $region120: #{forward.1} parent=11 // pred_fallthru
          _
        // Predicated region
        $region121: #{forward.1} parent=11 // pred_check
          %p896 = pneg %p690
        $region122: #{forward.1} parent=11 // pred_check_branch
          %898 = sbr.rel (%p896) target = $region124
        $region123: #{forward.1} parent=11 // pred_region
          _
        $region124: #{forward.1} parent=11 // pred_fallthru
          _
        // Predicated region
        $region125: #{forward.1} parent=11 // pred_check
          %p899 = pneg %p711
        $region126: #{forward.1} parent=11 // pred_check_branch
          %901 = sbr.rel (%p899) target = $region128
        $region127: #{forward.1} parent=11 // pred_region
          _
        $region128: #{forward.1} parent=11 // pred_fallthru
          _
        // Predicated region
        $region129: #{forward.1} parent=11 // pred_check
          %p902 = pneg %p732
        $region130: #{forward.1} parent=11 // pred_check_branch
          %904 = sbr.rel (%p902) target = $region132
        $region131: #{forward.1} parent=11 // pred_region
          _
        $region132: #{forward.1} parent=11 // pred_fallthru
          _
        // Predicated region
        $region133: #{forward.1} parent=11 // pred_check
          %p905 = pneg %p753
        $region134: #{forward.1} parent=11 // pred_check_branch
          %907 = sbr.rel (%p905) target = $region136
        $region135: #{forward.1} parent=11 // pred_region
          _
        $region136: #{forward.1} parent=11 // pred_fallthru
          _
        // Predicated region
        $region137: #{forward.1} parent=11 // pred_check
          %p908 = pneg %p774
        $region138: #{forward.1} parent=11 // pred_check_branch
          %910 = sbr.rel (%p908) target = $region140
        $region139: #{forward.1} parent=11 // pred_region
          _
        $region140: #{forward.1} parent=11 // pred_fallthru
          _
      $region12: #{forward.1} parent=5 // pred_fallthru
        _
      %p911 = scmp.lt.s32.totalorder %s76, 2
      // Predicated region
      $region141: #{forward.1} parent=5 // pred_check
        %p912 = pneg %p911
      $region142: #{forward.1} parent=5 // pred_check_branch
        %914 = sbr.rel (%p912) target = $region144
      $region143: #{forward.1} parent=5 // pred_region
        // Predicated region
        $region145: #{forward.1} parent=143 // pred_check
          %p915 = pneg %p96
        $region146: #{forward.1} parent=143 // pred_check_branch
          %917 = sbr.rel (%p915) target = $region148
        $region147: #{forward.1} parent=143 // pred_region
          %p918 = scmp.lt.s32.totalorder %s76, 1
          %s919 = scalar_select %p918, %s76, 1
          %s920 = smul.addr %s919, 46
          %s921 = smul.addr %s920, 4
          %s922 = scalar_lea.vmem %s1, %s921
        $region148: #{forward.1} parent=143 // pred_fallthru
          _
      $region144: #{forward.1} parent=5 // pred_fallthru
        _
      %p923 = scmp.le.s32.totalorder 1, %s76
      %p924 = scmp.lt.s32.totalorder %s76, 3
      %p925 = pnand %p923, %p924
      %p926 = pneg %p925
      // Predicated region
      $region149: #{forward.1} parent=5 // pred_check
        _
      $region150: #{forward.1} parent=5 // pred_check_branch
        %928 = sbr.rel (%p925) target = $region152
      $region151: #{forward.1} parent=5 // pred_region
        %s929 = ssub.s32 %s76, 1
        %p930 = scmp.lt.s32.totalorder %s81, 1
        %s931 = scalar_select %p930, %s81, 1
        %s932 = smul.addr %s931, 46
        %s933 = smul.addr %s932, 4
        %s934 = scalar_lea.vmem %s1, %s933
        %p935 = pneg %p102
        %p936 = pneg %p99
        %p937 = pneg %p123
        %p938 = pneg %p120
        %p939 = pneg %p144
        %p940 = pneg %p141
        %p941 = pneg %p165
        %p942 = pneg %p162
        %p943 = pneg %p186
        %p944 = pneg %p183
        %p945 = pneg %p207
        %p946 = pneg %p204
        %p947 = pneg %p228
        %p948 = pneg %p225
        %p949 = pneg %p249
        %p950 = pneg %p246
        %p951 = pneg %p270
        %p952 = pneg %p267
        %p953 = pneg %p291
        %p954 = pneg %p288
        %p955 = pneg %p312
        %p956 = pneg %p309
        %p957 = pneg %p333
        %p958 = pneg %p330
        %p959 = pneg %p354
        %p960 = pneg %p351
        %p961 = pneg %p375
        %p962 = pneg %p372
        %p963 = pneg %p396
        %p964 = pneg %p393
        %p965 = pneg %p417
        %p966 = pneg %p414
        %p967 = pneg %p438
        %p968 = pneg %p435
        %p969 = pneg %p459
        %p970 = pneg %p456
        %p971 = pneg %p480
        %p972 = pneg %p477
        %p973 = pneg %p501
        %p974 = pneg %p498
        %p975 = pneg %p522
        %p976 = pneg %p519
        %p977 = pneg %p543
        %p978 = pneg %p540
        %p979 = pneg %p564
        %p980 = pneg %p561
        %p981 = pneg %p585
        %p982 = pneg %p582
        %p983 = pneg %p606
        %p984 = pneg %p603
        %p985 = pneg %p627
        %p986 = pneg %p624
        %p987 = pneg %p648
        %p988 = pneg %p645
        %p989 = pneg %p669
        %p990 = pneg %p666
        %p991 = pneg %p690
        %p992 = pneg %p687
        %p993 = pneg %p711
        %p994 = pneg %p708
        %p995 = pneg %p732
        %p996 = pneg %p729
        %p997 = pneg %p753
        %p998 = pneg %p750
        %p999 = pneg %p774
        %p1000 = pneg %p771
        %p1001 = pneg %p800
        %p1002 = pneg %p797
        %s1003 = sand.u32 %s787, 1
        %s1004 = scalar_lea.sflag [#allocation6], %s1003
        %s1005 = sand.u32 %s787, 1
        %s1006 = scalar_lea.vmem [#allocation5], %s1005
        %p1007 = scmp.lt.s32.totalorder %s81, 1
        %s1008 = scalar_select %p1007, %s81, 1
        %s1009 = smul.addr %s1008, 46
        %s1010 = smul.addr %s1009, 4
        %s1011 = scalar_lea.vmem %s1, %s1010
        %vm1013 = vcmask 257024
        %1014 = vst.msk [vmem:[#allocation2] sm:$0xf] %vm1013, 0
        %1015 = vst.msk [vmem:[#allocation2 + $0x4] sm:$0xf] %vm1013, 0
        %1016 = vst.msk [vmem:[#allocation2 + $0x8] sm:$0xf] %vm1013, 0
        %1017 = vst.msk [vmem:[#allocation2 + $0xc] sm:$0xf] %vm1013, 0
        %1018 = vst.msk [vmem:[#allocation2 + $0x10] sm:$0xf] %vm1013, 0
        %1019 = vst.msk [vmem:[#allocation2 + $0x14] sm:$0xf] %vm1013, 0
        %1020 = vst.msk [vmem:[#allocation2 + $0x18] sm:$0xf] %vm1013, 0
        %1021 = vst.msk [vmem:[#allocation2 + $0x1c] sm:$0xf] %vm1013, 0
        %1022 = vst.msk [vmem:[#allocation2 + $0x20] sm:$0xf] %vm1013, 0
        %1023 = vst.msk [vmem:[#allocation2 + $0x24] sm:$0xf] %vm1013, 0
        %1024 = vst.msk [vmem:[#allocation2 + $0x28] sm:$0xf] %vm1013, 0
        %1025 = vst.msk [vmem:[#allocation2 + $0x2c] sm:$0xf] %vm1013, 0
        %1026 = vst.msk [vmem:[#allocation2 + $0x30] sm:$0xf] %vm1013, 0
        %1027 = vst.msk [vmem:[#allocation2 + $0x34] sm:$0xf] %vm1013, 0
        %1028 = vst.msk [vmem:[#allocation2 + $0x38] sm:$0xf] %vm1013, 0
        %vm1029 = vcmask 253952
        %1030 = vst.msk [vmem:[#allocation2 + $0x3c] sm:$0x1] %vm1029, 0
        %1031 = vst.msk [vmem:[#allocation3] sm:$0xf] %vm1013, 0
        %1032 = vst.msk [vmem:[#allocation3 + $0x4] sm:$0xf] %vm1013, 0
        %1033 = vst.msk [vmem:[#allocation3 + $0x8] sm:$0xf] %vm1013, 0
        %1034 = vst.msk [vmem:[#allocation3 + $0xc] sm:$0xf] %vm1013, 0
        %1035 = vst.msk [vmem:[#allocation3 + $0x10] sm:$0xf] %vm1013, 0
        %1036 = vst.msk [vmem:[#allocation3 + $0x14] sm:$0xf] %vm1013, 0
        %1037 = vst.msk [vmem:[#allocation3 + $0x18] sm:$0x1] %vm1029, 0
        %vm1038 = vcmask 519168
        %1039 = vst.msk [vmem:[#allocation4] sm:$0xf] %vm1038, 0
        %1040 = vst.msk [vmem:[#allocation4 + $0x4] sm:$0xf] %vm1038, 0
        %1041 = vst.msk [vmem:[#allocation4 + $0x8] sm:$0xf] %vm1038, 0
        %vm1042 = vcmask 516096
        %1043 = vst.msk [vmem:[#allocation4 + $0xc] sm:$0x1] %vm1042, 0
        %v1044 = vld [vmem:[%s1011] sm:$0xf]
        %v1045 = vld [vmem:[%s1011 + $0x4] sm:$0xf]
        %v1046 = vld [vmem:[%s1011 + $0x8] sm:$0xf]
        %v1047 = vld [vmem:[%s1011 + $0xc] sm:$0xf]
        %v1048 = vld [vmem:[%s1011 + $0x10] sm:$0xf]
        %v1049 = vld [vmem:[%s1011 + $0x14] sm:$0xf]
        %v1050 = vld [vmem:[%s1011 + $0x18] sm:$0xf]
        %v1051 = vld [vmem:[%s1011 + $0x1c] sm:$0xf]
        %v1052 = vld [vmem:[%s1011 + $0x20] sm:$0xf]
        %v1053 = vld [vmem:[%s1011 + $0x24] sm:$0xf]
        %v1054 = vld [vmem:[%s1011 + $0x28] sm:$0xf]
        %v1055 = vld [vmem:[%s1011 + $0x2c] sm:$0xf]
        %v1056 = vld [vmem:[%s1011 + $0x30] sm:$0xf]
        %v1057 = vld [vmem:[%s1011 + $0x34] sm:$0xf]
        %v1058 = vld [vmem:[%s1011 + $0x38] sm:$0xf]
        %v1059 = vld [vmem:[%s1011 + $0x3c] sm:$0xf]
        %v1060 = vld [vmem:[%s1011 + $0x40] sm:$0xf]
        %v1061 = vld [vmem:[%s1011 + $0x44] sm:$0xf]
        %v1062 = vld [vmem:[%s1011 + $0x48] sm:$0xf]
        %v1063 = vld [vmem:[%s1011 + $0x4c] sm:$0xf]
        %v1064 = vld [vmem:[%s1011 + $0x50] sm:$0xf]
        %v1065 = vld [vmem:[%s1011 + $0x54] sm:$0xf]
        %v1066 = vld [vmem:[%s1011 + $0x58] sm:$0xf]
        %v1067 = vld [vmem:[%s1011 + $0x5c] sm:$0xf]
        %v1068 = vld [vmem:[%s1011 + $0x60] sm:$0xf]
        %v1069 = vld [vmem:[%s1011 + $0x64] sm:$0xf]
        %v1070 = vld [vmem:[%s1011 + $0x68] sm:$0xf]
        %v1071 = vld [vmem:[%s1011 + $0x6c] sm:$0xf]
        %v1072 = vld [vmem:[%s1011 + $0x70] sm:$0xf]
        %v1073 = vld [vmem:[%s1011 + $0x74] sm:$0xf]
        %v1074 = vld [vmem:[%s1011 + $0x78] sm:$0xf]
        %v1075 = vld [vmem:[%s1011 + $0x7c] sm:$0xf]
        %v1076 = vld [vmem:[%s1011 + $0x80] sm:$0xf]
        %v1077 = vld [vmem:[%s1011 + $0x84] sm:$0xf]
        %v1078 = vld [vmem:[%s1011 + $0x88] sm:$0xf]
        %v1079 = vld [vmem:[%s1011 + $0x8c] sm:$0xf]
        %v1080 = vld [vmem:[%s1011 + $0x90] sm:$0xf]
        %v1081 = vld [vmem:[%s1011 + $0x94] sm:$0xf]
        %v1082 = vld [vmem:[%s1011 + $0x98] sm:$0xf]
        %v1083 = vld [vmem:[%s1011 + $0x9c] sm:$0xf]
        %v1084 = vld [vmem:[%s1011 + $0xa0] sm:$0x3]
        %v1085 = vld [vmem:[%s11] sm:$0x3]
        %v1086 = vld [vmem:[%s1011 + $0xa0] sm:$0x7]
        %s1087 = scalar_lea.vmem %s11, 2
        %v1088 = vld [vmem:[%s1087] sm:$0x3]
        %v1130 = vunpack.c.l.b16 %v1044
        %v1131 = vunpack.c.l.b16 %v1045
        %v1132 = vunpack.c.l.b16 %v1046
        %v1133 = vunpack.c.l.b16 %v1047
        %v1134 = vunpack.c.l.b16 %v1048
        %v1135 = vunpack.c.l.b16 %v1049
        %v1136 = vunpack.c.l.b16 %v1050
        %v1137 = vunpack.c.l.b16 %v1051
        %v1138 = vunpack.c.l.b16 %v1052
        %v1139 = vunpack.c.l.b16 %v1053
        %v1140 = vunpack.c.l.b16 %v1054
        %v1141 = vunpack.c.l.b16 %v1055
        %v1142 = vunpack.c.l.b16 %v1056
        %v1143 = vunpack.c.l.b16 %v1057
        %v1144 = vunpack.c.l.b16 %v1058
        %v1145 = vunpack.c.l.b16 %v1059
        %v1146 = vunpack.c.l.b16 %v1060
        %v1147 = vunpack.c.l.b16 %v1061
        %v1148 = vunpack.c.l.b16 %v1062
        %v1149 = vunpack.c.l.b16 %v1063
        %v1150 = vunpack.c.l.b16 %v1064
        %v1151 = vunpack.c.l.b16 %v1065
        %v1152 = vunpack.c.l.b16 %v1066
        %v1153 = vunpack.c.l.b16 %v1067
        %v1154 = vunpack.c.l.b16 %v1068
        %v1155 = vunpack.c.l.b16 %v1069
        %v1156 = vunpack.c.l.b16 %v1070
        %v1157 = vunpack.c.l.b16 %v1071
        %v1158 = vunpack.c.l.b16 %v1072
        %v1159 = vunpack.c.l.b16 %v1073
        %v1160 = vunpack.c.l.b16 %v1074
        %v1161 = vunpack.c.l.b16 %v1075
        %v1162 = vunpack.c.l.b16 %v1076
        %v1163 = vunpack.c.l.b16 %v1077
        %v1164 = vunpack.c.l.b16 %v1078
        %v1165 = vunpack.c.l.b16 %v1079
        %v1166 = vunpack.c.l.b16 %v1080
        %v1167 = vunpack.c.l.b16 %v1081
        %v1168 = vunpack.c.l.b16 %v1082
        %v1169 = vunpack.c.l.b16 %v1083
        %v1170 = vunpack.c.l.b16 %v1086
        %v1171 = vpack.c.b16 %v1131, %v1130
        %v1172 = vpack.c.b16 %v1133, %v1132
        %v1173 = vpack.c.b16 %v1135, %v1134
        %v1174 = vpack.c.b16 %v1137, %v1136
        %v1175 = vpack.c.b16 %v1139, %v1138
        %v1176 = vpack.c.b16 %v1141, %v1140
        %v1177 = vpack.c.b16 %v1143, %v1142
        %v1178 = vpack.c.b16 %v1145, %v1144
        %v1179 = vpack.c.b16 %v1147, %v1146
        %v1180 = vpack.c.b16 %v1149, %v1148
        %v1181 = vpack.c.b16 %v1151, %v1150
        %v1182 = vpack.c.b16 %v1153, %v1152
        %v1183 = vpack.c.b16 %v1155, %v1154
        %v1184 = vpack.c.b16 %v1157, %v1156
        %v1185 = vpack.c.b16 %v1159, %v1158
        %v1186 = vpack.c.b16 %v1161, %v1160
        %v1187 = vpack.c.b16 %v1163, %v1162
        %v1188 = vpack.c.b16 %v1165, %v1164
        %v1189 = vpack.c.b16 %v1167, %v1166
        %v1190 = vpack.c.b16 %v1169, %v1168
        %v1191 = vpack.c.b16 %v1170, %v1170
        %vm1192 = vsmask.f32 7424
        %v1194 = vshrl.u32 %v1171, 16
        %v1196 = vshll.u32 %v1171, 16
        %v1198 = vrot.slane %v1196, 1
        %v1199 = vor.u32 %v1194, %v1198
        %v1201 = vshll.u32 %v1172, 16
        %v1203 = vrot.slane %v1201, 1
        %v1204 = vsel %vm1192, %v1199, %v1203
        %v1205 = vshrl.u32 %v1172, 16
        %v1207 = vor.u32 %v1205, %v1203
        %v1209 = vshll.u32 %v1173, 16
        %v1211 = vrot.slane %v1209, 1
        %v1212 = vsel %vm1192, %v1207, %v1211
        %v1213 = vshrl.u32 %v1173, 16
        %v1215 = vor.u32 %v1213, %v1211
        %v1217 = vshll.u32 %v1174, 16
        %v1219 = vrot.slane %v1217, 1
        %v1220 = vsel %vm1192, %v1215, %v1219
        %v1221 = vshrl.u32 %v1174, 16
        %v1223 = vor.u32 %v1221, %v1219
        %v1225 = vshll.u32 %v1175, 16
        %v1227 = vrot.slane %v1225, 1
        %v1228 = vsel %vm1192, %v1223, %v1227
        %v1229 = vshrl.u32 %v1175, 16
        %v1231 = vor.u32 %v1229, %v1227
        %v1233 = vshll.u32 %v1176, 16
        %v1235 = vrot.slane %v1233, 1
        %v1236 = vsel %vm1192, %v1231, %v1235
        %v1237 = vshrl.u32 %v1176, 16
        %v1239 = vor.u32 %v1237, %v1235
        %v1241 = vshll.u32 %v1177, 16
        %v1243 = vrot.slane %v1241, 1
        %v1244 = vsel %vm1192, %v1239, %v1243
        %v1245 = vshrl.u32 %v1177, 16
        %v1247 = vor.u32 %v1245, %v1243
        %v1249 = vshll.u32 %v1178, 16
        %v1251 = vrot.slane %v1249, 1
        %v1252 = vsel %vm1192, %v1247, %v1251
        %v1253 = vshrl.u32 %v1178, 16
        %v1255 = vor.u32 %v1253, %v1251
        %v1257 = vshll.u32 %v1179, 16
        %v1259 = vrot.slane %v1257, 1
        %v1260 = vsel %vm1192, %v1255, %v1259
        %v1261 = vshrl.u32 %v1179, 16
        %v1263 = vor.u32 %v1261, %v1259
        %v1265 = vshll.u32 %v1180, 16
        %v1267 = vrot.slane %v1265, 1
        %v1268 = vsel %vm1192, %v1263, %v1267
        %v1269 = vshrl.u32 %v1180, 16
        %v1271 = vor.u32 %v1269, %v1267
        %v1273 = vshll.u32 %v1181, 16
        %v1275 = vrot.slane %v1273, 1
        %v1276 = vsel %vm1192, %v1271, %v1275
        %v1277 = vshrl.u32 %v1181, 16
        %v1279 = vor.u32 %v1277, %v1275
        %v1281 = vshll.u32 %v1182, 16
        %v1283 = vrot.slane %v1281, 1
        %v1284 = vsel %vm1192, %v1279, %v1283
        %v1285 = vshrl.u32 %v1182, 16
        %v1287 = vor.u32 %v1285, %v1283
        %v1289 = vshll.u32 %v1183, 16
        %v1291 = vrot.slane %v1289, 1
        %v1292 = vsel %vm1192, %v1287, %v1291
        %v1293 = vshrl.u32 %v1183, 16
        %v1295 = vor.u32 %v1293, %v1291
        %v1297 = vshll.u32 %v1184, 16
        %v1299 = vrot.slane %v1297, 1
        %v1300 = vsel %vm1192, %v1295, %v1299
        %v1301 = vshrl.u32 %v1184, 16
        %v1303 = vor.u32 %v1301, %v1299
        %v1305 = vshll.u32 %v1185, 16
        %v1307 = vrot.slane %v1305, 1
        %v1308 = vsel %vm1192, %v1303, %v1307
        %v1309 = vshrl.u32 %v1185, 16
        %v1311 = vor.u32 %v1309, %v1307
        %v1313 = vshll.u32 %v1186, 16
        %v1315 = vrot.slane %v1313, 1
        %v1316 = vsel %vm1192, %v1311, %v1315
        %v1317 = vshrl.u32 %v1186, 16
        %v1319 = vor.u32 %v1317, %v1315
        %v1321 = vshll.u32 %v1187, 16
        %v1323 = vrot.slane %v1321, 1
        %v1324 = vsel %vm1192, %v1319, %v1323
        %v1325 = vshrl.u32 %v1187, 16
        %v1327 = vor.u32 %v1325, %v1323
        %v1329 = vshll.u32 %v1188, 16
        %v1331 = vrot.slane %v1329, 1
        %v1332 = vsel %vm1192, %v1327, %v1331
        %v1333 = vshrl.u32 %v1188, 16
        %v1335 = vor.u32 %v1333, %v1331
        %v1337 = vshll.u32 %v1189, 16
        %v1339 = vrot.slane %v1337, 1
        %v1340 = vsel %vm1192, %v1335, %v1339
        %v1341 = vshrl.u32 %v1189, 16
        %v1343 = vor.u32 %v1341, %v1339
        %v1345 = vshll.u32 %v1190, 16
        %v1347 = vrot.slane %v1345, 1
        %v1348 = vsel %vm1192, %v1343, %v1347
        %v1349 = vshrl.u32 %v1190, 16
        %v1351 = vor.u32 %v1349, %v1347
        %v1353 = vshll.u32 %v1191, 16
        %v1355 = vrot.slane %v1353, 1
        %v1356 = vsel %vm1192, %v1351, %v1355
        %v1357 = vshrl.u32 %v1191, 16
        %v1359 = vor.u32 %v1357, %v1355
        %vm1360 = vcmask 23552
        %v1362 = vsel %vm1360, %v1204, 0
        %v1365 = vsel %vm1360, %v1212, 0
        %v1368 = vsel %vm1360, %v1220, 0
        %v1371 = vsel %vm1360, %v1228, 0
        %v1374 = vsel %vm1360, %v1236, 0
        %v1377 = vsel %vm1360, %v1244, 0
        %v1380 = vsel %vm1360, %v1252, 0
        %v1383 = vsel %vm1360, %v1260, 0
        %v1386 = vsel %vm1360, %v1268, 0
        %v1389 = vsel %vm1360, %v1276, 0
        %v1392 = vsel %vm1360, %v1284, 0
        %v1395 = vsel %vm1360, %v1292, 0
        %v1398 = vsel %vm1360, %v1300, 0
        %v1401 = vsel %vm1360, %v1308, 0
        %v1404 = vsel %vm1360, %v1316, 0
        %v1407 = vsel %vm1360, %v1324, 0
        %v1410 = vsel %vm1360, %v1332, 0
        %v1413 = vsel %vm1360, %v1340, 0
        %v1416 = vsel %vm1360, %v1348, 0
        %v1419 = vsel %vm1360, %v1356, 0
        %v1422 = vsel %vm1360, %v1359, 0
        %vm1424 = vcmask 1040384
        %vm1425 = vcmask 1041408
        %v1426 = vsel %vm1424, 4294967295, 65535
        %v1427 = vsel %vm1425, %v1426, 0
        %v1429 = vand.u32 %v1088, %v1427
        %1431 = vmatpush.bf16.msra.mxu0 0
        %1432 = vmatpush.bf16.msra.mxu0 0
        %1433 = vmatpush.bf16.msra.mxu0 0
        %1434 = vmatpush.bf16.msra.mxu0 0
        %1435 = vmatpush.bf16.msra.mxu0 0
        %1436 = vmatpush.bf16.msra.mxu0 0
        %1437 = vmatpush.bf16.msra.mxu0 0
        %1438 = vmatpush.bf16.msra.mxu0 %v1429
        %1439 = vmatmul.bf16.gmra.mxu0 %v1362
        %v1440 = vpop.f32.mrf.mxu0
        %v1441 = vpop.f32.mrf.mxu0
        %1442 = vmatmul.bf16.gmra.mxu0 %v1365
        %v1443 = vpop.f32.mrf.mxu0
        %v1444 = vadd.f32 0.0, %v1443
        %v1445 = vpop.f32.mrf.mxu0
        %v1446 = vadd.f32 0.0, %v1445
        %1447 = vmatmul.bf16.gmra.mxu0 %v1368
        %v1448 = vpop.f32.mrf.mxu0
        %v1449 = vadd.f32 0.0, %v1448
        %v1450 = vpop.f32.mrf.mxu0
        %v1451 = vadd.f32 0.0, %v1450
        %1452 = vmatmul.bf16.gmra.mxu0 %v1371
        %v1453 = vpop.f32.mrf.mxu0
        %v1454 = vadd.f32 0.0, %v1453
        %v1455 = vpop.f32.mrf.mxu0
        %v1456 = vadd.f32 0.0, %v1455
        %1457 = vmatmul.bf16.gmra.mxu0 %v1374
        %v1458 = vpop.f32.mrf.mxu0
        %v1459 = vadd.f32 0.0, %v1458
        %v1460 = vpop.f32.mrf.mxu0
        %v1461 = vadd.f32 0.0, %v1460
        %1462 = vmatmul.bf16.gmra.mxu0 %v1377
        %v1463 = vpop.f32.mrf.mxu0
        %v1464 = vadd.f32 0.0, %v1463
        %v1465 = vpop.f32.mrf.mxu0
        %v1466 = vadd.f32 0.0, %v1465
        %1467 = vmatmul.bf16.gmra.mxu0 %v1380
        %v1468 = vpop.f32.mrf.mxu0
        %v1469 = vadd.f32 0.0, %v1468
        %v1470 = vpop.f32.mrf.mxu0
        %v1471 = vadd.f32 0.0, %v1470
        %1472 = vmatmul.bf16.gmra.mxu0 %v1383
        %v1473 = vpop.f32.mrf.mxu0
        %v1474 = vadd.f32 0.0, %v1473
        %v1475 = vpop.f32.mrf.mxu0
        %v1476 = vadd.f32 0.0, %v1475
        %1477 = vmatmul.bf16.gmra.mxu0 %v1386
        %v1478 = vpop.f32.mrf.mxu0
        %v1479 = vadd.f32 0.0, %v1478
        %v1480 = vpop.f32.mrf.mxu0
        %v1481 = vadd.f32 0.0, %v1480
        %1482 = vmatmul.bf16.gmra.mxu0 %v1389
        %v1483 = vpop.f32.mrf.mxu0
        %v1484 = vadd.f32 0.0, %v1483
        %v1485 = vpop.f32.mrf.mxu0
        %v1486 = vadd.f32 0.0, %v1485
        %1487 = vmatmul.bf16.gmra.mxu0 %v1392
        %v1488 = vpop.f32.mrf.mxu0
        %v1489 = vadd.f32 0.0, %v1488
        %v1490 = vpop.f32.mrf.mxu0
        %v1491 = vadd.f32 0.0, %v1490
        %1492 = vmatmul.bf16.gmra.mxu0 %v1395
        %v1493 = vpop.f32.mrf.mxu0
        %v1494 = vadd.f32 0.0, %v1493
        %v1495 = vpop.f32.mrf.mxu0
        %v1496 = vadd.f32 0.0, %v1495
        %1497 = vmatmul.bf16.gmra.mxu0 %v1398
        %v1498 = vpop.f32.mrf.mxu0
        %v1499 = vadd.f32 0.0, %v1498
        %v1500 = vpop.f32.mrf.mxu0
        %v1501 = vadd.f32 0.0, %v1500
        %1502 = vmatmul.bf16.gmra.mxu0 %v1401
        %v1503 = vpop.f32.mrf.mxu0
        %v1504 = vadd.f32 0.0, %v1503
        %v1505 = vpop.f32.mrf.mxu0
        %v1506 = vadd.f32 0.0, %v1505
        %1507 = vmatmul.bf16.gmra.mxu0 %v1404
        %v1508 = vpop.f32.mrf.mxu0
        %v1509 = vadd.f32 0.0, %v1508
        %v1510 = vpop.f32.mrf.mxu0
        %v1511 = vadd.f32 0.0, %v1510
        %1512 = vmatmul.bf16.gmra.mxu0 %v1407
        %v1513 = vpop.f32.mrf.mxu0
        %v1514 = vadd.f32 0.0, %v1513
        %v1515 = vpop.f32.mrf.mxu0
        %v1516 = vadd.f32 0.0, %v1515
        %1517 = vmatmul.bf16.gmra.mxu0 %v1410
        %v1518 = vpop.f32.mrf.mxu0
        %v1519 = vadd.f32 0.0, %v1518
        %v1520 = vpop.f32.mrf.mxu0
        %v1521 = vadd.f32 0.0, %v1520
        %1522 = vmatmul.bf16.gmra.mxu0 %v1413
        %v1523 = vpop.f32.mrf.mxu0
        %v1524 = vadd.f32 0.0, %v1523
        %v1525 = vpop.f32.mrf.mxu0
        %v1526 = vadd.f32 0.0, %v1525
        %1527 = vmatmul.bf16.gmra.mxu0 %v1416
        %v1528 = vpop.f32.mrf.mxu0
        %v1529 = vadd.f32 0.0, %v1528
        %v1530 = vpop.f32.mrf.mxu0
        %v1531 = vadd.f32 0.0, %v1530
        %1532 = vmatmul.bf16.gmra.mxu0 %v1419
        %v1533 = vpop.f32.mrf.mxu0
        %v1534 = vadd.f32 0.0, %v1533
        %v1535 = vpop.f32.mrf.mxu0
        %1536 = vmatmul.bf16.gmra.mxu0 %v1422
        %v1537 = vpop.f32.mrf.mxu0
        %v1538 = vpop.f32.mrf.mxu0
        %1539 = vdwg.mxu0
        %v1541 = vunpack.c.l.b16 %v1084
        %v1542 = vpack.c.b16 %v1541, %v1541
        %v1543 = vsel %vm1360, %v1171, 0
        %v1545 = vsel %vm1360, %v1172, 0
        %v1547 = vsel %vm1360, %v1173, 0
        %v1549 = vsel %vm1360, %v1174, 0
        %v1551 = vsel %vm1360, %v1175, 0
        %v1553 = vsel %vm1360, %v1176, 0
        %v1555 = vsel %vm1360, %v1177, 0
        %v1557 = vsel %vm1360, %v1178, 0
        %v1559 = vsel %vm1360, %v1179, 0
        %v1561 = vsel %vm1360, %v1180, 0
        %v1563 = vsel %vm1360, %v1181, 0
        %v1565 = vsel %vm1360, %v1182, 0
        %v1567 = vsel %vm1360, %v1183, 0
        %v1569 = vsel %vm1360, %v1184, 0
        %v1571 = vsel %vm1360, %v1185, 0
        %v1573 = vsel %vm1360, %v1186, 0
        %v1575 = vsel %vm1360, %v1187, 0
        %v1577 = vsel %vm1360, %v1188, 0
        %v1579 = vsel %vm1360, %v1189, 0
        %v1581 = vsel %vm1360, %v1190, 0
        %v1584 = vsel %vm1360, %v1542, 0
        %v1587 = vand.u32 %v1085, %v1427
        %1589 = vmatpush.bf16.msra.mxu0 0
        %1590 = vmatpush.bf16.msra.mxu0 0
        %1591 = vmatpush.bf16.msra.mxu0 0
        %1592 = vmatpush.bf16.msra.mxu0 0
        %1593 = vmatpush.bf16.msra.mxu0 0
        %1594 = vmatpush.bf16.msra.mxu0 0
        %1595 = vmatpush.bf16.msra.mxu0 0
        %1596 = vmatpush.bf16.msra.mxu0 %v1587
        %1597 = vmatmul.bf16.gmra.mxu0 %v1543
        %v1598 = vpop.f32.mrf.mxu0
        %v1599 = vpop.f32.mrf.mxu0
        %1600 = vmatmul.bf16.gmra.mxu0 %v1545
        %v1601 = vpop.f32.mrf.mxu0
        %v1602 = vadd.f32 %v1444, %v1601
        %v1603 = vpop.f32.mrf.mxu0
        %v1604 = vadd.f32 %v1446, %v1603
        %1605 = vmatmul.bf16.gmra.mxu0 %v1547
        %v1606 = vpop.f32.mrf.mxu0
        %v1607 = vadd.f32 %v1449, %v1606
        %v1608 = vpop.f32.mrf.mxu0
        %v1609 = vadd.f32 %v1451, %v1608
        %1610 = vmatmul.bf16.gmra.mxu0 %v1549
        %v1611 = vpop.f32.mrf.mxu0
        %v1612 = vadd.f32 %v1454, %v1611
        %v1613 = vpop.f32.mrf.mxu0
        %v1614 = vadd.f32 %v1456, %v1613
        %1615 = vmatmul.bf16.gmra.mxu0 %v1551
        %v1616 = vpop.f32.mrf.mxu0
        %v1617 = vadd.f32 %v1459, %v1616
        %v1618 = vpop.f32.mrf.mxu0
        %v1619 = vadd.f32 %v1461, %v1618
        %1620 = vmatmul.bf16.gmra.mxu0 %v1553
        %v1621 = vpop.f32.mrf.mxu0
        %v1622 = vadd.f32 %v1464, %v1621
        %v1623 = vpop.f32.mrf.mxu0
        %v1624 = vadd.f32 %v1466, %v1623
        %1625 = vmatmul.bf16.gmra.mxu0 %v1555
        %v1626 = vpop.f32.mrf.mxu0
        %v1627 = vadd.f32 %v1469, %v1626
        %v1628 = vpop.f32.mrf.mxu0
        %v1629 = vadd.f32 %v1471, %v1628
        %1630 = vmatmul.bf16.gmra.mxu0 %v1557
        %v1631 = vpop.f32.mrf.mxu0
        %v1632 = vadd.f32 %v1474, %v1631
        %v1633 = vpop.f32.mrf.mxu0
        %v1634 = vadd.f32 %v1476, %v1633
        %1635 = vmatmul.bf16.gmra.mxu0 %v1559
        %v1636 = vpop.f32.mrf.mxu0
        %v1637 = vadd.f32 %v1479, %v1636
        %v1638 = vpop.f32.mrf.mxu0
        %v1639 = vadd.f32 %v1481, %v1638
        %1640 = vmatmul.bf16.gmra.mxu0 %v1561
        %v1641 = vpop.f32.mrf.mxu0
        %v1642 = vadd.f32 %v1484, %v1641
        %v1643 = vpop.f32.mrf.mxu0
        %v1644 = vadd.f32 %v1486, %v1643
        %1645 = vmatmul.bf16.gmra.mxu0 %v1563
        %v1646 = vpop.f32.mrf.mxu0
        %v1647 = vadd.f32 %v1489, %v1646
        %v1648 = vpop.f32.mrf.mxu0
        %v1649 = vadd.f32 %v1491, %v1648
        %1650 = vmatmul.bf16.gmra.mxu0 %v1565
        %v1651 = vpop.f32.mrf.mxu0
        %v1652 = vadd.f32 %v1494, %v1651
        %v1653 = vpop.f32.mrf.mxu0
        %v1654 = vadd.f32 %v1496, %v1653
        %1655 = vmatmul.bf16.gmra.mxu0 %v1567
        %v1656 = vpop.f32.mrf.mxu0
        %v1657 = vadd.f32 %v1499, %v1656
        %v1658 = vpop.f32.mrf.mxu0
        %v1659 = vadd.f32 %v1501, %v1658
        %1660 = vmatmul.bf16.gmra.mxu0 %v1569
        %v1661 = vpop.f32.mrf.mxu0
        %v1662 = vadd.f32 %v1504, %v1661
        %v1663 = vpop.f32.mrf.mxu0
        %v1664 = vadd.f32 %v1506, %v1663
        %1665 = vmatmul.bf16.gmra.mxu0 %v1571
        %v1666 = vpop.f32.mrf.mxu0
        %v1667 = vadd.f32 %v1509, %v1666
        %v1668 = vpop.f32.mrf.mxu0
        %v1669 = vadd.f32 %v1511, %v1668
        %1670 = vmatmul.bf16.gmra.mxu0 %v1573
        %v1671 = vpop.f32.mrf.mxu0
        %v1672 = vadd.f32 %v1514, %v1671
        %v1673 = vpop.f32.mrf.mxu0
        %v1674 = vadd.f32 %v1516, %v1673
        %1675 = vmatmul.bf16.gmra.mxu0 %v1575
        %v1676 = vpop.f32.mrf.mxu0
        %v1677 = vadd.f32 %v1519, %v1676
        %v1678 = vpop.f32.mrf.mxu0
        %v1679 = vadd.f32 %v1521, %v1678
        %1680 = vmatmul.bf16.gmra.mxu0 %v1577
        %v1681 = vpop.f32.mrf.mxu0
        %v1682 = vadd.f32 %v1524, %v1681
        %v1683 = vpop.f32.mrf.mxu0
        %v1684 = vadd.f32 %v1526, %v1683
        %1685 = vmatmul.bf16.gmra.mxu0 %v1579
        %v1686 = vpop.f32.mrf.mxu0
        %v1687 = vadd.f32 %v1529, %v1686
        %v1688 = vpop.f32.mrf.mxu0
        %v1689 = vadd.f32 %v1531, %v1688
        %1690 = vmatmul.bf16.gmra.mxu0 %v1581
        %v1691 = vpop.f32.mrf.mxu0
        %v1692 = vadd.f32 %v1534, %v1691
        %v1693 = vpop.f32.mrf.mxu0
        %1694 = vmatmul.bf16.gmra.mxu0 %v1584
        %v1695 = vpop.f32.mrf.mxu0
        %v1696 = vpop.f32.mrf.mxu0
        %1697 = vdwg.mxu0
        %v1698 = vld [vmem:[%s1011] sm:$0xe]
        %s1699 = scalar_lea.vmem %s11, 4
        %v1700 = vld [vmem:[%s1699] sm:$0x3]
        %v1702 = vunpack.c.l.b16 %v1698
        %v1703 = vpack.c.b16 %v1131, %v1702
        %vm1704 = vcmask 1046528
        %v1705 = vrot.slane %v1703, 1
        %v1706 = vrot.slane %v1172, 1
        %v1707 = vsel %vm1704, %v1705, %v1706
        %v1708 = vrot.slane %v1173, 1
        %v1709 = vsel %vm1704, %v1706, %v1708
        %v1710 = vrot.slane %v1174, 1
        %v1711 = vsel %vm1704, %v1708, %v1710
        %v1712 = vrot.slane %v1175, 1
        %v1713 = vsel %vm1704, %v1710, %v1712
        %v1714 = vrot.slane %v1176, 1
        %v1715 = vsel %vm1704, %v1712, %v1714
        %v1716 = vrot.slane %v1177, 1
        %v1717 = vsel %vm1704, %v1714, %v1716
        %v1718 = vrot.slane %v1178, 1
        %v1719 = vsel %vm1704, %v1716, %v1718
        %v1720 = vrot.slane %v1179, 1
        %v1721 = vsel %vm1704, %v1718, %v1720
        %v1722 = vrot.slane %v1180, 1
        %v1723 = vsel %vm1704, %v1720, %v1722
        %v1724 = vrot.slane %v1181, 1
        %v1725 = vsel %vm1704, %v1722, %v1724
        %v1726 = vrot.slane %v1182, 1
        %v1727 = vsel %vm1704, %v1724, %v1726
        %v1728 = vrot.slane %v1183, 1
        %v1729 = vsel %vm1704, %v1726, %v1728
        %v1730 = vrot.slane %v1184, 1
        %v1731 = vsel %vm1704, %v1728, %v1730
        %v1732 = vrot.slane %v1185, 1
        %v1733 = vsel %vm1704, %v1730, %v1732
        %v1734 = vrot.slane %v1186, 1
        %v1735 = vsel %vm1704, %v1732, %v1734
        %v1736 = vrot.slane %v1187, 1
        %v1737 = vsel %vm1704, %v1734, %v1736
        %v1738 = vrot.slane %v1188, 1
        %v1739 = vsel %vm1704, %v1736, %v1738
        %v1740 = vrot.slane %v1189, 1
        %v1741 = vsel %vm1704, %v1738, %v1740
        %v1742 = vrot.slane %v1190, 1
        %v1743 = vsel %vm1704, %v1740, %v1742
        %v1744 = vrot.slane %v1191, 1
        %v1745 = vsel %vm1704, %v1742, %v1744
        %v1747 = vsel %vm1360, %v1707, 0
        %v1750 = vsel %vm1360, %v1709, 0
        %v1753 = vsel %vm1360, %v1711, 0
        %v1756 = vsel %vm1360, %v1713, 0
        %v1759 = vsel %vm1360, %v1715, 0
        %v1762 = vsel %vm1360, %v1717, 0
        %v1765 = vsel %vm1360, %v1719, 0
        %v1768 = vsel %vm1360, %v1721, 0
        %v1771 = vsel %vm1360, %v1723, 0
        %v1774 = vsel %vm1360, %v1725, 0
        %v1777 = vsel %vm1360, %v1727, 0
        %v1780 = vsel %vm1360, %v1729, 0
        %v1783 = vsel %vm1360, %v1731, 0
        %v1786 = vsel %vm1360, %v1733, 0
        %v1789 = vsel %vm1360, %v1735, 0
        %v1792 = vsel %vm1360, %v1737, 0
        %v1795 = vsel %vm1360, %v1739, 0
        %v1798 = vsel %vm1360, %v1741, 0
        %v1801 = vsel %vm1360, %v1743, 0
        %v1804 = vsel %vm1360, %v1745, 0
        %v1807 = vsel %vm1360, %v1744, 0
        %v1810 = vand.u32 %v1700, %v1427
        %1812 = vmatpush.bf16.msra.mxu0 0
        %1813 = vmatpush.bf16.msra.mxu0 0
        %1814 = vmatpush.bf16.msra.mxu0 0
        %1815 = vmatpush.bf16.msra.mxu0 0
        %1816 = vmatpush.bf16.msra.mxu0 0
        %1817 = vmatpush.bf16.msra.mxu0 0
        %1818 = vmatpush.bf16.msra.mxu0 0
        %1819 = vmatpush.bf16.msra.mxu0 %v1810
        %1820 = vmatmul.bf16.gmra.mxu0 %v1747
        %v1821 = vpop.f32.mrf.mxu0
        %v1822 = vpop.f32.mrf.mxu0
        %1823 = vmatmul.bf16.gmra.mxu0 %v1750
        %v1824 = vpop.f32.mrf.mxu0
        %v1825 = vadd.f32 0.0, %v1824
        %v1826 = vpop.f32.mrf.mxu0
        %v1827 = vadd.f32 0.0, %v1826
        %1828 = vmatmul.bf16.gmra.mxu0 %v1753
        %v1829 = vpop.f32.mrf.mxu0
        %v1830 = vadd.f32 0.0, %v1829
        %v1831 = vpop.f32.mrf.mxu0
        %v1832 = vadd.f32 0.0, %v1831
        %1833 = vmatmul.bf16.gmra.mxu0 %v1756
        %v1834 = vpop.f32.mrf.mxu0
        %v1835 = vadd.f32 0.0, %v1834
        %v1836 = vpop.f32.mrf.mxu0
        %v1837 = vadd.f32 0.0, %v1836
        %1838 = vmatmul.bf16.gmra.mxu0 %v1759
        %v1839 = vpop.f32.mrf.mxu0
        %v1840 = vadd.f32 0.0, %v1839
        %v1841 = vpop.f32.mrf.mxu0
        %v1842 = vadd.f32 0.0, %v1841
        %1843 = vmatmul.bf16.gmra.mxu0 %v1762
        %v1844 = vpop.f32.mrf.mxu0
        %v1845 = vadd.f32 0.0, %v1844
        %v1846 = vpop.f32.mrf.mxu0
        %v1847 = vadd.f32 0.0, %v1846
        %1848 = vmatmul.bf16.gmra.mxu0 %v1765
        %v1849 = vpop.f32.mrf.mxu0
        %v1850 = vadd.f32 0.0, %v1849
        %v1851 = vpop.f32.mrf.mxu0
        %v1852 = vadd.f32 0.0, %v1851
        %1853 = vmatmul.bf16.gmra.mxu0 %v1768
        %v1854 = vpop.f32.mrf.mxu0
        %v1855 = vadd.f32 0.0, %v1854
        %v1856 = vpop.f32.mrf.mxu0
        %v1857 = vadd.f32 0.0, %v1856
        %1858 = vmatmul.bf16.gmra.mxu0 %v1771
        %v1859 = vpop.f32.mrf.mxu0
        %v1860 = vadd.f32 0.0, %v1859
        %v1861 = vpop.f32.mrf.mxu0
        %v1862 = vadd.f32 0.0, %v1861
        %1863 = vmatmul.bf16.gmra.mxu0 %v1774
        %v1864 = vpop.f32.mrf.mxu0
        %v1865 = vadd.f32 0.0, %v1864
        %v1866 = vpop.f32.mrf.mxu0
        %v1867 = vadd.f32 0.0, %v1866
        %1868 = vmatmul.bf16.gmra.mxu0 %v1777
        %v1869 = vpop.f32.mrf.mxu0
        %v1870 = vadd.f32 0.0, %v1869
        %v1871 = vpop.f32.mrf.mxu0
        %v1872 = vadd.f32 0.0, %v1871
        %1873 = vmatmul.bf16.gmra.mxu0 %v1780
        %v1874 = vpop.f32.mrf.mxu0
        %v1875 = vadd.f32 0.0, %v1874
        %v1876 = vpop.f32.mrf.mxu0
        %v1877 = vadd.f32 0.0, %v1876
        %1878 = vmatmul.bf16.gmra.mxu0 %v1783
        %v1879 = vpop.f32.mrf.mxu0
        %v1880 = vadd.f32 0.0, %v1879
        %v1881 = vpop.f32.mrf.mxu0
        %v1882 = vadd.f32 0.0, %v1881
        %1883 = vmatmul.bf16.gmra.mxu0 %v1786
        %v1884 = vpop.f32.mrf.mxu0
        %v1885 = vadd.f32 0.0, %v1884
        %v1886 = vpop.f32.mrf.mxu0
        %v1887 = vadd.f32 0.0, %v1886
        %1888 = vmatmul.bf16.gmra.mxu0 %v1789
        %v1889 = vpop.f32.mrf.mxu0
        %v1890 = vadd.f32 0.0, %v1889
        %v1891 = vpop.f32.mrf.mxu0
        %v1892 = vadd.f32 0.0, %v1891
        %1893 = vmatmul.bf16.gmra.mxu0 %v1792
        %v1894 = vpop.f32.mrf.mxu0
        %v1895 = vadd.f32 0.0, %v1894
        %v1896 = vpop.f32.mrf.mxu0
        %v1897 = vadd.f32 0.0, %v1896
        %1898 = vmatmul.bf16.gmra.mxu0 %v1795
        %v1899 = vpop.f32.mrf.mxu0
        %v1900 = vadd.f32 0.0, %v1899
        %v1901 = vpop.f32.mrf.mxu0
        %v1902 = vadd.f32 0.0, %v1901
        %1903 = vmatmul.bf16.gmra.mxu0 %v1798
        %v1904 = vpop.f32.mrf.mxu0
        %v1905 = vadd.f32 0.0, %v1904
        %v1906 = vpop.f32.mrf.mxu0
        %v1907 = vadd.f32 0.0, %v1906
        %1908 = vmatmul.bf16.gmra.mxu0 %v1801
        %v1909 = vpop.f32.mrf.mxu0
        %v1910 = vadd.f32 0.0, %v1909
        %v1911 = vpop.f32.mrf.mxu0
        %v1912 = vadd.f32 0.0, %v1911
        %1913 = vmatmul.bf16.gmra.mxu0 %v1804
        %v1914 = vpop.f32.mrf.mxu0
        %v1915 = vadd.f32 0.0, %v1914
        %v1916 = vpop.f32.mrf.mxu0
        %1917 = vmatmul.bf16.gmra.mxu0 %v1807
        %v1918 = vpop.f32.mrf.mxu0
        %v1919 = vpop.f32.mrf.mxu0
        %1920 = vdwg.mxu0
        %v1921 = vadd.f32 %v1602, %v1825
        %v1922 = vadd.f32 %v1604, %v1827
        %v1923 = vadd.f32 %v1607, %v1830
        %v1924 = vadd.f32 %v1609, %v1832
        %v1925 = vadd.f32 %v1612, %v1835
        %v1926 = vadd.f32 %v1614, %v1837
        %v1927 = vadd.f32 %v1617, %v1840
        %v1928 = vadd.f32 %v1619, %v1842
        %v1929 = vadd.f32 %v1622, %v1845
        %v1930 = vadd.f32 %v1624, %v1847
        %v1931 = vadd.f32 %v1627, %v1850
        %v1932 = vadd.f32 %v1629, %v1852
        %v1933 = vadd.f32 %v1632, %v1855
        %v1934 = vadd.f32 %v1634, %v1857
        %v1935 = vadd.f32 %v1637, %v1860
        %v1936 = vadd.f32 %v1639, %v1862
        %v1937 = vadd.f32 %v1642, %v1865
        %v1938 = vadd.f32 %v1644, %v1867
        %v1939 = vadd.f32 %v1647, %v1870
        %v1940 = vadd.f32 %v1649, %v1872
        %v1941 = vadd.f32 %v1652, %v1875
        %v1942 = vadd.f32 %v1654, %v1877
        %v1943 = vadd.f32 %v1657, %v1880
        %v1944 = vadd.f32 %v1659, %v1882
        %v1945 = vadd.f32 %v1662, %v1885
        %v1946 = vadd.f32 %v1664, %v1887
        %v1947 = vadd.f32 %v1667, %v1890
        %v1948 = vadd.f32 %v1669, %v1892
        %v1949 = vadd.f32 %v1672, %v1895
        %v1950 = vadd.f32 %v1674, %v1897
        %v1951 = vadd.f32 %v1677, %v1900
        %v1952 = vadd.f32 %v1679, %v1902
        %v1953 = vadd.f32 %v1682, %v1905
        %v1954 = vadd.f32 %v1684, %v1907
        %v1955 = vadd.f32 %v1687, %v1910
        %v1956 = vadd.f32 %v1689, %v1912
        %v1957 = vadd.f32 %v1692, %v1915
        %v1958 = vld [vmem:[%s1011 + $0x8] sm:$0xe]
        %v1959 = vld [vmem:[%s1011 + $0xc] sm:$0xf]
        %v1960 = vld [vmem:[%s1011 + $0x10] sm:$0xf]
        %v1961 = vld [vmem:[%s1011 + $0x14] sm:$0xf]
        %v1962 = vld [vmem:[%s1011 + $0x18] sm:$0xf]
        %v1963 = vld [vmem:[%s1011 + $0x1c] sm:$0xf]
        %v1964 = vld [vmem:[%s1011 + $0x20] sm:$0xf]
        %v1965 = vld [vmem:[%s1011 + $0x24] sm:$0xf]
        %v1966 = vld [vmem:[%s1011 + $0x28] sm:$0xf]
        %v1967 = vld [vmem:[%s1011 + $0x2c] sm:$0xf]
        %v1968 = vld [vmem:[%s1011 + $0x30] sm:$0xf]
        %v1969 = vld [vmem:[%s1011 + $0x34] sm:$0xf]
        %v1970 = vld [vmem:[%s1011 + $0x38] sm:$0xf]
        %v1971 = vld [vmem:[%s1011 + $0x3c] sm:$0xf]
        %v1972 = vld [vmem:[%s1011 + $0x40] sm:$0xf]
        %v1973 = vld [vmem:[%s1011 + $0x44] sm:$0xf]
        %v1974 = vld [vmem:[%s1011 + $0x48] sm:$0xf]
        %v1975 = vld [vmem:[%s1011 + $0x4c] sm:$0xf]
        %v1976 = vld [vmem:[%s1011 + $0x50] sm:$0xf]
        %v1977 = vld [vmem:[%s1011 + $0x54] sm:$0xf]
        %v1978 = vld [vmem:[%s1011 + $0x58] sm:$0xf]
        %v1979 = vld [vmem:[%s1011 + $0x5c] sm:$0xf]
        %v1980 = vld [vmem:[%s1011 + $0x60] sm:$0xf]
        %v1981 = vld [vmem:[%s1011 + $0x64] sm:$0xf]
        %v1982 = vld [vmem:[%s1011 + $0x68] sm:$0xf]
        %v1983 = vld [vmem:[%s1011 + $0x6c] sm:$0xf]
        %v1984 = vld [vmem:[%s1011 + $0x70] sm:$0xf]
        %v1985 = vld [vmem:[%s1011 + $0x74] sm:$0xf]
        %v1986 = vld [vmem:[%s1011 + $0x78] sm:$0xf]
        %v1987 = vld [vmem:[%s1011 + $0x7c] sm:$0xf]
        %v1988 = vld [vmem:[%s1011 + $0x80] sm:$0xf]
        %v1989 = vld [vmem:[%s1011 + $0x84] sm:$0xf]
        %v1990 = vld [vmem:[%s1011 + $0x88] sm:$0xf]
        %v1991 = vld [vmem:[%s1011 + $0x8c] sm:$0xf]
        %v1992 = vld [vmem:[%s1011 + $0x90] sm:$0xf]
        %v1993 = vld [vmem:[%s1011 + $0x94] sm:$0xf]
        %v1994 = vld [vmem:[%s1011 + $0x98] sm:$0xf]
        %v1995 = vld [vmem:[%s1011 + $0x9c] sm:$0xf]
        %v1996 = vld [vmem:[%s1011 + $0xa0] sm:$0xf]
        %v1997 = vld [vmem:[%s1011 + $0xa4] sm:$0xf]
        %v1998 = vld [vmem:[%s1011 + $0xa8] sm:$0x7]
        %s1999 = scalar_lea.vmem %s11, 6
        %v2000 = vld [vmem:[%s1999] sm:$0x3]
        %v2042 = vunpack.c.l.b16 %v1958
        %v2043 = vunpack.c.l.b16 %v1959
        %v2044 = vunpack.c.l.b16 %v1960
        %v2045 = vunpack.c.l.b16 %v1961
        %v2046 = vunpack.c.l.b16 %v1962
        %v2047 = vunpack.c.l.b16 %v1963
        %v2048 = vunpack.c.l.b16 %v1964
        %v2049 = vunpack.c.l.b16 %v1965
        %v2050 = vunpack.c.l.b16 %v1966
        %v2051 = vunpack.c.l.b16 %v1967
        %v2052 = vunpack.c.l.b16 %v1968
        %v2053 = vunpack.c.l.b16 %v1969
        %v2054 = vunpack.c.l.b16 %v1970
        %v2055 = vunpack.c.l.b16 %v1971
        %v2056 = vunpack.c.l.b16 %v1972
        %v2057 = vunpack.c.l.b16 %v1973
        %v2058 = vunpack.c.l.b16 %v1974
        %v2059 = vunpack.c.l.b16 %v1975
        %v2060 = vunpack.c.l.b16 %v1976
        %v2061 = vunpack.c.l.b16 %v1977
        %v2062 = vunpack.c.l.b16 %v1978
        %v2063 = vunpack.c.l.b16 %v1979
        %v2064 = vunpack.c.l.b16 %v1980
        %v2065 = vunpack.c.l.b16 %v1981
        %v2066 = vunpack.c.l.b16 %v1982
        %v2067 = vunpack.c.l.b16 %v1983
        %v2068 = vunpack.c.l.b16 %v1984
        %v2069 = vunpack.c.l.b16 %v1985
        %v2070 = vunpack.c.l.b16 %v1986
        %v2071 = vunpack.c.l.b16 %v1987
        %v2072 = vunpack.c.l.b16 %v1988
        %v2073 = vunpack.c.l.b16 %v1989
        %v2074 = vunpack.c.l.b16 %v1990
        %v2075 = vunpack.c.l.b16 %v1991
        %v2076 = vunpack.c.l.b16 %v1992
        %v2077 = vunpack.c.l.b16 %v1993
        %v2078 = vunpack.c.l.b16 %v1994
        %v2079 = vunpack.c.l.b16 %v1995
        %v2080 = vunpack.c.l.b16 %v1996
        %v2081 = vunpack.c.l.b16 %v1997
        %v2082 = vunpack.c.l.b16 %v1998
        %v2083 = vpack.c.b16 %v2043, %v2042
        %v2084 = vpack.c.b16 %v2045, %v2044
        %v2085 = vpack.c.b16 %v2047, %v2046
        %v2086 = vpack.c.b16 %v2049, %v2048
        %v2087 = vpack.c.b16 %v2051, %v2050
        %v2088 = vpack.c.b16 %v2053, %v2052
        %v2089 = vpack.c.b16 %v2055, %v2054
        %v2090 = vpack.c.b16 %v2057, %v2056
        %v2091 = vpack.c.b16 %v2059, %v2058
        %v2092 = vpack.c.b16 %v2061, %v2060
        %v2093 = vpack.c.b16 %v2063, %v2062
        %v2094 = vpack.c.b16 %v2065, %v2064
        %v2095 = vpack.c.b16 %v2067, %v2066
        %v2096 = vpack.c.b16 %v2069, %v2068
        %v2097 = vpack.c.b16 %v2071, %v2070
        %v2098 = vpack.c.b16 %v2073, %v2072
        %v2099 = vpack.c.b16 %v2075, %v2074
        %v2100 = vpack.c.b16 %v2077, %v2076
        %v2101 = vpack.c.b16 %v2079, %v2078
        %v2102 = vpack.c.b16 %v2081, %v2080
        %v2103 = vpack.c.b16 %v2082, %v2082
        %v2104 = vrot.slane %v2083, 1
        %v2105 = vrot.slane %v2084, 1
        %v2106 = vsel %vm1704, %v2104, %v2105
        %v2107 = vrot.slane %v2085, 1
        %v2108 = vsel %vm1704, %v2105, %v2107
        %v2109 = vrot.slane %v2086, 1
        %v2110 = vsel %vm1704, %v2107, %v2109
        %v2111 = vrot.slane %v2087, 1
        %v2112 = vsel %vm1704, %v2109, %v2111
        %v2113 = vrot.slane %v2088, 1
        %v2114 = vsel %vm1704, %v2111, %v2113
        %v2115 = vrot.slane %v2089, 1
        %v2116 = vsel %vm1704, %v2113, %v2115
        %v2117 = vrot.slane %v2090, 1
        %v2118 = vsel %vm1704, %v2115, %v2117
        %v2119 = vrot.slane %v2091, 1
        %v2120 = vsel %vm1704, %v2117, %v2119
        %v2121 = vrot.slane %v2092, 1
        %v2122 = vsel %vm1704, %v2119, %v2121
        %v2123 = vrot.slane %v2093, 1
        %v2124 = vsel %vm1704, %v2121, %v2123
        %v2125 = vrot.slane %v2094, 1
        %v2126 = vsel %vm1704, %v2123, %v2125
        %v2127 = vrot.slane %v2095, 1
        %v2128 = vsel %vm1704, %v2125, %v2127
        %v2129 = vrot.slane %v2096, 1
        %v2130 = vsel %vm1704, %v2127, %v2129
        %v2131 = vrot.slane %v2097, 1
        %v2132 = vsel %vm1704, %v2129, %v2131
        %v2133 = vrot.slane %v2098, 1
        %v2134 = vsel %vm1704, %v2131, %v2133
        %v2135 = vrot.slane %v2099, 1
        %v2136 = vsel %vm1704, %v2133, %v2135
        %v2137 = vrot.slane %v2100, 1
        %v2138 = vsel %vm1704, %v2135, %v2137
        %v2139 = vrot.slane %v2101, 1
        %v2140 = vsel %vm1704, %v2137, %v2139
        %v2141 = vrot.slane %v2102, 1
        %v2142 = vsel %vm1704, %v2139, %v2141
        %v2143 = vrot.slane %v2103, 1
        %v2144 = vsel %vm1704, %v2141, %v2143
        %v2146 = vsel %vm1360, %v2106, 0
        %v2149 = vsel %vm1360, %v2108, 0
        %v2152 = vsel %vm1360, %v2110, 0
        %v2155 = vsel %vm1360, %v2112, 0
        %v2158 = vsel %vm1360, %v2114, 0
        %v2161 = vsel %vm1360, %v2116, 0
        %v2164 = vsel %vm1360, %v2118, 0
        %v2167 = vsel %vm1360, %v2120, 0
        %v2170 = vsel %vm1360, %v2122, 0
        %v2173 = vsel %vm1360, %v2124, 0
        %v2176 = vsel %vm1360, %v2126, 0
        %v2179 = vsel %vm1360, %v2128, 0
        %v2182 = vsel %vm1360, %v2130, 0
        %v2185 = vsel %vm1360, %v2132, 0
        %v2188 = vsel %vm1360, %v2134, 0
        %v2191 = vsel %vm1360, %v2136, 0
        %v2194 = vsel %vm1360, %v2138, 0
        %v2197 = vsel %vm1360, %v2140, 0
        %v2200 = vsel %vm1360, %v2142, 0
        %v2203 = vsel %vm1360, %v2144, 0
        %v2206 = vsel %vm1360, %v2143, 0
        %v2209 = vand.u32 %v2000, %v1427
        %2211 = vmatpush.bf16.msra.mxu0 0
        %2212 = vmatpush.bf16.msra.mxu0 0
        %2213 = vmatpush.bf16.msra.mxu0 0
        %2214 = vmatpush.bf16.msra.mxu0 0
        %2215 = vmatpush.bf16.msra.mxu0 0
        %2216 = vmatpush.bf16.msra.mxu0 0
        %2217 = vmatpush.bf16.msra.mxu0 0
        %2218 = vmatpush.bf16.msra.mxu0 %v2209
        %2219 = vmatmul.bf16.gmra.mxu0 %v2146
        %v2220 = vpop.f32.mrf.mxu0
        %v2221 = vpop.f32.mrf.mxu0
        %2222 = vmatmul.bf16.gmra.mxu0 %v2149
        %v2223 = vpop.f32.mrf.mxu0
        %v2224 = vadd.f32 0.0, %v2223
        %v2225 = vpop.f32.mrf.mxu0
        %v2226 = vadd.f32 0.0, %v2225
        %2227 = vmatmul.bf16.gmra.mxu0 %v2152
        %v2228 = vpop.f32.mrf.mxu0
        %v2229 = vadd.f32 0.0, %v2228
        %v2230 = vpop.f32.mrf.mxu0
        %v2231 = vadd.f32 0.0, %v2230
        %2232 = vmatmul.bf16.gmra.mxu0 %v2155
        %v2233 = vpop.f32.mrf.mxu0
        %v2234 = vadd.f32 0.0, %v2233
        %v2235 = vpop.f32.mrf.mxu0
        %v2236 = vadd.f32 0.0, %v2235
        %2237 = vmatmul.bf16.gmra.mxu0 %v2158
        %v2238 = vpop.f32.mrf.mxu0
        %v2239 = vadd.f32 0.0, %v2238
        %v2240 = vpop.f32.mrf.mxu0
        %v2241 = vadd.f32 0.0, %v2240
        %2242 = vmatmul.bf16.gmra.mxu0 %v2161
        %v2243 = vpop.f32.mrf.mxu0
        %v2244 = vadd.f32 0.0, %v2243
        %v2245 = vpop.f32.mrf.mxu0
        %v2246 = vadd.f32 0.0, %v2245
        %2247 = vmatmul.bf16.gmra.mxu0 %v2164
        %v2248 = vpop.f32.mrf.mxu0
        %v2249 = vadd.f32 0.0, %v2248
        %v2250 = vpop.f32.mrf.mxu0
        %v2251 = vadd.f32 0.0, %v2250
        %2252 = vmatmul.bf16.gmra.mxu0 %v2167
        %v2253 = vpop.f32.mrf.mxu0
        %v2254 = vadd.f32 0.0, %v2253
        %v2255 = vpop.f32.mrf.mxu0
        %v2256 = vadd.f32 0.0, %v2255
        %2257 = vmatmul.bf16.gmra.mxu0 %v2170
        %v2258 = vpop.f32.mrf.mxu0
        %v2259 = vadd.f32 0.0, %v2258
        %v2260 = vpop.f32.mrf.mxu0
        %v2261 = vadd.f32 0.0, %v2260
        %2262 = vmatmul.bf16.gmra.mxu0 %v2173
        %v2263 = vpop.f32.mrf.mxu0
        %v2264 = vadd.f32 0.0, %v2263
        %v2265 = vpop.f32.mrf.mxu0
        %v2266 = vadd.f32 0.0, %v2265
        %2267 = vmatmul.bf16.gmra.mxu0 %v2176
        %v2268 = vpop.f32.mrf.mxu0
        %v2269 = vadd.f32 0.0, %v2268
        %v2270 = vpop.f32.mrf.mxu0
        %v2271 = vadd.f32 0.0, %v2270
        %2272 = vmatmul.bf16.gmra.mxu0 %v2179
        %v2273 = vpop.f32.mrf.mxu0
        %v2274 = vadd.f32 0.0, %v2273
        %v2275 = vpop.f32.mrf.mxu0
        %v2276 = vadd.f32 0.0, %v2275
        %2277 = vmatmul.bf16.gmra.mxu0 %v2182
        %v2278 = vpop.f32.mrf.mxu0
        %v2279 = vadd.f32 0.0, %v2278
        %v2280 = vpop.f32.mrf.mxu0
        %v2281 = vadd.f32 0.0, %v2280
        %2282 = vmatmul.bf16.gmra.mxu0 %v2185
        %v2283 = vpop.f32.mrf.mxu0
        %v2284 = vadd.f32 0.0, %v2283
        %v2285 = vpop.f32.mrf.mxu0
        %v2286 = vadd.f32 0.0, %v2285
        %2287 = vmatmul.bf16.gmra.mxu0 %v2188
        %v2288 = vpop.f32.mrf.mxu0
        %v2289 = vadd.f32 0.0, %v2288
        %v2290 = vpop.f32.mrf.mxu0
        %v2291 = vadd.f32 0.0, %v2290
        %2292 = vmatmul.bf16.gmra.mxu0 %v2191
        %v2293 = vpop.f32.mrf.mxu0
        %v2294 = vadd.f32 0.0, %v2293
        %v2295 = vpop.f32.mrf.mxu0
        %v2296 = vadd.f32 0.0, %v2295
        %2297 = vmatmul.bf16.gmra.mxu0 %v2194
        %v2298 = vpop.f32.mrf.mxu0
        %v2299 = vadd.f32 0.0, %v2298
        %v2300 = vpop.f32.mrf.mxu0
        %v2301 = vadd.f32 0.0, %v2300
        %2302 = vmatmul.bf16.gmra.mxu0 %v2197
        %v2303 = vpop.f32.mrf.mxu0
        %v2304 = vadd.f32 0.0, %v2303
        %v2305 = vpop.f32.mrf.mxu0
        %v2306 = vadd.f32 0.0, %v2305
        %2307 = vmatmul.bf16.gmra.mxu0 %v2200
        %v2308 = vpop.f32.mrf.mxu0
        %v2309 = vadd.f32 0.0, %v2308
        %v2310 = vpop.f32.mrf.mxu0
        %v2311 = vadd.f32 0.0, %v2310
        %2312 = vmatmul.bf16.gmra.mxu0 %v2203
        %v2313 = vpop.f32.mrf.mxu0
        %v2314 = vadd.f32 0.0, %v2313
        %v2315 = vpop.f32.mrf.mxu0
        %2316 = vmatmul.bf16.gmra.mxu0 %v2206
        %v2317 = vpop.f32.mrf.mxu0
        %v2318 = vpop.f32.mrf.mxu0
        %2319 = vdwg.mxu0
        %v2320 = vadd.f32 %v1921, %v2224
        %v2321 = vadd.f32 %v1922, %v2226
        %v2322 = vadd.f32 %v1923, %v2229
        %v2323 = vadd.f32 %v1924, %v2231
        %v2324 = vadd.f32 %v1925, %v2234
        %v2325 = vadd.f32 %v1926, %v2236
        %v2326 = vadd.f32 %v1927, %v2239
        %v2327 = vadd.f32 %v1928, %v2241
        %v2328 = vadd.f32 %v1929, %v2244
        %v2329 = vadd.f32 %v1930, %v2246
        %v2330 = vadd.f32 %v1931, %v2249
        %v2331 = vadd.f32 %v1932, %v2251
        %v2332 = vadd.f32 %v1933, %v2254
        %v2333 = vadd.f32 %v1934, %v2256
        %v2334 = vadd.f32 %v1935, %v2259
        %v2335 = vadd.f32 %v1936, %v2261
        %v2336 = vadd.f32 %v1937, %v2264
        %v2337 = vadd.f32 %v1938, %v2266
        %v2338 = vadd.f32 %v1939, %v2269
        %v2339 = vadd.f32 %v1940, %v2271
        %v2340 = vadd.f32 %v1941, %v2274
        %v2341 = vadd.f32 %v1942, %v2276
        %v2342 = vadd.f32 %v1943, %v2279
        %v2343 = vadd.f32 %v1944, %v2281
        %v2344 = vadd.f32 %v1945, %v2284
        %v2345 = vadd.f32 %v1946, %v2286
        %v2346 = vadd.f32 %v1947, %v2289
        %v2347 = vadd.f32 %v1948, %v2291
        %v2348 = vadd.f32 %v1949, %v2294
        %v2349 = vadd.f32 %v1950, %v2296
        %v2350 = vadd.f32 %v1951, %v2299
        %v2351 = vadd.f32 %v1952, %v2301
        %v2352 = vadd.f32 %v1953, %v2304
        %v2353 = vadd.f32 %v1954, %v2306
        %v2354 = vadd.f32 %v1955, %v2309
        %v2355 = vadd.f32 %v1956, %v2311
        %v2356 = vadd.f32 %v1957, %v2314
        %v2357 = vld [vmem:[%s1011 + $0xa8] sm:$0xf]
        %s2358 = scalar_lea.vmem %s11, 8
        %v2359 = vld [vmem:[%s2358] sm:$0x3]
        %v2361 = vunpack.c.l.b16 %v2357
        %v2362 = vpack.c.b16 %v2361, %v2361
        %vm2363 = vsmask.f32 6400
        %v2365 = vshrl.u32 %v2083, 16
        %v2367 = vrot.slane %v2365, 1
        %v2368 = vshll.u32 %v2083, 16
        %v2370 = vrot.slane %v2368, 2
        %v2371 = vor.u32 %v2367, %v2370
        %v2373 = vshrl.u32 %v2084, 16
        %v2375 = vrot.slane %v2373, 1
        %v2376 = vshll.u32 %v2084, 16
        %v2378 = vrot.slane %v2376, 2
        %v2379 = vor.u32 %v2375, %v2378
        %v2380 = vsel %vm2363, %v2371, %v2379
        %v2382 = vshrl.u32 %v2085, 16
        %v2384 = vrot.slane %v2382, 1
        %v2385 = vshll.u32 %v2085, 16
        %v2387 = vrot.slane %v2385, 2
        %v2388 = vor.u32 %v2384, %v2387
        %v2389 = vsel %vm2363, %v2379, %v2388
        %v2391 = vshrl.u32 %v2086, 16
        %v2393 = vrot.slane %v2391, 1
        %v2394 = vshll.u32 %v2086, 16
        %v2396 = vrot.slane %v2394, 2
        %v2397 = vor.u32 %v2393, %v2396
        %v2398 = vsel %vm2363, %v2388, %v2397
        %v2400 = vshrl.u32 %v2087, 16
        %v2402 = vrot.slane %v2400, 1
        %v2403 = vshll.u32 %v2087, 16
        %v2405 = vrot.slane %v2403, 2
        %v2406 = vor.u32 %v2402, %v2405
        %v2407 = vsel %vm2363, %v2397, %v2406
        %v2409 = vshrl.u32 %v2088, 16
        %v2411 = vrot.slane %v2409, 1
        %v2412 = vshll.u32 %v2088, 16
        %v2414 = vrot.slane %v2412, 2
        %v2415 = vor.u32 %v2411, %v2414
        %v2416 = vsel %vm2363, %v2406, %v2415
        %v2418 = vshrl.u32 %v2089, 16
        %v2420 = vrot.slane %v2418, 1
        %v2421 = vshll.u32 %v2089, 16
        %v2423 = vrot.slane %v2421, 2
        %v2424 = vor.u32 %v2420, %v2423
        %v2425 = vsel %vm2363, %v2415, %v2424
        %v2427 = vshrl.u32 %v2090, 16
        %v2429 = vrot.slane %v2427, 1
        %v2430 = vshll.u32 %v2090, 16
        %v2432 = vrot.slane %v2430, 2
        %v2433 = vor.u32 %v2429, %v2432
        %v2434 = vsel %vm2363, %v2424, %v2433
        %v2436 = vshrl.u32 %v2091, 16
        %v2438 = vrot.slane %v2436, 1
        %v2439 = vshll.u32 %v2091, 16
        %v2441 = vrot.slane %v2439, 2
        %v2442 = vor.u32 %v2438, %v2441
        %v2443 = vsel %vm2363, %v2433, %v2442
        %v2445 = vshrl.u32 %v2092, 16
        %v2447 = vrot.slane %v2445, 1
        %v2448 = vshll.u32 %v2092, 16
        %v2450 = vrot.slane %v2448, 2
        %v2451 = vor.u32 %v2447, %v2450
        %v2452 = vsel %vm2363, %v2442, %v2451
        %v2454 = vshrl.u32 %v2093, 16
        %v2456 = vrot.slane %v2454, 1
        %v2457 = vshll.u32 %v2093, 16
        %v2459 = vrot.slane %v2457, 2
        %v2460 = vor.u32 %v2456, %v2459
        %v2461 = vsel %vm2363, %v2451, %v2460
        %v2463 = vshrl.u32 %v2094, 16
        %v2465 = vrot.slane %v2463, 1
        %v2466 = vshll.u32 %v2094, 16
        %v2468 = vrot.slane %v2466, 2
        %v2469 = vor.u32 %v2465, %v2468
        %v2470 = vsel %vm2363, %v2460, %v2469
        %v2472 = vshrl.u32 %v2095, 16
        %v2474 = vrot.slane %v2472, 1
        %v2475 = vshll.u32 %v2095, 16
        %v2477 = vrot.slane %v2475, 2
        %v2478 = vor.u32 %v2474, %v2477
        %v2479 = vsel %vm2363, %v2469, %v2478
        %v2481 = vshrl.u32 %v2096, 16
        %v2483 = vrot.slane %v2481, 1
        %v2484 = vshll.u32 %v2096, 16
        %v2486 = vrot.slane %v2484, 2
        %v2487 = vor.u32 %v2483, %v2486
        %v2488 = vsel %vm2363, %v2478, %v2487
        %v2490 = vshrl.u32 %v2097, 16
        %v2492 = vrot.slane %v2490, 1
        %v2493 = vshll.u32 %v2097, 16
        %v2495 = vrot.slane %v2493, 2
        %v2496 = vor.u32 %v2492, %v2495
        %v2497 = vsel %vm2363, %v2487, %v2496
        %v2499 = vshrl.u32 %v2098, 16
        %v2501 = vrot.slane %v2499, 1
        %v2502 = vshll.u32 %v2098, 16
        %v2504 = vrot.slane %v2502, 2
        %v2505 = vor.u32 %v2501, %v2504
        %v2506 = vsel %vm2363, %v2496, %v2505
        %v2508 = vshrl.u32 %v2099, 16
        %v2510 = vrot.slane %v2508, 1
        %v2511 = vshll.u32 %v2099, 16
        %v2513 = vrot.slane %v2511, 2
        %v2514 = vor.u32 %v2510, %v2513
        %v2515 = vsel %vm2363, %v2505, %v2514
        %v2517 = vshrl.u32 %v2100, 16
        %v2519 = vrot.slane %v2517, 1
        %v2520 = vshll.u32 %v2100, 16
        %v2522 = vrot.slane %v2520, 2
        %v2523 = vor.u32 %v2519, %v2522
        %v2524 = vsel %vm2363, %v2514, %v2523
        %v2526 = vshrl.u32 %v2101, 16
        %v2528 = vrot.slane %v2526, 1
        %v2529 = vshll.u32 %v2101, 16
        %v2531 = vrot.slane %v2529, 2
        %v2532 = vor.u32 %v2528, %v2531
        %v2533 = vsel %vm2363, %v2523, %v2532
        %v2535 = vshrl.u32 %v2102, 16
        %v2537 = vrot.slane %v2535, 1
        %v2538 = vshll.u32 %v2102, 16
        %v2540 = vrot.slane %v2538, 2
        %v2541 = vor.u32 %v2537, %v2540
        %v2542 = vsel %vm2363, %v2532, %v2541
        %v2544 = vshrl.u32 %v2362, 16
        %v2546 = vrot.slane %v2544, 1
        %v2547 = vshll.u32 %v2362, 16
        %v2549 = vrot.slane %v2547, 2
        %v2550 = vor.u32 %v2546, %v2549
        %v2551 = vsel %vm2363, %v2541, %v2550
        %v2553 = vsel %vm1360, %v2380, 0
        %v2556 = vsel %vm1360, %v2389, 0
        %v2559 = vsel %vm1360, %v2398, 0
        %v2562 = vsel %vm1360, %v2407, 0
        %v2565 = vsel %vm1360, %v2416, 0
        %v2568 = vsel %vm1360, %v2425, 0
        %v2571 = vsel %vm1360, %v2434, 0
        %v2574 = vsel %vm1360, %v2443, 0
        %v2577 = vsel %vm1360, %v2452, 0
        %v2580 = vsel %vm1360, %v2461, 0
        %v2583 = vsel %vm1360, %v2470, 0
        %v2586 = vsel %vm1360, %v2479, 0
        %v2589 = vsel %vm1360, %v2488, 0
        %v2592 = vsel %vm1360, %v2497, 0
        %v2595 = vsel %vm1360, %v2506, 0
        %v2598 = vsel %vm1360, %v2515, 0
        %v2601 = vsel %vm1360, %v2524, 0
        %v2604 = vsel %vm1360, %v2533, 0
        %v2607 = vsel %vm1360, %v2542, 0
        %v2610 = vsel %vm1360, %v2551, 0
        %v2613 = vsel %vm1360, %v2550, 0
        %v2616 = vand.u32 %v2359, %v1427
        %2618 = vmatpush.bf16.msra.mxu0 0
        %2619 = vmatpush.bf16.msra.mxu0 0
        %2620 = vmatpush.bf16.msra.mxu0 0
        %2621 = vmatpush.bf16.msra.mxu0 0
        %2622 = vmatpush.bf16.msra.mxu0 0
        %2623 = vmatpush.bf16.msra.mxu0 0
        %2624 = vmatpush.bf16.msra.mxu0 0
        %2625 = vmatpush.bf16.msra.mxu0 %v2616
        %2626 = vmatmul.bf16.gmra.mxu0 %v2553
        %v2627 = vpop.f32.mrf.mxu0
        %v2628 = vpop.f32.mrf.mxu0
        %2629 = vmatmul.bf16.gmra.mxu0 %v2556
        %v2630 = vpop.f32.mrf.mxu0
        %v2631 = vadd.f32 0.0, %v2630
        %v2632 = vpop.f32.mrf.mxu0
        %v2633 = vadd.f32 0.0, %v2632
        %2634 = vmatmul.bf16.gmra.mxu0 %v2559
        %v2635 = vpop.f32.mrf.mxu0
        %v2636 = vadd.f32 0.0, %v2635
        %v2637 = vpop.f32.mrf.mxu0
        %v2638 = vadd.f32 0.0, %v2637
        %2639 = vmatmul.bf16.gmra.mxu0 %v2562
        %v2640 = vpop.f32.mrf.mxu0
        %v2641 = vadd.f32 0.0, %v2640
        %v2642 = vpop.f32.mrf.mxu0
        %v2643 = vadd.f32 0.0, %v2642
        %2644 = vmatmul.bf16.gmra.mxu0 %v2565
        %v2645 = vpop.f32.mrf.mxu0
        %v2646 = vadd.f32 0.0, %v2645
        %v2647 = vpop.f32.mrf.mxu0
        %v2648 = vadd.f32 0.0, %v2647
        %2649 = vmatmul.bf16.gmra.mxu0 %v2568
        %v2650 = vpop.f32.mrf.mxu0
        %v2651 = vadd.f32 0.0, %v2650
        %v2652 = vpop.f32.mrf.mxu0
        %v2653 = vadd.f32 0.0, %v2652
        %2654 = vmatmul.bf16.gmra.mxu0 %v2571
        %v2655 = vpop.f32.mrf.mxu0
        %v2656 = vadd.f32 0.0, %v2655
        %v2657 = vpop.f32.mrf.mxu0
        %v2658 = vadd.f32 0.0, %v2657
        %2659 = vmatmul.bf16.gmra.mxu0 %v2574
        %v2660 = vpop.f32.mrf.mxu0
        %v2661 = vadd.f32 0.0, %v2660
        %v2662 = vpop.f32.mrf.mxu0
        %v2663 = vadd.f32 0.0, %v2662
        %2664 = vmatmul.bf16.gmra.mxu0 %v2577
        %v2665 = vpop.f32.mrf.mxu0
        %v2666 = vadd.f32 0.0, %v2665
        %v2667 = vpop.f32.mrf.mxu0
        %v2668 = vadd.f32 0.0, %v2667
        %2669 = vmatmul.bf16.gmra.mxu0 %v2580
        %v2670 = vpop.f32.mrf.mxu0
        %v2671 = vadd.f32 0.0, %v2670
        %v2672 = vpop.f32.mrf.mxu0
        %v2673 = vadd.f32 0.0, %v2672
        %2674 = vmatmul.bf16.gmra.mxu0 %v2583
        %v2675 = vpop.f32.mrf.mxu0
        %v2676 = vadd.f32 0.0, %v2675
        %v2677 = vpop.f32.mrf.mxu0
        %v2678 = vadd.f32 0.0, %v2677
        %2679 = vmatmul.bf16.gmra.mxu0 %v2586
        %v2680 = vpop.f32.mrf.mxu0
        %v2681 = vadd.f32 0.0, %v2680
        %v2682 = vpop.f32.mrf.mxu0
        %v2683 = vadd.f32 0.0, %v2682
        %2684 = vmatmul.bf16.gmra.mxu0 %v2589
        %v2685 = vpop.f32.mrf.mxu0
        %v2686 = vadd.f32 0.0, %v2685
        %v2687 = vpop.f32.mrf.mxu0
        %v2688 = vadd.f32 0.0, %v2687
        %2689 = vmatmul.bf16.gmra.mxu0 %v2592
        %v2690 = vpop.f32.mrf.mxu0
        %v2691 = vadd.f32 0.0, %v2690
        %v2692 = vpop.f32.mrf.mxu0
        %v2693 = vadd.f32 0.0, %v2692
        %2694 = vmatmul.bf16.gmra.mxu0 %v2595
        %v2695 = vpop.f32.mrf.mxu0
        %v2696 = vadd.f32 0.0, %v2695
        %v2697 = vpop.f32.mrf.mxu0
        %v2698 = vadd.f32 0.0, %v2697
        %2699 = vmatmul.bf16.gmra.mxu0 %v2598
        %v2700 = vpop.f32.mrf.mxu0
        %v2701 = vadd.f32 0.0, %v2700
        %v2702 = vpop.f32.mrf.mxu0
        %v2703 = vadd.f32 0.0, %v2702
        %2704 = vmatmul.bf16.gmra.mxu0 %v2601
        %v2705 = vpop.f32.mrf.mxu0
        %v2706 = vadd.f32 0.0, %v2705
        %v2707 = vpop.f32.mrf.mxu0
        %v2708 = vadd.f32 0.0, %v2707
        %2709 = vmatmul.bf16.gmra.mxu0 %v2604
        %v2710 = vpop.f32.mrf.mxu0
        %v2711 = vadd.f32 0.0, %v2710
        %v2712 = vpop.f32.mrf.mxu0
        %v2713 = vadd.f32 0.0, %v2712
        %2714 = vmatmul.bf16.gmra.mxu0 %v2607
        %v2715 = vpop.f32.mrf.mxu0
        %v2716 = vadd.f32 0.0, %v2715
        %v2717 = vpop.f32.mrf.mxu0
        %v2718 = vadd.f32 0.0, %v2717
        %2719 = vmatmul.bf16.gmra.mxu0 %v2610
        %v2720 = vpop.f32.mrf.mxu0
        %v2721 = vadd.f32 0.0, %v2720
        %v2722 = vpop.f32.mrf.mxu0
        %2723 = vmatmul.bf16.gmra.mxu0 %v2613
        %v2724 = vpop.f32.mrf.mxu0
        %v2725 = vpop.f32.mrf.mxu0
        %2726 = vdwg.mxu0
        %v2727 = vadd.f32 %v2320, %v2631
        %v2728 = vadd.f32 %v2321, %v2633
        %v2729 = vadd.f32 %v2322, %v2636
        %v2730 = vadd.f32 %v2323, %v2638
        %v2731 = vadd.f32 %v2324, %v2641
        %v2732 = vadd.f32 %v2325, %v2643
        %v2733 = vadd.f32 %v2326, %v2646
        %v2734 = vadd.f32 %v2327, %v2648
        %v2735 = vadd.f32 %v2328, %v2651
        %v2736 = vadd.f32 %v2329, %v2653
        %v2737 = vadd.f32 %v2330, %v2656
        %v2738 = vadd.f32 %v2331, %v2658
        %v2739 = vadd.f32 %v2332, %v2661
        %v2740 = vadd.f32 %v2333, %v2663
        %v2741 = vadd.f32 %v2334, %v2666
        %v2742 = vadd.f32 %v2335, %v2668
        %v2743 = vadd.f32 %v2336, %v2671
        %v2744 = vadd.f32 %v2337, %v2673
        %v2745 = vadd.f32 %v2338, %v2676
        %v2746 = vadd.f32 %v2339, %v2678
        %v2747 = vadd.f32 %v2340, %v2681
        %v2748 = vadd.f32 %v2341, %v2683
        %v2749 = vadd.f32 %v2342, %v2686
        %v2750 = vadd.f32 %v2343, %v2688
        %v2751 = vadd.f32 %v2344, %v2691
        %v2752 = vadd.f32 %v2345, %v2693
        %v2753 = vadd.f32 %v2346, %v2696
        %v2754 = vadd.f32 %v2347, %v2698
        %v2755 = vadd.f32 %v2348, %v2701
        %v2756 = vadd.f32 %v2349, %v2703
        %v2757 = vadd.f32 %v2350, %v2706
        %v2758 = vadd.f32 %v2351, %v2708
        %v2759 = vadd.f32 %v2352, %v2711
        %v2760 = vadd.f32 %v2353, %v2713
        %v2761 = vadd.f32 %v2354, %v2716
        %v2762 = vadd.f32 %v2355, %v2718
        %v2763 = vadd.f32 %v2356, %v2721
        %v2764 = vld [vmem:[%s1011 + $0x8] sm:$0xc]
        %s2765 = scalar_lea.vmem %s11, 10
        %v2766 = vld [vmem:[%s2765] sm:$0x3]
        %v2768 = vunpack.c.l.b16 %v2764
        %v2769 = vpack.c.b16 %v2043, %v2768
        %vm2770 = vcmask 1045504
        %v2771 = vrot.slane %v2769, 2
        %v2772 = vrot.slane %v2084, 2
        %v2773 = vsel %vm2770, %v2771, %v2772
        %v2774 = vrot.slane %v2085, 2
        %v2775 = vsel %vm2770, %v2772, %v2774
        %v2776 = vrot.slane %v2086, 2
        %v2777 = vsel %vm2770, %v2774, %v2776
        %v2778 = vrot.slane %v2087, 2
        %v2779 = vsel %vm2770, %v2776, %v2778
        %v2780 = vrot.slane %v2088, 2
        %v2781 = vsel %vm2770, %v2778, %v2780
        %v2782 = vrot.slane %v2089, 2
        %v2783 = vsel %vm2770, %v2780, %v2782
        %v2784 = vrot.slane %v2090, 2
        %v2785 = vsel %vm2770, %v2782, %v2784
        %v2786 = vrot.slane %v2091, 2
        %v2787 = vsel %vm2770, %v2784, %v2786
        %v2788 = vrot.slane %v2092, 2
        %v2789 = vsel %vm2770, %v2786, %v2788
        %v2790 = vrot.slane %v2093, 2
        %v2791 = vsel %vm2770, %v2788, %v2790
        %v2792 = vrot.slane %v2094, 2
        %v2793 = vsel %vm2770, %v2790, %v2792
        %v2794 = vrot.slane %v2095, 2
        %v2795 = vsel %vm2770, %v2792, %v2794
        %v2796 = vrot.slane %v2096, 2
        %v2797 = vsel %vm2770, %v2794, %v2796
        %v2798 = vrot.slane %v2097, 2
        %v2799 = vsel %vm2770, %v2796, %v2798
        %v2800 = vrot.slane %v2098, 2
        %v2801 = vsel %vm2770, %v2798, %v2800
        %v2802 = vrot.slane %v2099, 2
        %v2803 = vsel %vm2770, %v2800, %v2802
        %v2804 = vrot.slane %v2100, 2
        %v2805 = vsel %vm2770, %v2802, %v2804
        %v2806 = vrot.slane %v2101, 2
        %v2807 = vsel %vm2770, %v2804, %v2806
        %v2808 = vrot.slane %v2102, 2
        %v2809 = vsel %vm2770, %v2806, %v2808
        %v2810 = vrot.slane %v2362, 2
        %v2811 = vsel %vm2770, %v2808, %v2810
        %v2813 = vsel %vm1360, %v2773, 0
        %v2816 = vsel %vm1360, %v2775, 0
        %v2819 = vsel %vm1360, %v2777, 0
        %v2822 = vsel %vm1360, %v2779, 0
        %v2825 = vsel %vm1360, %v2781, 0
        %v2828 = vsel %vm1360, %v2783, 0
        %v2831 = vsel %vm1360, %v2785, 0
        %v2834 = vsel %vm1360, %v2787, 0
        %v2837 = vsel %vm1360, %v2789, 0
        %v2840 = vsel %vm1360, %v2791, 0
        %v2843 = vsel %vm1360, %v2793, 0
        %v2846 = vsel %vm1360, %v2795, 0
        %v2849 = vsel %vm1360, %v2797, 0
        %v2852 = vsel %vm1360, %v2799, 0
        %v2855 = vsel %vm1360, %v2801, 0
        %v2858 = vsel %vm1360, %v2803, 0
        %v2861 = vsel %vm1360, %v2805, 0
        %v2864 = vsel %vm1360, %v2807, 0
        %v2867 = vsel %vm1360, %v2809, 0
        %v2870 = vsel %vm1360, %v2811, 0
        %v2873 = vsel %vm1360, %v2810, 0
        %v2876 = vand.u32 %v2766, %v1427
        %2878 = vmatpush.bf16.msra.mxu0 0
        %2879 = vmatpush.bf16.msra.mxu0 0
        %2880 = vmatpush.bf16.msra.mxu0 0
        %2881 = vmatpush.bf16.msra.mxu0 0
        %2882 = vmatpush.bf16.msra.mxu0 0
        %2883 = vmatpush.bf16.msra.mxu0 0
        %2884 = vmatpush.bf16.msra.mxu0 0
        %2885 = vmatpush.bf16.msra.mxu0 %v2876
        %2886 = vmatmul.bf16.gmra.mxu0 %v2813
        %v2887 = vpop.f32.mrf.mxu0
        %v2888 = vpop.f32.mrf.mxu0
        %2889 = vmatmul.bf16.gmra.mxu0 %v2816
        %v2890 = vpop.f32.mrf.mxu0
        %v2891 = vadd.f32 0.0, %v2890
        %v2892 = vpop.f32.mrf.mxu0
        %v2893 = vadd.f32 0.0, %v2892
        %2894 = vmatmul.bf16.gmra.mxu0 %v2819
        %v2895 = vpop.f32.mrf.mxu0
        %v2896 = vadd.f32 0.0, %v2895
        %v2897 = vpop.f32.mrf.mxu0
        %v2898 = vadd.f32 0.0, %v2897
        %2899 = vmatmul.bf16.gmra.mxu0 %v2822
        %v2900 = vpop.f32.mrf.mxu0
        %v2901 = vadd.f32 0.0, %v2900
        %v2902 = vpop.f32.mrf.mxu0
        %v2903 = vadd.f32 0.0, %v2902
        %2904 = vmatmul.bf16.gmra.mxu0 %v2825
        %v2905 = vpop.f32.mrf.mxu0
        %v2906 = vadd.f32 0.0, %v2905
        %v2907 = vpop.f32.mrf.mxu0
        %v2908 = vadd.f32 0.0, %v2907
        %2909 = vmatmul.bf16.gmra.mxu0 %v2828
        %v2910 = vpop.f32.mrf.mxu0
        %v2911 = vadd.f32 0.0, %v2910
        %v2912 = vpop.f32.mrf.mxu0
        %v2913 = vadd.f32 0.0, %v2912
        %2914 = vmatmul.bf16.gmra.mxu0 %v2831
        %v2915 = vpop.f32.mrf.mxu0
        %v2916 = vadd.f32 0.0, %v2915
        %v2917 = vpop.f32.mrf.mxu0
        %v2918 = vadd.f32 0.0, %v2917
        %2919 = vmatmul.bf16.gmra.mxu0 %v2834
        %v2920 = vpop.f32.mrf.mxu0
        %v2921 = vadd.f32 0.0, %v2920
        %v2922 = vpop.f32.mrf.mxu0
        %v2923 = vadd.f32 0.0, %v2922
        %2924 = vmatmul.bf16.gmra.mxu0 %v2837
        %v2925 = vpop.f32.mrf.mxu0
        %v2926 = vadd.f32 0.0, %v2925
        %v2927 = vpop.f32.mrf.mxu0
        %v2928 = vadd.f32 0.0, %v2927
        %2929 = vmatmul.bf16.gmra.mxu0 %v2840
        %v2930 = vpop.f32.mrf.mxu0
        %v2931 = vadd.f32 0.0, %v2930
        %v2932 = vpop.f32.mrf.mxu0
        %v2933 = vadd.f32 0.0, %v2932
        %2934 = vmatmul.bf16.gmra.mxu0 %v2843
        %v2935 = vpop.f32.mrf.mxu0
        %v2936 = vadd.f32 0.0, %v2935
        %v2937 = vpop.f32.mrf.mxu0
        %v2938 = vadd.f32 0.0, %v2937
        %2939 = vmatmul.bf16.gmra.mxu0 %v2846
        %v2940 = vpop.f32.mrf.mxu0
        %v2941 = vadd.f32 0.0, %v2940
        %v2942 = vpop.f32.mrf.mxu0
        %v2943 = vadd.f32 0.0, %v2942
        %2944 = vmatmul.bf16.gmra.mxu0 %v2849
        %v2945 = vpop.f32.mrf.mxu0
        %v2946 = vadd.f32 0.0, %v2945
        %v2947 = vpop.f32.mrf.mxu0
        %v2948 = vadd.f32 0.0, %v2947
        %2949 = vmatmul.bf16.gmra.mxu0 %v2852
        %v2950 = vpop.f32.mrf.mxu0
        %v2951 = vadd.f32 0.0, %v2950
        %v2952 = vpop.f32.mrf.mxu0
        %v2953 = vadd.f32 0.0, %v2952
        %2954 = vmatmul.bf16.gmra.mxu0 %v2855
        %v2955 = vpop.f32.mrf.mxu0
        %v2956 = vadd.f32 0.0, %v2955
        %v2957 = vpop.f32.mrf.mxu0
        %v2958 = vadd.f32 0.0, %v2957
        %2959 = vmatmul.bf16.gmra.mxu0 %v2858
        %v2960 = vpop.f32.mrf.mxu0
        %v2961 = vadd.f32 0.0, %v2960
        %v2962 = vpop.f32.mrf.mxu0
        %v2963 = vadd.f32 0.0, %v2962
        %2964 = vmatmul.bf16.gmra.mxu0 %v2861
        %v2965 = vpop.f32.mrf.mxu0
        %v2966 = vadd.f32 0.0, %v2965
        %v2967 = vpop.f32.mrf.mxu0
        %v2968 = vadd.f32 0.0, %v2967
        %2969 = vmatmul.bf16.gmra.mxu0 %v2864
        %v2970 = vpop.f32.mrf.mxu0
        %v2971 = vadd.f32 0.0, %v2970
        %v2972 = vpop.f32.mrf.mxu0
        %v2973 = vadd.f32 0.0, %v2972
        %2974 = vmatmul.bf16.gmra.mxu0 %v2867
        %v2975 = vpop.f32.mrf.mxu0
        %v2976 = vadd.f32 0.0, %v2975
        %v2977 = vpop.f32.mrf.mxu0
        %v2978 = vadd.f32 0.0, %v2977
        %2979 = vmatmul.bf16.gmra.mxu0 %v2870
        %v2980 = vpop.f32.mrf.mxu0
        %v2981 = vadd.f32 0.0, %v2980
        %v2982 = vpop.f32.mrf.mxu0
        %2983 = vmatmul.bf16.gmra.mxu0 %v2873
        %v2984 = vpop.f32.mrf.mxu0
        %v2985 = vpop.f32.mrf.mxu0
        %2986 = vdwg.mxu0
        %v2987 = vadd.f32 %v2727, %v2891
        %v2988 = vadd.f32 %v2728, %v2893
        %v2989 = vadd.f32 %v2729, %v2896
        %v2990 = vadd.f32 %v2730, %v2898
        %v2991 = vadd.f32 %v2731, %v2901
        %v2992 = vadd.f32 %v2732, %v2903
        %v2993 = vadd.f32 %v2733, %v2906
        %v2994 = vadd.f32 %v2734, %v2908
        %v2995 = vadd.f32 %v2735, %v2911
        %v2996 = vadd.f32 %v2736, %v2913
        %v2997 = vadd.f32 %v2737, %v2916
        %v2998 = vadd.f32 %v2738, %v2918
        %v2999 = vadd.f32 %v2739, %v2921
        %v3000 = vadd.f32 %v2740, %v2923
        %v3001 = vadd.f32 %v2741, %v2926
        %v3002 = vadd.f32 %v2742, %v2928
        %v3003 = vadd.f32 %v2743, %v2931
        %v3004 = vadd.f32 %v2744, %v2933
        %v3005 = vadd.f32 %v2745, %v2936
        %v3006 = vadd.f32 %v2746, %v2938
        %v3007 = vadd.f32 %v2747, %v2941
        %v3008 = vadd.f32 %v2748, %v2943
        %v3009 = vadd.f32 %v2749, %v2946
        %v3010 = vadd.f32 %v2750, %v2948
        %v3011 = vadd.f32 %v2751, %v2951
        %v3012 = vadd.f32 %v2752, %v2953
        %v3013 = vadd.f32 %v2753, %v2956
        %v3014 = vadd.f32 %v2754, %v2958
        %v3015 = vadd.f32 %v2755, %v2961
        %v3016 = vadd.f32 %v2756, %v2963
        %v3017 = vadd.f32 %v2757, %v2966
        %v3018 = vadd.f32 %v2758, %v2968
        %v3019 = vadd.f32 %v2759, %v2971
        %v3020 = vadd.f32 %v2760, %v2973
        %v3021 = vadd.f32 %v2761, %v2976
        %v3022 = vadd.f32 %v2762, %v2978
        %v3023 = vadd.f32 %v2763, %v2981
        %v3024 = vld [vmem:[%s1011 + $0x10] sm:$0xc]
        %v3025 = vld [vmem:[%s1011 + $0x14] sm:$0xf]
        %v3026 = vld [vmem:[%s1011 + $0x18] sm:$0xf]
        %v3027 = vld [vmem:[%s1011 + $0x1c] sm:$0xf]
        %v3028 = vld [vmem:[%s1011 + $0x20] sm:$0xf]
        %v3029 = vld [vmem:[%s1011 + $0x24] sm:$0xf]
        %v3030 = vld [vmem:[%s1011 + $0x28] sm:$0xf]
        %v3031 = vld [vmem:[%s1011 + $0x2c] sm:$0xf]
        %v3032 = vld [vmem:[%s1011 + $0x30] sm:$0xf]
        %v3033 = vld [vmem:[%s1011 + $0x34] sm:$0xf]
        %v3034 = vld [vmem:[%s1011 + $0x38] sm:$0xf]
        %v3035 = vld [vmem:[%s1011 + $0x3c] sm:$0xf]
        %v3036 = vld [vmem:[%s1011 + $0x40] sm:$0xf]
        %v3037 = vld [vmem:[%s1011 + $0x44] sm:$0xf]
        %v3038 = vld [vmem:[%s1011 + $0x48] sm:$0xf]
        %v3039 = vld [vmem:[%s1011 + $0x4c] sm:$0xf]
        %v3040 = vld [vmem:[%s1011 + $0x50] sm:$0xf]
        %v3041 = vld [vmem:[%s1011 + $0x54] sm:$0xf]
        %v3042 = vld [vmem:[%s1011 + $0x58] sm:$0xf]
        %v3043 = vld [vmem:[%s1011 + $0x5c] sm:$0xf]
        %v3044 = vld [vmem:[%s1011 + $0x60] sm:$0xf]
        %v3045 = vld [vmem:[%s1011 + $0x64] sm:$0xf]
        %v3046 = vld [vmem:[%s1011 + $0x68] sm:$0xf]
        %v3047 = vld [vmem:[%s1011 + $0x6c] sm:$0xf]
        %v3048 = vld [vmem:[%s1011 + $0x70] sm:$0xf]
        %v3049 = vld [vmem:[%s1011 + $0x74] sm:$0xf]
        %v3050 = vld [vmem:[%s1011 + $0x78] sm:$0xf]
        %v3051 = vld [vmem:[%s1011 + $0x7c] sm:$0xf]
        %v3052 = vld [vmem:[%s1011 + $0x80] sm:$0xf]
        %v3053 = vld [vmem:[%s1011 + $0x84] sm:$0xf]
        %v3054 = vld [vmem:[%s1011 + $0x88] sm:$0xf]
        %v3055 = vld [vmem:[%s1011 + $0x8c] sm:$0xf]
        %v3056 = vld [vmem:[%s1011 + $0x90] sm:$0xf]
        %v3057 = vld [vmem:[%s1011 + $0x94] sm:$0xf]
        %v3058 = vld [vmem:[%s1011 + $0x98] sm:$0xf]
        %v3059 = vld [vmem:[%s1011 + $0x9c] sm:$0xf]
        %v3060 = vld [vmem:[%s1011 + $0xa0] sm:$0xf]
        %v3061 = vld [vmem:[%s1011 + $0xa4] sm:$0xf]
        %v3062 = vld [vmem:[%s1011 + $0xa8] sm:$0xf]
        %v3063 = vld [vmem:[%s1011 + $0xac] sm:$0xf]
        %v3064 = vld [vmem:[%s1011 + $0xb0] sm:$0xf]
        %s3065 = scalar_lea.vmem %s11, 12
        %v3066 = vld [vmem:[%s3065] sm:$0x3]
        %v3108 = vunpack.c.l.b16 %v3024
        %v3109 = vunpack.c.l.b16 %v3025
        %v3110 = vunpack.c.l.b16 %v3026
        %v3111 = vunpack.c.l.b16 %v3027
        %v3112 = vunpack.c.l.b16 %v3028
        %v3113 = vunpack.c.l.b16 %v3029
        %v3114 = vunpack.c.l.b16 %v3030
        %v3115 = vunpack.c.l.b16 %v3031
        %v3116 = vunpack.c.l.b16 %v3032
        %v3117 = vunpack.c.l.b16 %v3033
        %v3118 = vunpack.c.l.b16 %v3034
        %v3119 = vunpack.c.l.b16 %v3035
        %v3120 = vunpack.c.l.b16 %v3036
        %v3121 = vunpack.c.l.b16 %v3037
        %v3122 = vunpack.c.l.b16 %v3038
        %v3123 = vunpack.c.l.b16 %v3039
        %v3124 = vunpack.c.l.b16 %v3040
        %v3125 = vunpack.c.l.b16 %v3041
        %v3126 = vunpack.c.l.b16 %v3042
        %v3127 = vunpack.c.l.b16 %v3043
        %v3128 = vunpack.c.l.b16 %v3044
        %v3129 = vunpack.c.l.b16 %v3045
        %v3130 = vunpack.c.l.b16 %v3046
        %v3131 = vunpack.c.l.b16 %v3047
        %v3132 = vunpack.c.l.b16 %v3048
        %v3133 = vunpack.c.l.b16 %v3049
        %v3134 = vunpack.c.l.b16 %v3050
        %v3135 = vunpack.c.l.b16 %v3051
        %v3136 = vunpack.c.l.b16 %v3052
        %v3137 = vunpack.c.l.b16 %v3053
        %v3138 = vunpack.c.l.b16 %v3054
        %v3139 = vunpack.c.l.b16 %v3055
        %v3140 = vunpack.c.l.b16 %v3056
        %v3141 = vunpack.c.l.b16 %v3057
        %v3142 = vunpack.c.l.b16 %v3058
        %v3143 = vunpack.c.l.b16 %v3059
        %v3144 = vunpack.c.l.b16 %v3060
        %v3145 = vunpack.c.l.b16 %v3061
        %v3146 = vunpack.c.l.b16 %v3062
        %v3147 = vunpack.c.l.b16 %v3063
        %v3148 = vunpack.c.l.b16 %v3064
        %v3149 = vpack.c.b16 %v3109, %v3108
        %v3150 = vpack.c.b16 %v3111, %v3110
        %v3151 = vpack.c.b16 %v3113, %v3112
        %v3152 = vpack.c.b16 %v3115, %v3114
        %v3153 = vpack.c.b16 %v3117, %v3116
        %v3154 = vpack.c.b16 %v3119, %v3118
        %v3155 = vpack.c.b16 %v3121, %v3120
        %v3156 = vpack.c.b16 %v3123, %v3122
        %v3157 = vpack.c.b16 %v3125, %v3124
        %v3158 = vpack.c.b16 %v3127, %v3126
        %v3159 = vpack.c.b16 %v3129, %v3128
        %v3160 = vpack.c.b16 %v3131, %v3130
        %v3161 = vpack.c.b16 %v3133, %v3132
        %v3162 = vpack.c.b16 %v3135, %v3134
        %v3163 = vpack.c.b16 %v3137, %v3136
        %v3164 = vpack.c.b16 %v3139, %v3138
        %v3165 = vpack.c.b16 %v3141, %v3140
        %v3166 = vpack.c.b16 %v3143, %v3142
        %v3167 = vpack.c.b16 %v3145, %v3144
        %v3168 = vpack.c.b16 %v3147, %v3146
        %v3169 = vpack.c.b16 %v3148, %v3148
        %v3170 = vrot.slane %v3149, 2
        %v3171 = vrot.slane %v3150, 2
        %v3172 = vsel %vm2770, %v3170, %v3171
        %v3173 = vrot.slane %v3151, 2
        %v3174 = vsel %vm2770, %v3171, %v3173
        %v3175 = vrot.slane %v3152, 2
        %v3176 = vsel %vm2770, %v3173, %v3175
        %v3177 = vrot.slane %v3153, 2
        %v3178 = vsel %vm2770, %v3175, %v3177
        %v3179 = vrot.slane %v3154, 2
        %v3180 = vsel %vm2770, %v3177, %v3179
        %v3181 = vrot.slane %v3155, 2
        %v3182 = vsel %vm2770, %v3179, %v3181
        %v3183 = vrot.slane %v3156, 2
        %v3184 = vsel %vm2770, %v3181, %v3183
        %v3185 = vrot.slane %v3157, 2
        %v3186 = vsel %vm2770, %v3183, %v3185
        %v3187 = vrot.slane %v3158, 2
        %v3188 = vsel %vm2770, %v3185, %v3187
        %v3189 = vrot.slane %v3159, 2
        %v3190 = vsel %vm2770, %v3187, %v3189
        %v3191 = vrot.slane %v3160, 2
        %v3192 = vsel %vm2770, %v3189, %v3191
        %v3193 = vrot.slane %v3161, 2
        %v3194 = vsel %vm2770, %v3191, %v3193
        %v3195 = vrot.slane %v3162, 2
        %v3196 = vsel %vm2770, %v3193, %v3195
        %v3197 = vrot.slane %v3163, 2
        %v3198 = vsel %vm2770, %v3195, %v3197
        %v3199 = vrot.slane %v3164, 2
        %v3200 = vsel %vm2770, %v3197, %v3199
        %v3201 = vrot.slane %v3165, 2
        %v3202 = vsel %vm2770, %v3199, %v3201
        %v3203 = vrot.slane %v3166, 2
        %v3204 = vsel %vm2770, %v3201, %v3203
        %v3205 = vrot.slane %v3167, 2
        %v3206 = vsel %vm2770, %v3203, %v3205
        %v3207 = vrot.slane %v3168, 2
        %v3208 = vsel %vm2770, %v3205, %v3207
        %v3209 = vrot.slane %v3169, 2
        %v3210 = vsel %vm2770, %v3207, %v3209
        %v3212 = vsel %vm1360, %v3172, 0
        %v3215 = vsel %vm1360, %v3174, 0
        %v3218 = vsel %vm1360, %v3176, 0
        %v3221 = vsel %vm1360, %v3178, 0
        %v3224 = vsel %vm1360, %v3180, 0
        %v3227 = vsel %vm1360, %v3182, 0
        %v3230 = vsel %vm1360, %v3184, 0
        %v3233 = vsel %vm1360, %v3186, 0
        %v3236 = vsel %vm1360, %v3188, 0
        %v3239 = vsel %vm1360, %v3190, 0
        %v3242 = vsel %vm1360, %v3192, 0
        %v3245 = vsel %vm1360, %v3194, 0
        %v3248 = vsel %vm1360, %v3196, 0
        %v3251 = vsel %vm1360, %v3198, 0
        %v3254 = vsel %vm1360, %v3200, 0
        %v3257 = vsel %vm1360, %v3202, 0
        %v3260 = vsel %vm1360, %v3204, 0
        %v3263 = vsel %vm1360, %v3206, 0
        %v3266 = vsel %vm1360, %v3208, 0
        %v3269 = vsel %vm1360, %v3210, 0
        %v3272 = vsel %vm1360, %v3209, 0
        %v3275 = vand.u32 %v3066, %v1427
        %3277 = vmatpush.bf16.msra.mxu0 0
        %3278 = vmatpush.bf16.msra.mxu0 0
        %3279 = vmatpush.bf16.msra.mxu0 0
        %3280 = vmatpush.bf16.msra.mxu0 0
        %3281 = vmatpush.bf16.msra.mxu0 0
        %3282 = vmatpush.bf16.msra.mxu0 0
        %3283 = vmatpush.bf16.msra.mxu0 0
        %3284 = vmatpush.bf16.msra.mxu0 %v3275
        %3285 = vmatmul.bf16.gmra.mxu0 %v3212
        %v3286 = vpop.f32.mrf.mxu0
        %v3287 = vpop.f32.mrf.mxu0
        %3288 = vmatmul.bf16.gmra.mxu0 %v3215
        %v3289 = vpop.f32.mrf.mxu0
        %v3290 = vadd.f32 0.0, %v3289
        %v3291 = vpop.f32.mrf.mxu0
        %v3292 = vadd.f32 0.0, %v3291
        %3293 = vmatmul.bf16.gmra.mxu0 %v3218
        %v3294 = vpop.f32.mrf.mxu0
        %v3295 = vadd.f32 0.0, %v3294
        %v3296 = vpop.f32.mrf.mxu0
        %v3297 = vadd.f32 0.0, %v3296
        %3298 = vmatmul.bf16.gmra.mxu0 %v3221
        %v3299 = vpop.f32.mrf.mxu0
        %v3300 = vadd.f32 0.0, %v3299
        %v3301 = vpop.f32.mrf.mxu0
        %v3302 = vadd.f32 0.0, %v3301
        %3303 = vmatmul.bf16.gmra.mxu0 %v3224
        %v3304 = vpop.f32.mrf.mxu0
        %v3305 = vadd.f32 0.0, %v3304
        %v3306 = vpop.f32.mrf.mxu0
        %v3307 = vadd.f32 0.0, %v3306
        %3308 = vmatmul.bf16.gmra.mxu0 %v3227
        %v3309 = vpop.f32.mrf.mxu0
        %v3310 = vadd.f32 0.0, %v3309
        %v3311 = vpop.f32.mrf.mxu0
        %v3312 = vadd.f32 0.0, %v3311
        %3313 = vmatmul.bf16.gmra.mxu0 %v3230
        %v3314 = vpop.f32.mrf.mxu0
        %v3315 = vadd.f32 0.0, %v3314
        %v3316 = vpop.f32.mrf.mxu0
        %v3317 = vadd.f32 0.0, %v3316
        %3318 = vmatmul.bf16.gmra.mxu0 %v3233
        %v3319 = vpop.f32.mrf.mxu0
        %v3320 = vadd.f32 0.0, %v3319
        %v3321 = vpop.f32.mrf.mxu0
        %v3322 = vadd.f32 0.0, %v3321
        %3323 = vmatmul.bf16.gmra.mxu0 %v3236
        %v3324 = vpop.f32.mrf.mxu0
        %v3325 = vadd.f32 0.0, %v3324
        %v3326 = vpop.f32.mrf.mxu0
        %v3327 = vadd.f32 0.0, %v3326
        %3328 = vmatmul.bf16.gmra.mxu0 %v3239
        %v3329 = vpop.f32.mrf.mxu0
        %v3330 = vadd.f32 0.0, %v3329
        %v3331 = vpop.f32.mrf.mxu0
        %v3332 = vadd.f32 0.0, %v3331
        %3333 = vmatmul.bf16.gmra.mxu0 %v3242
        %v3334 = vpop.f32.mrf.mxu0
        %v3335 = vadd.f32 0.0, %v3334
        %v3336 = vpop.f32.mrf.mxu0
        %v3337 = vadd.f32 0.0, %v3336
        %3338 = vmatmul.bf16.gmra.mxu0 %v3245
        %v3339 = vpop.f32.mrf.mxu0
        %v3340 = vadd.f32 0.0, %v3339
        %v3341 = vpop.f32.mrf.mxu0
        %v3342 = vadd.f32 0.0, %v3341
        %3343 = vmatmul.bf16.gmra.mxu0 %v3248
        %v3344 = vpop.f32.mrf.mxu0
        %v3345 = vadd.f32 0.0, %v3344
        %v3346 = vpop.f32.mrf.mxu0
        %v3347 = vadd.f32 0.0, %v3346
        %3348 = vmatmul.bf16.gmra.mxu0 %v3251
        %v3349 = vpop.f32.mrf.mxu0
        %v3350 = vadd.f32 0.0, %v3349
        %v3351 = vpop.f32.mrf.mxu0
        %v3352 = vadd.f32 0.0, %v3351
        %3353 = vmatmul.bf16.gmra.mxu0 %v3254
        %v3354 = vpop.f32.mrf.mxu0
        %v3355 = vadd.f32 0.0, %v3354
        %v3356 = vpop.f32.mrf.mxu0
        %v3357 = vadd.f32 0.0, %v3356
        %3358 = vmatmul.bf16.gmra.mxu0 %v3257
        %v3359 = vpop.f32.mrf.mxu0
        %v3360 = vadd.f32 0.0, %v3359
        %v3361 = vpop.f32.mrf.mxu0
        %v3362 = vadd.f32 0.0, %v3361
        %3363 = vmatmul.bf16.gmra.mxu0 %v3260
        %v3364 = vpop.f32.mrf.mxu0
        %v3365 = vadd.f32 0.0, %v3364
        %v3366 = vpop.f32.mrf.mxu0
        %v3367 = vadd.f32 0.0, %v3366
        %3368 = vmatmul.bf16.gmra.mxu0 %v3263
        %v3369 = vpop.f32.mrf.mxu0
        %v3370 = vadd.f32 0.0, %v3369
        %v3371 = vpop.f32.mrf.mxu0
        %v3372 = vadd.f32 0.0, %v3371
        %3373 = vmatmul.bf16.gmra.mxu0 %v3266
        %v3374 = vpop.f32.mrf.mxu0
        %v3375 = vadd.f32 0.0, %v3374
        %v3376 = vpop.f32.mrf.mxu0
        %v3377 = vadd.f32 0.0, %v3376
        %3378 = vmatmul.bf16.gmra.mxu0 %v3269
        %v3379 = vpop.f32.mrf.mxu0
        %v3380 = vadd.f32 0.0, %v3379
        %v3381 = vpop.f32.mrf.mxu0
        %3382 = vmatmul.bf16.gmra.mxu0 %v3272
        %v3383 = vpop.f32.mrf.mxu0
        %v3384 = vpop.f32.mrf.mxu0
        %3385 = vdwg.mxu0
        %v3386 = vadd.f32 %v2987, %v3290
        %v3387 = vadd.f32 %v2988, %v3292
        %v3388 = vadd.f32 %v2989, %v3295
        %v3389 = vadd.f32 %v2990, %v3297
        %v3390 = vadd.f32 %v2991, %v3300
        %v3391 = vadd.f32 %v2992, %v3302
        %v3392 = vadd.f32 %v2993, %v3305
        %v3393 = vadd.f32 %v2994, %v3307
        %v3394 = vadd.f32 %v2995, %v3310
        %v3395 = vadd.f32 %v2996, %v3312
        %v3396 = vadd.f32 %v2997, %v3315
        %v3397 = vadd.f32 %v2998, %v3317
        %v3398 = vadd.f32 %v2999, %v3320
        %v3399 = vadd.f32 %v3000, %v3322
        %v3400 = vadd.f32 %v3001, %v3325
        %v3401 = vadd.f32 %v3002, %v3327
        %v3402 = vadd.f32 %v3003, %v3330
        %v3403 = vadd.f32 %v3004, %v3332
        %v3404 = vadd.f32 %v3005, %v3335
        %v3405 = vadd.f32 %v3006, %v3337
        %v3406 = vadd.f32 %v3007, %v3340
        %v3407 = vadd.f32 %v3008, %v3342
        %v3408 = vadd.f32 %v3009, %v3345
        %v3409 = vadd.f32 %v3010, %v3347
        %v3410 = vadd.f32 %v3011, %v3350
        %v3411 = vadd.f32 %v3012, %v3352
        %v3412 = vadd.f32 %v3013, %v3355
        %v3413 = vadd.f32 %v3014, %v3357
        %v3414 = vadd.f32 %v3015, %v3360
        %v3415 = vadd.f32 %v3016, %v3362
        %v3416 = vadd.f32 %v3017, %v3365
        %v3417 = vadd.f32 %v3018, %v3367
        %v3418 = vadd.f32 %v3019, %v3370
        %v3419 = vadd.f32 %v3020, %v3372
        %v3420 = vadd.f32 %v3021, %v3375
        %v3421 = vadd.f32 %v3022, %v3377
        %v3422 = vadd.f32 %v3023, %v3380
        %v3423 = vld [vmem:[%s1011 + $0x10] sm:$0xc]
        %v3424 = vld [vmem:[%s1011 + $0x14] sm:$0xf]
        %v3425 = vld [vmem:[%s1011 + $0x18] sm:$0xf]
        %v3426 = vld [vmem:[%s1011 + $0x1c] sm:$0xf]
        %v3427 = vld [vmem:[%s1011 + $0x20] sm:$0xf]
        %v3428 = vld [vmem:[%s1011 + $0x24] sm:$0xf]
        %v3429 = vld [vmem:[%s1011 + $0x28] sm:$0xf]
        %v3430 = vld [vmem:[%s1011 + $0x2c] sm:$0xf]
        %v3431 = vld [vmem:[%s1011 + $0x30] sm:$0xf]
        %v3432 = vld [vmem:[%s1011 + $0x34] sm:$0xf]
        %v3433 = vld [vmem:[%s1011 + $0x38] sm:$0xf]
        %v3434 = vld [vmem:[%s1011 + $0x3c] sm:$0xf]
        %v3435 = vld [vmem:[%s1011 + $0x40] sm:$0xf]
        %v3436 = vld [vmem:[%s1011 + $0x44] sm:$0xf]
        %v3437 = vld [vmem:[%s1011 + $0x48] sm:$0xf]
        %v3438 = vld [vmem:[%s1011 + $0x4c] sm:$0xf]
        %v3439 = vld [vmem:[%s1011 + $0x50] sm:$0xf]
        %v3440 = vld [vmem:[%s1011 + $0x54] sm:$0xf]
        %v3441 = vld [vmem:[%s1011 + $0x58] sm:$0xf]
        %v3442 = vld [vmem:[%s1011 + $0x5c] sm:$0xf]
        %v3443 = vld [vmem:[%s1011 + $0x60] sm:$0xf]
        %v3444 = vld [vmem:[%s1011 + $0x64] sm:$0xf]
        %v3445 = vld [vmem:[%s1011 + $0x68] sm:$0xf]
        %v3446 = vld [vmem:[%s1011 + $0x6c] sm:$0xf]
        %v3447 = vld [vmem:[%s1011 + $0x70] sm:$0xf]
        %v3448 = vld [vmem:[%s1011 + $0x74] sm:$0xf]
        %v3449 = vld [vmem:[%s1011 + $0x78] sm:$0xf]
        %v3450 = vld [vmem:[%s1011 + $0x7c] sm:$0xf]
        %v3451 = vld [vmem:[%s1011 + $0x80] sm:$0xf]
        %v3452 = vld [vmem:[%s1011 + $0x84] sm:$0xf]
        %v3453 = vld [vmem:[%s1011 + $0x88] sm:$0xf]
        %v3454 = vld [vmem:[%s1011 + $0x8c] sm:$0xf]
        %v3455 = vld [vmem:[%s1011 + $0x90] sm:$0xf]
        %v3456 = vld [vmem:[%s1011 + $0x94] sm:$0xf]
        %v3457 = vld [vmem:[%s1011 + $0x98] sm:$0xf]
        %v3458 = vld [vmem:[%s1011 + $0x9c] sm:$0xf]
        %v3459 = vld [vmem:[%s1011 + $0xa0] sm:$0xf]
        %v3460 = vld [vmem:[%s1011 + $0xa4] sm:$0xf]
        %v3461 = vld [vmem:[%s1011 + $0xa8] sm:$0xf]
        %v3462 = vld [vmem:[%s1011 + $0xac] sm:$0xf]
        %v3463 = vld [vmem:[%s1011 + $0xb0] sm:$0xf]
        %v3464 = vld [vmem:[%s1011 + $0xb4] sm:$0x1]
        %s3465 = scalar_lea.vmem %s11, 14
        %v3466 = vld [vmem:[%s3465] sm:$0x3]
        %v3509 = vunpack.c.l.b16 %v3423
        %v3510 = vunpack.c.l.b16 %v3424
        %v3511 = vunpack.c.l.b16 %v3425
        %v3512 = vunpack.c.l.b16 %v3426
        %v3513 = vunpack.c.l.b16 %v3427
        %v3514 = vunpack.c.l.b16 %v3428
        %v3515 = vunpack.c.l.b16 %v3429
        %v3516 = vunpack.c.l.b16 %v3430
        %v3517 = vunpack.c.l.b16 %v3431
        %v3518 = vunpack.c.l.b16 %v3432
        %v3519 = vunpack.c.l.b16 %v3433
        %v3520 = vunpack.c.l.b16 %v3434
        %v3521 = vunpack.c.l.b16 %v3435
        %v3522 = vunpack.c.l.b16 %v3436
        %v3523 = vunpack.c.l.b16 %v3437
        %v3524 = vunpack.c.l.b16 %v3438
        %v3525 = vunpack.c.l.b16 %v3439
        %v3526 = vunpack.c.l.b16 %v3440
        %v3527 = vunpack.c.l.b16 %v3441
        %v3528 = vunpack.c.l.b16 %v3442
        %v3529 = vunpack.c.l.b16 %v3443
        %v3530 = vunpack.c.l.b16 %v3444
        %v3531 = vunpack.c.l.b16 %v3445
        %v3532 = vunpack.c.l.b16 %v3446
        %v3533 = vunpack.c.l.b16 %v3447
        %v3534 = vunpack.c.l.b16 %v3448
        %v3535 = vunpack.c.l.b16 %v3449
        %v3536 = vunpack.c.l.b16 %v3450
        %v3537 = vunpack.c.l.b16 %v3451
        %v3538 = vunpack.c.l.b16 %v3452
        %v3539 = vunpack.c.l.b16 %v3453
        %v3540 = vunpack.c.l.b16 %v3454
        %v3541 = vunpack.c.l.b16 %v3455
        %v3542 = vunpack.c.l.b16 %v3456
        %v3543 = vunpack.c.l.b16 %v3457
        %v3544 = vunpack.c.l.b16 %v3458
        %v3545 = vunpack.c.l.b16 %v3459
        %v3546 = vunpack.c.l.b16 %v3460
        %v3547 = vunpack.c.l.b16 %v3461
        %v3548 = vunpack.c.l.b16 %v3462
        %v3549 = vunpack.c.l.b16 %v3463
        %v3550 = vunpack.c.l.b16 %v3464
        %v3551 = vpack.c.b16 %v3510, %v3509
        %v3552 = vpack.c.b16 %v3512, %v3511
        %v3553 = vpack.c.b16 %v3514, %v3513
        %v3554 = vpack.c.b16 %v3516, %v3515
        %v3555 = vpack.c.b16 %v3518, %v3517
        %v3556 = vpack.c.b16 %v3520, %v3519
        %v3557 = vpack.c.b16 %v3522, %v3521
        %v3558 = vpack.c.b16 %v3524, %v3523
        %v3559 = vpack.c.b16 %v3526, %v3525
        %v3560 = vpack.c.b16 %v3528, %v3527
        %v3561 = vpack.c.b16 %v3530, %v3529
        %v3562 = vpack.c.b16 %v3532, %v3531
        %v3563 = vpack.c.b16 %v3534, %v3533
        %v3564 = vpack.c.b16 %v3536, %v3535
        %v3565 = vpack.c.b16 %v3538, %v3537
        %v3566 = vpack.c.b16 %v3540, %v3539
        %v3567 = vpack.c.b16 %v3542, %v3541
        %v3568 = vpack.c.b16 %v3544, %v3543
        %v3569 = vpack.c.b16 %v3546, %v3545
        %v3570 = vpack.c.b16 %v3548, %v3547
        %v3571 = vpack.c.b16 %v3550, %v3549
        %vm3572 = vsmask.f32 5376
        %v3574 = vshrl.u32 %v3551, 16
        %v3576 = vrot.slane %v3574, 2
        %v3577 = vshll.u32 %v3551, 16
        %v3579 = vrot.slane %v3577, 3
        %v3580 = vor.u32 %v3576, %v3579
        %v3582 = vshrl.u32 %v3552, 16
        %v3584 = vrot.slane %v3582, 2
        %v3585 = vshll.u32 %v3552, 16
        %v3587 = vrot.slane %v3585, 3
        %v3588 = vor.u32 %v3584, %v3587
        %v3589 = vsel %vm3572, %v3580, %v3588
        %v3591 = vshrl.u32 %v3553, 16
        %v3593 = vrot.slane %v3591, 2
        %v3594 = vshll.u32 %v3553, 16
        %v3596 = vrot.slane %v3594, 3
        %v3597 = vor.u32 %v3593, %v3596
        %v3598 = vsel %vm3572, %v3588, %v3597
        %v3600 = vshrl.u32 %v3554, 16
        %v3602 = vrot.slane %v3600, 2
        %v3603 = vshll.u32 %v3554, 16
        %v3605 = vrot.slane %v3603, 3
        %v3606 = vor.u32 %v3602, %v3605
        %v3607 = vsel %vm3572, %v3597, %v3606
        %v3609 = vshrl.u32 %v3555, 16
        %v3611 = vrot.slane %v3609, 2
        %v3612 = vshll.u32 %v3555, 16
        %v3614 = vrot.slane %v3612, 3
        %v3615 = vor.u32 %v3611, %v3614
        %v3616 = vsel %vm3572, %v3606, %v3615
        %v3618 = vshrl.u32 %v3556, 16
        %v3620 = vrot.slane %v3618, 2
        %v3621 = vshll.u32 %v3556, 16
        %v3623 = vrot.slane %v3621, 3
        %v3624 = vor.u32 %v3620, %v3623
        %v3625 = vsel %vm3572, %v3615, %v3624
        %v3627 = vshrl.u32 %v3557, 16
        %v3629 = vrot.slane %v3627, 2
        %v3630 = vshll.u32 %v3557, 16
        %v3632 = vrot.slane %v3630, 3
        %v3633 = vor.u32 %v3629, %v3632
        %v3634 = vsel %vm3572, %v3624, %v3633
        %v3636 = vshrl.u32 %v3558, 16
        %v3638 = vrot.slane %v3636, 2
        %v3639 = vshll.u32 %v3558, 16
        %v3641 = vrot.slane %v3639, 3
        %v3642 = vor.u32 %v3638, %v3641
        %v3643 = vsel %vm3572, %v3633, %v3642
        %v3645 = vshrl.u32 %v3559, 16
        %v3647 = vrot.slane %v3645, 2
        %v3648 = vshll.u32 %v3559, 16
        %v3650 = vrot.slane %v3648, 3
        %v3651 = vor.u32 %v3647, %v3650
        %v3652 = vsel %vm3572, %v3642, %v3651
        %v3654 = vshrl.u32 %v3560, 16
        %v3656 = vrot.slane %v3654, 2
        %v3657 = vshll.u32 %v3560, 16
        %v3659 = vrot.slane %v3657, 3
        %v3660 = vor.u32 %v3656, %v3659
        %v3661 = vsel %vm3572, %v3651, %v3660
        %v3663 = vshrl.u32 %v3561, 16
        %v3665 = vrot.slane %v3663, 2
        %v3666 = vshll.u32 %v3561, 16
        %v3668 = vrot.slane %v3666, 3
        %v3669 = vor.u32 %v3665, %v3668
        %v3670 = vsel %vm3572, %v3660, %v3669
        %v3672 = vshrl.u32 %v3562, 16
        %v3674 = vrot.slane %v3672, 2
        %v3675 = vshll.u32 %v3562, 16
        %v3677 = vrot.slane %v3675, 3
        %v3678 = vor.u32 %v3674, %v3677
        %v3679 = vsel %vm3572, %v3669, %v3678
        %v3681 = vshrl.u32 %v3563, 16
        %v3683 = vrot.slane %v3681, 2
        %v3684 = vshll.u32 %v3563, 16
        %v3686 = vrot.slane %v3684, 3
        %v3687 = vor.u32 %v3683, %v3686
        %v3688 = vsel %vm3572, %v3678, %v3687
        %v3690 = vshrl.u32 %v3564, 16
        %v3692 = vrot.slane %v3690, 2
        %v3693 = vshll.u32 %v3564, 16
        %v3695 = vrot.slane %v3693, 3
        %v3696 = vor.u32 %v3692, %v3695
        %v3697 = vsel %vm3572, %v3687, %v3696
        %v3699 = vshrl.u32 %v3565, 16
        %v3701 = vrot.slane %v3699, 2
        %v3702 = vshll.u32 %v3565, 16
        %v3704 = vrot.slane %v3702, 3
        %v3705 = vor.u32 %v3701, %v3704
        %v3706 = vsel %vm3572, %v3696, %v3705
        %v3708 = vshrl.u32 %v3566, 16
        %v3710 = vrot.slane %v3708, 2
        %v3711 = vshll.u32 %v3566, 16
        %v3713 = vrot.slane %v3711, 3
        %v3714 = vor.u32 %v3710, %v3713
        %v3715 = vsel %vm3572, %v3705, %v3714
        %v3717 = vshrl.u32 %v3567, 16
        %v3719 = vrot.slane %v3717, 2
        %v3720 = vshll.u32 %v3567, 16
        %v3722 = vrot.slane %v3720, 3
        %v3723 = vor.u32 %v3719, %v3722
        %v3724 = vsel %vm3572, %v3714, %v3723
        %v3726 = vshrl.u32 %v3568, 16
        %v3728 = vrot.slane %v3726, 2
        %v3729 = vshll.u32 %v3568, 16
        %v3731 = vrot.slane %v3729, 3
        %v3732 = vor.u32 %v3728, %v3731
        %v3733 = vsel %vm3572, %v3723, %v3732
        %v3735 = vshrl.u32 %v3569, 16
        %v3737 = vrot.slane %v3735, 2
        %v3738 = vshll.u32 %v3569, 16
        %v3740 = vrot.slane %v3738, 3
        %v3741 = vor.u32 %v3737, %v3740
        %v3742 = vsel %vm3572, %v3732, %v3741
        %v3744 = vshrl.u32 %v3570, 16
        %v3746 = vrot.slane %v3744, 2
        %v3747 = vshll.u32 %v3570, 16
        %v3749 = vrot.slane %v3747, 3
        %v3750 = vor.u32 %v3746, %v3749
        %v3751 = vsel %vm3572, %v3741, %v3750
        %v3753 = vshrl.u32 %v3571, 16
        %v3755 = vrot.slane %v3753, 2
        %v3756 = vshll.u32 %v3571, 16
        %v3758 = vrot.slane %v3756, 3
        %v3759 = vor.u32 %v3755, %v3758
        %v3760 = vsel %vm3572, %v3750, %v3759
        %v3762 = vsel %vm1360, %v3589, 0
        %v3765 = vsel %vm1360, %v3598, 0
        %v3768 = vsel %vm1360, %v3607, 0
        %v3771 = vsel %vm1360, %v3616, 0
        %v3774 = vsel %vm1360, %v3625, 0
        %v3777 = vsel %vm1360, %v3634, 0
        %v3780 = vsel %vm1360, %v3643, 0
        %v3783 = vsel %vm1360, %v3652, 0
        %v3786 = vsel %vm1360, %v3661, 0
        %v3789 = vsel %vm1360, %v3670, 0
        %v3792 = vsel %vm1360, %v3679, 0
        %v3795 = vsel %vm1360, %v3688, 0
        %v3798 = vsel %vm1360, %v3697, 0
        %v3801 = vsel %vm1360, %v3706, 0
        %v3804 = vsel %vm1360, %v3715, 0
        %v3807 = vsel %vm1360, %v3724, 0
        %v3810 = vsel %vm1360, %v3733, 0
        %v3813 = vsel %vm1360, %v3742, 0
        %v3816 = vsel %vm1360, %v3751, 0
        %v3819 = vsel %vm1360, %v3760, 0
        %v3822 = vsel %vm1360, %v3759, 0
        %v3825 = vand.u32 %v3466, %v1427
        %3827 = vmatpush.bf16.msra.mxu0 0
        %3828 = vmatpush.bf16.msra.mxu0 0
        %3829 = vmatpush.bf16.msra.mxu0 0
        %3830 = vmatpush.bf16.msra.mxu0 0
        %3831 = vmatpush.bf16.msra.mxu0 0
        %3832 = vmatpush.bf16.msra.mxu0 0
        %3833 = vmatpush.bf16.msra.mxu0 0
        %3834 = vmatpush.bf16.msra.mxu0 %v3825
        %3835 = vmatmul.bf16.gmra.mxu0 %v3762
        %v3836 = vpop.f32.mrf.mxu0
        %v3837 = vpop.f32.mrf.mxu0
        %3838 = vmatmul.bf16.gmra.mxu0 %v3765
        %v3839 = vpop.f32.mrf.mxu0
        %v3840 = vadd.f32 0.0, %v3839
        %v3841 = vpop.f32.mrf.mxu0
        %v3842 = vadd.f32 0.0, %v3841
        %3843 = vmatmul.bf16.gmra.mxu0 %v3768
        %v3844 = vpop.f32.mrf.mxu0
        %v3845 = vadd.f32 0.0, %v3844
        %v3846 = vpop.f32.mrf.mxu0
        %v3847 = vadd.f32 0.0, %v3846
        %3848 = vmatmul.bf16.gmra.mxu0 %v3771
        %v3849 = vpop.f32.mrf.mxu0
        %v3850 = vadd.f32 0.0, %v3849
        %v3851 = vpop.f32.mrf.mxu0
        %v3852 = vadd.f32 0.0, %v3851
        %3853 = vmatmul.bf16.gmra.mxu0 %v3774
        %v3854 = vpop.f32.mrf.mxu0
        %v3855 = vadd.f32 0.0, %v3854
        %v3856 = vpop.f32.mrf.mxu0
        %v3857 = vadd.f32 0.0, %v3856
        %3858 = vmatmul.bf16.gmra.mxu0 %v3777
        %v3859 = vpop.f32.mrf.mxu0
        %v3860 = vadd.f32 0.0, %v3859
        %v3861 = vpop.f32.mrf.mxu0
        %v3862 = vadd.f32 0.0, %v3861
        %3863 = vmatmul.bf16.gmra.mxu0 %v3780
        %v3864 = vpop.f32.mrf.mxu0
        %v3865 = vadd.f32 0.0, %v3864
        %v3866 = vpop.f32.mrf.mxu0
        %v3867 = vadd.f32 0.0, %v3866
        %3868 = vmatmul.bf16.gmra.mxu0 %v3783
        %v3869 = vpop.f32.mrf.mxu0
        %v3870 = vadd.f32 0.0, %v3869
        %v3871 = vpop.f32.mrf.mxu0
        %v3872 = vadd.f32 0.0, %v3871
        %3873 = vmatmul.bf16.gmra.mxu0 %v3786
        %v3874 = vpop.f32.mrf.mxu0
        %v3875 = vadd.f32 0.0, %v3874
        %v3876 = vpop.f32.mrf.mxu0
        %v3877 = vadd.f32 0.0, %v3876
        %3878 = vmatmul.bf16.gmra.mxu0 %v3789
        %v3879 = vpop.f32.mrf.mxu0
        %v3880 = vadd.f32 0.0, %v3879
        %v3881 = vpop.f32.mrf.mxu0
        %v3882 = vadd.f32 0.0, %v3881
        %3883 = vmatmul.bf16.gmra.mxu0 %v3792
        %v3884 = vpop.f32.mrf.mxu0
        %v3885 = vadd.f32 0.0, %v3884
        %v3886 = vpop.f32.mrf.mxu0
        %v3887 = vadd.f32 0.0, %v3886
        %3888 = vmatmul.bf16.gmra.mxu0 %v3795
        %v3889 = vpop.f32.mrf.mxu0
        %v3890 = vadd.f32 0.0, %v3889
        %v3891 = vpop.f32.mrf.mxu0
        %v3892 = vadd.f32 0.0, %v3891
        %3893 = vmatmul.bf16.gmra.mxu0 %v3798
        %v3894 = vpop.f32.mrf.mxu0
        %v3895 = vadd.f32 0.0, %v3894
        %v3896 = vpop.f32.mrf.mxu0
        %v3897 = vadd.f32 0.0, %v3896
        %3898 = vmatmul.bf16.gmra.mxu0 %v3801
        %v3899 = vpop.f32.mrf.mxu0
        %v3900 = vadd.f32 0.0, %v3899
        %v3901 = vpop.f32.mrf.mxu0
        %v3902 = vadd.f32 0.0, %v3901
        %3903 = vmatmul.bf16.gmra.mxu0 %v3804
        %v3904 = vpop.f32.mrf.mxu0
        %v3905 = vadd.f32 0.0, %v3904
        %v3906 = vpop.f32.mrf.mxu0
        %v3907 = vadd.f32 0.0, %v3906
        %3908 = vmatmul.bf16.gmra.mxu0 %v3807
        %v3909 = vpop.f32.mrf.mxu0
        %v3910 = vadd.f32 0.0, %v3909
        %v3911 = vpop.f32.mrf.mxu0
        %v3912 = vadd.f32 0.0, %v3911
        %3913 = vmatmul.bf16.gmra.mxu0 %v3810
        %v3914 = vpop.f32.mrf.mxu0
        %v3915 = vadd.f32 0.0, %v3914
        %v3916 = vpop.f32.mrf.mxu0
        %v3917 = vadd.f32 0.0, %v3916
        %3918 = vmatmul.bf16.gmra.mxu0 %v3813
        %v3919 = vpop.f32.mrf.mxu0
        %v3920 = vadd.f32 0.0, %v3919
        %v3921 = vpop.f32.mrf.mxu0
        %v3922 = vadd.f32 0.0, %v3921
        %3923 = vmatmul.bf16.gmra.mxu0 %v3816
        %v3924 = vpop.f32.mrf.mxu0
        %v3925 = vadd.f32 0.0, %v3924
        %v3926 = vpop.f32.mrf.mxu0
        %v3927 = vadd.f32 0.0, %v3926
        %3928 = vmatmul.bf16.gmra.mxu0 %v3819
        %v3929 = vpop.f32.mrf.mxu0
        %v3930 = vadd.f32 0.0, %v3929
        %v3931 = vpop.f32.mrf.mxu0
        %3932 = vmatmul.bf16.gmra.mxu0 %v3822
        %v3933 = vpop.f32.mrf.mxu0
        %v3934 = vpop.f32.mrf.mxu0
        %3935 = vdwg.mxu0
        %v3936 = vadd.f32 %v3386, %v3840
        %v3937 = vadd.f32 %v3387, %v3842
        %v3938 = vadd.f32 %v3388, %v3845
        %v3939 = vadd.f32 %v3389, %v3847
        %v3940 = vadd.f32 %v3390, %v3850
        %v3941 = vadd.f32 %v3391, %v3852
        %v3942 = vadd.f32 %v3392, %v3855
        %v3943 = vadd.f32 %v3393, %v3857
        %v3944 = vadd.f32 %v3394, %v3860
        %v3945 = vadd.f32 %v3395, %v3862
        %v3946 = vadd.f32 %v3396, %v3865
        %v3947 = vadd.f32 %v3397, %v3867
        %v3948 = vadd.f32 %v3398, %v3870
        %v3949 = vadd.f32 %v3399, %v3872
        %v3950 = vadd.f32 %v3400, %v3875
        %v3951 = vadd.f32 %v3401, %v3877
        %v3952 = vadd.f32 %v3402, %v3880
        %v3953 = vadd.f32 %v3403, %v3882
        %v3954 = vadd.f32 %v3404, %v3885
        %v3955 = vadd.f32 %v3405, %v3887
        %v3956 = vadd.f32 %v3406, %v3890
        %v3957 = vadd.f32 %v3407, %v3892
        %v3958 = vadd.f32 %v3408, %v3895
        %v3959 = vadd.f32 %v3409, %v3897
        %v3960 = vadd.f32 %v3410, %v3900
        %v3961 = vadd.f32 %v3411, %v3902
        %v3962 = vadd.f32 %v3412, %v3905
        %v3963 = vadd.f32 %v3413, %v3907
        %v3964 = vadd.f32 %v3414, %v3910
        %v3965 = vadd.f32 %v3415, %v3912
        %v3966 = vadd.f32 %v3416, %v3915
        %v3967 = vadd.f32 %v3417, %v3917
        %v3968 = vadd.f32 %v3418, %v3920
        %v3969 = vadd.f32 %v3419, %v3922
        %v3970 = vadd.f32 %v3420, %v3925
        %v3971 = vadd.f32 %v3421, %v3927
        %v3972 = vadd.f32 %v3422, %v3930
        %v3973 = vld [vmem:[%s1011 + $0x10] sm:$0x8]
        %s3974 = scalar_lea.vmem %s11, 16
        %v3975 = vld [vmem:[%s3974] sm:$0x3]
        %v3977 = vunpack.c.l.b16 %v3973
        %v3978 = vpack.c.b16 %v3510, %v3977
        %vm3979 = vcmask 1044480
        %v3980 = vrot.slane %v3978, 3
        %v3981 = vrot.slane %v3552, 3
        %v3982 = vsel %vm3979, %v3980, %v3981
        %v3983 = vrot.slane %v3553, 3
        %v3984 = vsel %vm3979, %v3981, %v3983
        %v3985 = vrot.slane %v3554, 3
        %v3986 = vsel %vm3979, %v3983, %v3985
        %v3987 = vrot.slane %v3555, 3
        %v3988 = vsel %vm3979, %v3985, %v3987
        %v3989 = vrot.slane %v3556, 3
        %v3990 = vsel %vm3979, %v3987, %v3989
        %v3991 = vrot.slane %v3557, 3
        %v3992 = vsel %vm3979, %v3989, %v3991
        %v3993 = vrot.slane %v3558, 3
        %v3994 = vsel %vm3979, %v3991, %v3993
        %v3995 = vrot.slane %v3559, 3
        %v3996 = vsel %vm3979, %v3993, %v3995
        %v3997 = vrot.slane %v3560, 3
        %v3998 = vsel %vm3979, %v3995, %v3997
        %v3999 = vrot.slane %v3561, 3
        %v4000 = vsel %vm3979, %v3997, %v3999
        %v4001 = vrot.slane %v3562, 3
        %v4002 = vsel %vm3979, %v3999, %v4001
        %v4003 = vrot.slane %v3563, 3
        %v4004 = vsel %vm3979, %v4001, %v4003
        %v4005 = vrot.slane %v3564, 3
        %v4006 = vsel %vm3979, %v4003, %v4005
        %v4007 = vrot.slane %v3565, 3
        %v4008 = vsel %vm3979, %v4005, %v4007
        %v4009 = vrot.slane %v3566, 3
        %v4010 = vsel %vm3979, %v4007, %v4009
        %v4011 = vrot.slane %v3567, 3
        %v4012 = vsel %vm3979, %v4009, %v4011
        %v4013 = vrot.slane %v3568, 3
        %v4014 = vsel %vm3979, %v4011, %v4013
        %v4015 = vrot.slane %v3569, 3
        %v4016 = vsel %vm3979, %v4013, %v4015
        %v4017 = vrot.slane %v3570, 3
        %v4018 = vsel %vm3979, %v4015, %v4017
        %v4019 = vrot.slane %v3571, 3
        %v4020 = vsel %vm3979, %v4017, %v4019
        %v4022 = vsel %vm1360, %v3982, 0
        %v4025 = vsel %vm1360, %v3984, 0
        %v4028 = vsel %vm1360, %v3986, 0
        %v4031 = vsel %vm1360, %v3988, 0
        %v4034 = vsel %vm1360, %v3990, 0
        %v4037 = vsel %vm1360, %v3992, 0
        %v4040 = vsel %vm1360, %v3994, 0
        %v4043 = vsel %vm1360, %v3996, 0
        %v4046 = vsel %vm1360, %v3998, 0
        %v4049 = vsel %vm1360, %v4000, 0
        %v4052 = vsel %vm1360, %v4002, 0
        %v4055 = vsel %vm1360, %v4004, 0
        %v4058 = vsel %vm1360, %v4006, 0
        %v4061 = vsel %vm1360, %v4008, 0
        %v4064 = vsel %vm1360, %v4010, 0
        %v4067 = vsel %vm1360, %v4012, 0
        %v4070 = vsel %vm1360, %v4014, 0
        %v4073 = vsel %vm1360, %v4016, 0
        %v4076 = vsel %vm1360, %v4018, 0
        %v4079 = vsel %vm1360, %v4020, 0
        %v4082 = vsel %vm1360, %v4019, 0
        %v4085 = vand.u32 %v3975, %v1427
        %4087 = vmatpush.bf16.msra.mxu0 0
        %4088 = vmatpush.bf16.msra.mxu0 0
        %4089 = vmatpush.bf16.msra.mxu0 0
        %4090 = vmatpush.bf16.msra.mxu0 0
        %4091 = vmatpush.bf16.msra.mxu0 0
        %4092 = vmatpush.bf16.msra.mxu0 0
        %4093 = vmatpush.bf16.msra.mxu0 0
        %4094 = vmatpush.bf16.msra.mxu0 %v4085
        %4095 = vmatmul.bf16.gmra.mxu0 %v4022
        %v4096 = vpop.f32.mrf.mxu0
        %v4097 = vpop.f32.mrf.mxu0
        %4098 = vmatmul.bf16.gmra.mxu0 %v4025
        %v4099 = vpop.f32.mrf.mxu0
        %v4100 = vadd.f32 0.0, %v4099
        %v4101 = vpop.f32.mrf.mxu0
        %v4102 = vadd.f32 0.0, %v4101
        %4103 = vmatmul.bf16.gmra.mxu0 %v4028
        %v4104 = vpop.f32.mrf.mxu0
        %v4105 = vadd.f32 0.0, %v4104
        %v4106 = vpop.f32.mrf.mxu0
        %v4107 = vadd.f32 0.0, %v4106
        %4108 = vmatmul.bf16.gmra.mxu0 %v4031
        %v4109 = vpop.f32.mrf.mxu0
        %v4110 = vadd.f32 0.0, %v4109
        %v4111 = vpop.f32.mrf.mxu0
        %v4112 = vadd.f32 0.0, %v4111
        %4113 = vmatmul.bf16.gmra.mxu0 %v4034
        %v4114 = vpop.f32.mrf.mxu0
        %v4115 = vadd.f32 0.0, %v4114
        %v4116 = vpop.f32.mrf.mxu0
        %v4117 = vadd.f32 0.0, %v4116
        %4118 = vmatmul.bf16.gmra.mxu0 %v4037
        %v4119 = vpop.f32.mrf.mxu0
        %v4120 = vadd.f32 0.0, %v4119
        %v4121 = vpop.f32.mrf.mxu0
        %v4122 = vadd.f32 0.0, %v4121
        %4123 = vmatmul.bf16.gmra.mxu0 %v4040
        %v4124 = vpop.f32.mrf.mxu0
        %v4125 = vadd.f32 0.0, %v4124
        %v4126 = vpop.f32.mrf.mxu0
        %v4127 = vadd.f32 0.0, %v4126
        %4128 = vmatmul.bf16.gmra.mxu0 %v4043
        %v4129 = vpop.f32.mrf.mxu0
        %v4130 = vadd.f32 0.0, %v4129
        %v4131 = vpop.f32.mrf.mxu0
        %v4132 = vadd.f32 0.0, %v4131
        %4133 = vmatmul.bf16.gmra.mxu0 %v4046
        %v4134 = vpop.f32.mrf.mxu0
        %v4135 = vadd.f32 0.0, %v4134
        %v4136 = vpop.f32.mrf.mxu0
        %v4137 = vadd.f32 0.0, %v4136
        %4138 = vmatmul.bf16.gmra.mxu0 %v4049
        %v4139 = vpop.f32.mrf.mxu0
        %v4140 = vadd.f32 0.0, %v4139
        %v4141 = vpop.f32.mrf.mxu0
        %v4142 = vadd.f32 0.0, %v4141
        %4143 = vmatmul.bf16.gmra.mxu0 %v4052
        %v4144 = vpop.f32.mrf.mxu0
        %v4145 = vadd.f32 0.0, %v4144
        %v4146 = vpop.f32.mrf.mxu0
        %v4147 = vadd.f32 0.0, %v4146
        %4148 = vmatmul.bf16.gmra.mxu0 %v4055
        %v4149 = vpop.f32.mrf.mxu0
        %v4150 = vadd.f32 0.0, %v4149
        %v4151 = vpop.f32.mrf.mxu0
        %v4152 = vadd.f32 0.0, %v4151
        %4153 = vmatmul.bf16.gmra.mxu0 %v4058
        %v4154 = vpop.f32.mrf.mxu0
        %v4155 = vadd.f32 0.0, %v4154
        %v4156 = vpop.f32.mrf.mxu0
        %v4157 = vadd.f32 0.0, %v4156
        %4158 = vmatmul.bf16.gmra.mxu0 %v4061
        %v4159 = vpop.f32.mrf.mxu0
        %v4160 = vadd.f32 0.0, %v4159
        %v4161 = vpop.f32.mrf.mxu0
        %v4162 = vadd.f32 0.0, %v4161
        %4163 = vmatmul.bf16.gmra.mxu0 %v4064
        %v4164 = vpop.f32.mrf.mxu0
        %v4165 = vadd.f32 0.0, %v4164
        %v4166 = vpop.f32.mrf.mxu0
        %v4167 = vadd.f32 0.0, %v4166
        %4168 = vmatmul.bf16.gmra.mxu0 %v4067
        %v4169 = vpop.f32.mrf.mxu0
        %v4170 = vadd.f32 0.0, %v4169
        %v4171 = vpop.f32.mrf.mxu0
        %v4172 = vadd.f32 0.0, %v4171
        %4173 = vmatmul.bf16.gmra.mxu0 %v4070
        %v4174 = vpop.f32.mrf.mxu0
        %v4175 = vadd.f32 0.0, %v4174
        %v4176 = vpop.f32.mrf.mxu0
        %v4177 = vadd.f32 0.0, %v4176
        %4178 = vmatmul.bf16.gmra.mxu0 %v4073
        %v4179 = vpop.f32.mrf.mxu0
        %v4180 = vadd.f32 0.0, %v4179
        %v4181 = vpop.f32.mrf.mxu0
        %v4182 = vadd.f32 0.0, %v4181
        %4183 = vmatmul.bf16.gmra.mxu0 %v4076
        %v4184 = vpop.f32.mrf.mxu0
        %v4185 = vadd.f32 0.0, %v4184
        %v4186 = vpop.f32.mrf.mxu0
        %v4187 = vadd.f32 0.0, %v4186
        %4188 = vmatmul.bf16.gmra.mxu0 %v4079
        %v4189 = vpop.f32.mrf.mxu0
        %v4190 = vadd.f32 0.0, %v4189
        %v4191 = vpop.f32.mrf.mxu0
        %4192 = vmatmul.bf16.gmra.mxu0 %v4082
        %v4193 = vpop.f32.mrf.mxu0
        %v4194 = vpop.f32.mrf.mxu0
        %4195 = vdwg.mxu0
        %v4196 = vadd.f32 %v3936, %v4100
        %v4197 = vadd.f32 %v3937, %v4102
        %v4198 = vadd.f32 %v3938, %v4105
        %v4199 = vadd.f32 %v3939, %v4107
        %v4200 = vadd.f32 %v3940, %v4110
        %v4201 = vadd.f32 %v3941, %v4112
        %v4202 = vadd.f32 %v3942, %v4115
        %v4203 = vadd.f32 %v3943, %v4117
        %v4204 = vadd.f32 %v3944, %v4120
        %v4205 = vadd.f32 %v3945, %v4122
        %v4206 = vadd.f32 %v3946, %v4125
        %v4207 = vadd.f32 %v3947, %v4127
        %v4208 = vadd.f32 %v3948, %v4130
        %v4209 = vadd.f32 %v3949, %v4132
        %v4210 = vadd.f32 %v3950, %v4135
        %v4211 = vadd.f32 %v3951, %v4137
        %v4212 = vadd.f32 %v3952, %v4140
        %v4213 = vadd.f32 %v3953, %v4142
        %v4214 = vadd.f32 %v3954, %v4145
        %v4215 = vadd.f32 %v3955, %v4147
        %v4216 = vadd.f32 %v3956, %v4150
        %v4217 = vadd.f32 %v3957, %v4152
        %v4218 = vadd.f32 %v3958, %v4155
        %v4219 = vadd.f32 %v3959, %v4157
        %v4220 = vadd.f32 %v3960, %v4160
        %v4221 = vadd.f32 %v3961, %v4162
        %v4222 = vadd.f32 %v3962, %v4165
        %v4223 = vadd.f32 %v3963, %v4167
        %v4224 = vadd.f32 %v3964, %v4170
        %v4225 = vadd.f32 %v3965, %v4172
        %v4226 = vadd.f32 %v3966, %v4175
        %v4227 = vadd.f32 %v3967, %v4177
        %v4228 = vadd.f32 %v3968, %v4180
        %v4229 = vadd.f32 %v3969, %v4182
        %v4230 = vadd.f32 %v3970, %v4185
        %v4231 = vadd.f32 %v3971, %v4187
        %v4232 = vadd.f32 %v3972, %v4190
        %v4233 = vld [vmem:[%s13] sm:$0x1]
        %v4235 = vperm.slane %v4233, 0
        %v4237 = vadd.f32 %v4196, %v4235
        %v4238 = vadd.f32 %v4197, %v4235
        %v4239 = vadd.f32 %v4198, %v4235
        %v4240 = vadd.f32 %v4199, %v4235
        %v4241 = vadd.f32 %v4200, %v4235
        %v4242 = vadd.f32 %v4201, %v4235
        %v4243 = vadd.f32 %v4202, %v4235
        %v4244 = vadd.f32 %v4203, %v4235
        %v4245 = vadd.f32 %v4204, %v4235
        %v4246 = vadd.f32 %v4205, %v4235
        %v4247 = vadd.f32 %v4206, %v4235
        %v4248 = vadd.f32 %v4207, %v4235
        %v4249 = vadd.f32 %v4208, %v4235
        %v4250 = vadd.f32 %v4209, %v4235
        %v4251 = vadd.f32 %v4210, %v4235
        %v4252 = vadd.f32 %v4211, %v4235
        %v4253 = vadd.f32 %v4212, %v4235
        %v4254 = vadd.f32 %v4213, %v4235
        %v4255 = vadd.f32 %v4214, %v4235
        %v4256 = vadd.f32 %v4215, %v4235
        %v4257 = vadd.f32 %v4216, %v4235
        %v4258 = vadd.f32 %v4217, %v4235
        %v4259 = vadd.f32 %v4218, %v4235
        %v4260 = vadd.f32 %v4219, %v4235
        %v4261 = vadd.f32 %v4220, %v4235
        %v4262 = vadd.f32 %v4221, %v4235
        %v4263 = vadd.f32 %v4222, %v4235
        %v4264 = vadd.f32 %v4223, %v4235
        %v4265 = vadd.f32 %v4224, %v4235
        %v4266 = vadd.f32 %v4225, %v4235
        %v4267 = vadd.f32 %v4226, %v4235
        %v4268 = vadd.f32 %v4227, %v4235
        %v4269 = vadd.f32 %v4228, %v4235
        %v4270 = vadd.f32 %v4229, %v4235
        %v4271 = vadd.f32 %v4230, %v4235
        %v4272 = vadd.f32 %v4231, %v4235
        %v4273 = vadd.f32 %v4232, %v4235
        %v4274 = vmax.f32 %v4237, 0.0
        %v4275 = vmax.f32 %v4238, 0.0
        %v4276 = vmax.f32 %v4239, 0.0
        %v4277 = vmax.f32 %v4240, 0.0
        %v4278 = vmax.f32 %v4241, 0.0
        %v4279 = vmax.f32 %v4242, 0.0
        %v4280 = vmax.f32 %v4243, 0.0
        %v4281 = vmax.f32 %v4244, 0.0
        %v4282 = vmax.f32 %v4245, 0.0
        %v4283 = vmax.f32 %v4246, 0.0
        %v4284 = vmax.f32 %v4247, 0.0
        %v4285 = vmax.f32 %v4248, 0.0
        %v4286 = vmax.f32 %v4249, 0.0
        %v4287 = vmax.f32 %v4250, 0.0
        %v4288 = vmax.f32 %v4251, 0.0
        %v4289 = vmax.f32 %v4252, 0.0
        %v4290 = vmax.f32 %v4253, 0.0
        %v4291 = vmax.f32 %v4254, 0.0
        %v4292 = vmax.f32 %v4255, 0.0
        %v4293 = vmax.f32 %v4256, 0.0
        %v4294 = vmax.f32 %v4257, 0.0
        %v4295 = vmax.f32 %v4258, 0.0
        %v4296 = vmax.f32 %v4259, 0.0
        %v4297 = vmax.f32 %v4260, 0.0
        %v4298 = vmax.f32 %v4261, 0.0
        %v4299 = vmax.f32 %v4262, 0.0
        %v4300 = vmax.f32 %v4263, 0.0
        %v4301 = vmax.f32 %v4264, 0.0
        %v4302 = vmax.f32 %v4265, 0.0
        %v4303 = vmax.f32 %v4266, 0.0
        %v4304 = vmax.f32 %v4267, 0.0
        %v4305 = vmax.f32 %v4268, 0.0
        %v4306 = vmax.f32 %v4269, 0.0
        %v4307 = vmax.f32 %v4270, 0.0
        %v4308 = vmax.f32 %v4271, 0.0
        %v4309 = vmax.f32 %v4272, 0.0
        %v4310 = vmax.f32 %v4273, 0.0
        %v4311 = vld [vmem:[%s3] sm:$0xf]
        %v4312 = vld [vmem:[%s5] sm:$0xf]
        %vm4316 = vcmask 1045504
        %v4317 = vrot.slane %v4276, 2
        %v4318 = vrot.slane %v4277, 2
        %v4319 = vsel %vm4316, %v4317, %v4318
        %v4320 = vrot.slane %v4278, 2
        %v4321 = vsel %vm4316, %v4318, %v4320
        %v4325 = vmax.f32 %v4274, %v4319
        %v4326 = vmax.f32 %v4275, %v4321
        %v4327 = vmax.f32 %v4276, %v4320
        %v4328 = vpack.c.bf16 %v4326, %v4325
        %v4329 = vpack.c.bf16 %v4327, %v4327
        %v4331 = vshrl.u32 %v4328, 16
        %v4333 = vrot.slane %v4331, 1
        %v4334 = vshll.u32 %v4328, 16
        %v4336 = vrot.slane %v4334, 2
        %v4337 = vor.u32 %v4333, %v4336
        %v4339 = vshrl.u32 %v4329, 16
        %v4341 = vrot.slane %v4339, 1
        %v4342 = vshll.u32 %v4329, 16
        %v4344 = vrot.slane %v4342, 2
        %v4345 = vor.u32 %v4341, %v4344
        %v4346 = vsel %vm2363, %v4337, %v4345
        %vm4348 = vcmask 130048
        %v4350 = vsel %vm4348, %v4311, 0
        %4352 = vmatpush.bf16.msra.mxu0 0
        %4353 = vmatpush.bf16.msra.mxu0 0
        %4354 = vmatpush.bf16.msra.mxu0 0
        %4355 = vmatpush.bf16.msra.mxu0 0
        %4356 = vmatpush.bf16.msra.mxu0 0
        %4357 = vmatpush.bf16.msra.mxu0 0
        %4358 = vmatpush.bf16.msra.mxu0 0
        %4359 = vmatpush.bf16.msra.mxu0 %v4346
        %4360 = vmatmul.bf16.gmra.mxu0 %v4350
        %v4361 = vpop.f32.mrf.mxu0
        %v4362 = vadd.f32 0.0, %v4361
        %v4363 = vpop.f32.mrf.mxu0
        %4364 = vdwg.mxu0
        %v4366 = vsel %vm4348, %v4312, 0
        %4368 = vmatpush.bf16.msra.mxu0 0
        %4369 = vmatpush.bf16.msra.mxu0 0
        %4370 = vmatpush.bf16.msra.mxu0 0
        %4371 = vmatpush.bf16.msra.mxu0 0
        %4372 = vmatpush.bf16.msra.mxu0 0
        %4373 = vmatpush.bf16.msra.mxu0 0
        %4374 = vmatpush.bf16.msra.mxu0 0
        %4375 = vmatpush.bf16.msra.mxu0 %v4346
        %4376 = vmatmul.bf16.gmra.mxu0 %v4366
        %v4377 = vpop.f32.mrf.mxu0
        %v4378 = vadd.f32 0.0, %v4377
        %v4379 = vpop.f32.mrf.mxu0
        %4380 = vdwg.mxu0
        %v4381 = vmax.f32 %v4362, %v4378
        %v4382 = vpack.c.bf16 %v4381, %v4381
        %v4384 = vrot.slane %v4382, 5
        %v4385 = vrot.slane %v4384, 4
        %vm4388 = vcmask 257027
        %4389 = vst.msk [vmem:[#allocation2 + $0x8] sm:$0x8] %vm4388, %v4384
        %vm4390 = vcmask 256000
        %4391 = vst.msk [vmem:[#allocation2 + $0xc] sm:$0x7] %vm4390, %v4385
        %v4395 = vrot.slane %v4281, 2
        %v4396 = vrot.slane %v4282, 2
        %v4397 = vsel %vm4316, %v4395, %v4396
        %v4398 = vrot.slane %v4283, 2
        %v4399 = vsel %vm4316, %v4396, %v4398
        %v4403 = vmax.f32 %v4278, %v4395
        %v4404 = vmax.f32 %v4279, %v4397
        %v4405 = vmax.f32 %v4280, %v4399
        %v4406 = vpack.c.bf16 %v4404, %v4403
        %v4407 = vpack.c.bf16 %v4405, %v4405
        %vm4408 = vsmask.f32 4352
        %v4410 = vshrl.u32 %v4406, 16
        %v4412 = vrot.slane %v4410, 3
        %v4413 = vshll.u32 %v4406, 16
        %v4415 = vrot.slane %v4413, 4
        %v4416 = vor.u32 %v4412, %v4415
        %v4418 = vshrl.u32 %v4407, 16
        %v4420 = vrot.slane %v4418, 3
        %v4421 = vshll.u32 %v4407, 16
        %v4423 = vrot.slane %v4421, 4
        %v4424 = vor.u32 %v4420, %v4423
        %v4425 = vsel %vm4408, %v4416, %v4424
        %4427 = vmatpush.bf16.msra.mxu0 0
        %4428 = vmatpush.bf16.msra.mxu0 0
        %4429 = vmatpush.bf16.msra.mxu0 0
        %4430 = vmatpush.bf16.msra.mxu0 0
        %4431 = vmatpush.bf16.msra.mxu0 0
        %4432 = vmatpush.bf16.msra.mxu0 0
        %4433 = vmatpush.bf16.msra.mxu0 0
        %4434 = vmatpush.bf16.msra.mxu0 %v4425
        %4435 = vmatmul.bf16.gmra.mxu0 %v4350
        %v4436 = vpop.f32.mrf.mxu0
        %v4437 = vadd.f32 0.0, %v4436
        %v4438 = vpop.f32.mrf.mxu0
        %4439 = vdwg.mxu0
        %4440 = vmatpush.bf16.msra.mxu0 0
        %4441 = vmatpush.bf16.msra.mxu0 0
        %4442 = vmatpush.bf16.msra.mxu0 0
        %4443 = vmatpush.bf16.msra.mxu0 0
        %4444 = vmatpush.bf16.msra.mxu0 0
        %4445 = vmatpush.bf16.msra.mxu0 0
        %4446 = vmatpush.bf16.msra.mxu0 0
        %4447 = vmatpush.bf16.msra.mxu0 %v4425
        %4448 = vmatmul.bf16.gmra.mxu0 %v4366
        %v4449 = vpop.f32.mrf.mxu0
        %v4450 = vadd.f32 0.0, %v4449
        %v4451 = vpop.f32.mrf.mxu0
        %4452 = vdwg.mxu0
        %v4453 = vmax.f32 %v4437, %v4450
        %v4454 = vpack.c.bf16 %v4453, %v4453
        %4455 = vst.msk [vmem:[#allocation2 + $0x10] sm:$0xf] %vm1013, %v4454
        %v4459 = vrot.slane %v4285, 2
        %v4460 = vrot.slane %v4286, 2
        %v4461 = vsel %vm4316, %v4459, %v4460
        %v4462 = vrot.slane %v4287, 2
        %v4463 = vsel %vm4316, %v4460, %v4462
        %v4467 = vmax.f32 %v4283, %v4461
        %v4468 = vmax.f32 %v4284, %v4463
        %v4469 = vmax.f32 %v4285, %v4462
        %v4470 = vpack.c.bf16 %v4468, %v4467
        %v4471 = vpack.c.bf16 %v4469, %v4469
        %v4473 = vshrl.u32 %v4470, 16
        %v4475 = vrot.slane %v4473, 1
        %v4476 = vshll.u32 %v4470, 16
        %v4478 = vrot.slane %v4476, 2
        %v4479 = vor.u32 %v4475, %v4478
        %v4481 = vshrl.u32 %v4471, 16
        %v4483 = vrot.slane %v4481, 1
        %v4484 = vshll.u32 %v4471, 16
        %v4486 = vrot.slane %v4484, 2
        %v4487 = vor.u32 %v4483, %v4486
        %v4488 = vsel %vm2363, %v4479, %v4487
        %4490 = vmatpush.bf16.msra.mxu0 0
        %4491 = vmatpush.bf16.msra.mxu0 0
        %4492 = vmatpush.bf16.msra.mxu0 0
        %4493 = vmatpush.bf16.msra.mxu0 0
        %4494 = vmatpush.bf16.msra.mxu0 0
        %4495 = vmatpush.bf16.msra.mxu0 0
        %4496 = vmatpush.bf16.msra.mxu0 0
        %4497 = vmatpush.bf16.msra.mxu0 %v4488
        %4498 = vmatmul.bf16.gmra.mxu0 %v4350
        %v4499 = vpop.f32.mrf.mxu0
        %v4500 = vadd.f32 0.0, %v4499
        %v4501 = vpop.f32.mrf.mxu0
        %4502 = vdwg.mxu0
        %4503 = vmatpush.bf16.msra.mxu0 0
        %4504 = vmatpush.bf16.msra.mxu0 0
        %4505 = vmatpush.bf16.msra.mxu0 0
        %4506 = vmatpush.bf16.msra.mxu0 0
        %4507 = vmatpush.bf16.msra.mxu0 0
        %4508 = vmatpush.bf16.msra.mxu0 0
        %4509 = vmatpush.bf16.msra.mxu0 0
        %4510 = vmatpush.bf16.msra.mxu0 %v4488
        %4511 = vmatmul.bf16.gmra.mxu0 %v4366
        %v4512 = vpop.f32.mrf.mxu0
        %v4513 = vadd.f32 0.0, %v4512
        %v4514 = vpop.f32.mrf.mxu0
        %4515 = vdwg.mxu0
        %v4516 = vmax.f32 %v4500, %v4513
        %v4517 = vpack.c.bf16 %v4516, %v4516
        %v4519 = vrot.slane %v4517, 7
        %v4520 = vrot.slane %v4519, 4
        %vm4523 = vcmask 257025
        %4524 = vst.msk [vmem:[#allocation2 + $0x14] sm:$0xe] %vm4523, %v4519
        %4525 = vst.msk [vmem:[#allocation2 + $0x18] sm:$0x1] %vm1029, %v4520
        %v4529 = vrot.slane %v4290, 2
        %v4530 = vrot.slane %v4291, 2
        %v4531 = vsel %vm4316, %v4529, %v4530
        %v4532 = vrot.slane %v4292, 2
        %v4533 = vsel %vm4316, %v4530, %v4532
        %v4537 = vmax.f32 %v4287, %v4529
        %v4538 = vmax.f32 %v4288, %v4531
        %v4539 = vmax.f32 %v4289, %v4533
        %v4540 = vpack.c.bf16 %v4538, %v4537
        %v4541 = vpack.c.bf16 %v4539, %v4539
        %v4543 = vshrl.u32 %v4540, 16
        %v4545 = vrot.slane %v4543, 3
        %v4546 = vshll.u32 %v4540, 16
        %v4548 = vrot.slane %v4546, 4
        %v4549 = vor.u32 %v4545, %v4548
        %v4551 = vshrl.u32 %v4541, 16
        %v4553 = vrot.slane %v4551, 3
        %v4554 = vshll.u32 %v4541, 16
        %v4556 = vrot.slane %v4554, 4
        %v4557 = vor.u32 %v4553, %v4556
        %v4558 = vsel %vm4408, %v4549, %v4557
        %4560 = vmatpush.bf16.msra.mxu0 0
        %4561 = vmatpush.bf16.msra.mxu0 0
        %4562 = vmatpush.bf16.msra.mxu0 0
        %4563 = vmatpush.bf16.msra.mxu0 0
        %4564 = vmatpush.bf16.msra.mxu0 0
        %4565 = vmatpush.bf16.msra.mxu0 0
        %4566 = vmatpush.bf16.msra.mxu0 0
        %4567 = vmatpush.bf16.msra.mxu0 %v4558
        %4568 = vmatmul.bf16.gmra.mxu0 %v4350
        %v4569 = vpop.f32.mrf.mxu0
        %v4570 = vadd.f32 0.0, %v4569
        %v4571 = vpop.f32.mrf.mxu0
        %4572 = vdwg.mxu0
        %4573 = vmatpush.bf16.msra.mxu0 0
        %4574 = vmatpush.bf16.msra.mxu0 0
        %4575 = vmatpush.bf16.msra.mxu0 0
        %4576 = vmatpush.bf16.msra.mxu0 0
        %4577 = vmatpush.bf16.msra.mxu0 0
        %4578 = vmatpush.bf16.msra.mxu0 0
        %4579 = vmatpush.bf16.msra.mxu0 0
        %4580 = vmatpush.bf16.msra.mxu0 %v4558
        %4581 = vmatmul.bf16.gmra.mxu0 %v4366
        %v4582 = vpop.f32.mrf.mxu0
        %v4583 = vadd.f32 0.0, %v4582
        %v4584 = vpop.f32.mrf.mxu0
        %4585 = vdwg.mxu0
        %v4586 = vmax.f32 %v4570, %v4583
        %v4587 = vpack.c.bf16 %v4586, %v4586
        %v4589 = vrot.slane %v4587, 6
        %v4590 = vrot.slane %v4589, 4
        %vm4593 = vcmask 257026
        %4594 = vst.msk [vmem:[#allocation2 + $0x18] sm:$0xc] %vm4593, %v4589
        %vm4595 = vcmask 254976
        %4596 = vst.msk [vmem:[#allocation2 + $0x1c] sm:$0x3] %vm4595, %v4590
        %v4600 = vrot.slane %v4294, 2
        %v4601 = vrot.slane %v4295, 2
        %v4602 = vsel %vm4316, %v4600, %v4601
        %v4603 = vrot.slane %v4296, 2
        %v4604 = vsel %vm4316, %v4601, %v4603
        %v4608 = vmax.f32 %v4292, %v4602
        %v4609 = vmax.f32 %v4293, %v4604
        %v4610 = vmax.f32 %v4294, %v4603
        %v4611 = vpack.c.bf16 %v4609, %v4608
        %v4612 = vpack.c.bf16 %v4610, %v4610
        %v4614 = vshrl.u32 %v4611, 16
        %v4616 = vrot.slane %v4614, 1
        %v4617 = vshll.u32 %v4611, 16
        %v4619 = vrot.slane %v4617, 2
        %v4620 = vor.u32 %v4616, %v4619
        %v4622 = vshrl.u32 %v4612, 16
        %v4624 = vrot.slane %v4622, 1
        %v4625 = vshll.u32 %v4612, 16
        %v4627 = vrot.slane %v4625, 2
        %v4628 = vor.u32 %v4624, %v4627
        %v4629 = vsel %vm2363, %v4620, %v4628
        %4631 = vmatpush.bf16.msra.mxu0 0
        %4632 = vmatpush.bf16.msra.mxu0 0
        %4633 = vmatpush.bf16.msra.mxu0 0
        %4634 = vmatpush.bf16.msra.mxu0 0
        %4635 = vmatpush.bf16.msra.mxu0 0
        %4636 = vmatpush.bf16.msra.mxu0 0
        %4637 = vmatpush.bf16.msra.mxu0 0
        %4638 = vmatpush.bf16.msra.mxu0 %v4629
        %4639 = vmatmul.bf16.gmra.mxu0 %v4350
        %v4640 = vpop.f32.mrf.mxu0
        %v4641 = vadd.f32 0.0, %v4640
        %v4642 = vpop.f32.mrf.mxu0
        %4643 = vdwg.mxu0
        %4644 = vmatpush.bf16.msra.mxu0 0
        %4645 = vmatpush.bf16.msra.mxu0 0
        %4646 = vmatpush.bf16.msra.mxu0 0
        %4647 = vmatpush.bf16.msra.mxu0 0
        %4648 = vmatpush.bf16.msra.mxu0 0
        %4649 = vmatpush.bf16.msra.mxu0 0
        %4650 = vmatpush.bf16.msra.mxu0 0
        %4651 = vmatpush.bf16.msra.mxu0 %v4629
        %4652 = vmatmul.bf16.gmra.mxu0 %v4366
        %v4653 = vpop.f32.mrf.mxu0
        %v4654 = vadd.f32 0.0, %v4653
        %v4655 = vpop.f32.mrf.mxu0
        %4656 = vdwg.mxu0
        %v4657 = vmax.f32 %v4641, %v4654
        %v4658 = vpack.c.bf16 %v4657, %v4657
        %v4660 = vrot.slane %v4658, 5
        %v4661 = vrot.slane %v4660, 4
        %4664 = vst.msk [vmem:[#allocation2 + $0x1c] sm:$0x8] %vm4388, %v4660
        %4665 = vst.msk [vmem:[#allocation2 + $0x20] sm:$0x7] %vm4390, %v4661
        %v4669 = vrot.slane %v4299, 2
        %v4670 = vrot.slane %v4300, 2
        %v4671 = vsel %vm4316, %v4669, %v4670
        %v4672 = vrot.slane %v4301, 2
        %v4673 = vsel %vm4316, %v4670, %v4672
        %v4677 = vmax.f32 %v4296, %v4669
        %v4678 = vmax.f32 %v4297, %v4671
        %v4679 = vmax.f32 %v4298, %v4673
        %v4680 = vpack.c.bf16 %v4678, %v4677
        %v4681 = vpack.c.bf16 %v4679, %v4679
        %v4683 = vshrl.u32 %v4680, 16
        %v4685 = vrot.slane %v4683, 3
        %v4686 = vshll.u32 %v4680, 16
        %v4688 = vrot.slane %v4686, 4
        %v4689 = vor.u32 %v4685, %v4688
        %v4691 = vshrl.u32 %v4681, 16
        %v4693 = vrot.slane %v4691, 3
        %v4694 = vshll.u32 %v4681, 16
        %v4696 = vrot.slane %v4694, 4
        %v4697 = vor.u32 %v4693, %v4696
        %v4698 = vsel %vm4408, %v4689, %v4697
        %4700 = vmatpush.bf16.msra.mxu0 0
        %4701 = vmatpush.bf16.msra.mxu0 0
        %4702 = vmatpush.bf16.msra.mxu0 0
        %4703 = vmatpush.bf16.msra.mxu0 0
        %4704 = vmatpush.bf16.msra.mxu0 0
        %4705 = vmatpush.bf16.msra.mxu0 0
        %4706 = vmatpush.bf16.msra.mxu0 0
        %4707 = vmatpush.bf16.msra.mxu0 %v4698
        %4708 = vmatmul.bf16.gmra.mxu0 %v4350
        %v4709 = vpop.f32.mrf.mxu0
        %v4710 = vadd.f32 0.0, %v4709
        %v4711 = vpop.f32.mrf.mxu0
        %4712 = vdwg.mxu0
        %4713 = vmatpush.bf16.msra.mxu0 0
        %4714 = vmatpush.bf16.msra.mxu0 0
        %4715 = vmatpush.bf16.msra.mxu0 0
        %4716 = vmatpush.bf16.msra.mxu0 0
        %4717 = vmatpush.bf16.msra.mxu0 0
        %4718 = vmatpush.bf16.msra.mxu0 0
        %4719 = vmatpush.bf16.msra.mxu0 0
        %4720 = vmatpush.bf16.msra.mxu0 %v4698
        %4721 = vmatmul.bf16.gmra.mxu0 %v4366
        %v4722 = vpop.f32.mrf.mxu0
        %v4723 = vadd.f32 0.0, %v4722
        %v4724 = vpop.f32.mrf.mxu0
        %4725 = vdwg.mxu0
        %v4726 = vmax.f32 %v4710, %v4723
        %v4727 = vpack.c.bf16 %v4726, %v4726
        %4728 = vst.msk [vmem:[#allocation2 + $0x24] sm:$0xf] %vm1013, %v4727
        %v4732 = vrot.slane %v4303, 2
        %v4733 = vrot.slane %v4304, 2
        %v4734 = vsel %vm4316, %v4732, %v4733
        %v4735 = vrot.slane %v4305, 2
        %v4736 = vsel %vm4316, %v4733, %v4735
        %v4740 = vmax.f32 %v4301, %v4734
        %v4741 = vmax.f32 %v4302, %v4736
        %v4742 = vmax.f32 %v4303, %v4735
        %v4743 = vpack.c.bf16 %v4741, %v4740
        %v4744 = vpack.c.bf16 %v4742, %v4742
        %v4746 = vshrl.u32 %v4743, 16
        %v4748 = vrot.slane %v4746, 1
        %v4749 = vshll.u32 %v4743, 16
        %v4751 = vrot.slane %v4749, 2
        %v4752 = vor.u32 %v4748, %v4751
        %v4754 = vshrl.u32 %v4744, 16
        %v4756 = vrot.slane %v4754, 1
        %v4757 = vshll.u32 %v4744, 16
        %v4759 = vrot.slane %v4757, 2
        %v4760 = vor.u32 %v4756, %v4759
        %v4761 = vsel %vm2363, %v4752, %v4760
        %4763 = vmatpush.bf16.msra.mxu0 0
        %4764 = vmatpush.bf16.msra.mxu0 0
        %4765 = vmatpush.bf16.msra.mxu0 0
        %4766 = vmatpush.bf16.msra.mxu0 0
        %4767 = vmatpush.bf16.msra.mxu0 0
        %4768 = vmatpush.bf16.msra.mxu0 0
        %4769 = vmatpush.bf16.msra.mxu0 0
        %4770 = vmatpush.bf16.msra.mxu0 %v4761
        %4771 = vmatmul.bf16.gmra.mxu0 %v4350
        %v4772 = vpop.f32.mrf.mxu0
        %v4773 = vadd.f32 0.0, %v4772
        %v4774 = vpop.f32.mrf.mxu0
        %4775 = vdwg.mxu0
        %4776 = vmatpush.bf16.msra.mxu0 0
        %4777 = vmatpush.bf16.msra.mxu0 0
        %4778 = vmatpush.bf16.msra.mxu0 0
        %4779 = vmatpush.bf16.msra.mxu0 0
        %4780 = vmatpush.bf16.msra.mxu0 0
        %4781 = vmatpush.bf16.msra.mxu0 0
        %4782 = vmatpush.bf16.msra.mxu0 0
        %4783 = vmatpush.bf16.msra.mxu0 %v4761
        %4784 = vmatmul.bf16.gmra.mxu0 %v4366
        %v4785 = vpop.f32.mrf.mxu0
        %v4786 = vadd.f32 0.0, %v4785
        %v4787 = vpop.f32.mrf.mxu0
        %4788 = vdwg.mxu0
        %v4789 = vmax.f32 %v4773, %v4786
        %v4790 = vpack.c.bf16 %v4789, %v4789
        %v4792 = vrot.slane %v4790, 7
        %v4793 = vrot.slane %v4792, 4
        %4796 = vst.msk [vmem:[#allocation2 + $0x28] sm:$0xe] %vm4523, %v4792
        %4797 = vst.msk [vmem:[#allocation2 + $0x2c] sm:$0x1] %vm1029, %v4793
        %v4801 = vrot.slane %v4308, 2
        %v4802 = vrot.slane %v4309, 2
        %v4803 = vsel %vm4316, %v4801, %v4802
        %v4804 = vrot.slane %v4310, 2
        %v4805 = vsel %vm4316, %v4802, %v4804
        %v4809 = vmax.f32 %v4305, %v4801
        %v4810 = vmax.f32 %v4306, %v4803
        %v4811 = vmax.f32 %v4307, %v4805
        %v4812 = vpack.c.bf16 %v4810, %v4809
        %v4813 = vpack.c.bf16 %v4811, %v4811
        %v4815 = vshrl.u32 %v4812, 16
        %v4817 = vrot.slane %v4815, 3
        %v4818 = vshll.u32 %v4812, 16
        %v4820 = vrot.slane %v4818, 4
        %v4821 = vor.u32 %v4817, %v4820
        %v4823 = vshrl.u32 %v4813, 16
        %v4825 = vrot.slane %v4823, 3
        %v4826 = vshll.u32 %v4813, 16
        %v4828 = vrot.slane %v4826, 4
        %v4829 = vor.u32 %v4825, %v4828
        %v4830 = vsel %vm4408, %v4821, %v4829
        %4832 = vmatpush.bf16.msra.mxu0 0
        %4833 = vmatpush.bf16.msra.mxu0 0
        %4834 = vmatpush.bf16.msra.mxu0 0
        %4835 = vmatpush.bf16.msra.mxu0 0
        %4836 = vmatpush.bf16.msra.mxu0 0
        %4837 = vmatpush.bf16.msra.mxu0 0
        %4838 = vmatpush.bf16.msra.mxu0 0
        %4839 = vmatpush.bf16.msra.mxu0 %v4830
        %4840 = vmatmul.bf16.gmra.mxu0 %v4350
        %v4841 = vpop.f32.mrf.mxu0
        %v4842 = vadd.f32 0.0, %v4841
        %v4843 = vpop.f32.mrf.mxu0
        %4844 = vdwg.mxu0
        %4845 = vmatpush.bf16.msra.mxu0 0
        %4846 = vmatpush.bf16.msra.mxu0 0
        %4847 = vmatpush.bf16.msra.mxu0 0
        %4848 = vmatpush.bf16.msra.mxu0 0
        %4849 = vmatpush.bf16.msra.mxu0 0
        %4850 = vmatpush.bf16.msra.mxu0 0
        %4851 = vmatpush.bf16.msra.mxu0 0
        %4852 = vmatpush.bf16.msra.mxu0 %v4830
        %4853 = vmatmul.bf16.gmra.mxu0 %v4366
        %v4854 = vpop.f32.mrf.mxu0
        %v4855 = vadd.f32 0.0, %v4854
        %v4856 = vpop.f32.mrf.mxu0
        %4857 = vdwg.mxu0
        %v4858 = vmax.f32 %v4842, %v4855
        %v4859 = vpack.c.bf16 %v4858, %v4858
        %v4861 = vrot.slane %v4859, 6
        %v4862 = vrot.slane %v4861, 4
        %4865 = vst.msk [vmem:[#allocation2 + $0x2c] sm:$0xc] %vm4593, %v4861
        %4866 = vst.msk [vmem:[#allocation2 + $0x30] sm:$0x3] %vm4595, %v4862
        %v4867 = vld [vmem:[#allocation2] sm:$0xf]
        %v4868 = vld [vmem:[#allocation2 + $0x4] sm:$0xf]
        %v4869 = vld [vmem:[#allocation2 + $0x8] sm:$0xf]
        %v4870 = vld [vmem:[#allocation2 + $0xc] sm:$0xf]
        %v4871 = vld [vmem:[#allocation2 + $0x10] sm:$0xf]
        %v4872 = vld [vmem:[#allocation2 + $0x14] sm:$0xf]
        %v4873 = vld [vmem:[#allocation2 + $0x18] sm:$0xf]
        %v4874 = vld [vmem:[#allocation2 + $0x1c] sm:$0xf]
        %v4875 = vld [vmem:[#allocation2 + $0x20] sm:$0xf]
        %v4876 = vld [vmem:[#allocation2 + $0x24] sm:$0xf]
        %v4877 = vld [vmem:[#allocation2 + $0x28] sm:$0xf]
        %v4878 = vld [vmem:[#allocation2 + $0x2c] sm:$0xf]
        %v4879 = vld [vmem:[#allocation2 + $0x30] sm:$0x3]
        %v4880 = vld [vmem:[%s15] sm:$0xf]
        %v4881 = vld [vmem:[%s15 + $0x4] sm:$0xf]
        %v4882 = vld [vmem:[%s15 + $0x8] sm:$0xf]
        %v4883 = vld [vmem:[%s15 + $0xc] sm:$0xf]
        %v4884 = vld [vmem:[#allocation2 + $0x30] sm:$0x7]
        %s4885 = scalar_lea.vmem %s15, 16
        %v4886 = vld [vmem:[%s4885] sm:$0xf]
        %v4887 = vld [vmem:[%s4885 + $0x4] sm:$0xf]
        %v4888 = vld [vmem:[%s4885 + $0x8] sm:$0xf]
        %v4889 = vld [vmem:[%s4885 + $0xc] sm:$0xf]
        %v4903 = vunpack.c.l.b16 %v4867
        %v4904 = vunpack.c.l.b16 %v4868
        %v4905 = vunpack.c.l.b16 %v4869
        %v4906 = vunpack.c.l.b16 %v4870
        %v4907 = vunpack.c.l.b16 %v4871
        %v4908 = vunpack.c.l.b16 %v4872
        %v4909 = vunpack.c.l.b16 %v4873
        %v4910 = vunpack.c.l.b16 %v4874
        %v4911 = vunpack.c.l.b16 %v4875
        %v4912 = vunpack.c.l.b16 %v4876
        %v4913 = vunpack.c.l.b16 %v4877
        %v4914 = vunpack.c.l.b16 %v4878
        %v4915 = vunpack.c.l.b16 %v4884
        %v4916 = vpack.c.b16 %v4904, %v4903
        %v4917 = vpack.c.b16 %v4906, %v4905
        %v4918 = vpack.c.b16 %v4908, %v4907
        %v4919 = vpack.c.b16 %v4910, %v4909
        %v4920 = vpack.c.b16 %v4912, %v4911
        %v4921 = vpack.c.b16 %v4914, %v4913
        %v4922 = vpack.c.b16 %v4915, %v4915
        %v4924 = vshrl.u32 %v4916, 16
        %v4926 = vshll.u32 %v4916, 16
        %v4928 = vrot.slane %v4926, 1
        %v4929 = vor.u32 %v4924, %v4928
        %v4931 = vshll.u32 %v4917, 16
        %v4933 = vrot.slane %v4931, 1
        %v4934 = vsel %vm1192, %v4929, %v4933
        %v4935 = vshrl.u32 %v4917, 16
        %v4937 = vor.u32 %v4935, %v4933
        %v4939 = vshll.u32 %v4918, 16
        %v4941 = vrot.slane %v4939, 1
        %v4942 = vsel %vm1192, %v4937, %v4941
        %v4943 = vshrl.u32 %v4918, 16
        %v4945 = vor.u32 %v4943, %v4941
        %v4947 = vshll.u32 %v4919, 16
        %v4949 = vrot.slane %v4947, 1
        %v4950 = vsel %vm1192, %v4945, %v4949
        %v4951 = vshrl.u32 %v4919, 16
        %v4953 = vor.u32 %v4951, %v4949
        %v4955 = vshll.u32 %v4920, 16
        %v4957 = vrot.slane %v4955, 1
        %v4958 = vsel %vm1192, %v4953, %v4957
        %v4959 = vshrl.u32 %v4920, 16
        %v4961 = vor.u32 %v4959, %v4957
        %v4963 = vshll.u32 %v4921, 16
        %v4965 = vrot.slane %v4963, 1
        %v4966 = vsel %vm1192, %v4961, %v4965
        %v4967 = vshrl.u32 %v4921, 16
        %v4969 = vor.u32 %v4967, %v4965
        %v4971 = vshll.u32 %v4922, 16
        %v4973 = vrot.slane %v4971, 1
        %v4974 = vsel %vm1192, %v4969, %v4973
        %v4975 = vshrl.u32 %v4922, 16
        %v4977 = vor.u32 %v4975, %v4973
        %v4982 = vunpack.c.l.b16 %v4886
        %v4983 = vunpack.c.l.b16 %v4887
        %v4984 = vunpack.c.l.b16 %v4888
        %v4985 = vunpack.c.l.b16 %v4889
        %v4986 = vpack.c.b16 %v4983, %v4982
        %v4987 = vpack.c.b16 %v4985, %v4984
        %vm4990 = vcmask 261120
        %v4992 = vsel %vm4990, %v4934, 0
        %v4995 = vsel %vm4990, %v4942, 0
        %v4998 = vsel %vm4990, %v4950, 0
        %v5001 = vsel %vm4990, %v4958, 0
        %v5004 = vsel %vm4990, %v4966, 0
        %v5007 = vsel %vm4990, %v4974, 0
        %v5010 = vsel %vm4990, %v4977, 0
        %5012 = vmatpush.bf16.msra.mxu0 0
        %5013 = vmatpush.bf16.msra.mxu0 0
        %5014 = vmatpush.bf16.msra.mxu0 0
        %5015 = vmatpush.bf16.msra.mxu0 0
        %5016 = vmatpush.bf16.msra.mxu0 0
        %5017 = vmatpush.bf16.msra.mxu0 0
        %5018 = vmatpush.bf16.msra.mxu0 %v4987
        %5019 = vmatpush.bf16.msra.mxu0 %v4986
        %5020 = vmatmul.bf16.gmra.mxu0 %v4992
        %v5021 = vpop.f32.mrf.mxu0
        %v5022 = vpop.f32.mrf.mxu0
        %v5023 = vadd.f32 0.0, %v5022
        %5024 = vmatmul.bf16.gmra.mxu0 %v4995
        %v5025 = vpop.f32.mrf.mxu0
        %v5026 = vadd.f32 0.0, %v5025
        %v5027 = vpop.f32.mrf.mxu0
        %v5028 = vadd.f32 0.0, %v5027
        %5029 = vmatmul.bf16.gmra.mxu0 %v4998
        %v5030 = vpop.f32.mrf.mxu0
        %v5031 = vadd.f32 0.0, %v5030
        %v5032 = vpop.f32.mrf.mxu0
        %v5033 = vadd.f32 0.0, %v5032
        %5034 = vmatmul.bf16.gmra.mxu0 %v5001
        %v5035 = vpop.f32.mrf.mxu0
        %v5036 = vadd.f32 0.0, %v5035
        %v5037 = vpop.f32.mrf.mxu0
        %v5038 = vadd.f32 0.0, %v5037
        %5039 = vmatmul.bf16.gmra.mxu0 %v5004
        %v5040 = vpop.f32.mrf.mxu0
        %v5041 = vadd.f32 0.0, %v5040
        %v5042 = vpop.f32.mrf.mxu0
        %v5043 = vadd.f32 0.0, %v5042
        %5044 = vmatmul.bf16.gmra.mxu0 %v5007
        %v5045 = vpop.f32.mrf.mxu0
        %v5046 = vadd.f32 0.0, %v5045
        %v5047 = vpop.f32.mrf.mxu0
        %v5048 = vadd.f32 0.0, %v5047
        %5049 = vmatmul.bf16.gmra.mxu0 %v5010
        %v5050 = vpop.f32.mrf.mxu0
        %v5051 = vpop.f32.mrf.mxu0
        %5052 = vdwg.mxu0
        %v5054 = vunpack.c.l.b16 %v4879
        %v5055 = vpack.c.b16 %v5054, %v5054
        %v5060 = vunpack.c.l.b16 %v4880
        %v5061 = vunpack.c.l.b16 %v4881
        %v5062 = vunpack.c.l.b16 %v4882
        %v5063 = vunpack.c.l.b16 %v4883
        %v5064 = vpack.c.b16 %v5061, %v5060
        %v5065 = vpack.c.b16 %v5063, %v5062
        %v5068 = vsel %vm4990, %v4916, 0
        %v5070 = vsel %vm4990, %v4917, 0
        %v5072 = vsel %vm4990, %v4918, 0
        %v5074 = vsel %vm4990, %v4919, 0
        %v5076 = vsel %vm4990, %v4920, 0
        %v5078 = vsel %vm4990, %v4921, 0
        %v5081 = vsel %vm4990, %v5055, 0
        %5083 = vmatpush.bf16.msra.mxu0 0
        %5084 = vmatpush.bf16.msra.mxu0 0
        %5085 = vmatpush.bf16.msra.mxu0 0
        %5086 = vmatpush.bf16.msra.mxu0 0
        %5087 = vmatpush.bf16.msra.mxu0 0
        %5088 = vmatpush.bf16.msra.mxu0 0
        %5089 = vmatpush.bf16.msra.mxu0 %v5065
        %5090 = vmatpush.bf16.msra.mxu0 %v5064
        %5091 = vmatmul.bf16.gmra.mxu0 %v5068
        %v5092 = vpop.f32.mrf.mxu0
        %v5093 = vpop.f32.mrf.mxu0
        %v5094 = vadd.f32 %v5023, %v5093
        %5095 = vmatmul.bf16.gmra.mxu0 %v5070
        %v5096 = vpop.f32.mrf.mxu0
        %v5097 = vadd.f32 %v5026, %v5096
        %v5098 = vpop.f32.mrf.mxu0
        %v5099 = vadd.f32 %v5028, %v5098
        %5100 = vmatmul.bf16.gmra.mxu0 %v5072
        %v5101 = vpop.f32.mrf.mxu0
        %v5102 = vadd.f32 %v5031, %v5101
        %v5103 = vpop.f32.mrf.mxu0
        %v5104 = vadd.f32 %v5033, %v5103
        %5105 = vmatmul.bf16.gmra.mxu0 %v5074
        %v5106 = vpop.f32.mrf.mxu0
        %v5107 = vadd.f32 %v5036, %v5106
        %v5108 = vpop.f32.mrf.mxu0
        %v5109 = vadd.f32 %v5038, %v5108
        %5110 = vmatmul.bf16.gmra.mxu0 %v5076
        %v5111 = vpop.f32.mrf.mxu0
        %v5112 = vadd.f32 %v5041, %v5111
        %v5113 = vpop.f32.mrf.mxu0
        %v5114 = vadd.f32 %v5043, %v5113
        %5115 = vmatmul.bf16.gmra.mxu0 %v5078
        %v5116 = vpop.f32.mrf.mxu0
        %v5117 = vadd.f32 %v5046, %v5116
        %v5118 = vpop.f32.mrf.mxu0
        %v5119 = vadd.f32 %v5048, %v5118
        %5120 = vmatmul.bf16.gmra.mxu0 %v5081
        %v5121 = vpop.f32.mrf.mxu0
        %v5122 = vpop.f32.mrf.mxu0
        %5123 = vdwg.mxu0
        %v5124 = vld [vmem:[#allocation2] sm:$0xe]
        %s5125 = scalar_lea.vmem %s15, 32
        %v5126 = vld [vmem:[%s5125] sm:$0xf]
        %v5127 = vld [vmem:[%s5125 + $0x4] sm:$0xf]
        %v5128 = vld [vmem:[%s5125 + $0x8] sm:$0xf]
        %v5129 = vld [vmem:[%s5125 + $0xc] sm:$0xf]
        %v5131 = vunpack.c.l.b16 %v5124
        %v5132 = vpack.c.b16 %v4904, %v5131
        %v5133 = vrot.slane %v5132, 1
        %v5134 = vrot.slane %v4917, 1
        %v5135 = vsel %vm1704, %v5133, %v5134
        %v5136 = vrot.slane %v4918, 1
        %v5137 = vsel %vm1704, %v5134, %v5136
        %v5138 = vrot.slane %v4919, 1
        %v5139 = vsel %vm1704, %v5136, %v5138
        %v5140 = vrot.slane %v4920, 1
        %v5141 = vsel %vm1704, %v5138, %v5140
        %v5142 = vrot.slane %v4921, 1
        %v5143 = vsel %vm1704, %v5140, %v5142
        %v5144 = vrot.slane %v4922, 1
        %v5145 = vsel %vm1704, %v5142, %v5144
        %v5150 = vunpack.c.l.b16 %v5126
        %v5151 = vunpack.c.l.b16 %v5127
        %v5152 = vunpack.c.l.b16 %v5128
        %v5153 = vunpack.c.l.b16 %v5129
        %v5154 = vpack.c.b16 %v5151, %v5150
        %v5155 = vpack.c.b16 %v5153, %v5152
        %v5159 = vsel %vm4990, %v5135, 0
        %v5162 = vsel %vm4990, %v5137, 0
        %v5165 = vsel %vm4990, %v5139, 0
        %v5168 = vsel %vm4990, %v5141, 0
        %v5171 = vsel %vm4990, %v5143, 0
        %v5174 = vsel %vm4990, %v5145, 0
        %v5177 = vsel %vm4990, %v5144, 0
        %5179 = vmatpush.bf16.msra.mxu0 0
        %5180 = vmatpush.bf16.msra.mxu0 0
        %5181 = vmatpush.bf16.msra.mxu0 0
        %5182 = vmatpush.bf16.msra.mxu0 0
        %5183 = vmatpush.bf16.msra.mxu0 0
        %5184 = vmatpush.bf16.msra.mxu0 0
        %5185 = vmatpush.bf16.msra.mxu0 %v5155
        %5186 = vmatpush.bf16.msra.mxu0 %v5154
        %5187 = vmatmul.bf16.gmra.mxu0 %v5159
        %v5188 = vpop.f32.mrf.mxu0
        %v5189 = vpop.f32.mrf.mxu0
        %v5190 = vadd.f32 0.0, %v5189
        %5191 = vmatmul.bf16.gmra.mxu0 %v5162
        %v5192 = vpop.f32.mrf.mxu0
        %v5193 = vadd.f32 0.0, %v5192
        %v5194 = vpop.f32.mrf.mxu0
        %v5195 = vadd.f32 0.0, %v5194
        %5196 = vmatmul.bf16.gmra.mxu0 %v5165
        %v5197 = vpop.f32.mrf.mxu0
        %v5198 = vadd.f32 0.0, %v5197
        %v5199 = vpop.f32.mrf.mxu0
        %v5200 = vadd.f32 0.0, %v5199
        %5201 = vmatmul.bf16.gmra.mxu0 %v5168
        %v5202 = vpop.f32.mrf.mxu0
        %v5203 = vadd.f32 0.0, %v5202
        %v5204 = vpop.f32.mrf.mxu0
        %v5205 = vadd.f32 0.0, %v5204
        %5206 = vmatmul.bf16.gmra.mxu0 %v5171
        %v5207 = vpop.f32.mrf.mxu0
        %v5208 = vadd.f32 0.0, %v5207
        %v5209 = vpop.f32.mrf.mxu0
        %v5210 = vadd.f32 0.0, %v5209
        %5211 = vmatmul.bf16.gmra.mxu0 %v5174
        %v5212 = vpop.f32.mrf.mxu0
        %v5213 = vadd.f32 0.0, %v5212
        %v5214 = vpop.f32.mrf.mxu0
        %v5215 = vadd.f32 0.0, %v5214
        %5216 = vmatmul.bf16.gmra.mxu0 %v5177
        %v5217 = vpop.f32.mrf.mxu0
        %v5218 = vpop.f32.mrf.mxu0
        %5219 = vdwg.mxu0
        %v5220 = vadd.f32 %v5094, %v5190
        %v5221 = vadd.f32 %v5097, %v5193
        %v5222 = vadd.f32 %v5099, %v5195
        %v5223 = vadd.f32 %v5102, %v5198
        %v5224 = vadd.f32 %v5104, %v5200
        %v5225 = vadd.f32 %v5107, %v5203
        %v5226 = vadd.f32 %v5109, %v5205
        %v5227 = vadd.f32 %v5112, %v5208
        %v5228 = vadd.f32 %v5114, %v5210
        %v5229 = vadd.f32 %v5117, %v5213
        %v5230 = vadd.f32 %v5119, %v5215
        %v5231 = vld [vmem:[#allocation2 + $0x4] sm:$0xe]
        %v5232 = vld [vmem:[#allocation2 + $0x8] sm:$0xf]
        %v5233 = vld [vmem:[#allocation2 + $0xc] sm:$0xf]
        %v5234 = vld [vmem:[#allocation2 + $0x10] sm:$0xf]
        %v5235 = vld [vmem:[#allocation2 + $0x14] sm:$0xf]
        %v5236 = vld [vmem:[#allocation2 + $0x18] sm:$0xf]
        %v5237 = vld [vmem:[#allocation2 + $0x1c] sm:$0xf]
        %v5238 = vld [vmem:[#allocation2 + $0x20] sm:$0xf]
        %v5239 = vld [vmem:[#allocation2 + $0x24] sm:$0xf]
        %v5240 = vld [vmem:[#allocation2 + $0x28] sm:$0xf]
        %v5241 = vld [vmem:[#allocation2 + $0x2c] sm:$0xf]
        %v5242 = vld [vmem:[#allocation2 + $0x30] sm:$0xf]
        %v5243 = vld [vmem:[#allocation2 + $0x34] sm:$0x7]
        %s5244 = scalar_lea.vmem %s15, 48
        %v5245 = vld [vmem:[%s5244] sm:$0xf]
        %v5246 = vld [vmem:[%s5244 + $0x4] sm:$0xf]
        %v5247 = vld [vmem:[%s5244 + $0x8] sm:$0xf]
        %v5248 = vld [vmem:[%s5244 + $0xc] sm:$0xf]
        %v5262 = vunpack.c.l.b16 %v5231
        %v5263 = vunpack.c.l.b16 %v5232
        %v5264 = vunpack.c.l.b16 %v5233
        %v5265 = vunpack.c.l.b16 %v5234
        %v5266 = vunpack.c.l.b16 %v5235
        %v5267 = vunpack.c.l.b16 %v5236
        %v5268 = vunpack.c.l.b16 %v5237
        %v5269 = vunpack.c.l.b16 %v5238
        %v5270 = vunpack.c.l.b16 %v5239
        %v5271 = vunpack.c.l.b16 %v5240
        %v5272 = vunpack.c.l.b16 %v5241
        %v5273 = vunpack.c.l.b16 %v5242
        %v5274 = vunpack.c.l.b16 %v5243
        %v5275 = vpack.c.b16 %v5263, %v5262
        %v5276 = vpack.c.b16 %v5265, %v5264
        %v5277 = vpack.c.b16 %v5267, %v5266
        %v5278 = vpack.c.b16 %v5269, %v5268
        %v5279 = vpack.c.b16 %v5271, %v5270
        %v5280 = vpack.c.b16 %v5273, %v5272
        %v5281 = vpack.c.b16 %v5274, %v5274
        %v5282 = vrot.slane %v5275, 1
        %v5283 = vrot.slane %v5276, 1
        %v5284 = vsel %vm1704, %v5282, %v5283
        %v5285 = vrot.slane %v5277, 1
        %v5286 = vsel %vm1704, %v5283, %v5285
        %v5287 = vrot.slane %v5278, 1
        %v5288 = vsel %vm1704, %v5285, %v5287
        %v5289 = vrot.slane %v5279, 1
        %v5290 = vsel %vm1704, %v5287, %v5289
        %v5291 = vrot.slane %v5280, 1
        %v5292 = vsel %vm1704, %v5289, %v5291
        %v5293 = vrot.slane %v5281, 1
        %v5294 = vsel %vm1704, %v5291, %v5293
        %v5299 = vunpack.c.l.b16 %v5245
        %v5300 = vunpack.c.l.b16 %v5246
        %v5301 = vunpack.c.l.b16 %v5247
        %v5302 = vunpack.c.l.b16 %v5248
        %v5303 = vpack.c.b16 %v5300, %v5299
        %v5304 = vpack.c.b16 %v5302, %v5301
        %v5308 = vsel %vm4990, %v5284, 0
        %v5311 = vsel %vm4990, %v5286, 0
        %v5314 = vsel %vm4990, %v5288, 0
        %v5317 = vsel %vm4990, %v5290, 0
        %v5320 = vsel %vm4990, %v5292, 0
        %v5323 = vsel %vm4990, %v5294, 0
        %v5326 = vsel %vm4990, %v5293, 0
        %5328 = vmatpush.bf16.msra.mxu0 0
        %5329 = vmatpush.bf16.msra.mxu0 0
        %5330 = vmatpush.bf16.msra.mxu0 0
        %5331 = vmatpush.bf16.msra.mxu0 0
        %5332 = vmatpush.bf16.msra.mxu0 0
        %5333 = vmatpush.bf16.msra.mxu0 0
        %5334 = vmatpush.bf16.msra.mxu0 %v5304
        %5335 = vmatpush.bf16.msra.mxu0 %v5303
        %5336 = vmatmul.bf16.gmra.mxu0 %v5308
        %v5337 = vpop.f32.mrf.mxu0
        %v5338 = vpop.f32.mrf.mxu0
        %v5339 = vadd.f32 0.0, %v5338
        %5340 = vmatmul.bf16.gmra.mxu0 %v5311
        %v5341 = vpop.f32.mrf.mxu0
        %v5342 = vadd.f32 0.0, %v5341
        %v5343 = vpop.f32.mrf.mxu0
        %v5344 = vadd.f32 0.0, %v5343
        %5345 = vmatmul.bf16.gmra.mxu0 %v5314
        %v5346 = vpop.f32.mrf.mxu0
        %v5347 = vadd.f32 0.0, %v5346
        %v5348 = vpop.f32.mrf.mxu0
        %v5349 = vadd.f32 0.0, %v5348
        %5350 = vmatmul.bf16.gmra.mxu0 %v5317
        %v5351 = vpop.f32.mrf.mxu0
        %v5352 = vadd.f32 0.0, %v5351
        %v5353 = vpop.f32.mrf.mxu0
        %v5354 = vadd.f32 0.0, %v5353
        %5355 = vmatmul.bf16.gmra.mxu0 %v5320
        %v5356 = vpop.f32.mrf.mxu0
        %v5357 = vadd.f32 0.0, %v5356
        %v5358 = vpop.f32.mrf.mxu0
        %v5359 = vadd.f32 0.0, %v5358
        %5360 = vmatmul.bf16.gmra.mxu0 %v5323
        %v5361 = vpop.f32.mrf.mxu0
        %v5362 = vadd.f32 0.0, %v5361
        %v5363 = vpop.f32.mrf.mxu0
        %v5364 = vadd.f32 0.0, %v5363
        %5365 = vmatmul.bf16.gmra.mxu0 %v5326
        %v5366 = vpop.f32.mrf.mxu0
        %v5367 = vpop.f32.mrf.mxu0
        %5368 = vdwg.mxu0
        %v5369 = vadd.f32 %v5220, %v5339
        %v5370 = vadd.f32 %v5221, %v5342
        %v5371 = vadd.f32 %v5222, %v5344
        %v5372 = vadd.f32 %v5223, %v5347
        %v5373 = vadd.f32 %v5224, %v5349
        %v5374 = vadd.f32 %v5225, %v5352
        %v5375 = vadd.f32 %v5226, %v5354
        %v5376 = vadd.f32 %v5227, %v5357
        %v5377 = vadd.f32 %v5228, %v5359
        %v5378 = vadd.f32 %v5229, %v5362
        %v5379 = vadd.f32 %v5230, %v5364
        %v5380 = vld [vmem:[#allocation2 + $0x34] sm:$0xf]
        %s5381 = scalar_lea.vmem %s15, 64
        %v5382 = vld [vmem:[%s5381] sm:$0xf]
        %v5383 = vld [vmem:[%s5381 + $0x4] sm:$0xf]
        %v5384 = vld [vmem:[%s5381 + $0x8] sm:$0xf]
        %v5385 = vld [vmem:[%s5381 + $0xc] sm:$0xf]
        %v5387 = vunpack.c.l.b16 %v5380
        %v5388 = vpack.c.b16 %v5387, %v5387
        %v5390 = vshrl.u32 %v5275, 16
        %v5392 = vrot.slane %v5390, 1
        %v5393 = vshll.u32 %v5275, 16
        %v5395 = vrot.slane %v5393, 2
        %v5396 = vor.u32 %v5392, %v5395
        %v5398 = vshrl.u32 %v5276, 16
        %v5400 = vrot.slane %v5398, 1
        %v5401 = vshll.u32 %v5276, 16
        %v5403 = vrot.slane %v5401, 2
        %v5404 = vor.u32 %v5400, %v5403
        %v5405 = vsel %vm2363, %v5396, %v5404
        %v5407 = vshrl.u32 %v5277, 16
        %v5409 = vrot.slane %v5407, 1
        %v5410 = vshll.u32 %v5277, 16
        %v5412 = vrot.slane %v5410, 2
        %v5413 = vor.u32 %v5409, %v5412
        %v5414 = vsel %vm2363, %v5404, %v5413
        %v5416 = vshrl.u32 %v5278, 16
        %v5418 = vrot.slane %v5416, 1
        %v5419 = vshll.u32 %v5278, 16
        %v5421 = vrot.slane %v5419, 2
        %v5422 = vor.u32 %v5418, %v5421
        %v5423 = vsel %vm2363, %v5413, %v5422
        %v5425 = vshrl.u32 %v5279, 16
        %v5427 = vrot.slane %v5425, 1
        %v5428 = vshll.u32 %v5279, 16
        %v5430 = vrot.slane %v5428, 2
        %v5431 = vor.u32 %v5427, %v5430
        %v5432 = vsel %vm2363, %v5422, %v5431
        %v5434 = vshrl.u32 %v5280, 16
        %v5436 = vrot.slane %v5434, 1
        %v5437 = vshll.u32 %v5280, 16
        %v5439 = vrot.slane %v5437, 2
        %v5440 = vor.u32 %v5436, %v5439
        %v5441 = vsel %vm2363, %v5431, %v5440
        %v5443 = vshrl.u32 %v5388, 16
        %v5445 = vrot.slane %v5443, 1
        %v5446 = vshll.u32 %v5388, 16
        %v5448 = vrot.slane %v5446, 2
        %v5449 = vor.u32 %v5445, %v5448
        %v5450 = vsel %vm2363, %v5440, %v5449
        %v5455 = vunpack.c.l.b16 %v5382
        %v5456 = vunpack.c.l.b16 %v5383
        %v5457 = vunpack.c.l.b16 %v5384
        %v5458 = vunpack.c.l.b16 %v5385
        %v5459 = vpack.c.b16 %v5456, %v5455
        %v5460 = vpack.c.b16 %v5458, %v5457
        %v5464 = vsel %vm4990, %v5405, 0
        %v5467 = vsel %vm4990, %v5414, 0
        %v5470 = vsel %vm4990, %v5423, 0
        %v5473 = vsel %vm4990, %v5432, 0
        %v5476 = vsel %vm4990, %v5441, 0
        %v5479 = vsel %vm4990, %v5450, 0
        %v5482 = vsel %vm4990, %v5449, 0
        %5484 = vmatpush.bf16.msra.mxu0 0
        %5485 = vmatpush.bf16.msra.mxu0 0
        %5486 = vmatpush.bf16.msra.mxu0 0
        %5487 = vmatpush.bf16.msra.mxu0 0
        %5488 = vmatpush.bf16.msra.mxu0 0
        %5489 = vmatpush.bf16.msra.mxu0 0
        %5490 = vmatpush.bf16.msra.mxu0 %v5460
        %5491 = vmatpush.bf16.msra.mxu0 %v5459
        %5492 = vmatmul.bf16.gmra.mxu0 %v5464
        %v5493 = vpop.f32.mrf.mxu0
        %v5494 = vpop.f32.mrf.mxu0
        %v5495 = vadd.f32 0.0, %v5494
        %5496 = vmatmul.bf16.gmra.mxu0 %v5467
        %v5497 = vpop.f32.mrf.mxu0
        %v5498 = vadd.f32 0.0, %v5497
        %v5499 = vpop.f32.mrf.mxu0
        %v5500 = vadd.f32 0.0, %v5499
        %5501 = vmatmul.bf16.gmra.mxu0 %v5470
        %v5502 = vpop.f32.mrf.mxu0
        %v5503 = vadd.f32 0.0, %v5502
        %v5504 = vpop.f32.mrf.mxu0
        %v5505 = vadd.f32 0.0, %v5504
        %5506 = vmatmul.bf16.gmra.mxu0 %v5473
        %v5507 = vpop.f32.mrf.mxu0
        %v5508 = vadd.f32 0.0, %v5507
        %v5509 = vpop.f32.mrf.mxu0
        %v5510 = vadd.f32 0.0, %v5509
        %5511 = vmatmul.bf16.gmra.mxu0 %v5476
        %v5512 = vpop.f32.mrf.mxu0
        %v5513 = vadd.f32 0.0, %v5512
        %v5514 = vpop.f32.mrf.mxu0
        %v5515 = vadd.f32 0.0, %v5514
        %5516 = vmatmul.bf16.gmra.mxu0 %v5479
        %v5517 = vpop.f32.mrf.mxu0
        %v5518 = vadd.f32 0.0, %v5517
        %v5519 = vpop.f32.mrf.mxu0
        %v5520 = vadd.f32 0.0, %v5519
        %5521 = vmatmul.bf16.gmra.mxu0 %v5482
        %v5522 = vpop.f32.mrf.mxu0
        %v5523 = vpop.f32.mrf.mxu0
        %5524 = vdwg.mxu0
        %v5525 = vadd.f32 %v5369, %v5495
        %v5526 = vadd.f32 %v5370, %v5498
        %v5527 = vadd.f32 %v5371, %v5500
        %v5528 = vadd.f32 %v5372, %v5503
        %v5529 = vadd.f32 %v5373, %v5505
        %v5530 = vadd.f32 %v5374, %v5508
        %v5531 = vadd.f32 %v5375, %v5510
        %v5532 = vadd.f32 %v5376, %v5513
        %v5533 = vadd.f32 %v5377, %v5515
        %v5534 = vadd.f32 %v5378, %v5518
        %v5535 = vadd.f32 %v5379, %v5520
        %v5536 = vld [vmem:[#allocation2 + $0x4] sm:$0xc]
        %s5537 = scalar_lea.vmem %s15, 80
        %v5538 = vld [vmem:[%s5537] sm:$0xf]
        %v5539 = vld [vmem:[%s5537 + $0x4] sm:$0xf]
        %v5540 = vld [vmem:[%s5537 + $0x8] sm:$0xf]
        %v5541 = vld [vmem:[%s5537 + $0xc] sm:$0xf]
        %v5543 = vunpack.c.l.b16 %v5536
        %v5544 = vpack.c.b16 %v5263, %v5543
        %v5545 = vrot.slane %v5544, 2
        %v5546 = vrot.slane %v5276, 2
        %v5547 = vsel %vm2770, %v5545, %v5546
        %v5548 = vrot.slane %v5277, 2
        %v5549 = vsel %vm2770, %v5546, %v5548
        %v5550 = vrot.slane %v5278, 2
        %v5551 = vsel %vm2770, %v5548, %v5550
        %v5552 = vrot.slane %v5279, 2
        %v5553 = vsel %vm2770, %v5550, %v5552
        %v5554 = vrot.slane %v5280, 2
        %v5555 = vsel %vm2770, %v5552, %v5554
        %v5556 = vrot.slane %v5388, 2
        %v5557 = vsel %vm2770, %v5554, %v5556
        %v5562 = vunpack.c.l.b16 %v5538
        %v5563 = vunpack.c.l.b16 %v5539
        %v5564 = vunpack.c.l.b16 %v5540
        %v5565 = vunpack.c.l.b16 %v5541
        %v5566 = vpack.c.b16 %v5563, %v5562
        %v5567 = vpack.c.b16 %v5565, %v5564
        %v5571 = vsel %vm4990, %v5547, 0
        %v5574 = vsel %vm4990, %v5549, 0
        %v5577 = vsel %vm4990, %v5551, 0
        %v5580 = vsel %vm4990, %v5553, 0
        %v5583 = vsel %vm4990, %v5555, 0
        %v5586 = vsel %vm4990, %v5557, 0
        %v5589 = vsel %vm4990, %v5556, 0
        %5591 = vmatpush.bf16.msra.mxu0 0
        %5592 = vmatpush.bf16.msra.mxu0 0
        %5593 = vmatpush.bf16.msra.mxu0 0
        %5594 = vmatpush.bf16.msra.mxu0 0
        %5595 = vmatpush.bf16.msra.mxu0 0
        %5596 = vmatpush.bf16.msra.mxu0 0
        %5597 = vmatpush.bf16.msra.mxu0 %v5567
        %5598 = vmatpush.bf16.msra.mxu0 %v5566
        %5599 = vmatmul.bf16.gmra.mxu0 %v5571
        %v5600 = vpop.f32.mrf.mxu0
        %v5601 = vpop.f32.mrf.mxu0
        %v5602 = vadd.f32 0.0, %v5601
        %5603 = vmatmul.bf16.gmra.mxu0 %v5574
        %v5604 = vpop.f32.mrf.mxu0
        %v5605 = vadd.f32 0.0, %v5604
        %v5606 = vpop.f32.mrf.mxu0
        %v5607 = vadd.f32 0.0, %v5606
        %5608 = vmatmul.bf16.gmra.mxu0 %v5577
        %v5609 = vpop.f32.mrf.mxu0
        %v5610 = vadd.f32 0.0, %v5609
        %v5611 = vpop.f32.mrf.mxu0
        %v5612 = vadd.f32 0.0, %v5611
        %5613 = vmatmul.bf16.gmra.mxu0 %v5580
        %v5614 = vpop.f32.mrf.mxu0
        %v5615 = vadd.f32 0.0, %v5614
        %v5616 = vpop.f32.mrf.mxu0
        %v5617 = vadd.f32 0.0, %v5616
        %5618 = vmatmul.bf16.gmra.mxu0 %v5583
        %v5619 = vpop.f32.mrf.mxu0
        %v5620 = vadd.f32 0.0, %v5619
        %v5621 = vpop.f32.mrf.mxu0
        %v5622 = vadd.f32 0.0, %v5621
        %5623 = vmatmul.bf16.gmra.mxu0 %v5586
        %v5624 = vpop.f32.mrf.mxu0
        %v5625 = vadd.f32 0.0, %v5624
        %v5626 = vpop.f32.mrf.mxu0
        %v5627 = vadd.f32 0.0, %v5626
        %5628 = vmatmul.bf16.gmra.mxu0 %v5589
        %v5629 = vpop.f32.mrf.mxu0
        %v5630 = vpop.f32.mrf.mxu0
        %5631 = vdwg.mxu0
        %v5632 = vadd.f32 %v5525, %v5602
        %v5633 = vadd.f32 %v5526, %v5605
        %v5634 = vadd.f32 %v5527, %v5607
        %v5635 = vadd.f32 %v5528, %v5610
        %v5636 = vadd.f32 %v5529, %v5612
        %v5637 = vadd.f32 %v5530, %v5615
        %v5638 = vadd.f32 %v5531, %v5617
        %v5639 = vadd.f32 %v5532, %v5620
        %v5640 = vadd.f32 %v5533, %v5622
        %v5641 = vadd.f32 %v5534, %v5625
        %v5642 = vadd.f32 %v5535, %v5627
        %v5643 = vld [vmem:[#allocation2 + $0x8] sm:$0xc]
        %v5644 = vld [vmem:[#allocation2 + $0xc] sm:$0xf]
        %v5645 = vld [vmem:[#allocation2 + $0x10] sm:$0xf]
        %v5646 = vld [vmem:[#allocation2 + $0x14] sm:$0xf]
        %v5647 = vld [vmem:[#allocation2 + $0x18] sm:$0xf]
        %v5648 = vld [vmem:[#allocation2 + $0x1c] sm:$0xf]
        %v5649 = vld [vmem:[#allocation2 + $0x20] sm:$0xf]
        %v5650 = vld [vmem:[#allocation2 + $0x24] sm:$0xf]
        %v5651 = vld [vmem:[#allocation2 + $0x28] sm:$0xf]
        %v5652 = vld [vmem:[#allocation2 + $0x2c] sm:$0xf]
        %v5653 = vld [vmem:[#allocation2 + $0x30] sm:$0xf]
        %v5654 = vld [vmem:[#allocation2 + $0x34] sm:$0xf]
        %v5655 = vld [vmem:[#allocation2 + $0x38] sm:$0xf]
        %s5656 = scalar_lea.vmem %s15, 96
        %v5657 = vld [vmem:[%s5656] sm:$0xf]
        %v5658 = vld [vmem:[%s5656 + $0x4] sm:$0xf]
        %v5659 = vld [vmem:[%s5656 + $0x8] sm:$0xf]
        %v5660 = vld [vmem:[%s5656 + $0xc] sm:$0xf]
        %v5674 = vunpack.c.l.b16 %v5643
        %v5675 = vunpack.c.l.b16 %v5644
        %v5676 = vunpack.c.l.b16 %v5645
        %v5677 = vunpack.c.l.b16 %v5646
        %v5678 = vunpack.c.l.b16 %v5647
        %v5679 = vunpack.c.l.b16 %v5648
        %v5680 = vunpack.c.l.b16 %v5649
        %v5681 = vunpack.c.l.b16 %v5650
        %v5682 = vunpack.c.l.b16 %v5651
        %v5683 = vunpack.c.l.b16 %v5652
        %v5684 = vunpack.c.l.b16 %v5653
        %v5685 = vunpack.c.l.b16 %v5654
        %v5686 = vunpack.c.l.b16 %v5655
        %v5687 = vpack.c.b16 %v5675, %v5674
        %v5688 = vpack.c.b16 %v5677, %v5676
        %v5689 = vpack.c.b16 %v5679, %v5678
        %v5690 = vpack.c.b16 %v5681, %v5680
        %v5691 = vpack.c.b16 %v5683, %v5682
        %v5692 = vpack.c.b16 %v5685, %v5684
        %v5693 = vpack.c.b16 %v5686, %v5686
        %v5694 = vrot.slane %v5687, 2
        %v5695 = vrot.slane %v5688, 2
        %v5696 = vsel %vm2770, %v5694, %v5695
        %v5697 = vrot.slane %v5689, 2
        %v5698 = vsel %vm2770, %v5695, %v5697
        %v5699 = vrot.slane %v5690, 2
        %v5700 = vsel %vm2770, %v5697, %v5699
        %v5701 = vrot.slane %v5691, 2
        %v5702 = vsel %vm2770, %v5699, %v5701
        %v5703 = vrot.slane %v5692, 2
        %v5704 = vsel %vm2770, %v5701, %v5703
        %v5705 = vrot.slane %v5693, 2
        %v5706 = vsel %vm2770, %v5703, %v5705
        %v5711 = vunpack.c.l.b16 %v5657
        %v5712 = vunpack.c.l.b16 %v5658
        %v5713 = vunpack.c.l.b16 %v5659
        %v5714 = vunpack.c.l.b16 %v5660
        %v5715 = vpack.c.b16 %v5712, %v5711
        %v5716 = vpack.c.b16 %v5714, %v5713
        %v5720 = vsel %vm4990, %v5696, 0
        %v5723 = vsel %vm4990, %v5698, 0
        %v5726 = vsel %vm4990, %v5700, 0
        %v5729 = vsel %vm4990, %v5702, 0
        %v5732 = vsel %vm4990, %v5704, 0
        %v5735 = vsel %vm4990, %v5706, 0
        %v5738 = vsel %vm4990, %v5705, 0
        %5740 = vmatpush.bf16.msra.mxu0 0
        %5741 = vmatpush.bf16.msra.mxu0 0
        %5742 = vmatpush.bf16.msra.mxu0 0
        %5743 = vmatpush.bf16.msra.mxu0 0
        %5744 = vmatpush.bf16.msra.mxu0 0
        %5745 = vmatpush.bf16.msra.mxu0 0
        %5746 = vmatpush.bf16.msra.mxu0 %v5716
        %5747 = vmatpush.bf16.msra.mxu0 %v5715
        %5748 = vmatmul.bf16.gmra.mxu0 %v5720
        %v5749 = vpop.f32.mrf.mxu0
        %v5750 = vpop.f32.mrf.mxu0
        %v5751 = vadd.f32 0.0, %v5750
        %5752 = vmatmul.bf16.gmra.mxu0 %v5723
        %v5753 = vpop.f32.mrf.mxu0
        %v5754 = vadd.f32 0.0, %v5753
        %v5755 = vpop.f32.mrf.mxu0
        %v5756 = vadd.f32 0.0, %v5755
        %5757 = vmatmul.bf16.gmra.mxu0 %v5726
        %v5758 = vpop.f32.mrf.mxu0
        %v5759 = vadd.f32 0.0, %v5758
        %v5760 = vpop.f32.mrf.mxu0
        %v5761 = vadd.f32 0.0, %v5760
        %5762 = vmatmul.bf16.gmra.mxu0 %v5729
        %v5763 = vpop.f32.mrf.mxu0
        %v5764 = vadd.f32 0.0, %v5763
        %v5765 = vpop.f32.mrf.mxu0
        %v5766 = vadd.f32 0.0, %v5765
        %5767 = vmatmul.bf16.gmra.mxu0 %v5732
        %v5768 = vpop.f32.mrf.mxu0
        %v5769 = vadd.f32 0.0, %v5768
        %v5770 = vpop.f32.mrf.mxu0
        %v5771 = vadd.f32 0.0, %v5770
        %5772 = vmatmul.bf16.gmra.mxu0 %v5735
        %v5773 = vpop.f32.mrf.mxu0
        %v5774 = vadd.f32 0.0, %v5773
        %v5775 = vpop.f32.mrf.mxu0
        %v5776 = vadd.f32 0.0, %v5775
        %5777 = vmatmul.bf16.gmra.mxu0 %v5738
        %v5778 = vpop.f32.mrf.mxu0
        %v5779 = vpop.f32.mrf.mxu0
        %5780 = vdwg.mxu0
        %v5781 = vadd.f32 %v5632, %v5751
        %v5782 = vadd.f32 %v5633, %v5754
        %v5783 = vadd.f32 %v5634, %v5756
        %v5784 = vadd.f32 %v5635, %v5759
        %v5785 = vadd.f32 %v5636, %v5761
        %v5786 = vadd.f32 %v5637, %v5764
        %v5787 = vadd.f32 %v5638, %v5766
        %v5788 = vadd.f32 %v5639, %v5769
        %v5789 = vadd.f32 %v5640, %v5771
        %v5790 = vadd.f32 %v5641, %v5774
        %v5791 = vadd.f32 %v5642, %v5776
        %v5792 = vld [vmem:[#allocation2 + $0x8] sm:$0xc]
        %v5793 = vld [vmem:[#allocation2 + $0xc] sm:$0xf]
        %v5794 = vld [vmem:[#allocation2 + $0x10] sm:$0xf]
        %v5795 = vld [vmem:[#allocation2 + $0x14] sm:$0xf]
        %v5796 = vld [vmem:[#allocation2 + $0x18] sm:$0xf]
        %v5797 = vld [vmem:[#allocation2 + $0x1c] sm:$0xf]
        %v5798 = vld [vmem:[#allocation2 + $0x20] sm:$0xf]
        %v5799 = vld [vmem:[#allocation2 + $0x24] sm:$0xf]
        %v5800 = vld [vmem:[#allocation2 + $0x28] sm:$0xf]
        %v5801 = vld [vmem:[#allocation2 + $0x2c] sm:$0xf]
        %v5802 = vld [vmem:[#allocation2 + $0x30] sm:$0xf]
        %v5803 = vld [vmem:[#allocation2 + $0x34] sm:$0xf]
        %v5804 = vld [vmem:[#allocation2 + $0x38] sm:$0xf]
        %v5805 = vld [vmem:[#allocation2 + $0x3c] sm:$0x1]
        %s5806 = scalar_lea.vmem %s15, 112
        %v5807 = vld [vmem:[%s5806] sm:$0xf]
        %v5808 = vld [vmem:[%s5806 + $0x4] sm:$0xf]
        %v5809 = vld [vmem:[%s5806 + $0x8] sm:$0xf]
        %v5810 = vld [vmem:[%s5806 + $0xc] sm:$0xf]
        %v5825 = vunpack.c.l.b16 %v5792
        %v5826 = vunpack.c.l.b16 %v5793
        %v5827 = vunpack.c.l.b16 %v5794
        %v5828 = vunpack.c.l.b16 %v5795
        %v5829 = vunpack.c.l.b16 %v5796
        %v5830 = vunpack.c.l.b16 %v5797
        %v5831 = vunpack.c.l.b16 %v5798
        %v5832 = vunpack.c.l.b16 %v5799
        %v5833 = vunpack.c.l.b16 %v5800
        %v5834 = vunpack.c.l.b16 %v5801
        %v5835 = vunpack.c.l.b16 %v5802
        %v5836 = vunpack.c.l.b16 %v5803
        %v5837 = vunpack.c.l.b16 %v5804
        %v5838 = vunpack.c.l.b16 %v5805
        %v5839 = vpack.c.b16 %v5826, %v5825
        %v5840 = vpack.c.b16 %v5828, %v5827
        %v5841 = vpack.c.b16 %v5830, %v5829
        %v5842 = vpack.c.b16 %v5832, %v5831
        %v5843 = vpack.c.b16 %v5834, %v5833
        %v5844 = vpack.c.b16 %v5836, %v5835
        %v5845 = vpack.c.b16 %v5838, %v5837
        %v5847 = vshrl.u32 %v5839, 16
        %v5849 = vrot.slane %v5847, 2
        %v5850 = vshll.u32 %v5839, 16
        %v5852 = vrot.slane %v5850, 3
        %v5853 = vor.u32 %v5849, %v5852
        %v5855 = vshrl.u32 %v5840, 16
        %v5857 = vrot.slane %v5855, 2
        %v5858 = vshll.u32 %v5840, 16
        %v5860 = vrot.slane %v5858, 3
        %v5861 = vor.u32 %v5857, %v5860
        %v5862 = vsel %vm3572, %v5853, %v5861
        %v5864 = vshrl.u32 %v5841, 16
        %v5866 = vrot.slane %v5864, 2
        %v5867 = vshll.u32 %v5841, 16
        %v5869 = vrot.slane %v5867, 3
        %v5870 = vor.u32 %v5866, %v5869
        %v5871 = vsel %vm3572, %v5861, %v5870
        %v5873 = vshrl.u32 %v5842, 16
        %v5875 = vrot.slane %v5873, 2
        %v5876 = vshll.u32 %v5842, 16
        %v5878 = vrot.slane %v5876, 3
        %v5879 = vor.u32 %v5875, %v5878
        %v5880 = vsel %vm3572, %v5870, %v5879
        %v5882 = vshrl.u32 %v5843, 16
        %v5884 = vrot.slane %v5882, 2
        %v5885 = vshll.u32 %v5843, 16
        %v5887 = vrot.slane %v5885, 3
        %v5888 = vor.u32 %v5884, %v5887
        %v5889 = vsel %vm3572, %v5879, %v5888
        %v5891 = vshrl.u32 %v5844, 16
        %v5893 = vrot.slane %v5891, 2
        %v5894 = vshll.u32 %v5844, 16
        %v5896 = vrot.slane %v5894, 3
        %v5897 = vor.u32 %v5893, %v5896
        %v5898 = vsel %vm3572, %v5888, %v5897
        %v5900 = vshrl.u32 %v5845, 16
        %v5902 = vrot.slane %v5900, 2
        %v5903 = vshll.u32 %v5845, 16
        %v5905 = vrot.slane %v5903, 3
        %v5906 = vor.u32 %v5902, %v5905
        %v5907 = vsel %vm3572, %v5897, %v5906
        %v5912 = vunpack.c.l.b16 %v5807
        %v5913 = vunpack.c.l.b16 %v5808
        %v5914 = vunpack.c.l.b16 %v5809
        %v5915 = vunpack.c.l.b16 %v5810
        %v5916 = vpack.c.b16 %v5913, %v5912
        %v5917 = vpack.c.b16 %v5915, %v5914
        %v5921 = vsel %vm4990, %v5862, 0
        %v5924 = vsel %vm4990, %v5871, 0
        %v5927 = vsel %vm4990, %v5880, 0
        %v5930 = vsel %vm4990, %v5889, 0
        %v5933 = vsel %vm4990, %v5898, 0
        %v5936 = vsel %vm4990, %v5907, 0
        %v5939 = vsel %vm4990, %v5906, 0
        %5941 = vmatpush.bf16.msra.mxu0 0
        %5942 = vmatpush.bf16.msra.mxu0 0
        %5943 = vmatpush.bf16.msra.mxu0 0
        %5944 = vmatpush.bf16.msra.mxu0 0
        %5945 = vmatpush.bf16.msra.mxu0 0
        %5946 = vmatpush.bf16.msra.mxu0 0
        %5947 = vmatpush.bf16.msra.mxu0 %v5917
        %5948 = vmatpush.bf16.msra.mxu0 %v5916
        %5949 = vmatmul.bf16.gmra.mxu0 %v5921
        %v5950 = vpop.f32.mrf.mxu0
        %v5951 = vpop.f32.mrf.mxu0
        %v5952 = vadd.f32 0.0, %v5951
        %5953 = vmatmul.bf16.gmra.mxu0 %v5924
        %v5954 = vpop.f32.mrf.mxu0
        %v5955 = vadd.f32 0.0, %v5954
        %v5956 = vpop.f32.mrf.mxu0
        %v5957 = vadd.f32 0.0, %v5956
        %5958 = vmatmul.bf16.gmra.mxu0 %v5927
        %v5959 = vpop.f32.mrf.mxu0
        %v5960 = vadd.f32 0.0, %v5959
        %v5961 = vpop.f32.mrf.mxu0
        %v5962 = vadd.f32 0.0, %v5961
        %5963 = vmatmul.bf16.gmra.mxu0 %v5930
        %v5964 = vpop.f32.mrf.mxu0
        %v5965 = vadd.f32 0.0, %v5964
        %v5966 = vpop.f32.mrf.mxu0
        %v5967 = vadd.f32 0.0, %v5966
        %5968 = vmatmul.bf16.gmra.mxu0 %v5933
        %v5969 = vpop.f32.mrf.mxu0
        %v5970 = vadd.f32 0.0, %v5969
        %v5971 = vpop.f32.mrf.mxu0
        %v5972 = vadd.f32 0.0, %v5971
        %5973 = vmatmul.bf16.gmra.mxu0 %v5936
        %v5974 = vpop.f32.mrf.mxu0
        %v5975 = vadd.f32 0.0, %v5974
        %v5976 = vpop.f32.mrf.mxu0
        %v5977 = vadd.f32 0.0, %v5976
        %5978 = vmatmul.bf16.gmra.mxu0 %v5939
        %v5979 = vpop.f32.mrf.mxu0
        %v5980 = vpop.f32.mrf.mxu0
        %5981 = vdwg.mxu0
        %v5982 = vadd.f32 %v5781, %v5952
        %v5983 = vadd.f32 %v5782, %v5955
        %v5984 = vadd.f32 %v5783, %v5957
        %v5985 = vadd.f32 %v5784, %v5960
        %v5986 = vadd.f32 %v5785, %v5962
        %v5987 = vadd.f32 %v5786, %v5965
        %v5988 = vadd.f32 %v5787, %v5967
        %v5989 = vadd.f32 %v5788, %v5970
        %v5990 = vadd.f32 %v5789, %v5972
        %v5991 = vadd.f32 %v5790, %v5975
        %v5992 = vadd.f32 %v5791, %v5977
        %v5993 = vld [vmem:[#allocation2 + $0x8] sm:$0x8]
        %s5994 = scalar_lea.vmem %s15, 128
        %v5995 = vld [vmem:[%s5994] sm:$0xf]
        %v5996 = vld [vmem:[%s5994 + $0x4] sm:$0xf]
        %v5997 = vld [vmem:[%s5994 + $0x8] sm:$0xf]
        %v5998 = vld [vmem:[%s5994 + $0xc] sm:$0xf]
        %v6000 = vunpack.c.l.b16 %v5993
        %v6001 = vpack.c.b16 %v5826, %v6000
        %v6002 = vrot.slane %v6001, 3
        %v6003 = vrot.slane %v5840, 3
        %v6004 = vsel %vm3979, %v6002, %v6003
        %v6005 = vrot.slane %v5841, 3
        %v6006 = vsel %vm3979, %v6003, %v6005
        %v6007 = vrot.slane %v5842, 3
        %v6008 = vsel %vm3979, %v6005, %v6007
        %v6009 = vrot.slane %v5843, 3
        %v6010 = vsel %vm3979, %v6007, %v6009
        %v6011 = vrot.slane %v5844, 3
        %v6012 = vsel %vm3979, %v6009, %v6011
        %v6013 = vrot.slane %v5845, 3
        %v6014 = vsel %vm3979, %v6011, %v6013
        %v6019 = vunpack.c.l.b16 %v5995
        %v6020 = vunpack.c.l.b16 %v5996
        %v6021 = vunpack.c.l.b16 %v5997
        %v6022 = vunpack.c.l.b16 %v5998
        %v6023 = vpack.c.b16 %v6020, %v6019
        %v6024 = vpack.c.b16 %v6022, %v6021
        %v6028 = vsel %vm4990, %v6004, 0
        %v6031 = vsel %vm4990, %v6006, 0
        %v6034 = vsel %vm4990, %v6008, 0
        %v6037 = vsel %vm4990, %v6010, 0
        %v6040 = vsel %vm4990, %v6012, 0
        %v6043 = vsel %vm4990, %v6014, 0
        %v6046 = vsel %vm4990, %v6013, 0
        %6048 = vmatpush.bf16.msra.mxu0 0
        %6049 = vmatpush.bf16.msra.mxu0 0
        %6050 = vmatpush.bf16.msra.mxu0 0
        %6051 = vmatpush.bf16.msra.mxu0 0
        %6052 = vmatpush.bf16.msra.mxu0 0
        %6053 = vmatpush.bf16.msra.mxu0 0
        %6054 = vmatpush.bf16.msra.mxu0 %v6024
        %6055 = vmatpush.bf16.msra.mxu0 %v6023
        %6056 = vmatmul.bf16.gmra.mxu0 %v6028
        %v6057 = vpop.f32.mrf.mxu0
        %v6058 = vpop.f32.mrf.mxu0
        %v6059 = vadd.f32 0.0, %v6058
        %6060 = vmatmul.bf16.gmra.mxu0 %v6031
        %v6061 = vpop.f32.mrf.mxu0
        %v6062 = vadd.f32 0.0, %v6061
        %v6063 = vpop.f32.mrf.mxu0
        %v6064 = vadd.f32 0.0, %v6063
        %6065 = vmatmul.bf16.gmra.mxu0 %v6034
        %v6066 = vpop.f32.mrf.mxu0
        %v6067 = vadd.f32 0.0, %v6066
        %v6068 = vpop.f32.mrf.mxu0
        %v6069 = vadd.f32 0.0, %v6068
        %6070 = vmatmul.bf16.gmra.mxu0 %v6037
        %v6071 = vpop.f32.mrf.mxu0
        %v6072 = vadd.f32 0.0, %v6071
        %v6073 = vpop.f32.mrf.mxu0
        %v6074 = vadd.f32 0.0, %v6073
        %6075 = vmatmul.bf16.gmra.mxu0 %v6040
        %v6076 = vpop.f32.mrf.mxu0
        %v6077 = vadd.f32 0.0, %v6076
        %v6078 = vpop.f32.mrf.mxu0
        %v6079 = vadd.f32 0.0, %v6078
        %6080 = vmatmul.bf16.gmra.mxu0 %v6043
        %v6081 = vpop.f32.mrf.mxu0
        %v6082 = vadd.f32 0.0, %v6081
        %v6083 = vpop.f32.mrf.mxu0
        %v6084 = vadd.f32 0.0, %v6083
        %6085 = vmatmul.bf16.gmra.mxu0 %v6046
        %v6086 = vpop.f32.mrf.mxu0
        %v6087 = vpop.f32.mrf.mxu0
        %6088 = vdwg.mxu0
        %v6089 = vadd.f32 %v5982, %v6059
        %v6090 = vadd.f32 %v5983, %v6062
        %v6091 = vadd.f32 %v5984, %v6064
        %v6092 = vadd.f32 %v5985, %v6067
        %v6093 = vadd.f32 %v5986, %v6069
        %v6094 = vadd.f32 %v5987, %v6072
        %v6095 = vadd.f32 %v5988, %v6074
        %v6096 = vadd.f32 %v5989, %v6077
        %v6097 = vadd.f32 %v5990, %v6079
        %v6098 = vadd.f32 %v5991, %v6082
        %v6099 = vadd.f32 %v5992, %v6084
        %v6100 = vld [vmem:[%s17] sm:$0x1]
        %v6102 = vperm.slane %v6100, 0
        %v6104 = vadd.f32 %v6089, %v6102
        %v6105 = vadd.f32 %v6090, %v6102
        %v6106 = vadd.f32 %v6091, %v6102
        %v6107 = vadd.f32 %v6092, %v6102
        %v6108 = vadd.f32 %v6093, %v6102
        %v6109 = vadd.f32 %v6094, %v6102
        %v6110 = vadd.f32 %v6095, %v6102
        %v6111 = vadd.f32 %v6096, %v6102
        %v6112 = vadd.f32 %v6097, %v6102
        %v6113 = vadd.f32 %v6098, %v6102
        %v6114 = vadd.f32 %v6099, %v6102
        %v6115 = vmax.f32 %v6104, 0.0
        %v6116 = vmax.f32 %v6105, 0.0
        %v6117 = vmax.f32 %v6106, 0.0
        %v6118 = vmax.f32 %v6107, 0.0
        %v6119 = vmax.f32 %v6108, 0.0
        %v6120 = vmax.f32 %v6109, 0.0
        %v6121 = vmax.f32 %v6110, 0.0
        %v6122 = vmax.f32 %v6111, 0.0
        %v6123 = vmax.f32 %v6112, 0.0
        %v6124 = vmax.f32 %v6113, 0.0
        %v6125 = vmax.f32 %v6114, 0.0
        %v6126 = vld [vmem:[%s3] sm:$0x3]
        %v6127 = vld [vmem:[%s5] sm:$0x3]
        %v6130 = vrot.slane %v6116, 2
        %v6131 = vrot.slane %v6117, 2
        %v6132 = vsel %vm4316, %v6130, %v6131
        %v6135 = vmax.f32 %v6115, %v6132
        %v6136 = vmax.f32 %v6116, %v6131
        %v6137 = vpack.c.bf16 %v6136, %v6135
        %v6139 = vshrl.u32 %v6137, 16
        %v6141 = vrot.slane %v6139, 1
        %v6142 = vshll.u32 %v6137, 16
        %v6144 = vrot.slane %v6142, 2
        %v6145 = vor.u32 %v6141, %v6144
        %vm6146 = vcmask 64512
        %v6148 = vsel %vm6146, %v6126, 0
        %vm6150 = vcmask 1043456
        %v6152 = vsel %vm6150, %v6145, 0
        %6154 = vmatpush.bf16.msra.mxu0 0
        %6155 = vmatpush.bf16.msra.mxu0 0
        %6156 = vmatpush.bf16.msra.mxu0 0
        %6157 = vmatpush.bf16.msra.mxu0 0
        %6158 = vmatpush.bf16.msra.mxu0 0
        %6159 = vmatpush.bf16.msra.mxu0 0
        %6160 = vmatpush.bf16.msra.mxu0 0
        %6161 = vmatpush.bf16.msra.mxu0 %v6152
        %6162 = vmatmul.bf16.gmra.mxu0 %v6148
        %v6163 = vpop.f32.mrf.mxu0
        %v6164 = vadd.f32 0.0, %v6163
        %v6165 = vpop.f32.mrf.mxu0
        %6166 = vdwg.mxu0
        %v6168 = vsel %vm6146, %v6127, 0
        %6170 = vmatpush.bf16.msra.mxu0 0
        %6171 = vmatpush.bf16.msra.mxu0 0
        %6172 = vmatpush.bf16.msra.mxu0 0
        %6173 = vmatpush.bf16.msra.mxu0 0
        %6174 = vmatpush.bf16.msra.mxu0 0
        %6175 = vmatpush.bf16.msra.mxu0 0
        %6176 = vmatpush.bf16.msra.mxu0 0
        %6177 = vmatpush.bf16.msra.mxu0 %v6152
        %6178 = vmatmul.bf16.gmra.mxu0 %v6168
        %v6179 = vpop.f32.mrf.mxu0
        %v6180 = vadd.f32 0.0, %v6179
        %v6181 = vpop.f32.mrf.mxu0
        %6182 = vdwg.mxu0
        %v6183 = vmax.f32 %v6164, %v6180
        %v6184 = vpack.c.bf16 %v6183, %v6183
        %v6186 = vrot.slane %v6184, 5
        %v6187 = vrot.slane %v6186, 4
        %vm6190 = vcmask 125955
        %6191 = vst.msk [vmem:[#allocation3 + $0x4] sm:$0x8] %vm6190, %v6186
        %vm6192 = vcmask 122880
        %6193 = vst.msk [vmem:[#allocation3 + $0x8] sm:$0x1] %vm6192, %v6187
        %v6196 = vrot.slane %v6119, 2
        %v6197 = vrot.slane %v6120, 2
        %v6198 = vsel %vm4316, %v6196, %v6197
        %v6201 = vmax.f32 %v6117, %v6196
        %v6202 = vmax.f32 %v6118, %v6198
        %v6203 = vpack.c.bf16 %v6202, %v6201
        %v6205 = vshrl.u32 %v6203, 16
        %v6207 = vrot.slane %v6205, 3
        %v6208 = vshll.u32 %v6203, 16
        %v6210 = vrot.slane %v6208, 4
        %v6211 = vor.u32 %v6207, %v6210
        %v6213 = vsel %vm6150, %v6211, 0
        %6215 = vmatpush.bf16.msra.mxu0 0
        %6216 = vmatpush.bf16.msra.mxu0 0
        %6217 = vmatpush.bf16.msra.mxu0 0
        %6218 = vmatpush.bf16.msra.mxu0 0
        %6219 = vmatpush.bf16.msra.mxu0 0
        %6220 = vmatpush.bf16.msra.mxu0 0
        %6221 = vmatpush.bf16.msra.mxu0 0
        %6222 = vmatpush.bf16.msra.mxu0 %v6213
        %6223 = vmatmul.bf16.gmra.mxu0 %v6148
        %v6224 = vpop.f32.mrf.mxu0
        %v6225 = vadd.f32 0.0, %v6224
        %v6226 = vpop.f32.mrf.mxu0
        %6227 = vdwg.mxu0
        %6228 = vmatpush.bf16.msra.mxu0 0
        %6229 = vmatpush.bf16.msra.mxu0 0
        %6230 = vmatpush.bf16.msra.mxu0 0
        %6231 = vmatpush.bf16.msra.mxu0 0
        %6232 = vmatpush.bf16.msra.mxu0 0
        %6233 = vmatpush.bf16.msra.mxu0 0
        %6234 = vmatpush.bf16.msra.mxu0 0
        %6235 = vmatpush.bf16.msra.mxu0 %v6213
        %6236 = vmatmul.bf16.gmra.mxu0 %v6168
        %v6237 = vpop.f32.mrf.mxu0
        %v6238 = vadd.f32 0.0, %v6237
        %v6239 = vpop.f32.mrf.mxu0
        %6240 = vdwg.mxu0
        %v6241 = vmax.f32 %v6225, %v6238
        %v6242 = vpack.c.bf16 %v6241, %v6241
        %v6244 = vrot.slane %v6242, 6
        %vm6246 = vcmask 125954
        %6247 = vst.msk [vmem:[#allocation3 + $0x8] sm:$0xc] %vm6246, %v6244
        %v6250 = vrot.slane %v6121, 2
        %v6251 = vrot.slane %v6122, 2
        %v6252 = vsel %vm4316, %v6250, %v6251
        %v6255 = vmax.f32 %v6120, %v6252
        %v6256 = vmax.f32 %v6121, %v6251
        %v6257 = vpack.c.bf16 %v6256, %v6255
        %v6259 = vshrl.u32 %v6257, 16
        %v6261 = vrot.slane %v6259, 1
        %v6262 = vshll.u32 %v6257, 16
        %v6264 = vrot.slane %v6262, 2
        %v6265 = vor.u32 %v6261, %v6264
        %v6267 = vsel %vm6150, %v6265, 0
        %6269 = vmatpush.bf16.msra.mxu0 0
        %6270 = vmatpush.bf16.msra.mxu0 0
        %6271 = vmatpush.bf16.msra.mxu0 0
        %6272 = vmatpush.bf16.msra.mxu0 0
        %6273 = vmatpush.bf16.msra.mxu0 0
        %6274 = vmatpush.bf16.msra.mxu0 0
        %6275 = vmatpush.bf16.msra.mxu0 0
        %6276 = vmatpush.bf16.msra.mxu0 %v6267
        %6277 = vmatmul.bf16.gmra.mxu0 %v6148
        %v6278 = vpop.f32.mrf.mxu0
        %v6279 = vadd.f32 0.0, %v6278
        %v6280 = vpop.f32.mrf.mxu0
        %6281 = vdwg.mxu0
        %6282 = vmatpush.bf16.msra.mxu0 0
        %6283 = vmatpush.bf16.msra.mxu0 0
        %6284 = vmatpush.bf16.msra.mxu0 0
        %6285 = vmatpush.bf16.msra.mxu0 0
        %6286 = vmatpush.bf16.msra.mxu0 0
        %6287 = vmatpush.bf16.msra.mxu0 0
        %6288 = vmatpush.bf16.msra.mxu0 0
        %6289 = vmatpush.bf16.msra.mxu0 %v6267
        %6290 = vmatmul.bf16.gmra.mxu0 %v6168
        %v6291 = vpop.f32.mrf.mxu0
        %v6292 = vadd.f32 0.0, %v6291
        %v6293 = vpop.f32.mrf.mxu0
        %6294 = vdwg.mxu0
        %v6295 = vmax.f32 %v6279, %v6292
        %v6296 = vpack.c.bf16 %v6295, %v6295
        %v6298 = vrot.slane %v6296, 7
        %vm6300 = vcmask 124929
        %6301 = vst.msk [vmem:[#allocation3 + $0xc] sm:$0x6] %vm6300, %v6298
        %v6304 = vrot.slane %v6124, 2
        %v6305 = vrot.slane %v6125, 2
        %v6306 = vsel %vm4316, %v6304, %v6305
        %v6309 = vmax.f32 %v6122, %v6304
        %v6310 = vmax.f32 %v6123, %v6306
        %v6311 = vpack.c.bf16 %v6310, %v6309
        %v6313 = vshrl.u32 %v6311, 16
        %v6315 = vrot.slane %v6313, 3
        %v6316 = vshll.u32 %v6311, 16
        %v6318 = vrot.slane %v6316, 4
        %v6319 = vor.u32 %v6315, %v6318
        %v6321 = vsel %vm6150, %v6319, 0
        %6323 = vmatpush.bf16.msra.mxu0 0
        %6324 = vmatpush.bf16.msra.mxu0 0
        %6325 = vmatpush.bf16.msra.mxu0 0
        %6326 = vmatpush.bf16.msra.mxu0 0
        %6327 = vmatpush.bf16.msra.mxu0 0
        %6328 = vmatpush.bf16.msra.mxu0 0
        %6329 = vmatpush.bf16.msra.mxu0 0
        %6330 = vmatpush.bf16.msra.mxu0 %v6321
        %6331 = vmatmul.bf16.gmra.mxu0 %v6148
        %v6332 = vpop.f32.mrf.mxu0
        %v6333 = vadd.f32 0.0, %v6332
        %v6334 = vpop.f32.mrf.mxu0
        %6335 = vdwg.mxu0
        %6336 = vmatpush.bf16.msra.mxu0 0
        %6337 = vmatpush.bf16.msra.mxu0 0
        %6338 = vmatpush.bf16.msra.mxu0 0
        %6339 = vmatpush.bf16.msra.mxu0 0
        %6340 = vmatpush.bf16.msra.mxu0 0
        %6341 = vmatpush.bf16.msra.mxu0 0
        %6342 = vmatpush.bf16.msra.mxu0 0
        %6343 = vmatpush.bf16.msra.mxu0 %v6321
        %6344 = vmatmul.bf16.gmra.mxu0 %v6168
        %v6345 = vpop.f32.mrf.mxu0
        %v6346 = vadd.f32 0.0, %v6345
        %v6347 = vpop.f32.mrf.mxu0
        %6348 = vdwg.mxu0
        %v6349 = vmax.f32 %v6333, %v6346
        %v6350 = vpack.c.bf16 %v6349, %v6349
        %vm6351 = vcmask 123904
        %6352 = vst.msk [vmem:[#allocation3 + $0x10] sm:$0x3] %vm6351, %v6350
        %v6353 = vld [vmem:[%s7] sm:$0xff]
        %v6354 = vld [vmem:[%s7 + $0x8] sm:$0xff]
        %v6355 = vld [vmem:[%s7 + $0x10] sm:$0xff]
        %v6356 = vld [vmem:[%s7 + $0x18] sm:$0xff]
        %v6357 = vld [vmem:[%s7 + $0x20] sm:$0xf]
        %v6358 = vld [vmem:[#allocation3] sm:$0x8]
        %v6359 = vld [vmem:[#allocation3 + $0x4] sm:$0xf]
        %v6360 = vld [vmem:[#allocation3 + $0x8] sm:$0xf]
        %v6361 = vld [vmem:[#allocation3 + $0xc] sm:$0xf]
        %v6362 = vld [vmem:[#allocation3 + $0x10] sm:$0xf]
        %v6363 = vld [vmem:[#allocation3 + $0x14] sm:$0x3]
        %v6364 = vld [vmem:[%s19] sm:$0xf]
        %v6365 = vld [vmem:[%s19 + $0x4] sm:$0xf]
        %v6366 = vld [vmem:[%s21] sm:$0x1]
        %v6368 = vperm.slane %v6366, 0
        %v6376 = vunpack.c.l.b16 %v6358
        %v6377 = vunpack.c.l.b16 %v6359
        %v6378 = vunpack.c.l.b16 %v6360
        %v6379 = vunpack.c.l.b16 %v6361
        %v6380 = vunpack.c.l.b16 %v6362
        %v6381 = vunpack.c.l.b16 %v6363
        %v6382 = vpack.c.b16 %v6377, %v6376
        %v6383 = vpack.c.b16 %v6379, %v6378
        %v6384 = vpack.c.b16 %v6381, %v6380
        %v6386 = vshrl.u32 %v6382, 16
        %v6388 = vrot.slane %v6386, 3
        %v6389 = vshll.u32 %v6382, 16
        %v6391 = vrot.slane %v6389, 4
        %v6392 = vor.u32 %v6388, %v6391
        %v6394 = vshrl.u32 %v6383, 16
        %v6396 = vrot.slane %v6394, 3
        %v6397 = vshll.u32 %v6383, 16
        %v6399 = vrot.slane %v6397, 4
        %v6400 = vor.u32 %v6396, %v6399
        %v6401 = vsel %vm4408, %v6392, %v6400
        %v6403 = vshrl.u32 %v6384, 16
        %v6405 = vrot.slane %v6403, 3
        %v6406 = vshll.u32 %v6384, 16
        %v6408 = vrot.slane %v6406, 4
        %v6409 = vor.u32 %v6405, %v6408
        %v6410 = vsel %vm4408, %v6400, %v6409
        %v6413 = vunpack.c.l.b16 %v6364
        %v6414 = vunpack.c.l.b16 %v6365
        %v6415 = vpack.c.b16 %v6414, %v6413
        %v6418 = vsel %vm4348, %v6401, 0
        %v6421 = vsel %vm4348, %v6410, 0
        %v6424 = vsel %vm4348, %v6409, 0
        %6426 = vmatpush.bf16.msra.mxu0 0
        %6427 = vmatpush.bf16.msra.mxu0 0
        %6428 = vmatpush.bf16.msra.mxu0 0
        %6429 = vmatpush.bf16.msra.mxu0 0
        %6430 = vmatpush.bf16.msra.mxu0 0
        %6431 = vmatpush.bf16.msra.mxu0 0
        %6432 = vmatpush.bf16.msra.mxu0 0
        %6433 = vmatpush.bf16.msra.mxu0 %v6415
        %6434 = vmatmul.bf16.gmra.mxu0 %v6418
        %v6435 = vpop.f32.mrf.mxu0
        %v6436 = vadd.f32 %v6368, %v6435
        %v6437 = vpop.f32.mrf.mxu0
        %v6438 = vadd.f32 %v6368, %v6437
        %6439 = vmatmul.bf16.gmra.mxu0 %v6421
        %v6440 = vpop.f32.mrf.mxu0
        %v6441 = vadd.f32 %v6368, %v6440
        %v6442 = vpop.f32.mrf.mxu0
        %v6443 = vadd.f32 %v6368, %v6442
        %6444 = vmatmul.bf16.gmra.mxu0 %v6424
        %v6445 = vpop.f32.mrf.mxu0
        %v6446 = vadd.f32 %v6368, %v6445
        %v6447 = vpop.f32.mrf.mxu0
        %6448 = vdwg.mxu0
        %v6449 = vmax.f32 %v6436, 0.0
        %v6450 = vmax.f32 %v6438, 0.0
        %v6451 = vmax.f32 %v6441, 0.0
        %v6452 = vmax.f32 %v6443, 0.0
        %v6453 = vmax.f32 %v6446, 0.0
        %6455 = vset.pattern.permute.xlu0 0
        %6456 = vperm.xlu0 %6455, %v6353
        %v6457 = vpop.permute.xlu0 %6456
        %6460 = vset.pattern.permute.xlu0 0
        %6461 = vperm.xlu0 %6460, %v6354
        %v6462 = vpop.permute.xlu0 %6461
        %6465 = vset.pattern.permute.xlu0 0
        %6466 = vperm.xlu0 %6465, %v6355
        %v6467 = vpop.permute.xlu0 %6466
        %6470 = vset.pattern.permute.xlu0 0
        %6471 = vperm.xlu0 %6470, %v6356
        %v6472 = vpop.permute.xlu0 %6471
        %6475 = vset.pattern.permute.xlu0 0
        %6476 = vperm.xlu0 %6475, %v6357
        %v6477 = vpop.permute.xlu0 %6476
        %v6479 = vmul.f32 %v6449, %v6457
        %v6480 = vmul.f32 %v6450, %v6462
        %v6481 = vmul.f32 %v6451, %v6467
        %v6482 = vmul.f32 %v6452, %v6472
        %v6483 = vmul.f32 %v6453, %v6477
        %v6484 = vpack.c.bf16 %v6479, %v6479
        %v6485 = vpack.c.bf16 %v6480, %v6480
        %v6486 = vpack.c.bf16 %v6481, %v6481
        %v6487 = vpack.c.bf16 %v6482, %v6482
        %v6488 = vpack.c.bf16 %v6483, %v6483
        %vm6489 = vsmask.f32 3328
        %vm6490 = vsmask.f32 7440
        %vm6491 = vmor %vm6489, %vm6490
        %v6493 = vshll.u32 %v6484, 16
        %v6495 = vrot.slane %v6493, 5
        %v6496 = vshrl.u32 %v6484, 16
        %v6498 = vrot.slane %v6496, 4
        %v6499 = vor.u32 %v6498, %v6495
        %v6500 = vrot.slane %v6499, 4
        %v6502 = vshll.u32 %v6485, 16
        %v6504 = vrot.slane %v6502, 5
        %v6505 = vsel %vm6491, %v6500, %v6504
        %v6506 = vshrl.u32 %v6485, 16
        %v6508 = vrot.slane %v6506, 4
        %v6509 = vor.u32 %v6508, %v6504
        %v6510 = vrot.slane %v6509, 4
        %v6512 = vshll.u32 %v6486, 16
        %v6514 = vrot.slane %v6512, 5
        %v6515 = vsel %vm6491, %v6510, %v6514
        %v6516 = vshrl.u32 %v6486, 16
        %v6518 = vrot.slane %v6516, 4
        %v6519 = vor.u32 %v6518, %v6514
        %v6520 = vrot.slane %v6519, 4
        %v6522 = vshll.u32 %v6487, 16
        %v6524 = vrot.slane %v6522, 5
        %v6525 = vsel %vm6491, %v6520, %v6524
        %v6526 = vshrl.u32 %v6487, 16
        %v6528 = vrot.slane %v6526, 4
        %v6529 = vor.u32 %v6528, %v6524
        %v6530 = vrot.slane %v6529, 4
        %v6532 = vshll.u32 %v6488, 16
        %v6534 = vrot.slane %v6532, 5
        %v6535 = vsel %vm6491, %v6530, %v6534
        %v6536 = vshrl.u32 %v6488, 16
        %v6538 = vrot.slane %v6536, 4
        %v6539 = vor.u32 %v6538, %v6534
        %v6540 = vrot.slane %v6539, 4
        %vm6547 = vcmask 125955
        %vm6548 = vsmask.f32 7950
        %vm6549 = vmand %vm6547, %vm6548
        %v6550 = vsel %vm6549, %v6495, %v6358
        %6551 = vst [vmem:[#allocation3] sm:$0x8] %v6550
        %vm6552 = vcmask 125952
        %6553 = vst.msk [vmem:[#allocation3 + $0x4] sm:$0xf] %vm6552, %v6505
        %6554 = vst.msk [vmem:[#allocation3 + $0x8] sm:$0xf] %vm6552, %v6515
        %6555 = vst.msk [vmem:[#allocation3 + $0xc] sm:$0xf] %vm6552, %v6525
        %6556 = vst.msk [vmem:[#allocation3 + $0x10] sm:$0xf] %vm6552, %v6535
        %vm6557 = vcmask 123904
        %vm6558 = vsmask.f32 1280
        %vm6559 = vmand %vm6557, %vm6558
        %v6560 = vld [vmem:[#allocation3 + $0x14] sm:$0x3]
        %v6561 = vsel %vm6559, %v6540, %v6560
        %6562 = vst [vmem:[#allocation3 + $0x14] sm:$0x3] %v6561
        %v6563 = vld [vmem:[#allocation3] sm:$0xf]
        %v6564 = vld [vmem:[#allocation3 + $0x4] sm:$0xf]
        %v6565 = vld [vmem:[#allocation3 + $0x8] sm:$0xf]
        %v6566 = vld [vmem:[#allocation3 + $0xc] sm:$0xf]
        %v6567 = vld [vmem:[#allocation3 + $0x10] sm:$0x3]
        %v6568 = vld [vmem:[%s23] sm:$0xf]
        %v6569 = vld [vmem:[%s23 + $0x4] sm:$0xf]
        %v6570 = vld [vmem:[#allocation3 + $0x10] sm:$0x7]
        %s6571 = scalar_lea.vmem %s23, 8
        %v6572 = vld [vmem:[%s6571] sm:$0xf]
        %v6573 = vld [vmem:[%s6571 + $0x4] sm:$0xf]
        %v6579 = vunpack.c.l.b16 %v6563
        %v6580 = vunpack.c.l.b16 %v6564
        %v6581 = vunpack.c.l.b16 %v6565
        %v6582 = vunpack.c.l.b16 %v6566
        %v6583 = vunpack.c.l.b16 %v6570
        %v6584 = vpack.c.b16 %v6580, %v6579
        %v6585 = vpack.c.b16 %v6582, %v6581
        %v6586 = vpack.c.b16 %v6583, %v6583
        %v6588 = vshrl.u32 %v6584, 16
        %v6590 = vshll.u32 %v6584, 16
        %v6592 = vrot.slane %v6590, 1
        %v6593 = vor.u32 %v6588, %v6592
        %v6595 = vshll.u32 %v6585, 16
        %v6597 = vrot.slane %v6595, 1
        %v6598 = vsel %vm1192, %v6593, %v6597
        %v6599 = vshrl.u32 %v6585, 16
        %v6601 = vor.u32 %v6599, %v6597
        %v6603 = vshll.u32 %v6586, 16
        %v6605 = vrot.slane %v6603, 1
        %v6606 = vsel %vm1192, %v6601, %v6605
        %v6607 = vshrl.u32 %v6586, 16
        %v6609 = vor.u32 %v6607, %v6605
        %v6612 = vunpack.c.l.b16 %v6572
        %v6613 = vunpack.c.l.b16 %v6573
        %v6614 = vpack.c.b16 %v6613, %v6612
        %v6617 = vsel %vm4348, %v6598, 0
        %v6620 = vsel %vm4348, %v6606, 0
        %v6623 = vsel %vm4348, %v6609, 0
        %6625 = vmatpush.bf16.msra.mxu0 0
        %6626 = vmatpush.bf16.msra.mxu0 0
        %6627 = vmatpush.bf16.msra.mxu0 0
        %6628 = vmatpush.bf16.msra.mxu0 0
        %6629 = vmatpush.bf16.msra.mxu0 0
        %6630 = vmatpush.bf16.msra.mxu0 0
        %6631 = vmatpush.bf16.msra.mxu0 0
        %6632 = vmatpush.bf16.msra.mxu0 %v6614
        %6633 = vmatmul.bf16.gmra.mxu0 %v6617
        %v6634 = vpop.f32.mrf.mxu0
        %v6635 = vadd.f32 0.0, %v6634
        %v6636 = vpop.f32.mrf.mxu0
        %v6637 = vadd.f32 0.0, %v6636
        %6638 = vmatmul.bf16.gmra.mxu0 %v6620
        %v6639 = vpop.f32.mrf.mxu0
        %v6640 = vadd.f32 0.0, %v6639
        %v6641 = vpop.f32.mrf.mxu0
        %v6642 = vadd.f32 0.0, %v6641
        %6643 = vmatmul.bf16.gmra.mxu0 %v6623
        %v6644 = vpop.f32.mrf.mxu0
        %v6645 = vadd.f32 0.0, %v6644
        %v6646 = vpop.f32.mrf.mxu0
        %6647 = vdwg.mxu0
        %v6649 = vunpack.c.l.b16 %v6567
        %v6650 = vpack.c.b16 %v6649, %v6649
        %v6653 = vunpack.c.l.b16 %v6568
        %v6654 = vunpack.c.l.b16 %v6569
        %v6655 = vpack.c.b16 %v6654, %v6653
        %v6657 = vsel %vm4348, %v6584, 0
        %v6659 = vsel %vm4348, %v6585, 0
        %v6662 = vsel %vm4348, %v6650, 0
        %6664 = vmatpush.bf16.msra.mxu0 0
        %6665 = vmatpush.bf16.msra.mxu0 0
        %6666 = vmatpush.bf16.msra.mxu0 0
        %6667 = vmatpush.bf16.msra.mxu0 0
        %6668 = vmatpush.bf16.msra.mxu0 0
        %6669 = vmatpush.bf16.msra.mxu0 0
        %6670 = vmatpush.bf16.msra.mxu0 0
        %6671 = vmatpush.bf16.msra.mxu0 %v6655
        %6672 = vmatmul.bf16.gmra.mxu0 %v6657
        %v6673 = vpop.f32.mrf.mxu0
        %v6674 = vadd.f32 %v6635, %v6673
        %v6675 = vpop.f32.mrf.mxu0
        %v6676 = vadd.f32 %v6637, %v6675
        %6677 = vmatmul.bf16.gmra.mxu0 %v6659
        %v6678 = vpop.f32.mrf.mxu0
        %v6679 = vadd.f32 %v6640, %v6678
        %v6680 = vpop.f32.mrf.mxu0
        %v6681 = vadd.f32 %v6642, %v6680
        %6682 = vmatmul.bf16.gmra.mxu0 %v6662
        %v6683 = vpop.f32.mrf.mxu0
        %v6684 = vadd.f32 %v6645, %v6683
        %v6685 = vpop.f32.mrf.mxu0
        %6686 = vdwg.mxu0
        %v6687 = vld [vmem:[#allocation3] sm:$0xe]
        %s6688 = scalar_lea.vmem %s23, 16
        %v6689 = vld [vmem:[%s6688] sm:$0xf]
        %v6690 = vld [vmem:[%s6688 + $0x4] sm:$0xf]
        %v6692 = vunpack.c.l.b16 %v6687
        %v6693 = vpack.c.b16 %v6580, %v6692
        %v6694 = vrot.slane %v6693, 1
        %v6695 = vrot.slane %v6585, 1
        %v6696 = vsel %vm1704, %v6694, %v6695
        %v6697 = vrot.slane %v6586, 1
        %v6698 = vsel %vm1704, %v6695, %v6697
        %v6701 = vunpack.c.l.b16 %v6689
        %v6702 = vunpack.c.l.b16 %v6690
        %v6703 = vpack.c.b16 %v6702, %v6701
        %v6706 = vsel %vm4348, %v6696, 0
        %v6709 = vsel %vm4348, %v6698, 0
        %v6712 = vsel %vm4348, %v6697, 0
        %6714 = vmatpush.bf16.msra.mxu0 0
        %6715 = vmatpush.bf16.msra.mxu0 0
        %6716 = vmatpush.bf16.msra.mxu0 0
        %6717 = vmatpush.bf16.msra.mxu0 0
        %6718 = vmatpush.bf16.msra.mxu0 0
        %6719 = vmatpush.bf16.msra.mxu0 0
        %6720 = vmatpush.bf16.msra.mxu0 0
        %6721 = vmatpush.bf16.msra.mxu0 %v6703
        %6722 = vmatmul.bf16.gmra.mxu0 %v6706
        %v6723 = vpop.f32.mrf.mxu0
        %v6724 = vadd.f32 0.0, %v6723
        %v6725 = vpop.f32.mrf.mxu0
        %v6726 = vadd.f32 0.0, %v6725
        %6727 = vmatmul.bf16.gmra.mxu0 %v6709
        %v6728 = vpop.f32.mrf.mxu0
        %v6729 = vadd.f32 0.0, %v6728
        %v6730 = vpop.f32.mrf.mxu0
        %v6731 = vadd.f32 0.0, %v6730
        %6732 = vmatmul.bf16.gmra.mxu0 %v6712
        %v6733 = vpop.f32.mrf.mxu0
        %v6734 = vadd.f32 0.0, %v6733
        %v6735 = vpop.f32.mrf.mxu0
        %6736 = vdwg.mxu0
        %v6737 = vadd.f32 %v6674, %v6724
        %v6738 = vadd.f32 %v6676, %v6726
        %v6739 = vadd.f32 %v6679, %v6729
        %v6740 = vadd.f32 %v6681, %v6731
        %v6741 = vadd.f32 %v6684, %v6734
        %v6742 = vld [vmem:[#allocation3] sm:$0x8]
        %v6743 = vld [vmem:[#allocation3 + $0x4] sm:$0xf]
        %v6744 = vld [vmem:[#allocation3 + $0x8] sm:$0xf]
        %v6745 = vld [vmem:[#allocation3 + $0xc] sm:$0xf]
        %v6746 = vld [vmem:[#allocation3 + $0x10] sm:$0xf]
        %v6747 = vld [vmem:[#allocation3 + $0x14] sm:$0x1]
        %s6748 = scalar_lea.vmem %s23, 24
        %v6749 = vld [vmem:[%s6748] sm:$0xf]
        %v6750 = vld [vmem:[%s6748 + $0x4] sm:$0xf]
        %v6757 = vunpack.c.l.b16 %v6742
        %v6758 = vunpack.c.l.b16 %v6743
        %v6759 = vunpack.c.l.b16 %v6744
        %v6760 = vunpack.c.l.b16 %v6745
        %v6761 = vunpack.c.l.b16 %v6746
        %v6762 = vunpack.c.l.b16 %v6747
        %v6763 = vpack.c.b16 %v6758, %v6757
        %v6764 = vpack.c.b16 %v6760, %v6759
        %v6765 = vpack.c.b16 %v6762, %v6761
        %v6766 = vrot.slane %v6763, 3
        %v6767 = vrot.slane %v6764, 3
        %v6768 = vsel %vm3979, %v6766, %v6767
        %v6769 = vrot.slane %v6765, 3
        %v6770 = vsel %vm3979, %v6767, %v6769
        %v6773 = vunpack.c.l.b16 %v6749
        %v6774 = vunpack.c.l.b16 %v6750
        %v6775 = vpack.c.b16 %v6774, %v6773
        %v6778 = vsel %vm4348, %v6768, 0
        %v6781 = vsel %vm4348, %v6770, 0
        %v6784 = vsel %vm4348, %v6769, 0
        %6786 = vmatpush.bf16.msra.mxu0 0
        %6787 = vmatpush.bf16.msra.mxu0 0
        %6788 = vmatpush.bf16.msra.mxu0 0
        %6789 = vmatpush.bf16.msra.mxu0 0
        %6790 = vmatpush.bf16.msra.mxu0 0
        %6791 = vmatpush.bf16.msra.mxu0 0
        %6792 = vmatpush.bf16.msra.mxu0 0
        %6793 = vmatpush.bf16.msra.mxu0 %v6775
        %6794 = vmatmul.bf16.gmra.mxu0 %v6778
        %v6795 = vpop.f32.mrf.mxu0
        %v6796 = vadd.f32 0.0, %v6795
        %v6797 = vpop.f32.mrf.mxu0
        %v6798 = vadd.f32 0.0, %v6797
        %6799 = vmatmul.bf16.gmra.mxu0 %v6781
        %v6800 = vpop.f32.mrf.mxu0
        %v6801 = vadd.f32 0.0, %v6800
        %v6802 = vpop.f32.mrf.mxu0
        %v6803 = vadd.f32 0.0, %v6802
        %6804 = vmatmul.bf16.gmra.mxu0 %v6784
        %v6805 = vpop.f32.mrf.mxu0
        %v6806 = vadd.f32 0.0, %v6805
        %v6807 = vpop.f32.mrf.mxu0
        %6808 = vdwg.mxu0
        %v6809 = vadd.f32 %v6737, %v6796
        %v6810 = vadd.f32 %v6738, %v6798
        %v6811 = vadd.f32 %v6739, %v6801
        %v6812 = vadd.f32 %v6740, %v6803
        %v6813 = vadd.f32 %v6741, %v6806
        %v6814 = vld [vmem:[#allocation3 + $0x14] sm:$0x3]
        %s6815 = scalar_lea.vmem %s23, 32
        %v6816 = vld [vmem:[%s6815] sm:$0xf]
        %v6817 = vld [vmem:[%s6815 + $0x4] sm:$0xf]
        %v6819 = vunpack.c.l.b16 %v6814
        %v6820 = vpack.c.b16 %v6819, %v6761
        %v6822 = vshrl.u32 %v6763, 16
        %v6824 = vrot.slane %v6822, 3
        %v6825 = vshll.u32 %v6763, 16
        %v6827 = vrot.slane %v6825, 4
        %v6828 = vor.u32 %v6824, %v6827
        %v6830 = vshrl.u32 %v6764, 16
        %v6832 = vrot.slane %v6830, 3
        %v6833 = vshll.u32 %v6764, 16
        %v6835 = vrot.slane %v6833, 4
        %v6836 = vor.u32 %v6832, %v6835
        %v6837 = vsel %vm4408, %v6828, %v6836
        %v6839 = vshrl.u32 %v6820, 16
        %v6841 = vrot.slane %v6839, 3
        %v6842 = vshll.u32 %v6820, 16
        %v6844 = vrot.slane %v6842, 4
        %v6845 = vor.u32 %v6841, %v6844
        %v6846 = vsel %vm4408, %v6836, %v6845
        %v6849 = vunpack.c.l.b16 %v6816
        %v6850 = vunpack.c.l.b16 %v6817
        %v6851 = vpack.c.b16 %v6850, %v6849
        %v6854 = vsel %vm4348, %v6837, 0
        %v6857 = vsel %vm4348, %v6846, 0
        %v6860 = vsel %vm4348, %v6845, 0
        %6862 = vmatpush.bf16.msra.mxu0 0
        %6863 = vmatpush.bf16.msra.mxu0 0
        %6864 = vmatpush.bf16.msra.mxu0 0
        %6865 = vmatpush.bf16.msra.mxu0 0
        %6866 = vmatpush.bf16.msra.mxu0 0
        %6867 = vmatpush.bf16.msra.mxu0 0
        %6868 = vmatpush.bf16.msra.mxu0 0
        %6869 = vmatpush.bf16.msra.mxu0 %v6851
        %6870 = vmatmul.bf16.gmra.mxu0 %v6854
        %v6871 = vpop.f32.mrf.mxu0
        %v6872 = vadd.f32 0.0, %v6871
        %v6873 = vpop.f32.mrf.mxu0
        %v6874 = vadd.f32 0.0, %v6873
        %6875 = vmatmul.bf16.gmra.mxu0 %v6857
        %v6876 = vpop.f32.mrf.mxu0
        %v6877 = vadd.f32 0.0, %v6876
        %v6878 = vpop.f32.mrf.mxu0
        %v6879 = vadd.f32 0.0, %v6878
        %6880 = vmatmul.bf16.gmra.mxu0 %v6860
        %v6881 = vpop.f32.mrf.mxu0
        %v6882 = vadd.f32 0.0, %v6881
        %v6883 = vpop.f32.mrf.mxu0
        %6884 = vdwg.mxu0
        %v6885 = vadd.f32 %v6809, %v6872
        %v6886 = vadd.f32 %v6810, %v6874
        %v6887 = vadd.f32 %v6811, %v6877
        %v6888 = vadd.f32 %v6812, %v6879
        %v6889 = vadd.f32 %v6813, %v6882
        %s6890 = scalar_lea.vmem %s23, 40
        %v6891 = vld [vmem:[%s6890] sm:$0xf]
        %v6892 = vld [vmem:[%s6890 + $0x4] sm:$0xf]
        %v6893 = vpack.c.b16 %v6759, %v6758
        %v6894 = vpack.c.b16 %v6761, %v6760
        %v6895 = vpack.c.b16 %v6819, %v6819
        %v6898 = vunpack.c.l.b16 %v6891
        %v6899 = vunpack.c.l.b16 %v6892
        %v6900 = vpack.c.b16 %v6899, %v6898
        %v6903 = vsel %vm4348, %v6893, 0
        %v6906 = vsel %vm4348, %v6894, 0
        %v6909 = vsel %vm4348, %v6895, 0
        %6911 = vmatpush.bf16.msra.mxu0 0
        %6912 = vmatpush.bf16.msra.mxu0 0
        %6913 = vmatpush.bf16.msra.mxu0 0
        %6914 = vmatpush.bf16.msra.mxu0 0
        %6915 = vmatpush.bf16.msra.mxu0 0
        %6916 = vmatpush.bf16.msra.mxu0 0
        %6917 = vmatpush.bf16.msra.mxu0 0
        %6918 = vmatpush.bf16.msra.mxu0 %v6900
        %6919 = vmatmul.bf16.gmra.mxu0 %v6903
        %v6920 = vpop.f32.mrf.mxu0
        %v6921 = vadd.f32 0.0, %v6920
        %v6922 = vpop.f32.mrf.mxu0
        %v6923 = vadd.f32 0.0, %v6922
        %6924 = vmatmul.bf16.gmra.mxu0 %v6906
        %v6925 = vpop.f32.mrf.mxu0
        %v6926 = vadd.f32 0.0, %v6925
        %v6927 = vpop.f32.mrf.mxu0
        %v6928 = vadd.f32 0.0, %v6927
        %6929 = vmatmul.bf16.gmra.mxu0 %v6909
        %v6930 = vpop.f32.mrf.mxu0
        %v6931 = vadd.f32 0.0, %v6930
        %v6932 = vpop.f32.mrf.mxu0
        %6933 = vdwg.mxu0
        %v6934 = vadd.f32 %v6885, %v6921
        %v6935 = vadd.f32 %v6886, %v6923
        %v6936 = vadd.f32 %v6887, %v6926
        %v6937 = vadd.f32 %v6888, %v6928
        %v6938 = vadd.f32 %v6889, %v6931
        %v6939 = vld [vmem:[#allocation3 + $0x4] sm:$0xc]
        %v6940 = vld [vmem:[#allocation3 + $0x14] sm:$0xf]
        %s6941 = scalar_lea.vmem %s23, 48
        %v6942 = vld [vmem:[%s6941] sm:$0xf]
        %v6943 = vld [vmem:[%s6941 + $0x4] sm:$0xf]
        %v6946 = vunpack.c.l.b16 %v6939
        %v6947 = vunpack.c.l.b16 %v6940
        %v6948 = vpack.c.b16 %v6759, %v6946
        %v6949 = vpack.c.b16 %v6947, %v6947
        %v6950 = vrot.slane %v6948, 2
        %v6951 = vrot.slane %v6894, 2
        %v6952 = vsel %vm2770, %v6950, %v6951
        %v6953 = vrot.slane %v6949, 2
        %v6954 = vsel %vm2770, %v6951, %v6953
        %v6957 = vunpack.c.l.b16 %v6942
        %v6958 = vunpack.c.l.b16 %v6943
        %v6959 = vpack.c.b16 %v6958, %v6957
        %v6962 = vsel %vm4348, %v6952, 0
        %v6965 = vsel %vm4348, %v6954, 0
        %v6968 = vsel %vm4348, %v6953, 0
        %6970 = vmatpush.bf16.msra.mxu0 0
        %6971 = vmatpush.bf16.msra.mxu0 0
        %6972 = vmatpush.bf16.msra.mxu0 0
        %6973 = vmatpush.bf16.msra.mxu0 0
        %6974 = vmatpush.bf16.msra.mxu0 0
        %6975 = vmatpush.bf16.msra.mxu0 0
        %6976 = vmatpush.bf16.msra.mxu0 0
        %6977 = vmatpush.bf16.msra.mxu0 %v6959
        %6978 = vmatmul.bf16.gmra.mxu0 %v6962
        %v6979 = vpop.f32.mrf.mxu0
        %v6980 = vadd.f32 0.0, %v6979
        %v6981 = vpop.f32.mrf.mxu0
        %v6982 = vadd.f32 0.0, %v6981
        %6983 = vmatmul.bf16.gmra.mxu0 %v6965
        %v6984 = vpop.f32.mrf.mxu0
        %v6985 = vadd.f32 0.0, %v6984
        %v6986 = vpop.f32.mrf.mxu0
        %v6987 = vadd.f32 0.0, %v6986
        %6988 = vmatmul.bf16.gmra.mxu0 %v6968
        %v6989 = vpop.f32.mrf.mxu0
        %v6990 = vadd.f32 0.0, %v6989
        %v6991 = vpop.f32.mrf.mxu0
        %6992 = vdwg.mxu0
        %v6993 = vadd.f32 %v6934, %v6980
        %v6994 = vadd.f32 %v6935, %v6982
        %v6995 = vadd.f32 %v6936, %v6985
        %v6996 = vadd.f32 %v6937, %v6987
        %v6997 = vadd.f32 %v6938, %v6990
        %v6998 = vld [vmem:[#allocation3 + $0x4] sm:$0xc]
        %v6999 = vld [vmem:[#allocation3 + $0x8] sm:$0xf]
        %v7000 = vld [vmem:[#allocation3 + $0xc] sm:$0xf]
        %v7001 = vld [vmem:[#allocation3 + $0x10] sm:$0xf]
        %v7002 = vld [vmem:[#allocation3 + $0x14] sm:$0xf]
        %v7003 = vld [vmem:[#allocation3 + $0x18] sm:$0x1]
        %s7004 = scalar_lea.vmem %s23, 56
        %v7005 = vld [vmem:[%s7004] sm:$0xf]
        %v7006 = vld [vmem:[%s7004 + $0x4] sm:$0xf]
        %v7013 = vunpack.c.l.b16 %v6998
        %v7014 = vunpack.c.l.b16 %v6999
        %v7015 = vunpack.c.l.b16 %v7000
        %v7016 = vunpack.c.l.b16 %v7001
        %v7017 = vunpack.c.l.b16 %v7002
        %v7018 = vunpack.c.l.b16 %v7003
        %v7019 = vpack.c.b16 %v7014, %v7013
        %v7020 = vpack.c.b16 %v7016, %v7015
        %v7021 = vpack.c.b16 %v7018, %v7017
        %v7023 = vshrl.u32 %v7019, 16
        %v7025 = vrot.slane %v7023, 2
        %v7026 = vshll.u32 %v7019, 16
        %v7028 = vrot.slane %v7026, 3
        %v7029 = vor.u32 %v7025, %v7028
        %v7031 = vshrl.u32 %v7020, 16
        %v7033 = vrot.slane %v7031, 2
        %v7034 = vshll.u32 %v7020, 16
        %v7036 = vrot.slane %v7034, 3
        %v7037 = vor.u32 %v7033, %v7036
        %v7038 = vsel %vm3572, %v7029, %v7037
        %v7040 = vshrl.u32 %v7021, 16
        %v7042 = vrot.slane %v7040, 2
        %v7043 = vshll.u32 %v7021, 16
        %v7045 = vrot.slane %v7043, 3
        %v7046 = vor.u32 %v7042, %v7045
        %v7047 = vsel %vm3572, %v7037, %v7046
        %v7050 = vunpack.c.l.b16 %v7005
        %v7051 = vunpack.c.l.b16 %v7006
        %v7052 = vpack.c.b16 %v7051, %v7050
        %v7055 = vsel %vm4348, %v7038, 0
        %v7058 = vsel %vm4348, %v7047, 0
        %v7061 = vsel %vm4348, %v7046, 0
        %7063 = vmatpush.bf16.msra.mxu0 0
        %7064 = vmatpush.bf16.msra.mxu0 0
        %7065 = vmatpush.bf16.msra.mxu0 0
        %7066 = vmatpush.bf16.msra.mxu0 0
        %7067 = vmatpush.bf16.msra.mxu0 0
        %7068 = vmatpush.bf16.msra.mxu0 0
        %7069 = vmatpush.bf16.msra.mxu0 0
        %7070 = vmatpush.bf16.msra.mxu0 %v7052
        %7071 = vmatmul.bf16.gmra.mxu0 %v7055
        %v7072 = vpop.f32.mrf.mxu0
        %v7073 = vadd.f32 0.0, %v7072
        %v7074 = vpop.f32.mrf.mxu0
        %v7075 = vadd.f32 0.0, %v7074
        %7076 = vmatmul.bf16.gmra.mxu0 %v7058
        %v7077 = vpop.f32.mrf.mxu0
        %v7078 = vadd.f32 0.0, %v7077
        %v7079 = vpop.f32.mrf.mxu0
        %v7080 = vadd.f32 0.0, %v7079
        %7081 = vmatmul.bf16.gmra.mxu0 %v7061
        %v7082 = vpop.f32.mrf.mxu0
        %v7083 = vadd.f32 0.0, %v7082
        %v7084 = vpop.f32.mrf.mxu0
        %7085 = vdwg.mxu0
        %v7086 = vadd.f32 %v6993, %v7073
        %v7087 = vadd.f32 %v6994, %v7075
        %v7088 = vadd.f32 %v6995, %v7078
        %v7089 = vadd.f32 %v6996, %v7080
        %v7090 = vadd.f32 %v6997, %v7083
        %v7091 = vld [vmem:[#allocation3 + $0x4] sm:$0x8]
        %s7092 = scalar_lea.vmem %s23, 64
        %v7093 = vld [vmem:[%s7092] sm:$0xf]
        %v7094 = vld [vmem:[%s7092 + $0x4] sm:$0xf]
        %v7096 = vunpack.c.l.b16 %v7091
        %v7097 = vpack.c.b16 %v7014, %v7096
        %v7098 = vrot.slane %v7097, 3
        %v7099 = vrot.slane %v7020, 3
        %v7100 = vsel %vm3979, %v7098, %v7099
        %v7101 = vrot.slane %v7021, 3
        %v7102 = vsel %vm3979, %v7099, %v7101
        %v7105 = vunpack.c.l.b16 %v7093
        %v7106 = vunpack.c.l.b16 %v7094
        %v7107 = vpack.c.b16 %v7106, %v7105
        %v7110 = vsel %vm4348, %v7100, 0
        %v7113 = vsel %vm4348, %v7102, 0
        %v7116 = vsel %vm4348, %v7101, 0
        %7118 = vmatpush.bf16.msra.mxu0 0
        %7119 = vmatpush.bf16.msra.mxu0 0
        %7120 = vmatpush.bf16.msra.mxu0 0
        %7121 = vmatpush.bf16.msra.mxu0 0
        %7122 = vmatpush.bf16.msra.mxu0 0
        %7123 = vmatpush.bf16.msra.mxu0 0
        %7124 = vmatpush.bf16.msra.mxu0 0
        %7125 = vmatpush.bf16.msra.mxu0 %v7107
        %7126 = vmatmul.bf16.gmra.mxu0 %v7110
        %v7127 = vpop.f32.mrf.mxu0
        %v7128 = vadd.f32 0.0, %v7127
        %v7129 = vpop.f32.mrf.mxu0
        %v7130 = vadd.f32 0.0, %v7129
        %7131 = vmatmul.bf16.gmra.mxu0 %v7113
        %v7132 = vpop.f32.mrf.mxu0
        %v7133 = vadd.f32 0.0, %v7132
        %v7134 = vpop.f32.mrf.mxu0
        %v7135 = vadd.f32 0.0, %v7134
        %7136 = vmatmul.bf16.gmra.mxu0 %v7116
        %v7137 = vpop.f32.mrf.mxu0
        %v7138 = vadd.f32 0.0, %v7137
        %v7139 = vpop.f32.mrf.mxu0
        %7140 = vdwg.mxu0
        %v7141 = vadd.f32 %v7086, %v7128
        %v7142 = vadd.f32 %v7087, %v7130
        %v7143 = vadd.f32 %v7088, %v7133
        %v7144 = vadd.f32 %v7089, %v7135
        %v7145 = vadd.f32 %v7090, %v7138
        %v7146 = vld [vmem:[%s25] sm:$0x1]
        %v7148 = vperm.slane %v7146, 0
        %v7150 = vadd.f32 %v7141, %v7148
        %v7151 = vadd.f32 %v7142, %v7148
        %v7152 = vadd.f32 %v7143, %v7148
        %v7153 = vadd.f32 %v7144, %v7148
        %v7154 = vadd.f32 %v7145, %v7148
        %v7155 = vmax.f32 %v7150, 0.0
        %v7156 = vmax.f32 %v7151, 0.0
        %v7157 = vmax.f32 %v7152, 0.0
        %v7158 = vmax.f32 %v7153, 0.0
        %v7159 = vmax.f32 %v7154, 0.0
        %v7160 = vmul.f32 %v7155, %v6457
        %v7161 = vmul.f32 %v7156, %v6462
        %v7162 = vmul.f32 %v7157, %v6467
        %v7163 = vmul.f32 %v7158, %v6472
        %v7164 = vmul.f32 %v7159, %v6477
        %v7165 = vpack.c.bf16 %v7160, %v7160
        %v7166 = vpack.c.bf16 %v7161, %v7161
        %v7167 = vpack.c.bf16 %v7162, %v7162
        %v7168 = vpack.c.bf16 %v7163, %v7163
        %v7169 = vpack.c.bf16 %v7164, %v7164
        %v7171 = vshll.u32 %v7165, 16
        %v7173 = vrot.slane %v7171, 5
        %v7174 = vshrl.u32 %v7165, 16
        %v7176 = vrot.slane %v7174, 4
        %v7177 = vor.u32 %v7176, %v7173
        %v7178 = vrot.slane %v7177, 4
        %v7180 = vshll.u32 %v7166, 16
        %v7182 = vrot.slane %v7180, 5
        %v7183 = vsel %vm6491, %v7178, %v7182
        %v7184 = vshrl.u32 %v7166, 16
        %v7186 = vrot.slane %v7184, 4
        %v7187 = vor.u32 %v7186, %v7182
        %v7188 = vrot.slane %v7187, 4
        %v7190 = vshll.u32 %v7167, 16
        %v7192 = vrot.slane %v7190, 5
        %v7193 = vsel %vm6491, %v7188, %v7192
        %v7194 = vshrl.u32 %v7167, 16
        %v7196 = vrot.slane %v7194, 4
        %v7197 = vor.u32 %v7196, %v7192
        %v7198 = vrot.slane %v7197, 4
        %v7200 = vshll.u32 %v7168, 16
        %v7202 = vrot.slane %v7200, 5
        %v7203 = vsel %vm6491, %v7198, %v7202
        %v7204 = vshrl.u32 %v7168, 16
        %v7206 = vrot.slane %v7204, 4
        %v7207 = vor.u32 %v7206, %v7202
        %v7208 = vrot.slane %v7207, 4
        %v7210 = vshll.u32 %v7169, 16
        %v7212 = vrot.slane %v7210, 5
        %v7213 = vsel %vm6491, %v7208, %v7212
        %v7214 = vshrl.u32 %v7169, 16
        %v7216 = vrot.slane %v7214, 4
        %v7217 = vor.u32 %v7216, %v7212
        %v7218 = vrot.slane %v7217, 4
        %vm7225 = vcmask 257027
        %vm7226 = vmand %vm7225, %vm6548
        %v7227 = vsel %vm7226, %v7173, %v6742
        %7228 = vst [vmem:[#allocation3] sm:$0x8] %v7227
        %7229 = vst.msk [vmem:[#allocation3 + $0x4] sm:$0xf] %vm1013, %v7183
        %7230 = vst.msk [vmem:[#allocation3 + $0x8] sm:$0xf] %vm1013, %v7193
        %7231 = vst.msk [vmem:[#allocation3 + $0xc] sm:$0xf] %vm1013, %v7203
        %7232 = vst.msk [vmem:[#allocation3 + $0x10] sm:$0xf] %vm1013, %v7213
        %vm7233 = vcmask 254976
        %vm7234 = vmand %vm7233, %vm6558
        %v7235 = vld [vmem:[#allocation3 + $0x14] sm:$0x3]
        %v7236 = vsel %vm7234, %v7218, %v7235
        %7237 = vst [vmem:[#allocation3 + $0x14] sm:$0x3] %v7236
        %v7238 = vld [vmem:[#allocation3] sm:$0x8]
        %v7239 = vld [vmem:[#allocation3 + $0x4] sm:$0xf]
        %v7240 = vld [vmem:[#allocation3 + $0x8] sm:$0xf]
        %v7241 = vld [vmem:[#allocation3 + $0xc] sm:$0xf]
        %v7242 = vld [vmem:[#allocation3 + $0x10] sm:$0xf]
        %v7243 = vld [vmem:[#allocation3 + $0x14] sm:$0x3]
        %v7244 = vld [vmem:[%s27] sm:$0xf]
        %v7245 = vld [vmem:[%s27 + $0x4] sm:$0xf]
        %v7246 = vld [vmem:[%s27 + $0x8] sm:$0xf]
        %v7247 = vld [vmem:[%s27 + $0xc] sm:$0xf]
        %v7248 = vld [vmem:[%s29] sm:$0x1]
        %v7250 = vperm.slane %v7248, 0
        %v7258 = vunpack.c.l.b16 %v7238
        %v7259 = vunpack.c.l.b16 %v7239
        %v7260 = vunpack.c.l.b16 %v7240
        %v7261 = vunpack.c.l.b16 %v7241
        %v7262 = vunpack.c.l.b16 %v7242
        %v7263 = vunpack.c.l.b16 %v7243
        %v7264 = vpack.c.b16 %v7259, %v7258
        %v7265 = vpack.c.b16 %v7261, %v7260
        %v7266 = vpack.c.b16 %v7263, %v7262
        %v7268 = vshrl.u32 %v7264, 16
        %v7270 = vrot.slane %v7268, 3
        %v7271 = vshll.u32 %v7264, 16
        %v7273 = vrot.slane %v7271, 4
        %v7274 = vor.u32 %v7270, %v7273
        %v7276 = vshrl.u32 %v7265, 16
        %v7278 = vrot.slane %v7276, 3
        %v7279 = vshll.u32 %v7265, 16
        %v7281 = vrot.slane %v7279, 4
        %v7282 = vor.u32 %v7278, %v7281
        %v7283 = vsel %vm4408, %v7274, %v7282
        %v7285 = vshrl.u32 %v7266, 16
        %v7287 = vrot.slane %v7285, 3
        %v7288 = vshll.u32 %v7266, 16
        %v7290 = vrot.slane %v7288, 4
        %v7291 = vor.u32 %v7287, %v7290
        %v7292 = vsel %vm4408, %v7282, %v7291
        %v7297 = vunpack.c.l.b16 %v7244
        %v7298 = vunpack.c.l.b16 %v7245
        %v7299 = vunpack.c.l.b16 %v7246
        %v7300 = vunpack.c.l.b16 %v7247
        %v7301 = vpack.c.b16 %v7298, %v7297
        %v7302 = vpack.c.b16 %v7300, %v7299
        %v7306 = vsel %vm4990, %v7283, 0
        %v7309 = vsel %vm4990, %v7292, 0
        %v7312 = vsel %vm4990, %v7291, 0
        %7314 = vmatpush.bf16.msra.mxu0 0
        %7315 = vmatpush.bf16.msra.mxu0 0
        %7316 = vmatpush.bf16.msra.mxu0 0
        %7317 = vmatpush.bf16.msra.mxu0 0
        %7318 = vmatpush.bf16.msra.mxu0 0
        %7319 = vmatpush.bf16.msra.mxu0 0
        %7320 = vmatpush.bf16.msra.mxu0 %v7302
        %7321 = vmatpush.bf16.msra.mxu0 %v7301
        %7322 = vmatmul.bf16.gmra.mxu0 %v7306
        %v7323 = vpop.f32.mrf.mxu0
        %v7324 = vadd.f32 %v7250, %v7323
        %v7325 = vpop.f32.mrf.mxu0
        %v7326 = vadd.f32 %v7250, %v7325
        %7327 = vmatmul.bf16.gmra.mxu0 %v7309
        %v7328 = vpop.f32.mrf.mxu0
        %v7329 = vadd.f32 %v7250, %v7328
        %v7330 = vpop.f32.mrf.mxu0
        %v7331 = vadd.f32 %v7250, %v7330
        %7332 = vmatmul.bf16.gmra.mxu0 %v7312
        %v7333 = vpop.f32.mrf.mxu0
        %v7334 = vadd.f32 %v7250, %v7333
        %v7335 = vpop.f32.mrf.mxu0
        %7336 = vdwg.mxu0
        %v7337 = vmax.f32 %v7324, 0.0
        %v7338 = vmax.f32 %v7326, 0.0
        %v7339 = vmax.f32 %v7329, 0.0
        %v7340 = vmax.f32 %v7331, 0.0
        %v7341 = vmax.f32 %v7334, 0.0
        %v7342 = vmul.f32 %v7337, %v6457
        %v7343 = vmul.f32 %v7338, %v6462
        %v7344 = vmul.f32 %v7339, %v6467
        %v7345 = vmul.f32 %v7340, %v6472
        %v7346 = vmul.f32 %v7341, %v6477
        %v7347 = vpack.c.bf16 %v7342, %v7342
        %v7348 = vpack.c.bf16 %v7343, %v7343
        %v7349 = vpack.c.bf16 %v7344, %v7344
        %v7350 = vpack.c.bf16 %v7345, %v7345
        %v7351 = vpack.c.bf16 %v7346, %v7346
        %v7353 = vshll.u32 %v7347, 16
        %v7355 = vrot.slane %v7353, 5
        %v7356 = vshrl.u32 %v7347, 16
        %v7358 = vrot.slane %v7356, 4
        %v7359 = vor.u32 %v7358, %v7355
        %v7360 = vrot.slane %v7359, 4
        %v7362 = vshll.u32 %v7348, 16
        %v7364 = vrot.slane %v7362, 5
        %v7365 = vsel %vm6491, %v7360, %v7364
        %v7366 = vshrl.u32 %v7348, 16
        %v7368 = vrot.slane %v7366, 4
        %v7369 = vor.u32 %v7368, %v7364
        %v7370 = vrot.slane %v7369, 4
        %v7372 = vshll.u32 %v7349, 16
        %v7374 = vrot.slane %v7372, 5
        %v7375 = vsel %vm6491, %v7370, %v7374
        %v7376 = vshrl.u32 %v7349, 16
        %v7378 = vrot.slane %v7376, 4
        %v7379 = vor.u32 %v7378, %v7374
        %v7380 = vrot.slane %v7379, 4
        %v7382 = vshll.u32 %v7350, 16
        %v7384 = vrot.slane %v7382, 5
        %v7385 = vsel %vm6491, %v7380, %v7384
        %v7386 = vshrl.u32 %v7350, 16
        %v7388 = vrot.slane %v7386, 4
        %v7389 = vor.u32 %v7388, %v7384
        %v7390 = vrot.slane %v7389, 4
        %v7392 = vshll.u32 %v7351, 16
        %v7394 = vrot.slane %v7392, 5
        %v7395 = vsel %vm6491, %v7390, %v7394
        %v7396 = vshrl.u32 %v7351, 16
        %v7398 = vrot.slane %v7396, 4
        %v7399 = vor.u32 %v7398, %v7394
        %v7400 = vrot.slane %v7399, 4
        %v7407 = vsel %vm7226, %v7355, %v7238
        %7408 = vst [vmem:[#allocation3] sm:$0x8] %v7407
        %7409 = vst.msk [vmem:[#allocation3 + $0x4] sm:$0xf] %vm1013, %v7365
        %7410 = vst.msk [vmem:[#allocation3 + $0x8] sm:$0xf] %vm1013, %v7375
        %7411 = vst.msk [vmem:[#allocation3 + $0xc] sm:$0xf] %vm1013, %v7385
        %7412 = vst.msk [vmem:[#allocation3 + $0x10] sm:$0xf] %vm1013, %v7395
        %v7413 = vld [vmem:[#allocation3 + $0x14] sm:$0x3]
        %v7414 = vsel %vm7234, %v7400, %v7413
        %7415 = vst [vmem:[#allocation3 + $0x14] sm:$0x3] %v7414
        %v7416 = vld [vmem:[#allocation3] sm:$0xf]
        %v7417 = vld [vmem:[#allocation3 + $0x4] sm:$0xf]
        %v7418 = vld [vmem:[#allocation3 + $0x8] sm:$0xf]
        %v7419 = vld [vmem:[#allocation3 + $0xc] sm:$0xf]
        %v7420 = vld [vmem:[#allocation3 + $0x10] sm:$0x3]
        %v7421 = vld [vmem:[%s31] sm:$0xf]
        %v7422 = vld [vmem:[%s31 + $0x4] sm:$0xf]
        %v7423 = vld [vmem:[%s31 + $0x8] sm:$0xf]
        %v7424 = vld [vmem:[%s31 + $0xc] sm:$0xf]
        %v7425 = vld [vmem:[#allocation3 + $0x10] sm:$0x7]
        %s7426 = scalar_lea.vmem %s31, 16
        %v7427 = vld [vmem:[%s7426] sm:$0xf]
        %v7428 = vld [vmem:[%s7426 + $0x4] sm:$0xf]
        %v7429 = vld [vmem:[%s7426 + $0x8] sm:$0xf]
        %v7430 = vld [vmem:[%s7426 + $0xc] sm:$0xf]
        %v7436 = vunpack.c.l.b16 %v7416
        %v7437 = vunpack.c.l.b16 %v7417
        %v7438 = vunpack.c.l.b16 %v7418
        %v7439 = vunpack.c.l.b16 %v7419
        %v7440 = vunpack.c.l.b16 %v7425
        %v7441 = vpack.c.b16 %v7437, %v7436
        %v7442 = vpack.c.b16 %v7439, %v7438
        %v7443 = vpack.c.b16 %v7440, %v7440
        %v7445 = vshrl.u32 %v7441, 16
        %v7447 = vshll.u32 %v7441, 16
        %v7449 = vrot.slane %v7447, 1
        %v7450 = vor.u32 %v7445, %v7449
        %v7452 = vshll.u32 %v7442, 16
        %v7454 = vrot.slane %v7452, 1
        %v7455 = vsel %vm1192, %v7450, %v7454
        %v7456 = vshrl.u32 %v7442, 16
        %v7458 = vor.u32 %v7456, %v7454
        %v7460 = vshll.u32 %v7443, 16
        %v7462 = vrot.slane %v7460, 1
        %v7463 = vsel %vm1192, %v7458, %v7462
        %v7464 = vshrl.u32 %v7443, 16
        %v7466 = vor.u32 %v7464, %v7462
        %v7471 = vunpack.c.l.b16 %v7427
        %v7472 = vunpack.c.l.b16 %v7428
        %v7473 = vunpack.c.l.b16 %v7429
        %v7474 = vunpack.c.l.b16 %v7430
        %v7475 = vpack.c.b16 %v7472, %v7471
        %v7476 = vpack.c.b16 %v7474, %v7473
        %v7480 = vsel %vm4990, %v7455, 0
        %v7483 = vsel %vm4990, %v7463, 0
        %v7486 = vsel %vm4990, %v7466, 0
        %7488 = vmatpush.bf16.msra.mxu0 0
        %7489 = vmatpush.bf16.msra.mxu0 0
        %7490 = vmatpush.bf16.msra.mxu0 0
        %7491 = vmatpush.bf16.msra.mxu0 0
        %7492 = vmatpush.bf16.msra.mxu0 0
        %7493 = vmatpush.bf16.msra.mxu0 0
        %7494 = vmatpush.bf16.msra.mxu0 %v7476
        %7495 = vmatpush.bf16.msra.mxu0 %v7475
        %7496 = vmatmul.bf16.gmra.mxu0 %v7480
        %v7497 = vpop.f32.mrf.mxu0
        %v7498 = vadd.f32 0.0, %v7497
        %v7499 = vpop.f32.mrf.mxu0
        %v7500 = vadd.f32 0.0, %v7499
        %7501 = vmatmul.bf16.gmra.mxu0 %v7483
        %v7502 = vpop.f32.mrf.mxu0
        %v7503 = vadd.f32 0.0, %v7502
        %v7504 = vpop.f32.mrf.mxu0
        %v7505 = vadd.f32 0.0, %v7504
        %7506 = vmatmul.bf16.gmra.mxu0 %v7486
        %v7507 = vpop.f32.mrf.mxu0
        %v7508 = vpop.f32.mrf.mxu0
        %7509 = vdwg.mxu0
        %v7511 = vunpack.c.l.b16 %v7420
        %v7512 = vpack.c.b16 %v7511, %v7511
        %v7517 = vunpack.c.l.b16 %v7421
        %v7518 = vunpack.c.l.b16 %v7422
        %v7519 = vunpack.c.l.b16 %v7423
        %v7520 = vunpack.c.l.b16 %v7424
        %v7521 = vpack.c.b16 %v7518, %v7517
        %v7522 = vpack.c.b16 %v7520, %v7519
        %v7525 = vsel %vm4990, %v7441, 0
        %v7527 = vsel %vm4990, %v7442, 0
        %v7530 = vsel %vm4990, %v7512, 0
        %7532 = vmatpush.bf16.msra.mxu0 0
        %7533 = vmatpush.bf16.msra.mxu0 0
        %7534 = vmatpush.bf16.msra.mxu0 0
        %7535 = vmatpush.bf16.msra.mxu0 0
        %7536 = vmatpush.bf16.msra.mxu0 0
        %7537 = vmatpush.bf16.msra.mxu0 0
        %7538 = vmatpush.bf16.msra.mxu0 %v7522
        %7539 = vmatpush.bf16.msra.mxu0 %v7521
        %7540 = vmatmul.bf16.gmra.mxu0 %v7525
        %v7541 = vpop.f32.mrf.mxu0
        %v7542 = vadd.f32 %v7498, %v7541
        %v7543 = vpop.f32.mrf.mxu0
        %v7544 = vadd.f32 %v7500, %v7543
        %7545 = vmatmul.bf16.gmra.mxu0 %v7527
        %v7546 = vpop.f32.mrf.mxu0
        %v7547 = vadd.f32 %v7503, %v7546
        %v7548 = vpop.f32.mrf.mxu0
        %v7549 = vadd.f32 %v7505, %v7548
        %7550 = vmatmul.bf16.gmra.mxu0 %v7530
        %v7551 = vpop.f32.mrf.mxu0
        %v7552 = vpop.f32.mrf.mxu0
        %7553 = vdwg.mxu0
        %v7554 = vld [vmem:[#allocation3] sm:$0xe]
        %s7555 = scalar_lea.vmem %s31, 32
        %v7556 = vld [vmem:[%s7555] sm:$0xf]
        %v7557 = vld [vmem:[%s7555 + $0x4] sm:$0xf]
        %v7558 = vld [vmem:[%s7555 + $0x8] sm:$0xf]
        %v7559 = vld [vmem:[%s7555 + $0xc] sm:$0xf]
        %v7561 = vunpack.c.l.b16 %v7554
        %v7562 = vpack.c.b16 %v7437, %v7561
        %v7563 = vrot.slane %v7562, 1
        %v7564 = vrot.slane %v7442, 1
        %v7565 = vsel %vm1704, %v7563, %v7564
        %v7566 = vrot.slane %v7443, 1
        %v7567 = vsel %vm1704, %v7564, %v7566
        %v7572 = vunpack.c.l.b16 %v7556
        %v7573 = vunpack.c.l.b16 %v7557
        %v7574 = vunpack.c.l.b16 %v7558
        %v7575 = vunpack.c.l.b16 %v7559
        %v7576 = vpack.c.b16 %v7573, %v7572
        %v7577 = vpack.c.b16 %v7575, %v7574
        %v7581 = vsel %vm4990, %v7565, 0
        %v7584 = vsel %vm4990, %v7567, 0
        %v7587 = vsel %vm4990, %v7566, 0
        %7589 = vmatpush.bf16.msra.mxu0 0
        %7590 = vmatpush.bf16.msra.mxu0 0
        %7591 = vmatpush.bf16.msra.mxu0 0
        %7592 = vmatpush.bf16.msra.mxu0 0
        %7593 = vmatpush.bf16.msra.mxu0 0
        %7594 = vmatpush.bf16.msra.mxu0 0
        %7595 = vmatpush.bf16.msra.mxu0 %v7577
        %7596 = vmatpush.bf16.msra.mxu0 %v7576
        %7597 = vmatmul.bf16.gmra.mxu0 %v7581
        %v7598 = vpop.f32.mrf.mxu0
        %v7599 = vadd.f32 0.0, %v7598
        %v7600 = vpop.f32.mrf.mxu0
        %v7601 = vadd.f32 0.0, %v7600
        %7602 = vmatmul.bf16.gmra.mxu0 %v7584
        %v7603 = vpop.f32.mrf.mxu0
        %v7604 = vadd.f32 0.0, %v7603
        %v7605 = vpop.f32.mrf.mxu0
        %v7606 = vadd.f32 0.0, %v7605
        %7607 = vmatmul.bf16.gmra.mxu0 %v7587
        %v7608 = vpop.f32.mrf.mxu0
        %v7609 = vpop.f32.mrf.mxu0
        %7610 = vdwg.mxu0
        %v7611 = vadd.f32 %v7542, %v7599
        %v7612 = vadd.f32 %v7544, %v7601
        %v7613 = vadd.f32 %v7547, %v7604
        %v7614 = vadd.f32 %v7549, %v7606
        %v7615 = vld [vmem:[#allocation3] sm:$0x8]
        %v7616 = vld [vmem:[#allocation3 + $0x4] sm:$0xf]
        %v7617 = vld [vmem:[#allocation3 + $0x8] sm:$0xf]
        %v7618 = vld [vmem:[#allocation3 + $0xc] sm:$0xf]
        %v7619 = vld [vmem:[#allocation3 + $0x10] sm:$0xf]
        %v7620 = vld [vmem:[#allocation3 + $0x14] sm:$0x1]
        %s7621 = scalar_lea.vmem %s31, 48
        %v7622 = vld [vmem:[%s7621] sm:$0xf]
        %v7623 = vld [vmem:[%s7621 + $0x4] sm:$0xf]
        %v7624 = vld [vmem:[%s7621 + $0x8] sm:$0xf]
        %v7625 = vld [vmem:[%s7621 + $0xc] sm:$0xf]
        %v7632 = vunpack.c.l.b16 %v7615
        %v7633 = vunpack.c.l.b16 %v7616
        %v7634 = vunpack.c.l.b16 %v7617
        %v7635 = vunpack.c.l.b16 %v7618
        %v7636 = vunpack.c.l.b16 %v7619
        %v7637 = vunpack.c.l.b16 %v7620
        %v7638 = vpack.c.b16 %v7633, %v7632
        %v7639 = vpack.c.b16 %v7635, %v7634
        %v7640 = vpack.c.b16 %v7637, %v7636
        %v7641 = vrot.slane %v7638, 3
        %v7642 = vrot.slane %v7639, 3
        %v7643 = vsel %vm3979, %v7641, %v7642
        %v7644 = vrot.slane %v7640, 3
        %v7645 = vsel %vm3979, %v7642, %v7644
        %v7650 = vunpack.c.l.b16 %v7622
        %v7651 = vunpack.c.l.b16 %v7623
        %v7652 = vunpack.c.l.b16 %v7624
        %v7653 = vunpack.c.l.b16 %v7625
        %v7654 = vpack.c.b16 %v7651, %v7650
        %v7655 = vpack.c.b16 %v7653, %v7652
        %v7659 = vsel %vm4990, %v7643, 0
        %v7662 = vsel %vm4990, %v7645, 0
        %v7665 = vsel %vm4990, %v7644, 0
        %7667 = vmatpush.bf16.msra.mxu0 0
        %7668 = vmatpush.bf16.msra.mxu0 0
        %7669 = vmatpush.bf16.msra.mxu0 0
        %7670 = vmatpush.bf16.msra.mxu0 0
        %7671 = vmatpush.bf16.msra.mxu0 0
        %7672 = vmatpush.bf16.msra.mxu0 0
        %7673 = vmatpush.bf16.msra.mxu0 %v7655
        %7674 = vmatpush.bf16.msra.mxu0 %v7654
        %7675 = vmatmul.bf16.gmra.mxu0 %v7659
        %v7676 = vpop.f32.mrf.mxu0
        %v7677 = vadd.f32 0.0, %v7676
        %v7678 = vpop.f32.mrf.mxu0
        %v7679 = vadd.f32 0.0, %v7678
        %7680 = vmatmul.bf16.gmra.mxu0 %v7662
        %v7681 = vpop.f32.mrf.mxu0
        %v7682 = vadd.f32 0.0, %v7681
        %v7683 = vpop.f32.mrf.mxu0
        %v7684 = vadd.f32 0.0, %v7683
        %7685 = vmatmul.bf16.gmra.mxu0 %v7665
        %v7686 = vpop.f32.mrf.mxu0
        %v7687 = vpop.f32.mrf.mxu0
        %7688 = vdwg.mxu0
        %v7689 = vadd.f32 %v7611, %v7677
        %v7690 = vadd.f32 %v7612, %v7679
        %v7691 = vadd.f32 %v7613, %v7682
        %v7692 = vadd.f32 %v7614, %v7684
        %v7693 = vld [vmem:[#allocation3 + $0x14] sm:$0x3]
        %s7694 = scalar_lea.vmem %s31, 64
        %v7695 = vld [vmem:[%s7694] sm:$0xf]
        %v7696 = vld [vmem:[%s7694 + $0x4] sm:$0xf]
        %v7697 = vld [vmem:[%s7694 + $0x8] sm:$0xf]
        %v7698 = vld [vmem:[%s7694 + $0xc] sm:$0xf]
        %v7700 = vunpack.c.l.b16 %v7693
        %v7701 = vpack.c.b16 %v7700, %v7636
        %v7703 = vshrl.u32 %v7638, 16
        %v7705 = vrot.slane %v7703, 3
        %v7706 = vshll.u32 %v7638, 16
        %v7708 = vrot.slane %v7706, 4
        %v7709 = vor.u32 %v7705, %v7708
        %v7711 = vshrl.u32 %v7639, 16
        %v7713 = vrot.slane %v7711, 3
        %v7714 = vshll.u32 %v7639, 16
        %v7716 = vrot.slane %v7714, 4
        %v7717 = vor.u32 %v7713, %v7716
        %v7718 = vsel %vm4408, %v7709, %v7717
        %v7720 = vshrl.u32 %v7701, 16
        %v7722 = vrot.slane %v7720, 3
        %v7723 = vshll.u32 %v7701, 16
        %v7725 = vrot.slane %v7723, 4
        %v7726 = vor.u32 %v7722, %v7725
        %v7727 = vsel %vm4408, %v7717, %v7726
        %v7732 = vunpack.c.l.b16 %v7695
        %v7733 = vunpack.c.l.b16 %v7696
        %v7734 = vunpack.c.l.b16 %v7697
        %v7735 = vunpack.c.l.b16 %v7698
        %v7736 = vpack.c.b16 %v7733, %v7732
        %v7737 = vpack.c.b16 %v7735, %v7734
        %v7741 = vsel %vm4990, %v7718, 0
        %v7744 = vsel %vm4990, %v7727, 0
        %v7747 = vsel %vm4990, %v7726, 0
        %7749 = vmatpush.bf16.msra.mxu0 0
        %7750 = vmatpush.bf16.msra.mxu0 0
        %7751 = vmatpush.bf16.msra.mxu0 0
        %7752 = vmatpush.bf16.msra.mxu0 0
        %7753 = vmatpush.bf16.msra.mxu0 0
        %7754 = vmatpush.bf16.msra.mxu0 0
        %7755 = vmatpush.bf16.msra.mxu0 %v7737
        %7756 = vmatpush.bf16.msra.mxu0 %v7736
        %7757 = vmatmul.bf16.gmra.mxu0 %v7741
        %v7758 = vpop.f32.mrf.mxu0
        %v7759 = vadd.f32 0.0, %v7758
        %v7760 = vpop.f32.mrf.mxu0
        %v7761 = vadd.f32 0.0, %v7760
        %7762 = vmatmul.bf16.gmra.mxu0 %v7744
        %v7763 = vpop.f32.mrf.mxu0
        %v7764 = vadd.f32 0.0, %v7763
        %v7765 = vpop.f32.mrf.mxu0
        %v7766 = vadd.f32 0.0, %v7765
        %7767 = vmatmul.bf16.gmra.mxu0 %v7747
        %v7768 = vpop.f32.mrf.mxu0
        %v7769 = vpop.f32.mrf.mxu0
        %7770 = vdwg.mxu0
        %v7771 = vadd.f32 %v7689, %v7759
        %v7772 = vadd.f32 %v7690, %v7761
        %v7773 = vadd.f32 %v7691, %v7764
        %v7774 = vadd.f32 %v7692, %v7766
        %s7775 = scalar_lea.vmem %s31, 80
        %v7776 = vld [vmem:[%s7775] sm:$0xf]
        %v7777 = vld [vmem:[%s7775 + $0x4] sm:$0xf]
        %v7778 = vld [vmem:[%s7775 + $0x8] sm:$0xf]
        %v7779 = vld [vmem:[%s7775 + $0xc] sm:$0xf]
        %v7780 = vpack.c.b16 %v7634, %v7633
        %v7781 = vpack.c.b16 %v7636, %v7635
        %v7782 = vpack.c.b16 %v7700, %v7700
        %v7787 = vunpack.c.l.b16 %v7776
        %v7788 = vunpack.c.l.b16 %v7777
        %v7789 = vunpack.c.l.b16 %v7778
        %v7790 = vunpack.c.l.b16 %v7779
        %v7791 = vpack.c.b16 %v7788, %v7787
        %v7792 = vpack.c.b16 %v7790, %v7789
        %v7796 = vsel %vm4990, %v7780, 0
        %v7799 = vsel %vm4990, %v7781, 0
        %v7802 = vsel %vm4990, %v7782, 0
        %7804 = vmatpush.bf16.msra.mxu0 0
        %7805 = vmatpush.bf16.msra.mxu0 0
        %7806 = vmatpush.bf16.msra.mxu0 0
        %7807 = vmatpush.bf16.msra.mxu0 0
        %7808 = vmatpush.bf16.msra.mxu0 0
        %7809 = vmatpush.bf16.msra.mxu0 0
        %7810 = vmatpush.bf16.msra.mxu0 %v7792
        %7811 = vmatpush.bf16.msra.mxu0 %v7791
        %7812 = vmatmul.bf16.gmra.mxu0 %v7796
        %v7813 = vpop.f32.mrf.mxu0
        %v7814 = vadd.f32 0.0, %v7813
        %v7815 = vpop.f32.mrf.mxu0
        %v7816 = vadd.f32 0.0, %v7815
        %7817 = vmatmul.bf16.gmra.mxu0 %v7799
        %v7818 = vpop.f32.mrf.mxu0
        %v7819 = vadd.f32 0.0, %v7818
        %v7820 = vpop.f32.mrf.mxu0
        %v7821 = vadd.f32 0.0, %v7820
        %7822 = vmatmul.bf16.gmra.mxu0 %v7802
        %v7823 = vpop.f32.mrf.mxu0
        %v7824 = vpop.f32.mrf.mxu0
        %7825 = vdwg.mxu0
        %v7826 = vadd.f32 %v7771, %v7814
        %v7827 = vadd.f32 %v7772, %v7816
        %v7828 = vadd.f32 %v7773, %v7819
        %v7829 = vadd.f32 %v7774, %v7821
        %v7830 = vld [vmem:[#allocation3 + $0x4] sm:$0xc]
        %v7831 = vld [vmem:[#allocation3 + $0x14] sm:$0xf]
        %s7832 = scalar_lea.vmem %s31, 96
        %v7833 = vld [vmem:[%s7832] sm:$0xf]
        %v7834 = vld [vmem:[%s7832 + $0x4] sm:$0xf]
        %v7835 = vld [vmem:[%s7832 + $0x8] sm:$0xf]
        %v7836 = vld [vmem:[%s7832 + $0xc] sm:$0xf]
        %v7839 = vunpack.c.l.b16 %v7830
        %v7840 = vunpack.c.l.b16 %v7831
        %v7841 = vpack.c.b16 %v7634, %v7839
        %v7842 = vpack.c.b16 %v7840, %v7840
        %v7843 = vrot.slane %v7841, 2
        %v7844 = vrot.slane %v7781, 2
        %v7845 = vsel %vm2770, %v7843, %v7844
        %v7846 = vrot.slane %v7842, 2
        %v7847 = vsel %vm2770, %v7844, %v7846
        %v7852 = vunpack.c.l.b16 %v7833
        %v7853 = vunpack.c.l.b16 %v7834
        %v7854 = vunpack.c.l.b16 %v7835
        %v7855 = vunpack.c.l.b16 %v7836
        %v7856 = vpack.c.b16 %v7853, %v7852
        %v7857 = vpack.c.b16 %v7855, %v7854
        %v7861 = vsel %vm4990, %v7845, 0
        %v7864 = vsel %vm4990, %v7847, 0
        %v7867 = vsel %vm4990, %v7846, 0
        %7869 = vmatpush.bf16.msra.mxu0 0
        %7870 = vmatpush.bf16.msra.mxu0 0
        %7871 = vmatpush.bf16.msra.mxu0 0
        %7872 = vmatpush.bf16.msra.mxu0 0
        %7873 = vmatpush.bf16.msra.mxu0 0
        %7874 = vmatpush.bf16.msra.mxu0 0
        %7875 = vmatpush.bf16.msra.mxu0 %v7857
        %7876 = vmatpush.bf16.msra.mxu0 %v7856
        %7877 = vmatmul.bf16.gmra.mxu0 %v7861
        %v7878 = vpop.f32.mrf.mxu0
        %v7879 = vadd.f32 0.0, %v7878
        %v7880 = vpop.f32.mrf.mxu0
        %v7881 = vadd.f32 0.0, %v7880
        %7882 = vmatmul.bf16.gmra.mxu0 %v7864
        %v7883 = vpop.f32.mrf.mxu0
        %v7884 = vadd.f32 0.0, %v7883
        %v7885 = vpop.f32.mrf.mxu0
        %v7886 = vadd.f32 0.0, %v7885
        %7887 = vmatmul.bf16.gmra.mxu0 %v7867
        %v7888 = vpop.f32.mrf.mxu0
        %v7889 = vpop.f32.mrf.mxu0
        %7890 = vdwg.mxu0
        %v7891 = vadd.f32 %v7826, %v7879
        %v7892 = vadd.f32 %v7827, %v7881
        %v7893 = vadd.f32 %v7828, %v7884
        %v7894 = vadd.f32 %v7829, %v7886
        %v7895 = vld [vmem:[#allocation3 + $0x4] sm:$0xc]
        %v7896 = vld [vmem:[#allocation3 + $0x8] sm:$0xf]
        %v7897 = vld [vmem:[#allocation3 + $0xc] sm:$0xf]
        %v7898 = vld [vmem:[#allocation3 + $0x10] sm:$0xf]
        %v7899 = vld [vmem:[#allocation3 + $0x14] sm:$0xf]
        %v7900 = vld [vmem:[#allocation3 + $0x18] sm:$0x1]
        %s7901 = scalar_lea.vmem %s31, 112
        %v7902 = vld [vmem:[%s7901] sm:$0xf]
        %v7903 = vld [vmem:[%s7901 + $0x4] sm:$0xf]
        %v7904 = vld [vmem:[%s7901 + $0x8] sm:$0xf]
        %v7905 = vld [vmem:[%s7901 + $0xc] sm:$0xf]
        %v7912 = vunpack.c.l.b16 %v7895
        %v7913 = vunpack.c.l.b16 %v7896
        %v7914 = vunpack.c.l.b16 %v7897
        %v7915 = vunpack.c.l.b16 %v7898
        %v7916 = vunpack.c.l.b16 %v7899
        %v7917 = vunpack.c.l.b16 %v7900
        %v7918 = vpack.c.b16 %v7913, %v7912
        %v7919 = vpack.c.b16 %v7915, %v7914
        %v7920 = vpack.c.b16 %v7917, %v7916
        %v7922 = vshrl.u32 %v7918, 16
        %v7924 = vrot.slane %v7922, 2
        %v7925 = vshll.u32 %v7918, 16
        %v7927 = vrot.slane %v7925, 3
        %v7928 = vor.u32 %v7924, %v7927
        %v7930 = vshrl.u32 %v7919, 16
        %v7932 = vrot.slane %v7930, 2
        %v7933 = vshll.u32 %v7919, 16
        %v7935 = vrot.slane %v7933, 3
        %v7936 = vor.u32 %v7932, %v7935
        %v7937 = vsel %vm3572, %v7928, %v7936
        %v7939 = vshrl.u32 %v7920, 16
        %v7941 = vrot.slane %v7939, 2
        %v7942 = vshll.u32 %v7920, 16
        %v7944 = vrot.slane %v7942, 3
        %v7945 = vor.u32 %v7941, %v7944
        %v7946 = vsel %vm3572, %v7936, %v7945
        %v7951 = vunpack.c.l.b16 %v7902
        %v7952 = vunpack.c.l.b16 %v7903
        %v7953 = vunpack.c.l.b16 %v7904
        %v7954 = vunpack.c.l.b16 %v7905
        %v7955 = vpack.c.b16 %v7952, %v7951
        %v7956 = vpack.c.b16 %v7954, %v7953
        %v7960 = vsel %vm4990, %v7937, 0
        %v7963 = vsel %vm4990, %v7946, 0
        %v7966 = vsel %vm4990, %v7945, 0
        %7968 = vmatpush.bf16.msra.mxu0 0
        %7969 = vmatpush.bf16.msra.mxu0 0
        %7970 = vmatpush.bf16.msra.mxu0 0
        %7971 = vmatpush.bf16.msra.mxu0 0
        %7972 = vmatpush.bf16.msra.mxu0 0
        %7973 = vmatpush.bf16.msra.mxu0 0
        %7974 = vmatpush.bf16.msra.mxu0 %v7956
        %7975 = vmatpush.bf16.msra.mxu0 %v7955
        %7976 = vmatmul.bf16.gmra.mxu0 %v7960
        %v7977 = vpop.f32.mrf.mxu0
        %v7978 = vadd.f32 0.0, %v7977
        %v7979 = vpop.f32.mrf.mxu0
        %v7980 = vadd.f32 0.0, %v7979
        %7981 = vmatmul.bf16.gmra.mxu0 %v7963
        %v7982 = vpop.f32.mrf.mxu0
        %v7983 = vadd.f32 0.0, %v7982
        %v7984 = vpop.f32.mrf.mxu0
        %v7985 = vadd.f32 0.0, %v7984
        %7986 = vmatmul.bf16.gmra.mxu0 %v7966
        %v7987 = vpop.f32.mrf.mxu0
        %v7988 = vpop.f32.mrf.mxu0
        %7989 = vdwg.mxu0
        %v7990 = vadd.f32 %v7891, %v7978
        %v7991 = vadd.f32 %v7892, %v7980
        %v7992 = vadd.f32 %v7893, %v7983
        %v7993 = vadd.f32 %v7894, %v7985
        %v7994 = vld [vmem:[#allocation3 + $0x4] sm:$0x8]
        %s7995 = scalar_lea.vmem %s31, 128
        %v7996 = vld [vmem:[%s7995] sm:$0xf]
        %v7997 = vld [vmem:[%s7995 + $0x4] sm:$0xf]
        %v7998 = vld [vmem:[%s7995 + $0x8] sm:$0xf]
        %v7999 = vld [vmem:[%s7995 + $0xc] sm:$0xf]
        %v8001 = vunpack.c.l.b16 %v7994
        %v8002 = vpack.c.b16 %v7913, %v8001
        %v8003 = vrot.slane %v8002, 3
        %v8004 = vrot.slane %v7919, 3
        %v8005 = vsel %vm3979, %v8003, %v8004
        %v8006 = vrot.slane %v7920, 3
        %v8007 = vsel %vm3979, %v8004, %v8006
        %v8012 = vunpack.c.l.b16 %v7996
        %v8013 = vunpack.c.l.b16 %v7997
        %v8014 = vunpack.c.l.b16 %v7998
        %v8015 = vunpack.c.l.b16 %v7999
        %v8016 = vpack.c.b16 %v8013, %v8012
        %v8017 = vpack.c.b16 %v8015, %v8014
        %v8021 = vsel %vm4990, %v8005, 0
        %v8024 = vsel %vm4990, %v8007, 0
        %v8027 = vsel %vm4990, %v8006, 0
        %8029 = vmatpush.bf16.msra.mxu0 0
        %8030 = vmatpush.bf16.msra.mxu0 0
        %8031 = vmatpush.bf16.msra.mxu0 0
        %8032 = vmatpush.bf16.msra.mxu0 0
        %8033 = vmatpush.bf16.msra.mxu0 0
        %8034 = vmatpush.bf16.msra.mxu0 0
        %8035 = vmatpush.bf16.msra.mxu0 %v8017
        %8036 = vmatpush.bf16.msra.mxu0 %v8016
        %8037 = vmatmul.bf16.gmra.mxu0 %v8021
        %v8038 = vpop.f32.mrf.mxu0
        %v8039 = vadd.f32 0.0, %v8038
        %v8040 = vpop.f32.mrf.mxu0
        %v8041 = vadd.f32 0.0, %v8040
        %8042 = vmatmul.bf16.gmra.mxu0 %v8024
        %v8043 = vpop.f32.mrf.mxu0
        %v8044 = vadd.f32 0.0, %v8043
        %v8045 = vpop.f32.mrf.mxu0
        %v8046 = vadd.f32 0.0, %v8045
        %8047 = vmatmul.bf16.gmra.mxu0 %v8027
        %v8048 = vpop.f32.mrf.mxu0
        %v8049 = vpop.f32.mrf.mxu0
        %8050 = vdwg.mxu0
        %v8051 = vadd.f32 %v7990, %v8039
        %v8052 = vadd.f32 %v7991, %v8041
        %v8053 = vadd.f32 %v7992, %v8044
        %v8054 = vadd.f32 %v7993, %v8046
        %v8055 = vld [vmem:[%s33] sm:$0x1]
        %v8057 = vperm.slane %v8055, 0
        %v8059 = vadd.f32 %v8051, %v8057
        %v8060 = vadd.f32 %v8052, %v8057
        %v8061 = vadd.f32 %v8053, %v8057
        %v8062 = vadd.f32 %v8054, %v8057
        %v8063 = vmax.f32 %v8059, 0.0
        %v8064 = vmax.f32 %v8060, 0.0
        %v8065 = vmax.f32 %v8061, 0.0
        %v8066 = vmax.f32 %v8062, 0.0
        %v8067 = vld [vmem:[%s3] sm:$0x1]
        %v8068 = vld [vmem:[%s5] sm:$0x1]
        %v8071 = vrot.slane %v8064, 6
        %v8072 = vrot.slane %v8065, 6
        %v8073 = vsel %vm1425, %v8071, %v8072
        %v8076 = vmax.f32 %v8063, %v8071
        %v8077 = vmax.f32 %v8064, %v8073
        %v8078 = vpack.c.bf16 %v8077, %v8076
        %v8080 = vshrl.u32 %v8078, 16
        %v8082 = vrot.slane %v8080, 3
        %v8083 = vshll.u32 %v8078, 16
        %v8085 = vrot.slane %v8083, 4
        %v8086 = vor.u32 %v8082, %v8085
        %vm8087 = vcmask 31744
        %v8089 = vsel %vm8087, %v8067, 0
        %v8092 = vsel %vm1425, %v8086, 0
        %8094 = vmatpush.bf16.msra.mxu0 0
        %8095 = vmatpush.bf16.msra.mxu0 0
        %8096 = vmatpush.bf16.msra.mxu0 0
        %8097 = vmatpush.bf16.msra.mxu0 0
        %8098 = vmatpush.bf16.msra.mxu0 0
        %8099 = vmatpush.bf16.msra.mxu0 0
        %8100 = vmatpush.bf16.msra.mxu0 0
        %8101 = vmatpush.bf16.msra.mxu0 %v8092
        %8102 = vmatmul.bf16.gmra.mxu0 %v8089
        %v8103 = vpop.f32.mrf.mxu0
        %v8104 = vadd.f32 0.0, %v8103
        %v8105 = vpop.f32.mrf.mxu0
        %8106 = vdwg.mxu0
        %v8108 = vsel %vm8087, %v8068, 0
        %8110 = vmatpush.bf16.msra.mxu0 0
        %8111 = vmatpush.bf16.msra.mxu0 0
        %8112 = vmatpush.bf16.msra.mxu0 0
        %8113 = vmatpush.bf16.msra.mxu0 0
        %8114 = vmatpush.bf16.msra.mxu0 0
        %8115 = vmatpush.bf16.msra.mxu0 0
        %8116 = vmatpush.bf16.msra.mxu0 0
        %8117 = vmatpush.bf16.msra.mxu0 %v8092
        %8118 = vmatmul.bf16.gmra.mxu0 %v8108
        %v8119 = vpop.f32.mrf.mxu0
        %v8120 = vadd.f32 0.0, %v8119
        %v8121 = vpop.f32.mrf.mxu0
        %8122 = vdwg.mxu0
        %v8123 = vmax.f32 %v8104, %v8120
        %v8124 = vpack.c.bf16 %v8123, %v8123
        %v8126 = vrot.slane %v8124, 7
        %vm8128 = vcmask 517121
        %8129 = vst.msk [vmem:[#allocation4 + $0x4] sm:$0x2] %vm8128, %v8126
        %v8131 = vrot.slane %v8066, 6
        %v8133 = vmax.f32 %v8065, %v8131
        %v8134 = vpack.c.bf16 %v8133, %v8133
        %v8136 = vshrl.u32 %v8134, 16
        %v8138 = vrot.slane %v8136, 1
        %v8139 = vshll.u32 %v8134, 16
        %v8141 = vrot.slane %v8139, 2
        %v8142 = vor.u32 %v8138, %v8141
        %v8144 = vsel %vm1425, %v8142, 0
        %8146 = vmatpush.bf16.msra.mxu0 0
        %8147 = vmatpush.bf16.msra.mxu0 0
        %8148 = vmatpush.bf16.msra.mxu0 0
        %8149 = vmatpush.bf16.msra.mxu0 0
        %8150 = vmatpush.bf16.msra.mxu0 0
        %8151 = vmatpush.bf16.msra.mxu0 0
        %8152 = vmatpush.bf16.msra.mxu0 0
        %8153 = vmatpush.bf16.msra.mxu0 %v8144
        %8154 = vmatmul.bf16.gmra.mxu0 %v8089
        %v8155 = vpop.f32.mrf.mxu0
        %v8156 = vadd.f32 0.0, %v8155
        %v8157 = vpop.f32.mrf.mxu0
        %8158 = vdwg.mxu0
        %8159 = vmatpush.bf16.msra.mxu0 0
        %8160 = vmatpush.bf16.msra.mxu0 0
        %8161 = vmatpush.bf16.msra.mxu0 0
        %8162 = vmatpush.bf16.msra.mxu0 0
        %8163 = vmatpush.bf16.msra.mxu0 0
        %8164 = vmatpush.bf16.msra.mxu0 0
        %8165 = vmatpush.bf16.msra.mxu0 0
        %8166 = vmatpush.bf16.msra.mxu0 %v8144
        %8167 = vmatmul.bf16.gmra.mxu0 %v8108
        %v8168 = vpop.f32.mrf.mxu0
        %v8169 = vadd.f32 0.0, %v8168
        %v8170 = vpop.f32.mrf.mxu0
        %8171 = vdwg.mxu0
        %v8172 = vmax.f32 %v8156, %v8169
        %v8173 = vpack.c.bf16 %v8172, %v8172
        %v8175 = vrot.slane %v8173, 5
        %vm8177 = vcmask 519171
        %8178 = vst.msk [vmem:[#allocation4 + $0x4] sm:$0x8] %vm8177, %v8175
        %v8179 = vld [vmem:[%s9] sm:$0xff]
        %v8180 = vld [vmem:[%s9 + $0x8] sm:$0xff]
        %v8181 = vld [vmem:[#allocation4] sm:$0xc]
        %v8182 = vld [vmem:[#allocation4 + $0x4] sm:$0xf]
        %v8183 = vld [vmem:[#allocation4 + $0x8] sm:$0x7]
        %v8184 = vld [vmem:[%s35] sm:$0xf]
        %v8185 = vld [vmem:[%s35 + $0x4] sm:$0xf]
        %v8186 = vld [vmem:[%s35 + $0x8] sm:$0xf]
        %v8187 = vld [vmem:[%s35 + $0xc] sm:$0xf]
        %v8188 = vld [vmem:[%s35 + $0x10] sm:$0xf]
        %v8189 = vld [vmem:[%s35 + $0x14] sm:$0xf]
        %v8190 = vld [vmem:[%s35 + $0x18] sm:$0xf]
        %v8191 = vld [vmem:[%s35 + $0x1c] sm:$0xf]
        %v8192 = vld [vmem:[%s37] sm:$0x1]
        %v8194 = vperm.slane %v8192, 0
        %v8199 = vunpack.c.l.b16 %v8181
        %v8200 = vunpack.c.l.b16 %v8182
        %v8201 = vunpack.c.l.b16 %v8183
        %v8202 = vpack.c.b16 %v8200, %v8199
        %v8203 = vpack.c.b16 %v8201, %v8201
        %v8205 = vshrl.u32 %v8202, 16
        %v8207 = vrot.slane %v8205, 2
        %v8208 = vshll.u32 %v8202, 16
        %v8210 = vrot.slane %v8208, 3
        %v8211 = vor.u32 %v8207, %v8210
        %v8213 = vshrl.u32 %v8203, 16
        %v8215 = vrot.slane %v8213, 2
        %v8216 = vshll.u32 %v8203, 16
        %v8218 = vrot.slane %v8216, 3
        %v8219 = vor.u32 %v8215, %v8218
        %v8220 = vsel %vm3572, %v8211, %v8219
        %v8229 = vunpack.c.l.b16 %v8184
        %v8230 = vunpack.c.l.b16 %v8185
        %v8231 = vunpack.c.l.b16 %v8186
        %v8232 = vunpack.c.l.b16 %v8187
        %v8233 = vunpack.c.l.b16 %v8188
        %v8234 = vunpack.c.l.b16 %v8189
        %v8235 = vunpack.c.l.b16 %v8190
        %v8236 = vunpack.c.l.b16 %v8191
        %v8237 = vpack.c.b16 %v8230, %v8229
        %v8238 = vpack.c.b16 %v8232, %v8231
        %v8239 = vpack.c.b16 %v8234, %v8233
        %v8240 = vpack.c.b16 %v8236, %v8235
        %vm8245 = vcmask 523264
        %v8247 = vsel %vm8245, %v8220, 0
        %8249 = vmatpush.bf16.msra.mxu0 0
        %8250 = vmatpush.bf16.msra.mxu0 0
        %8251 = vmatpush.bf16.msra.mxu0 0
        %8252 = vmatpush.bf16.msra.mxu0 0
        %8253 = vmatpush.bf16.msra.mxu0 %v8240
        %8254 = vmatpush.bf16.msra.mxu0 %v8239
        %8255 = vmatpush.bf16.msra.mxu0 %v8238
        %8256 = vmatpush.bf16.msra.mxu0 %v8237
        %8257 = vmatmul.bf16.gmra.mxu0 %v8247
        %v8258 = vpop.f32.mrf.mxu0
        %v8259 = vadd.f32 %v8194, %v8258
        %v8260 = vpop.f32.mrf.mxu0
        %v8261 = vadd.f32 %v8194, %v8260
        %8262 = vdwg.mxu0
        %v8263 = vmax.f32 %v8259, 0.0
        %v8264 = vmax.f32 %v8261, 0.0
        %8266 = vset.pattern.permute.xlu0 0
        %8267 = vperm.xlu0 %8266, %v8179
        %v8268 = vpop.permute.xlu0 %8267
        %8271 = vset.pattern.permute.xlu0 0
        %8272 = vperm.xlu0 %8271, %v8180
        %v8273 = vpop.permute.xlu0 %8272
        %v8275 = vmul.f32 %v8263, %v8268
        %v8276 = vmul.f32 %v8264, %v8273
        %v8277 = vpack.c.bf16 %v8275, %v8275
        %v8278 = vpack.c.bf16 %v8276, %v8276
        %vm8279 = vsmask.f32 2304
        %vm8280 = vsmask.f32 6416
        %vm8281 = vmor %vm8279, %vm8280
        %v8283 = vshrl.u32 %v8277, 16
        %v8285 = vrot.slane %v8283, 5
        %v8286 = vshll.u32 %v8277, 16
        %v8288 = vrot.slane %v8286, 6
        %v8289 = vor.u32 %v8285, %v8288
        %v8290 = vrot.slane %v8289, 4
        %v8292 = vshrl.u32 %v8278, 16
        %v8294 = vrot.slane %v8292, 5
        %v8295 = vshll.u32 %v8278, 16
        %v8297 = vrot.slane %v8295, 6
        %v8298 = vor.u32 %v8294, %v8297
        %v8299 = vsel %vm8281, %v8290, %v8298
        %v8300 = vrot.slane %v8298, 4
        %vm8304 = vcmask 257026
        %vm8305 = vsmask.f32 7946
        %vm8306 = vmand %vm8304, %vm8305
        %v8307 = vsel %vm8306, %v8289, %v8181
        %8308 = vst [vmem:[#allocation4] sm:$0xc] %v8307
        %8309 = vst.msk [vmem:[#allocation4 + $0x4] sm:$0xf] %vm1013, %v8299
        %vm8310 = vcmask 256000
        %vm8311 = vmand %vm8310, %vm8279
        %v8312 = vld [vmem:[#allocation4 + $0x8] sm:$0x7]
        %v8313 = vsel %vm8311, %v8300, %v8312
        %8314 = vst [vmem:[#allocation4 + $0x8] sm:$0x7] %v8313
        %v8315 = vld [vmem:[#allocation4] sm:$0xf]
        %v8316 = vld [vmem:[#allocation4 + $0x4] sm:$0xf]
        %v8317 = vld [vmem:[%s39] sm:$0xf]
        %v8318 = vld [vmem:[%s39 + $0x4] sm:$0xf]
        %v8319 = vld [vmem:[%s39 + $0x8] sm:$0xf]
        %v8320 = vld [vmem:[%s39 + $0xc] sm:$0xf]
        %v8321 = vld [vmem:[#allocation4 + $0x8] sm:$0x1]
        %s8322 = scalar_lea.vmem %s39, 16
        %v8323 = vld [vmem:[%s8322] sm:$0xf]
        %v8324 = vld [vmem:[%s8322 + $0x4] sm:$0xf]
        %v8325 = vld [vmem:[%s8322 + $0x8] sm:$0xf]
        %v8326 = vld [vmem:[%s8322 + $0xc] sm:$0xf]
        %v8330 = vunpack.c.l.b16 %v8315
        %v8331 = vunpack.c.l.b16 %v8316
        %v8332 = vunpack.c.l.b16 %v8321
        %v8333 = vpack.c.b16 %v8331, %v8330
        %v8334 = vpack.c.b16 %v8332, %v8332
        %v8336 = vshrl.u32 %v8333, 16
        %v8338 = vshll.u32 %v8333, 16
        %v8340 = vrot.slane %v8338, 1
        %v8341 = vor.u32 %v8336, %v8340
        %v8343 = vshll.u32 %v8334, 16
        %v8345 = vrot.slane %v8343, 1
        %v8346 = vsel %vm1192, %v8341, %v8345
        %v8351 = vunpack.c.l.b16 %v8323
        %v8352 = vunpack.c.l.b16 %v8324
        %v8353 = vunpack.c.l.b16 %v8325
        %v8354 = vunpack.c.l.b16 %v8326
        %v8355 = vpack.c.b16 %v8352, %v8351
        %v8356 = vpack.c.b16 %v8354, %v8353
        %v8360 = vsel %vm4990, %v8346, 0
        %8362 = vmatpush.bf16.msra.mxu0 0
        %8363 = vmatpush.bf16.msra.mxu0 0
        %8364 = vmatpush.bf16.msra.mxu0 0
        %8365 = vmatpush.bf16.msra.mxu0 0
        %8366 = vmatpush.bf16.msra.mxu0 0
        %8367 = vmatpush.bf16.msra.mxu0 0
        %8368 = vmatpush.bf16.msra.mxu0 %v8356
        %8369 = vmatpush.bf16.msra.mxu0 %v8355
        %8370 = vmatmul.bf16.gmra.mxu0 %v8360
        %v8371 = vpop.f32.mrf.mxu0
        %v8372 = vadd.f32 0.0, %v8371
        %v8373 = vpop.f32.mrf.mxu0
        %v8374 = vadd.f32 0.0, %v8373
        %8375 = vdwg.mxu0
        %v8380 = vunpack.c.l.b16 %v8317
        %v8381 = vunpack.c.l.b16 %v8318
        %v8382 = vunpack.c.l.b16 %v8319
        %v8383 = vunpack.c.l.b16 %v8320
        %v8384 = vpack.c.b16 %v8381, %v8380
        %v8385 = vpack.c.b16 %v8383, %v8382
        %v8388 = vsel %vm4990, %v8333, 0
        %8390 = vmatpush.bf16.msra.mxu0 0
        %8391 = vmatpush.bf16.msra.mxu0 0
        %8392 = vmatpush.bf16.msra.mxu0 0
        %8393 = vmatpush.bf16.msra.mxu0 0
        %8394 = vmatpush.bf16.msra.mxu0 0
        %8395 = vmatpush.bf16.msra.mxu0 0
        %8396 = vmatpush.bf16.msra.mxu0 %v8385
        %8397 = vmatpush.bf16.msra.mxu0 %v8384
        %8398 = vmatmul.bf16.gmra.mxu0 %v8388
        %v8399 = vpop.f32.mrf.mxu0
        %v8400 = vadd.f32 %v8372, %v8399
        %v8401 = vpop.f32.mrf.mxu0
        %v8402 = vadd.f32 %v8374, %v8401
        %8403 = vdwg.mxu0
        %v8404 = vld [vmem:[#allocation4] sm:$0xe]
        %s8405 = scalar_lea.vmem %s39, 32
        %v8406 = vld [vmem:[%s8405] sm:$0xf]
        %v8407 = vld [vmem:[%s8405 + $0x4] sm:$0xf]
        %v8408 = vld [vmem:[%s8405 + $0x8] sm:$0xf]
        %v8409 = vld [vmem:[%s8405 + $0xc] sm:$0xf]
        %v8411 = vunpack.c.l.b16 %v8404
        %v8412 = vpack.c.b16 %v8331, %v8411
        %v8413 = vrot.slane %v8412, 1
        %v8414 = vrot.slane %v8334, 1
        %v8415 = vsel %vm1704, %v8413, %v8414
        %v8420 = vunpack.c.l.b16 %v8406
        %v8421 = vunpack.c.l.b16 %v8407
        %v8422 = vunpack.c.l.b16 %v8408
        %v8423 = vunpack.c.l.b16 %v8409
        %v8424 = vpack.c.b16 %v8421, %v8420
        %v8425 = vpack.c.b16 %v8423, %v8422
        %v8429 = vsel %vm4990, %v8415, 0
        %8431 = vmatpush.bf16.msra.mxu0 0
        %8432 = vmatpush.bf16.msra.mxu0 0
        %8433 = vmatpush.bf16.msra.mxu0 0
        %8434 = vmatpush.bf16.msra.mxu0 0
        %8435 = vmatpush.bf16.msra.mxu0 0
        %8436 = vmatpush.bf16.msra.mxu0 0
        %8437 = vmatpush.bf16.msra.mxu0 %v8425
        %8438 = vmatpush.bf16.msra.mxu0 %v8424
        %8439 = vmatmul.bf16.gmra.mxu0 %v8429
        %v8440 = vpop.f32.mrf.mxu0
        %v8441 = vadd.f32 0.0, %v8440
        %v8442 = vpop.f32.mrf.mxu0
        %v8443 = vadd.f32 0.0, %v8442
        %8444 = vdwg.mxu0
        %v8445 = vadd.f32 %v8400, %v8441
        %v8446 = vadd.f32 %v8402, %v8443
        %v8447 = vld [vmem:[#allocation4] sm:$0xc]
        %v8448 = vld [vmem:[#allocation4 + $0x8] sm:$0x3]
        %s8449 = scalar_lea.vmem %s39, 48
        %v8450 = vld [vmem:[%s8449] sm:$0xf]
        %v8451 = vld [vmem:[%s8449 + $0x4] sm:$0xf]
        %v8452 = vld [vmem:[%s8449 + $0x8] sm:$0xf]
        %v8453 = vld [vmem:[%s8449 + $0xc] sm:$0xf]
        %v8456 = vunpack.c.l.b16 %v8447
        %v8457 = vunpack.c.l.b16 %v8448
        %v8458 = vpack.c.b16 %v8331, %v8456
        %v8459 = vpack.c.b16 %v8457, %v8457
        %v8460 = vrot.slane %v8458, 2
        %v8461 = vrot.slane %v8459, 2
        %v8462 = vsel %vm2770, %v8460, %v8461
        %v8467 = vunpack.c.l.b16 %v8450
        %v8468 = vunpack.c.l.b16 %v8451
        %v8469 = vunpack.c.l.b16 %v8452
        %v8470 = vunpack.c.l.b16 %v8453
        %v8471 = vpack.c.b16 %v8468, %v8467
        %v8472 = vpack.c.b16 %v8470, %v8469
        %v8476 = vsel %vm4990, %v8462, 0
        %8478 = vmatpush.bf16.msra.mxu0 0
        %8479 = vmatpush.bf16.msra.mxu0 0
        %8480 = vmatpush.bf16.msra.mxu0 0
        %8481 = vmatpush.bf16.msra.mxu0 0
        %8482 = vmatpush.bf16.msra.mxu0 0
        %8483 = vmatpush.bf16.msra.mxu0 0
        %8484 = vmatpush.bf16.msra.mxu0 %v8472
        %8485 = vmatpush.bf16.msra.mxu0 %v8471
        %8486 = vmatmul.bf16.gmra.mxu0 %v8476
        %v8487 = vpop.f32.mrf.mxu0
        %v8488 = vadd.f32 0.0, %v8487
        %v8489 = vpop.f32.mrf.mxu0
        %v8490 = vadd.f32 0.0, %v8489
        %8491 = vdwg.mxu0
        %v8492 = vadd.f32 %v8445, %v8488
        %v8493 = vadd.f32 %v8446, %v8490
        %v8494 = vld [vmem:[#allocation4 + $0x8] sm:$0x7]
        %s8495 = scalar_lea.vmem %s39, 64
        %v8496 = vld [vmem:[%s8495] sm:$0xf]
        %v8497 = vld [vmem:[%s8495 + $0x4] sm:$0xf]
        %v8498 = vld [vmem:[%s8495 + $0x8] sm:$0xf]
        %v8499 = vld [vmem:[%s8495 + $0xc] sm:$0xf]
        %v8501 = vunpack.c.l.b16 %v8494
        %v8502 = vpack.c.b16 %v8501, %v8501
        %v8504 = vshrl.u32 %v8458, 16
        %v8506 = vrot.slane %v8504, 2
        %v8507 = vshll.u32 %v8458, 16
        %v8509 = vrot.slane %v8507, 3
        %v8510 = vor.u32 %v8506, %v8509
        %v8512 = vshrl.u32 %v8502, 16
        %v8514 = vrot.slane %v8512, 2
        %v8515 = vshll.u32 %v8502, 16
        %v8517 = vrot.slane %v8515, 3
        %v8518 = vor.u32 %v8514, %v8517
        %v8519 = vsel %vm3572, %v8510, %v8518
        %v8524 = vunpack.c.l.b16 %v8496
        %v8525 = vunpack.c.l.b16 %v8497
        %v8526 = vunpack.c.l.b16 %v8498
        %v8527 = vunpack.c.l.b16 %v8499
        %v8528 = vpack.c.b16 %v8525, %v8524
        %v8529 = vpack.c.b16 %v8527, %v8526
        %v8533 = vsel %vm4990, %v8519, 0
        %8535 = vmatpush.bf16.msra.mxu0 0
        %8536 = vmatpush.bf16.msra.mxu0 0
        %8537 = vmatpush.bf16.msra.mxu0 0
        %8538 = vmatpush.bf16.msra.mxu0 0
        %8539 = vmatpush.bf16.msra.mxu0 0
        %8540 = vmatpush.bf16.msra.mxu0 0
        %8541 = vmatpush.bf16.msra.mxu0 %v8529
        %8542 = vmatpush.bf16.msra.mxu0 %v8528
        %8543 = vmatmul.bf16.gmra.mxu0 %v8533
        %v8544 = vpop.f32.mrf.mxu0
        %v8545 = vadd.f32 0.0, %v8544
        %v8546 = vpop.f32.mrf.mxu0
        %v8547 = vadd.f32 0.0, %v8546
        %8548 = vdwg.mxu0
        %v8549 = vadd.f32 %v8492, %v8545
        %v8550 = vadd.f32 %v8493, %v8547
        %v8551 = vld [vmem:[#allocation4] sm:$0x8]
        %s8552 = scalar_lea.vmem %s39, 80
        %v8553 = vld [vmem:[%s8552] sm:$0xf]
        %v8554 = vld [vmem:[%s8552 + $0x4] sm:$0xf]
        %v8555 = vld [vmem:[%s8552 + $0x8] sm:$0xf]
        %v8556 = vld [vmem:[%s8552 + $0xc] sm:$0xf]
        %v8558 = vunpack.c.l.b16 %v8551
        %v8559 = vpack.c.b16 %v8331, %v8558
        %v8560 = vrot.slane %v8559, 3
        %v8561 = vrot.slane %v8502, 3
        %v8562 = vsel %vm3979, %v8560, %v8561
        %v8567 = vunpack.c.l.b16 %v8553
        %v8568 = vunpack.c.l.b16 %v8554
        %v8569 = vunpack.c.l.b16 %v8555
        %v8570 = vunpack.c.l.b16 %v8556
        %v8571 = vpack.c.b16 %v8568, %v8567
        %v8572 = vpack.c.b16 %v8570, %v8569
        %v8576 = vsel %vm4990, %v8562, 0
        %8578 = vmatpush.bf16.msra.mxu0 0
        %8579 = vmatpush.bf16.msra.mxu0 0
        %8580 = vmatpush.bf16.msra.mxu0 0
        %8581 = vmatpush.bf16.msra.mxu0 0
        %8582 = vmatpush.bf16.msra.mxu0 0
        %8583 = vmatpush.bf16.msra.mxu0 0
        %8584 = vmatpush.bf16.msra.mxu0 %v8572
        %8585 = vmatpush.bf16.msra.mxu0 %v8571
        %8586 = vmatmul.bf16.gmra.mxu0 %v8576
        %v8587 = vpop.f32.mrf.mxu0
        %v8588 = vadd.f32 0.0, %v8587
        %v8589 = vpop.f32.mrf.mxu0
        %v8590 = vadd.f32 0.0, %v8589
        %8591 = vdwg.mxu0
        %v8592 = vadd.f32 %v8549, %v8588
        %v8593 = vadd.f32 %v8550, %v8590
        %v8594 = vld [vmem:[#allocation4 + $0x8] sm:$0xf]
        %s8595 = scalar_lea.vmem %s39, 96
        %v8596 = vld [vmem:[%s8595] sm:$0xf]
        %v8597 = vld [vmem:[%s8595 + $0x4] sm:$0xf]
        %v8598 = vld [vmem:[%s8595 + $0x8] sm:$0xf]
        %v8599 = vld [vmem:[%s8595 + $0xc] sm:$0xf]
        %v8601 = vunpack.c.l.b16 %v8594
        %v8602 = vpack.c.b16 %v8601, %v8331
        %v8607 = vunpack.c.l.b16 %v8596
        %v8608 = vunpack.c.l.b16 %v8597
        %v8609 = vunpack.c.l.b16 %v8598
        %v8610 = vunpack.c.l.b16 %v8599
        %v8611 = vpack.c.b16 %v8608, %v8607
        %v8612 = vpack.c.b16 %v8610, %v8609
        %v8616 = vsel %vm4990, %v8602, 0
        %8618 = vmatpush.bf16.msra.mxu0 0
        %8619 = vmatpush.bf16.msra.mxu0 0
        %8620 = vmatpush.bf16.msra.mxu0 0
        %8621 = vmatpush.bf16.msra.mxu0 0
        %8622 = vmatpush.bf16.msra.mxu0 0
        %8623 = vmatpush.bf16.msra.mxu0 0
        %8624 = vmatpush.bf16.msra.mxu0 %v8612
        %8625 = vmatpush.bf16.msra.mxu0 %v8611
        %8626 = vmatmul.bf16.gmra.mxu0 %v8616
        %v8627 = vpop.f32.mrf.mxu0
        %v8628 = vadd.f32 0.0, %v8627
        %v8629 = vpop.f32.mrf.mxu0
        %v8630 = vadd.f32 0.0, %v8629
        %8631 = vdwg.mxu0
        %v8632 = vadd.f32 %v8592, %v8628
        %v8633 = vadd.f32 %v8593, %v8630
        %v8634 = vld [vmem:[#allocation4 + $0x4] sm:$0xf]
        %v8635 = vld [vmem:[#allocation4 + $0x8] sm:$0xf]
        %v8636 = vld [vmem:[#allocation4 + $0xc] sm:$0x1]
        %s8637 = scalar_lea.vmem %s39, 112
        %v8638 = vld [vmem:[%s8637] sm:$0xf]
        %v8639 = vld [vmem:[%s8637 + $0x4] sm:$0xf]
        %v8640 = vld [vmem:[%s8637 + $0x8] sm:$0xf]
        %v8641 = vld [vmem:[%s8637 + $0xc] sm:$0xf]
        %v8645 = vunpack.c.l.b16 %v8634
        %v8646 = vunpack.c.l.b16 %v8635
        %v8647 = vunpack.c.l.b16 %v8636
        %v8648 = vpack.c.b16 %v8646, %v8645
        %v8649 = vpack.c.b16 %v8647, %v8647
        %v8651 = vshrl.u32 %v8648, 16
        %v8653 = vshll.u32 %v8648, 16
        %v8655 = vrot.slane %v8653, 1
        %v8656 = vor.u32 %v8651, %v8655
        %v8658 = vshll.u32 %v8649, 16
        %v8660 = vrot.slane %v8658, 1
        %v8661 = vsel %vm1192, %v8656, %v8660
        %v8666 = vunpack.c.l.b16 %v8638
        %v8667 = vunpack.c.l.b16 %v8639
        %v8668 = vunpack.c.l.b16 %v8640
        %v8669 = vunpack.c.l.b16 %v8641
        %v8670 = vpack.c.b16 %v8667, %v8666
        %v8671 = vpack.c.b16 %v8669, %v8668
        %v8675 = vsel %vm4990, %v8661, 0
        %8677 = vmatpush.bf16.msra.mxu0 0
        %8678 = vmatpush.bf16.msra.mxu0 0
        %8679 = vmatpush.bf16.msra.mxu0 0
        %8680 = vmatpush.bf16.msra.mxu0 0
        %8681 = vmatpush.bf16.msra.mxu0 0
        %8682 = vmatpush.bf16.msra.mxu0 0
        %8683 = vmatpush.bf16.msra.mxu0 %v8671
        %8684 = vmatpush.bf16.msra.mxu0 %v8670
        %8685 = vmatmul.bf16.gmra.mxu0 %v8675
        %v8686 = vpop.f32.mrf.mxu0
        %v8687 = vadd.f32 0.0, %v8686
        %v8688 = vpop.f32.mrf.mxu0
        %v8689 = vadd.f32 0.0, %v8688
        %8690 = vdwg.mxu0
        %v8691 = vadd.f32 %v8632, %v8687
        %v8692 = vadd.f32 %v8633, %v8689
        %v8693 = vld [vmem:[#allocation4 + $0x4] sm:$0xe]
        %s8694 = scalar_lea.vmem %s39, 128
        %v8695 = vld [vmem:[%s8694] sm:$0xf]
        %v8696 = vld [vmem:[%s8694 + $0x4] sm:$0xf]
        %v8697 = vld [vmem:[%s8694 + $0x8] sm:$0xf]
        %v8698 = vld [vmem:[%s8694 + $0xc] sm:$0xf]
        %v8700 = vunpack.c.l.b16 %v8693
        %v8701 = vpack.c.b16 %v8646, %v8700
        %v8702 = vrot.slane %v8701, 1
        %v8703 = vrot.slane %v8649, 1
        %v8704 = vsel %vm1704, %v8702, %v8703
        %v8709 = vunpack.c.l.b16 %v8695
        %v8710 = vunpack.c.l.b16 %v8696
        %v8711 = vunpack.c.l.b16 %v8697
        %v8712 = vunpack.c.l.b16 %v8698
        %v8713 = vpack.c.b16 %v8710, %v8709
        %v8714 = vpack.c.b16 %v8712, %v8711
        %v8718 = vsel %vm4990, %v8704, 0
        %8720 = vmatpush.bf16.msra.mxu0 0
        %8721 = vmatpush.bf16.msra.mxu0 0
        %8722 = vmatpush.bf16.msra.mxu0 0
        %8723 = vmatpush.bf16.msra.mxu0 0
        %8724 = vmatpush.bf16.msra.mxu0 0
        %8725 = vmatpush.bf16.msra.mxu0 0
        %8726 = vmatpush.bf16.msra.mxu0 %v8714
        %8727 = vmatpush.bf16.msra.mxu0 %v8713
        %8728 = vmatmul.bf16.gmra.mxu0 %v8718
        %v8729 = vpop.f32.mrf.mxu0
        %v8730 = vadd.f32 0.0, %v8729
        %v8731 = vpop.f32.mrf.mxu0
        %v8732 = vadd.f32 0.0, %v8731
        %8733 = vdwg.mxu0
        %v8734 = vadd.f32 %v8691, %v8730
        %v8735 = vadd.f32 %v8692, %v8732
        %v8736 = vld [vmem:[%s41] sm:$0x1]
        %v8738 = vperm.slane %v8736, 0
        %v8740 = vadd.f32 %v8734, %v8738
        %v8741 = vadd.f32 %v8735, %v8738
        %v8742 = vmax.f32 %v8740, 0.0
        %v8743 = vmax.f32 %v8741, 0.0
        %v8744 = vmul.f32 %v8742, %v8268
        %v8745 = vmul.f32 %v8743, %v8273
        %v8746 = vpack.c.bf16 %v8744, %v8744
        %v8747 = vpack.c.bf16 %v8745, %v8745
        %v8749 = vshrl.u32 %v8746, 16
        %v8751 = vrot.slane %v8749, 5
        %v8752 = vshll.u32 %v8746, 16
        %v8754 = vrot.slane %v8752, 6
        %v8755 = vor.u32 %v8751, %v8754
        %v8756 = vrot.slane %v8755, 4
        %v8758 = vshrl.u32 %v8747, 16
        %v8760 = vrot.slane %v8758, 5
        %v8761 = vshll.u32 %v8747, 16
        %v8763 = vrot.slane %v8761, 6
        %v8764 = vor.u32 %v8760, %v8763
        %v8765 = vsel %vm8281, %v8756, %v8764
        %v8766 = vrot.slane %v8764, 4
        %vm8770 = vcmask 519170
        %vm8771 = vmand %vm8770, %vm8305
        %v8772 = vsel %vm8771, %v8755, %v8447
        %8773 = vst [vmem:[#allocation4] sm:$0xc] %v8772
        %8774 = vst.msk [vmem:[#allocation4 + $0x4] sm:$0xf] %vm1038, %v8765
        %vm8775 = vcmask 518144
        %vm8776 = vmand %vm8775, %vm8279
        %v8777 = vld [vmem:[#allocation4 + $0x8] sm:$0x7]
        %v8778 = vsel %vm8776, %v8766, %v8777
        %8779 = vst [vmem:[#allocation4 + $0x8] sm:$0x7] %v8778
        %v8780 = vld [vmem:[#allocation4] sm:$0xc]
        %v8781 = vld [vmem:[#allocation4 + $0x4] sm:$0xf]
        %v8782 = vld [vmem:[#allocation4 + $0x8] sm:$0x7]
        %v8783 = vld [vmem:[%s43] sm:$0xf]
        %v8784 = vld [vmem:[%s43 + $0x4] sm:$0xf]
        %v8785 = vld [vmem:[%s43 + $0x8] sm:$0xf]
        %v8786 = vld [vmem:[%s43 + $0xc] sm:$0xf]
        %v8787 = vld [vmem:[%s43 + $0x10] sm:$0xf]
        %v8788 = vld [vmem:[%s43 + $0x14] sm:$0xf]
        %v8789 = vld [vmem:[%s43 + $0x18] sm:$0xf]
        %v8790 = vld [vmem:[%s43 + $0x1c] sm:$0xf]
        %v8791 = vld [vmem:[%s45] sm:$0x1]
        %v8793 = vperm.slane %v8791, 0
        %v8798 = vunpack.c.l.b16 %v8780
        %v8799 = vunpack.c.l.b16 %v8781
        %v8800 = vunpack.c.l.b16 %v8782
        %v8801 = vpack.c.b16 %v8799, %v8798
        %v8802 = vpack.c.b16 %v8800, %v8800
        %v8804 = vshrl.u32 %v8801, 16
        %v8806 = vrot.slane %v8804, 2
        %v8807 = vshll.u32 %v8801, 16
        %v8809 = vrot.slane %v8807, 3
        %v8810 = vor.u32 %v8806, %v8809
        %v8812 = vshrl.u32 %v8802, 16
        %v8814 = vrot.slane %v8812, 2
        %v8815 = vshll.u32 %v8802, 16
        %v8817 = vrot.slane %v8815, 3
        %v8818 = vor.u32 %v8814, %v8817
        %v8819 = vsel %vm3572, %v8810, %v8818
        %v8828 = vunpack.c.l.b16 %v8783
        %v8829 = vunpack.c.l.b16 %v8784
        %v8830 = vunpack.c.l.b16 %v8785
        %v8831 = vunpack.c.l.b16 %v8786
        %v8832 = vunpack.c.l.b16 %v8787
        %v8833 = vunpack.c.l.b16 %v8788
        %v8834 = vunpack.c.l.b16 %v8789
        %v8835 = vunpack.c.l.b16 %v8790
        %v8836 = vpack.c.b16 %v8829, %v8828
        %v8837 = vpack.c.b16 %v8831, %v8830
        %v8838 = vpack.c.b16 %v8833, %v8832
        %v8839 = vpack.c.b16 %v8835, %v8834
        %v8845 = vsel %vm8245, %v8819, 0
        %8847 = vmatpush.bf16.msra.mxu0 0
        %8848 = vmatpush.bf16.msra.mxu0 0
        %8849 = vmatpush.bf16.msra.mxu0 0
        %8850 = vmatpush.bf16.msra.mxu0 0
        %8851 = vmatpush.bf16.msra.mxu0 %v8839
        %8852 = vmatpush.bf16.msra.mxu0 %v8838
        %8853 = vmatpush.bf16.msra.mxu0 %v8837
        %8854 = vmatpush.bf16.msra.mxu0 %v8836
        %8855 = vmatmul.bf16.gmra.mxu0 %v8845
        %v8856 = vpop.f32.mrf.mxu0
        %v8857 = vadd.f32 %v8793, %v8856
        %v8858 = vpop.f32.mrf.mxu0
        %v8859 = vadd.f32 %v8793, %v8858
        %8860 = vdwg.mxu0
        %v8861 = vmax.f32 %v8857, 0.0
        %v8862 = vmax.f32 %v8859, 0.0
        %v8863 = vmul.f32 %v8861, %v8268
        %v8864 = vmul.f32 %v8862, %v8273
        %v8865 = vpack.c.bf16 %v8863, %v8863
        %v8866 = vpack.c.bf16 %v8864, %v8864
        %v8868 = vshrl.u32 %v8865, 16
        %v8870 = vrot.slane %v8868, 5
        %v8871 = vshll.u32 %v8865, 16
        %v8873 = vrot.slane %v8871, 6
        %v8874 = vor.u32 %v8870, %v8873
        %v8875 = vrot.slane %v8874, 4
        %v8877 = vshrl.u32 %v8866, 16
        %v8879 = vrot.slane %v8877, 5
        %v8880 = vshll.u32 %v8866, 16
        %v8882 = vrot.slane %v8880, 6
        %v8883 = vor.u32 %v8879, %v8882
        %v8884 = vsel %vm8281, %v8875, %v8883
        %v8885 = vrot.slane %v8883, 4
        %v8889 = vsel %vm8306, %v8874, %v8780
        %8890 = vst [vmem:[#allocation4] sm:$0xc] %v8889
        %8891 = vst.msk [vmem:[#allocation4 + $0x4] sm:$0xf] %vm1013, %v8884
        %v8892 = vld [vmem:[#allocation4 + $0x8] sm:$0x7]
        %v8893 = vsel %vm8311, %v8885, %v8892
        %8894 = vst [vmem:[#allocation4 + $0x8] sm:$0x7] %v8893
        %v8895 = vld [vmem:[#allocation4] sm:$0xf]
        %v8896 = vld [vmem:[#allocation4 + $0x4] sm:$0xf]
        %v8897 = vld [vmem:[%s47] sm:$0xf]
        %v8898 = vld [vmem:[%s47 + $0x4] sm:$0xf]
        %v8899 = vld [vmem:[%s47 + $0x8] sm:$0xf]
        %v8900 = vld [vmem:[%s47 + $0xc] sm:$0xf]
        %v8901 = vld [vmem:[#allocation4 + $0x8] sm:$0x1]
        %s8902 = scalar_lea.vmem %s47, 16
        %v8903 = vld [vmem:[%s8902] sm:$0xf]
        %v8904 = vld [vmem:[%s8902 + $0x4] sm:$0xf]
        %v8905 = vld [vmem:[%s8902 + $0x8] sm:$0xf]
        %v8906 = vld [vmem:[%s8902 + $0xc] sm:$0xf]
        %v8910 = vunpack.c.l.b16 %v8895
        %v8911 = vunpack.c.l.b16 %v8896
        %v8912 = vunpack.c.l.b16 %v8901
        %v8913 = vpack.c.b16 %v8911, %v8910
        %v8914 = vpack.c.b16 %v8912, %v8912
        %v8916 = vshrl.u32 %v8913, 16
        %v8918 = vshll.u32 %v8913, 16
        %v8920 = vrot.slane %v8918, 1
        %v8921 = vor.u32 %v8916, %v8920
        %v8923 = vshll.u32 %v8914, 16
        %v8925 = vrot.slane %v8923, 1
        %v8926 = vsel %vm1192, %v8921, %v8925
        %v8931 = vunpack.c.l.b16 %v8903
        %v8932 = vunpack.c.l.b16 %v8904
        %v8933 = vunpack.c.l.b16 %v8905
        %v8934 = vunpack.c.l.b16 %v8906
        %v8935 = vpack.c.b16 %v8932, %v8931
        %v8936 = vpack.c.b16 %v8934, %v8933
        %v8940 = vsel %vm4990, %v8926, 0
        %8942 = vmatpush.bf16.msra.mxu0 0
        %8943 = vmatpush.bf16.msra.mxu0 0
        %8944 = vmatpush.bf16.msra.mxu0 0
        %8945 = vmatpush.bf16.msra.mxu0 0
        %8946 = vmatpush.bf16.msra.mxu0 0
        %8947 = vmatpush.bf16.msra.mxu0 0
        %8948 = vmatpush.bf16.msra.mxu0 %v8936
        %8949 = vmatpush.bf16.msra.mxu0 %v8935
        %8950 = vmatmul.bf16.gmra.mxu0 %v8940
        %v8951 = vpop.f32.mrf.mxu0
        %v8952 = vadd.f32 0.0, %v8951
        %v8953 = vpop.f32.mrf.mxu0
        %v8954 = vadd.f32 0.0, %v8953
        %8955 = vdwg.mxu0
        %v8960 = vunpack.c.l.b16 %v8897
        %v8961 = vunpack.c.l.b16 %v8898
        %v8962 = vunpack.c.l.b16 %v8899
        %v8963 = vunpack.c.l.b16 %v8900
        %v8964 = vpack.c.b16 %v8961, %v8960
        %v8965 = vpack.c.b16 %v8963, %v8962
        %v8968 = vsel %vm4990, %v8913, 0
        %8970 = vmatpush.bf16.msra.mxu0 0
        %8971 = vmatpush.bf16.msra.mxu0 0
        %8972 = vmatpush.bf16.msra.mxu0 0
        %8973 = vmatpush.bf16.msra.mxu0 0
        %8974 = vmatpush.bf16.msra.mxu0 0
        %8975 = vmatpush.bf16.msra.mxu0 0
        %8976 = vmatpush.bf16.msra.mxu0 %v8965
        %8977 = vmatpush.bf16.msra.mxu0 %v8964
        %8978 = vmatmul.bf16.gmra.mxu0 %v8968
        %v8979 = vpop.f32.mrf.mxu0
        %v8980 = vadd.f32 %v8952, %v8979
        %v8981 = vpop.f32.mrf.mxu0
        %v8982 = vadd.f32 %v8954, %v8981
        %8983 = vdwg.mxu0
        %v8984 = vld [vmem:[#allocation4] sm:$0xe]
        %s8985 = scalar_lea.vmem %s47, 32
        %v8986 = vld [vmem:[%s8985] sm:$0xf]
        %v8987 = vld [vmem:[%s8985 + $0x4] sm:$0xf]
        %v8988 = vld [vmem:[%s8985 + $0x8] sm:$0xf]
        %v8989 = vld [vmem:[%s8985 + $0xc] sm:$0xf]
        %v8991 = vunpack.c.l.b16 %v8984
        %v8992 = vpack.c.b16 %v8911, %v8991
        %v8993 = vrot.slane %v8992, 1
        %v8994 = vrot.slane %v8914, 1
        %v8995 = vsel %vm1704, %v8993, %v8994
        %v9000 = vunpack.c.l.b16 %v8986
        %v9001 = vunpack.c.l.b16 %v8987
        %v9002 = vunpack.c.l.b16 %v8988
        %v9003 = vunpack.c.l.b16 %v8989
        %v9004 = vpack.c.b16 %v9001, %v9000
        %v9005 = vpack.c.b16 %v9003, %v9002
        %v9009 = vsel %vm4990, %v8995, 0
        %9011 = vmatpush.bf16.msra.mxu0 0
        %9012 = vmatpush.bf16.msra.mxu0 0
        %9013 = vmatpush.bf16.msra.mxu0 0
        %9014 = vmatpush.bf16.msra.mxu0 0
        %9015 = vmatpush.bf16.msra.mxu0 0
        %9016 = vmatpush.bf16.msra.mxu0 0
        %9017 = vmatpush.bf16.msra.mxu0 %v9005
        %9018 = vmatpush.bf16.msra.mxu0 %v9004
        %9019 = vmatmul.bf16.gmra.mxu0 %v9009
        %v9020 = vpop.f32.mrf.mxu0
        %v9021 = vadd.f32 0.0, %v9020
        %v9022 = vpop.f32.mrf.mxu0
        %v9023 = vadd.f32 0.0, %v9022
        %9024 = vdwg.mxu0
        %v9025 = vadd.f32 %v8980, %v9021
        %v9026 = vadd.f32 %v8982, %v9023
        %v9027 = vld [vmem:[#allocation4] sm:$0xc]
        %v9028 = vld [vmem:[#allocation4 + $0x8] sm:$0x3]
        %s9029 = scalar_lea.vmem %s47, 48
        %v9030 = vld [vmem:[%s9029] sm:$0xf]
        %v9031 = vld [vmem:[%s9029 + $0x4] sm:$0xf]
        %v9032 = vld [vmem:[%s9029 + $0x8] sm:$0xf]
        %v9033 = vld [vmem:[%s9029 + $0xc] sm:$0xf]
        %v9036 = vunpack.c.l.b16 %v9027
        %v9037 = vunpack.c.l.b16 %v9028
        %v9038 = vpack.c.b16 %v8911, %v9036
        %v9039 = vpack.c.b16 %v9037, %v9037
        %v9040 = vrot.slane %v9038, 2
        %v9041 = vrot.slane %v9039, 2
        %v9042 = vsel %vm2770, %v9040, %v9041
        %v9047 = vunpack.c.l.b16 %v9030
        %v9048 = vunpack.c.l.b16 %v9031
        %v9049 = vunpack.c.l.b16 %v9032
        %v9050 = vunpack.c.l.b16 %v9033
        %v9051 = vpack.c.b16 %v9048, %v9047
        %v9052 = vpack.c.b16 %v9050, %v9049
        %v9056 = vsel %vm4990, %v9042, 0
        %9058 = vmatpush.bf16.msra.mxu0 0
        %9059 = vmatpush.bf16.msra.mxu0 0
        %9060 = vmatpush.bf16.msra.mxu0 0
        %9061 = vmatpush.bf16.msra.mxu0 0
        %9062 = vmatpush.bf16.msra.mxu0 0
        %9063 = vmatpush.bf16.msra.mxu0 0
        %9064 = vmatpush.bf16.msra.mxu0 %v9052
        %9065 = vmatpush.bf16.msra.mxu0 %v9051
        %9066 = vmatmul.bf16.gmra.mxu0 %v9056
        %v9067 = vpop.f32.mrf.mxu0
        %v9068 = vadd.f32 0.0, %v9067
        %v9069 = vpop.f32.mrf.mxu0
        %v9070 = vadd.f32 0.0, %v9069
        %9071 = vdwg.mxu0
        %v9072 = vadd.f32 %v9025, %v9068
        %v9073 = vadd.f32 %v9026, %v9070
        %v9074 = vld [vmem:[#allocation4 + $0x8] sm:$0x7]
        %s9075 = scalar_lea.vmem %s47, 64
        %v9076 = vld [vmem:[%s9075] sm:$0xf]
        %v9077 = vld [vmem:[%s9075 + $0x4] sm:$0xf]
        %v9078 = vld [vmem:[%s9075 + $0x8] sm:$0xf]
        %v9079 = vld [vmem:[%s9075 + $0xc] sm:$0xf]
        %v9081 = vunpack.c.l.b16 %v9074
        %v9082 = vpack.c.b16 %v9081, %v9081
        %v9084 = vshrl.u32 %v9038, 16
        %v9086 = vrot.slane %v9084, 2
        %v9087 = vshll.u32 %v9038, 16
        %v9089 = vrot.slane %v9087, 3
        %v9090 = vor.u32 %v9086, %v9089
        %v9092 = vshrl.u32 %v9082, 16
        %v9094 = vrot.slane %v9092, 2
        %v9095 = vshll.u32 %v9082, 16
        %v9097 = vrot.slane %v9095, 3
        %v9098 = vor.u32 %v9094, %v9097
        %v9099 = vsel %vm3572, %v9090, %v9098
        %v9104 = vunpack.c.l.b16 %v9076
        %v9105 = vunpack.c.l.b16 %v9077
        %v9106 = vunpack.c.l.b16 %v9078
        %v9107 = vunpack.c.l.b16 %v9079
        %v9108 = vpack.c.b16 %v9105, %v9104
        %v9109 = vpack.c.b16 %v9107, %v9106
        %v9113 = vsel %vm4990, %v9099, 0
        %9115 = vmatpush.bf16.msra.mxu0 0
        %9116 = vmatpush.bf16.msra.mxu0 0
        %9117 = vmatpush.bf16.msra.mxu0 0
        %9118 = vmatpush.bf16.msra.mxu0 0
        %9119 = vmatpush.bf16.msra.mxu0 0
        %9120 = vmatpush.bf16.msra.mxu0 0
        %9121 = vmatpush.bf16.msra.mxu0 %v9109
        %9122 = vmatpush.bf16.msra.mxu0 %v9108
        %9123 = vmatmul.bf16.gmra.mxu0 %v9113
        %v9124 = vpop.f32.mrf.mxu0
        %v9125 = vadd.f32 0.0, %v9124
        %v9126 = vpop.f32.mrf.mxu0
        %v9127 = vadd.f32 0.0, %v9126
        %9128 = vdwg.mxu0
        %v9129 = vadd.f32 %v9072, %v9125
        %v9130 = vadd.f32 %v9073, %v9127
        %v9131 = vld [vmem:[#allocation4] sm:$0x8]
        %s9132 = scalar_lea.vmem %s47, 80
        %v9133 = vld [vmem:[%s9132] sm:$0xf]
        %v9134 = vld [vmem:[%s9132 + $0x4] sm:$0xf]
        %v9135 = vld [vmem:[%s9132 + $0x8] sm:$0xf]
        %v9136 = vld [vmem:[%s9132 + $0xc] sm:$0xf]
        %v9138 = vunpack.c.l.b16 %v9131
        %v9139 = vpack.c.b16 %v8911, %v9138
        %v9140 = vrot.slane %v9139, 3
        %v9141 = vrot.slane %v9082, 3
        %v9142 = vsel %vm3979, %v9140, %v9141
        %v9147 = vunpack.c.l.b16 %v9133
        %v9148 = vunpack.c.l.b16 %v9134
        %v9149 = vunpack.c.l.b16 %v9135
        %v9150 = vunpack.c.l.b16 %v9136
        %v9151 = vpack.c.b16 %v9148, %v9147
        %v9152 = vpack.c.b16 %v9150, %v9149
        %v9156 = vsel %vm4990, %v9142, 0
        %9158 = vmatpush.bf16.msra.mxu0 0
        %9159 = vmatpush.bf16.msra.mxu0 0
        %9160 = vmatpush.bf16.msra.mxu0 0
        %9161 = vmatpush.bf16.msra.mxu0 0
        %9162 = vmatpush.bf16.msra.mxu0 0
        %9163 = vmatpush.bf16.msra.mxu0 0
        %9164 = vmatpush.bf16.msra.mxu0 %v9152
        %9165 = vmatpush.bf16.msra.mxu0 %v9151
        %9166 = vmatmul.bf16.gmra.mxu0 %v9156
        %v9167 = vpop.f32.mrf.mxu0
        %v9168 = vadd.f32 0.0, %v9167
        %v9169 = vpop.f32.mrf.mxu0
        %v9170 = vadd.f32 0.0, %v9169
        %9171 = vdwg.mxu0
        %v9172 = vadd.f32 %v9129, %v9168
        %v9173 = vadd.f32 %v9130, %v9170
        %v9174 = vld [vmem:[#allocation4 + $0x8] sm:$0xf]
        %s9175 = scalar_lea.vmem %s47, 96
        %v9176 = vld [vmem:[%s9175] sm:$0xf]
        %v9177 = vld [vmem:[%s9175 + $0x4] sm:$0xf]
        %v9178 = vld [vmem:[%s9175 + $0x8] sm:$0xf]
        %v9179 = vld [vmem:[%s9175 + $0xc] sm:$0xf]
        %v9181 = vunpack.c.l.b16 %v9174
        %v9182 = vpack.c.b16 %v9181, %v8911
        %v9187 = vunpack.c.l.b16 %v9176
        %v9188 = vunpack.c.l.b16 %v9177
        %v9189 = vunpack.c.l.b16 %v9178
        %v9190 = vunpack.c.l.b16 %v9179
        %v9191 = vpack.c.b16 %v9188, %v9187
        %v9192 = vpack.c.b16 %v9190, %v9189
        %v9196 = vsel %vm4990, %v9182, 0
        %9198 = vmatpush.bf16.msra.mxu0 0
        %9199 = vmatpush.bf16.msra.mxu0 0
        %9200 = vmatpush.bf16.msra.mxu0 0
        %9201 = vmatpush.bf16.msra.mxu0 0
        %9202 = vmatpush.bf16.msra.mxu0 0
        %9203 = vmatpush.bf16.msra.mxu0 0
        %9204 = vmatpush.bf16.msra.mxu0 %v9192
        %9205 = vmatpush.bf16.msra.mxu0 %v9191
        %9206 = vmatmul.bf16.gmra.mxu0 %v9196
        %v9207 = vpop.f32.mrf.mxu0
        %v9208 = vadd.f32 0.0, %v9207
        %v9209 = vpop.f32.mrf.mxu0
        %v9210 = vadd.f32 0.0, %v9209
        %9211 = vdwg.mxu0
        %v9212 = vadd.f32 %v9172, %v9208
        %v9213 = vadd.f32 %v9173, %v9210
        %v9214 = vld [vmem:[#allocation4 + $0x4] sm:$0xf]
        %v9215 = vld [vmem:[#allocation4 + $0x8] sm:$0xf]
        %v9216 = vld [vmem:[#allocation4 + $0xc] sm:$0x1]
        %s9217 = scalar_lea.vmem %s47, 112
        %v9218 = vld [vmem:[%s9217] sm:$0xf]
        %v9219 = vld [vmem:[%s9217 + $0x4] sm:$0xf]
        %v9220 = vld [vmem:[%s9217 + $0x8] sm:$0xf]
        %v9221 = vld [vmem:[%s9217 + $0xc] sm:$0xf]
        %v9225 = vunpack.c.l.b16 %v9214
        %v9226 = vunpack.c.l.b16 %v9215
        %v9227 = vunpack.c.l.b16 %v9216
        %v9228 = vpack.c.b16 %v9226, %v9225
        %v9229 = vpack.c.b16 %v9227, %v9227
        %v9231 = vshrl.u32 %v9228, 16
        %v9233 = vshll.u32 %v9228, 16
        %v9235 = vrot.slane %v9233, 1
        %v9236 = vor.u32 %v9231, %v9235
        %v9238 = vshll.u32 %v9229, 16
        %v9240 = vrot.slane %v9238, 1
        %v9241 = vsel %vm1192, %v9236, %v9240
        %v9246 = vunpack.c.l.b16 %v9218
        %v9247 = vunpack.c.l.b16 %v9219
        %v9248 = vunpack.c.l.b16 %v9220
        %v9249 = vunpack.c.l.b16 %v9221
        %v9250 = vpack.c.b16 %v9247, %v9246
        %v9251 = vpack.c.b16 %v9249, %v9248
        %v9255 = vsel %vm4990, %v9241, 0
        %9257 = vmatpush.bf16.msra.mxu0 0
        %9258 = vmatpush.bf16.msra.mxu0 0
        %9259 = vmatpush.bf16.msra.mxu0 0
        %9260 = vmatpush.bf16.msra.mxu0 0
        %9261 = vmatpush.bf16.msra.mxu0 0
        %9262 = vmatpush.bf16.msra.mxu0 0
        %9263 = vmatpush.bf16.msra.mxu0 %v9251
        %9264 = vmatpush.bf16.msra.mxu0 %v9250
        %9265 = vmatmul.bf16.gmra.mxu0 %v9255
        %v9266 = vpop.f32.mrf.mxu0
        %v9267 = vadd.f32 0.0, %v9266
        %v9268 = vpop.f32.mrf.mxu0
        %v9269 = vadd.f32 0.0, %v9268
        %9270 = vdwg.mxu0
        %v9271 = vadd.f32 %v9212, %v9267
        %v9272 = vadd.f32 %v9213, %v9269
        %v9273 = vld [vmem:[#allocation4 + $0x4] sm:$0xe]
        %s9274 = scalar_lea.vmem %s47, 128
        %v9275 = vld [vmem:[%s9274] sm:$0xf]
        %v9276 = vld [vmem:[%s9274 + $0x4] sm:$0xf]
        %v9277 = vld [vmem:[%s9274 + $0x8] sm:$0xf]
        %v9278 = vld [vmem:[%s9274 + $0xc] sm:$0xf]
        %v9280 = vunpack.c.l.b16 %v9273
        %v9281 = vpack.c.b16 %v9226, %v9280
        %v9282 = vrot.slane %v9281, 1
        %v9283 = vrot.slane %v9229, 1
        %v9284 = vsel %vm1704, %v9282, %v9283
        %v9289 = vunpack.c.l.b16 %v9275
        %v9290 = vunpack.c.l.b16 %v9276
        %v9291 = vunpack.c.l.b16 %v9277
        %v9292 = vunpack.c.l.b16 %v9278
        %v9293 = vpack.c.b16 %v9290, %v9289
        %v9294 = vpack.c.b16 %v9292, %v9291
        %v9298 = vsel %vm4990, %v9284, 0
        %9300 = vmatpush.bf16.msra.mxu0 0
        %9301 = vmatpush.bf16.msra.mxu0 0
        %9302 = vmatpush.bf16.msra.mxu0 0
        %9303 = vmatpush.bf16.msra.mxu0 0
        %9304 = vmatpush.bf16.msra.mxu0 0
        %9305 = vmatpush.bf16.msra.mxu0 0
        %9306 = vmatpush.bf16.msra.mxu0 %v9294
        %9307 = vmatpush.bf16.msra.mxu0 %v9293
        %9308 = vmatmul.bf16.gmra.mxu0 %v9298
        %v9309 = vpop.f32.mrf.mxu0
        %v9310 = vadd.f32 0.0, %v9309
        %v9311 = vpop.f32.mrf.mxu0
        %v9312 = vadd.f32 0.0, %v9311
        %9313 = vdwg.mxu0
        %v9314 = vadd.f32 %v9271, %v9310
        %v9315 = vadd.f32 %v9272, %v9312
        %v9316 = vld [vmem:[%s49] sm:$0x1]
        %v9318 = vperm.slane %v9316, 0
        %v9320 = vadd.f32 %v9314, %v9318
        %v9321 = vadd.f32 %v9315, %v9318
        %v9322 = vmax.f32 %v9320, 0.0
        %v9323 = vmax.f32 %v9321, 0.0
        %v9324 = vmul.f32 %v9322, %v8268
        %v9325 = vmul.f32 %v9323, %v8273
        %v9326 = vpack.c.bf16 %v9324, %v9324
        %v9327 = vpack.c.bf16 %v9325, %v9325
        %v9329 = vshrl.u32 %v9326, 16
        %v9331 = vrot.slane %v9329, 5
        %v9332 = vshll.u32 %v9326, 16
        %v9334 = vrot.slane %v9332, 6
        %v9335 = vor.u32 %v9331, %v9334
        %v9336 = vrot.slane %v9335, 4
        %v9338 = vshrl.u32 %v9327, 16
        %v9340 = vrot.slane %v9338, 5
        %v9341 = vshll.u32 %v9327, 16
        %v9343 = vrot.slane %v9341, 6
        %v9344 = vor.u32 %v9340, %v9343
        %v9345 = vsel %vm8281, %v9336, %v9344
        %v9346 = vrot.slane %v9344, 4
        %v9350 = vsel %vm8771, %v9335, %v9027
        %9351 = vst [vmem:[#allocation4] sm:$0xc] %v9350
        %9352 = vst.msk [vmem:[#allocation4 + $0x4] sm:$0xf] %vm1038, %v9345
        %v9353 = vld [vmem:[#allocation4 + $0x8] sm:$0x7]
        %v9354 = vsel %vm8776, %v9346, %v9353
        %9355 = vst [vmem:[#allocation4 + $0x8] sm:$0x7] %v9354
        %v9356 = vld [vmem:[#allocation4] sm:$0xc]
        %v9357 = vld [vmem:[#allocation4 + $0x4] sm:$0xf]
        %v9358 = vld [vmem:[#allocation4 + $0x8] sm:$0x7]
        %v9359 = vld [vmem:[%s51] sm:$0xf]
        %v9360 = vld [vmem:[%s51 + $0x4] sm:$0xf]
        %v9361 = vld [vmem:[%s51 + $0x8] sm:$0xf]
        %v9362 = vld [vmem:[%s51 + $0xc] sm:$0xf]
        %v9363 = vld [vmem:[%s51 + $0x10] sm:$0xf]
        %v9364 = vld [vmem:[%s51 + $0x14] sm:$0xf]
        %v9365 = vld [vmem:[%s51 + $0x18] sm:$0xf]
        %v9366 = vld [vmem:[%s51 + $0x1c] sm:$0xf]
        %v9367 = vld [vmem:[%s53] sm:$0x1]
        %v9369 = vperm.slane %v9367, 0
        %v9374 = vunpack.c.l.b16 %v9356
        %v9375 = vunpack.c.l.b16 %v9357
        %v9376 = vunpack.c.l.b16 %v9358
        %v9377 = vpack.c.b16 %v9375, %v9374
        %v9378 = vpack.c.b16 %v9376, %v9376
        %v9380 = vshrl.u32 %v9377, 16
        %v9382 = vrot.slane %v9380, 2
        %v9383 = vshll.u32 %v9377, 16
        %v9385 = vrot.slane %v9383, 3
        %v9386 = vor.u32 %v9382, %v9385
        %v9388 = vshrl.u32 %v9378, 16
        %v9390 = vrot.slane %v9388, 2
        %v9391 = vshll.u32 %v9378, 16
        %v9393 = vrot.slane %v9391, 3
        %v9394 = vor.u32 %v9390, %v9393
        %v9395 = vsel %vm3572, %v9386, %v9394
        %v9404 = vunpack.c.l.b16 %v9359
        %v9405 = vunpack.c.l.b16 %v9360
        %v9406 = vunpack.c.l.b16 %v9361
        %v9407 = vunpack.c.l.b16 %v9362
        %v9408 = vunpack.c.l.b16 %v9363
        %v9409 = vunpack.c.l.b16 %v9364
        %v9410 = vunpack.c.l.b16 %v9365
        %v9411 = vunpack.c.l.b16 %v9366
        %v9412 = vpack.c.b16 %v9405, %v9404
        %v9413 = vpack.c.b16 %v9407, %v9406
        %v9414 = vpack.c.b16 %v9409, %v9408
        %v9415 = vpack.c.b16 %v9411, %v9410
        %v9421 = vsel %vm8245, %v9395, 0
        %9423 = vmatpush.bf16.msra.mxu0 0
        %9424 = vmatpush.bf16.msra.mxu0 0
        %9425 = vmatpush.bf16.msra.mxu0 0
        %9426 = vmatpush.bf16.msra.mxu0 0
        %9427 = vmatpush.bf16.msra.mxu0 %v9415
        %9428 = vmatpush.bf16.msra.mxu0 %v9414
        %9429 = vmatpush.bf16.msra.mxu0 %v9413
        %9430 = vmatpush.bf16.msra.mxu0 %v9412
        %9431 = vmatmul.bf16.gmra.mxu0 %v9421
        %v9432 = vpop.f32.mrf.mxu0
        %v9433 = vadd.f32 %v9369, %v9432
        %v9434 = vpop.f32.mrf.mxu0
        %v9435 = vadd.f32 %v9369, %v9434
        %9436 = vdwg.mxu0
        %v9437 = vmax.f32 %v9433, 0.0
        %v9438 = vmax.f32 %v9435, 0.0
        %v9439 = vmul.f32 %v9437, %v8268
        %v9440 = vmul.f32 %v9438, %v8273
        %v9441 = vpack.c.bf16 %v9439, %v9439
        %v9442 = vpack.c.bf16 %v9440, %v9440
        %v9444 = vshrl.u32 %v9441, 16
        %v9446 = vrot.slane %v9444, 5
        %v9447 = vshll.u32 %v9441, 16
        %v9449 = vrot.slane %v9447, 6
        %v9450 = vor.u32 %v9446, %v9449
        %v9451 = vrot.slane %v9450, 4
        %v9453 = vshrl.u32 %v9442, 16
        %v9455 = vrot.slane %v9453, 5
        %v9456 = vshll.u32 %v9442, 16
        %v9458 = vrot.slane %v9456, 6
        %v9459 = vor.u32 %v9455, %v9458
        %v9460 = vsel %vm8281, %v9451, %v9459
        %v9461 = vrot.slane %v9459, 4
        %v9465 = vsel %vm8306, %v9450, %v9356
        %9466 = vst [vmem:[#allocation4] sm:$0xc] %v9465
        %9467 = vst.msk [vmem:[#allocation4 + $0x4] sm:$0xf] %vm1013, %v9460
        %v9468 = vld [vmem:[#allocation4 + $0x8] sm:$0x7]
        %v9469 = vsel %vm8311, %v9461, %v9468
        %9470 = vst [vmem:[#allocation4 + $0x8] sm:$0x7] %v9469
        %v9471 = vld [vmem:[#allocation4] sm:$0xf]
        %v9472 = vld [vmem:[#allocation4 + $0x4] sm:$0xf]
        %v9473 = vld [vmem:[%s55] sm:$0xf]
        %v9474 = vld [vmem:[%s55 + $0x4] sm:$0xf]
        %v9475 = vld [vmem:[%s55 + $0x8] sm:$0xf]
        %v9476 = vld [vmem:[%s55 + $0xc] sm:$0xf]
        %v9477 = vld [vmem:[#allocation4 + $0x8] sm:$0x1]
        %s9478 = scalar_lea.vmem %s55, 16
        %v9479 = vld [vmem:[%s9478] sm:$0xf]
        %v9480 = vld [vmem:[%s9478 + $0x4] sm:$0xf]
        %v9481 = vld [vmem:[%s9478 + $0x8] sm:$0xf]
        %v9482 = vld [vmem:[%s9478 + $0xc] sm:$0xf]
        %v9486 = vunpack.c.l.b16 %v9471
        %v9487 = vunpack.c.l.b16 %v9472
        %v9488 = vunpack.c.l.b16 %v9477
        %v9489 = vpack.c.b16 %v9487, %v9486
        %v9490 = vpack.c.b16 %v9488, %v9488
        %v9492 = vshrl.u32 %v9489, 16
        %v9494 = vshll.u32 %v9489, 16
        %v9496 = vrot.slane %v9494, 1
        %v9497 = vor.u32 %v9492, %v9496
        %v9499 = vshll.u32 %v9490, 16
        %v9501 = vrot.slane %v9499, 1
        %v9502 = vsel %vm1192, %v9497, %v9501
        %v9507 = vunpack.c.l.b16 %v9479
        %v9508 = vunpack.c.l.b16 %v9480
        %v9509 = vunpack.c.l.b16 %v9481
        %v9510 = vunpack.c.l.b16 %v9482
        %v9511 = vpack.c.b16 %v9508, %v9507
        %v9512 = vpack.c.b16 %v9510, %v9509
        %v9516 = vsel %vm4990, %v9502, 0
        %9518 = vmatpush.bf16.msra.mxu0 0
        %9519 = vmatpush.bf16.msra.mxu0 0
        %9520 = vmatpush.bf16.msra.mxu0 0
        %9521 = vmatpush.bf16.msra.mxu0 0
        %9522 = vmatpush.bf16.msra.mxu0 0
        %9523 = vmatpush.bf16.msra.mxu0 0
        %9524 = vmatpush.bf16.msra.mxu0 %v9512
        %9525 = vmatpush.bf16.msra.mxu0 %v9511
        %9526 = vmatmul.bf16.gmra.mxu0 %v9516
        %v9527 = vpop.f32.mrf.mxu0
        %v9528 = vadd.f32 0.0, %v9527
        %v9529 = vpop.f32.mrf.mxu0
        %v9530 = vadd.f32 0.0, %v9529
        %9531 = vdwg.mxu0
        %v9536 = vunpack.c.l.b16 %v9473
        %v9537 = vunpack.c.l.b16 %v9474
        %v9538 = vunpack.c.l.b16 %v9475
        %v9539 = vunpack.c.l.b16 %v9476
        %v9540 = vpack.c.b16 %v9537, %v9536
        %v9541 = vpack.c.b16 %v9539, %v9538
        %v9544 = vsel %vm4990, %v9489, 0
        %9546 = vmatpush.bf16.msra.mxu0 0
        %9547 = vmatpush.bf16.msra.mxu0 0
        %9548 = vmatpush.bf16.msra.mxu0 0
        %9549 = vmatpush.bf16.msra.mxu0 0
        %9550 = vmatpush.bf16.msra.mxu0 0
        %9551 = vmatpush.bf16.msra.mxu0 0
        %9552 = vmatpush.bf16.msra.mxu0 %v9541
        %9553 = vmatpush.bf16.msra.mxu0 %v9540
        %9554 = vmatmul.bf16.gmra.mxu0 %v9544
        %v9555 = vpop.f32.mrf.mxu0
        %v9556 = vadd.f32 %v9528, %v9555
        %v9557 = vpop.f32.mrf.mxu0
        %v9558 = vadd.f32 %v9530, %v9557
        %9559 = vdwg.mxu0
        %v9560 = vld [vmem:[#allocation4] sm:$0xe]
        %s9561 = scalar_lea.vmem %s55, 32
        %v9562 = vld [vmem:[%s9561] sm:$0xf]
        %v9563 = vld [vmem:[%s9561 + $0x4] sm:$0xf]
        %v9564 = vld [vmem:[%s9561 + $0x8] sm:$0xf]
        %v9565 = vld [vmem:[%s9561 + $0xc] sm:$0xf]
        %v9567 = vunpack.c.l.b16 %v9560
        %v9568 = vpack.c.b16 %v9487, %v9567
        %v9569 = vrot.slane %v9568, 1
        %v9570 = vrot.slane %v9490, 1
        %v9571 = vsel %vm1704, %v9569, %v9570
        %v9576 = vunpack.c.l.b16 %v9562
        %v9577 = vunpack.c.l.b16 %v9563
        %v9578 = vunpack.c.l.b16 %v9564
        %v9579 = vunpack.c.l.b16 %v9565
        %v9580 = vpack.c.b16 %v9577, %v9576
        %v9581 = vpack.c.b16 %v9579, %v9578
        %v9585 = vsel %vm4990, %v9571, 0
        %9587 = vmatpush.bf16.msra.mxu0 0
        %9588 = vmatpush.bf16.msra.mxu0 0
        %9589 = vmatpush.bf16.msra.mxu0 0
        %9590 = vmatpush.bf16.msra.mxu0 0
        %9591 = vmatpush.bf16.msra.mxu0 0
        %9592 = vmatpush.bf16.msra.mxu0 0
        %9593 = vmatpush.bf16.msra.mxu0 %v9581
        %9594 = vmatpush.bf16.msra.mxu0 %v9580
        %9595 = vmatmul.bf16.gmra.mxu0 %v9585
        %v9596 = vpop.f32.mrf.mxu0
        %v9597 = vadd.f32 0.0, %v9596
        %v9598 = vpop.f32.mrf.mxu0
        %v9599 = vadd.f32 0.0, %v9598
        %9600 = vdwg.mxu0
        %v9601 = vadd.f32 %v9556, %v9597
        %v9602 = vadd.f32 %v9558, %v9599
        %v9603 = vld [vmem:[#allocation4] sm:$0xc]
        %v9604 = vld [vmem:[#allocation4 + $0x8] sm:$0x3]
        %s9605 = scalar_lea.vmem %s55, 48
        %v9606 = vld [vmem:[%s9605] sm:$0xf]
        %v9607 = vld [vmem:[%s9605 + $0x4] sm:$0xf]
        %v9608 = vld [vmem:[%s9605 + $0x8] sm:$0xf]
        %v9609 = vld [vmem:[%s9605 + $0xc] sm:$0xf]
        %v9612 = vunpack.c.l.b16 %v9603
        %v9613 = vunpack.c.l.b16 %v9604
        %v9614 = vpack.c.b16 %v9487, %v9612
        %v9615 = vpack.c.b16 %v9613, %v9613
        %v9616 = vrot.slane %v9614, 2
        %v9617 = vrot.slane %v9615, 2
        %v9618 = vsel %vm2770, %v9616, %v9617
        %v9623 = vunpack.c.l.b16 %v9606
        %v9624 = vunpack.c.l.b16 %v9607
        %v9625 = vunpack.c.l.b16 %v9608
        %v9626 = vunpack.c.l.b16 %v9609
        %v9627 = vpack.c.b16 %v9624, %v9623
        %v9628 = vpack.c.b16 %v9626, %v9625
        %v9632 = vsel %vm4990, %v9618, 0
        %9634 = vmatpush.bf16.msra.mxu0 0
        %9635 = vmatpush.bf16.msra.mxu0 0
        %9636 = vmatpush.bf16.msra.mxu0 0
        %9637 = vmatpush.bf16.msra.mxu0 0
        %9638 = vmatpush.bf16.msra.mxu0 0
        %9639 = vmatpush.bf16.msra.mxu0 0
        %9640 = vmatpush.bf16.msra.mxu0 %v9628
        %9641 = vmatpush.bf16.msra.mxu0 %v9627
        %9642 = vmatmul.bf16.gmra.mxu0 %v9632
        %v9643 = vpop.f32.mrf.mxu0
        %v9644 = vadd.f32 0.0, %v9643
        %v9645 = vpop.f32.mrf.mxu0
        %v9646 = vadd.f32 0.0, %v9645
        %9647 = vdwg.mxu0
        %v9648 = vadd.f32 %v9601, %v9644
        %v9649 = vadd.f32 %v9602, %v9646
        %v9650 = vld [vmem:[#allocation4 + $0x8] sm:$0x7]
        %s9651 = scalar_lea.vmem %s55, 64
        %v9652 = vld [vmem:[%s9651] sm:$0xf]
        %v9653 = vld [vmem:[%s9651 + $0x4] sm:$0xf]
        %v9654 = vld [vmem:[%s9651 + $0x8] sm:$0xf]
        %v9655 = vld [vmem:[%s9651 + $0xc] sm:$0xf]
        %v9657 = vunpack.c.l.b16 %v9650
        %v9658 = vpack.c.b16 %v9657, %v9657
        %v9660 = vshrl.u32 %v9614, 16
        %v9662 = vrot.slane %v9660, 2
        %v9663 = vshll.u32 %v9614, 16
        %v9665 = vrot.slane %v9663, 3
        %v9666 = vor.u32 %v9662, %v9665
        %v9668 = vshrl.u32 %v9658, 16
        %v9670 = vrot.slane %v9668, 2
        %v9671 = vshll.u32 %v9658, 16
        %v9673 = vrot.slane %v9671, 3
        %v9674 = vor.u32 %v9670, %v9673
        %v9675 = vsel %vm3572, %v9666, %v9674
        %v9680 = vunpack.c.l.b16 %v9652
        %v9681 = vunpack.c.l.b16 %v9653
        %v9682 = vunpack.c.l.b16 %v9654
        %v9683 = vunpack.c.l.b16 %v9655
        %v9684 = vpack.c.b16 %v9681, %v9680
        %v9685 = vpack.c.b16 %v9683, %v9682
        %v9689 = vsel %vm4990, %v9675, 0
        %9691 = vmatpush.bf16.msra.mxu0 0
        %9692 = vmatpush.bf16.msra.mxu0 0
        %9693 = vmatpush.bf16.msra.mxu0 0
        %9694 = vmatpush.bf16.msra.mxu0 0
        %9695 = vmatpush.bf16.msra.mxu0 0
        %9696 = vmatpush.bf16.msra.mxu0 0
        %9697 = vmatpush.bf16.msra.mxu0 %v9685
        %9698 = vmatpush.bf16.msra.mxu0 %v9684
        %9699 = vmatmul.bf16.gmra.mxu0 %v9689
        %v9700 = vpop.f32.mrf.mxu0
        %v9701 = vadd.f32 0.0, %v9700
        %v9702 = vpop.f32.mrf.mxu0
        %v9703 = vadd.f32 0.0, %v9702
        %9704 = vdwg.mxu0
        %v9705 = vadd.f32 %v9648, %v9701
        %v9706 = vadd.f32 %v9649, %v9703
        %v9707 = vld [vmem:[#allocation4] sm:$0x8]
        %s9708 = scalar_lea.vmem %s55, 80
        %v9709 = vld [vmem:[%s9708] sm:$0xf]
        %v9710 = vld [vmem:[%s9708 + $0x4] sm:$0xf]
        %v9711 = vld [vmem:[%s9708 + $0x8] sm:$0xf]
        %v9712 = vld [vmem:[%s9708 + $0xc] sm:$0xf]
        %v9714 = vunpack.c.l.b16 %v9707
        %v9715 = vpack.c.b16 %v9487, %v9714
        %v9716 = vrot.slane %v9715, 3
        %v9717 = vrot.slane %v9658, 3
        %v9718 = vsel %vm3979, %v9716, %v9717
        %v9723 = vunpack.c.l.b16 %v9709
        %v9724 = vunpack.c.l.b16 %v9710
        %v9725 = vunpack.c.l.b16 %v9711
        %v9726 = vunpack.c.l.b16 %v9712
        %v9727 = vpack.c.b16 %v9724, %v9723
        %v9728 = vpack.c.b16 %v9726, %v9725
        %v9732 = vsel %vm4990, %v9718, 0
        %9734 = vmatpush.bf16.msra.mxu0 0
        %9735 = vmatpush.bf16.msra.mxu0 0
        %9736 = vmatpush.bf16.msra.mxu0 0
        %9737 = vmatpush.bf16.msra.mxu0 0
        %9738 = vmatpush.bf16.msra.mxu0 0
        %9739 = vmatpush.bf16.msra.mxu0 0
        %9740 = vmatpush.bf16.msra.mxu0 %v9728
        %9741 = vmatpush.bf16.msra.mxu0 %v9727
        %9742 = vmatmul.bf16.gmra.mxu0 %v9732
        %v9743 = vpop.f32.mrf.mxu0
        %v9744 = vadd.f32 0.0, %v9743
        %v9745 = vpop.f32.mrf.mxu0
        %v9746 = vadd.f32 0.0, %v9745
        %9747 = vdwg.mxu0
        %v9748 = vadd.f32 %v9705, %v9744
        %v9749 = vadd.f32 %v9706, %v9746
        %v9750 = vld [vmem:[#allocation4 + $0x8] sm:$0xf]
        %s9751 = scalar_lea.vmem %s55, 96
        %v9752 = vld [vmem:[%s9751] sm:$0xf]
        %v9753 = vld [vmem:[%s9751 + $0x4] sm:$0xf]
        %v9754 = vld [vmem:[%s9751 + $0x8] sm:$0xf]
        %v9755 = vld [vmem:[%s9751 + $0xc] sm:$0xf]
        %v9757 = vunpack.c.l.b16 %v9750
        %v9758 = vpack.c.b16 %v9757, %v9487
        %v9763 = vunpack.c.l.b16 %v9752
        %v9764 = vunpack.c.l.b16 %v9753
        %v9765 = vunpack.c.l.b16 %v9754
        %v9766 = vunpack.c.l.b16 %v9755
        %v9767 = vpack.c.b16 %v9764, %v9763
        %v9768 = vpack.c.b16 %v9766, %v9765
        %v9772 = vsel %vm4990, %v9758, 0
        %9774 = vmatpush.bf16.msra.mxu0 0
        %9775 = vmatpush.bf16.msra.mxu0 0
        %9776 = vmatpush.bf16.msra.mxu0 0
        %9777 = vmatpush.bf16.msra.mxu0 0
        %9778 = vmatpush.bf16.msra.mxu0 0
        %9779 = vmatpush.bf16.msra.mxu0 0
        %9780 = vmatpush.bf16.msra.mxu0 %v9768
        %9781 = vmatpush.bf16.msra.mxu0 %v9767
        %9782 = vmatmul.bf16.gmra.mxu0 %v9772
        %v9783 = vpop.f32.mrf.mxu0
        %v9784 = vadd.f32 0.0, %v9783
        %v9785 = vpop.f32.mrf.mxu0
        %v9786 = vadd.f32 0.0, %v9785
        %9787 = vdwg.mxu0
        %v9788 = vadd.f32 %v9748, %v9784
        %v9789 = vadd.f32 %v9749, %v9786
        %v9790 = vld [vmem:[#allocation4 + $0x4] sm:$0xf]
        %v9791 = vld [vmem:[#allocation4 + $0x8] sm:$0xf]
        %v9792 = vld [vmem:[#allocation4 + $0xc] sm:$0x1]
        %s9793 = scalar_lea.vmem %s55, 112
        %v9794 = vld [vmem:[%s9793] sm:$0xf]
        %v9795 = vld [vmem:[%s9793 + $0x4] sm:$0xf]
        %v9796 = vld [vmem:[%s9793 + $0x8] sm:$0xf]
        %v9797 = vld [vmem:[%s9793 + $0xc] sm:$0xf]
        %v9801 = vunpack.c.l.b16 %v9790
        %v9802 = vunpack.c.l.b16 %v9791
        %v9803 = vunpack.c.l.b16 %v9792
        %v9804 = vpack.c.b16 %v9802, %v9801
        %v9805 = vpack.c.b16 %v9803, %v9803
        %v9807 = vshrl.u32 %v9804, 16
        %v9809 = vshll.u32 %v9804, 16
        %v9811 = vrot.slane %v9809, 1
        %v9812 = vor.u32 %v9807, %v9811
        %v9814 = vshll.u32 %v9805, 16
        %v9816 = vrot.slane %v9814, 1
        %v9817 = vsel %vm1192, %v9812, %v9816
        %v9822 = vunpack.c.l.b16 %v9794
        %v9823 = vunpack.c.l.b16 %v9795
        %v9824 = vunpack.c.l.b16 %v9796
        %v9825 = vunpack.c.l.b16 %v9797
        %v9826 = vpack.c.b16 %v9823, %v9822
        %v9827 = vpack.c.b16 %v9825, %v9824
        %v9831 = vsel %vm4990, %v9817, 0
        %9833 = vmatpush.bf16.msra.mxu0 0
        %9834 = vmatpush.bf16.msra.mxu0 0
        %9835 = vmatpush.bf16.msra.mxu0 0
        %9836 = vmatpush.bf16.msra.mxu0 0
        %9837 = vmatpush.bf16.msra.mxu0 0
        %9838 = vmatpush.bf16.msra.mxu0 0
        %9839 = vmatpush.bf16.msra.mxu0 %v9827
        %9840 = vmatpush.bf16.msra.mxu0 %v9826
        %9841 = vmatmul.bf16.gmra.mxu0 %v9831
        %v9842 = vpop.f32.mrf.mxu0
        %v9843 = vadd.f32 0.0, %v9842
        %v9844 = vpop.f32.mrf.mxu0
        %v9845 = vadd.f32 0.0, %v9844
        %9846 = vdwg.mxu0
        %v9847 = vadd.f32 %v9788, %v9843
        %v9848 = vadd.f32 %v9789, %v9845
        %v9849 = vld [vmem:[#allocation4 + $0x4] sm:$0xe]
        %s9850 = scalar_lea.vmem %s55, 128
        %v9851 = vld [vmem:[%s9850] sm:$0xf]
        %v9852 = vld [vmem:[%s9850 + $0x4] sm:$0xf]
        %v9853 = vld [vmem:[%s9850 + $0x8] sm:$0xf]
        %v9854 = vld [vmem:[%s9850 + $0xc] sm:$0xf]
        %v9856 = vunpack.c.l.b16 %v9849
        %v9857 = vpack.c.b16 %v9802, %v9856
        %v9858 = vrot.slane %v9857, 1
        %v9859 = vrot.slane %v9805, 1
        %v9860 = vsel %vm1704, %v9858, %v9859
        %v9865 = vunpack.c.l.b16 %v9851
        %v9866 = vunpack.c.l.b16 %v9852
        %v9867 = vunpack.c.l.b16 %v9853
        %v9868 = vunpack.c.l.b16 %v9854
        %v9869 = vpack.c.b16 %v9866, %v9865
        %v9870 = vpack.c.b16 %v9868, %v9867
        %v9874 = vsel %vm4990, %v9860, 0
        %9876 = vmatpush.bf16.msra.mxu0 0
        %9877 = vmatpush.bf16.msra.mxu0 0
        %9878 = vmatpush.bf16.msra.mxu0 0
        %9879 = vmatpush.bf16.msra.mxu0 0
        %9880 = vmatpush.bf16.msra.mxu0 0
        %9881 = vmatpush.bf16.msra.mxu0 0
        %9882 = vmatpush.bf16.msra.mxu0 %v9870
        %9883 = vmatpush.bf16.msra.mxu0 %v9869
        %9884 = vmatmul.bf16.gmra.mxu0 %v9874
        %v9885 = vpop.f32.mrf.mxu0
        %v9886 = vadd.f32 0.0, %v9885
        %v9887 = vpop.f32.mrf.mxu0
        %v9888 = vadd.f32 0.0, %v9887
        %9889 = vdwg.mxu0
        %v9890 = vadd.f32 %v9847, %v9886
        %v9891 = vadd.f32 %v9848, %v9888
        %v9892 = vld [vmem:[%s57] sm:$0x1]
        %v9894 = vperm.slane %v9892, 0
        %v9896 = vadd.f32 %v9890, %v9894
        %v9897 = vadd.f32 %v9891, %v9894
        %v9898 = vmax.f32 %v9896, 0.0
        %v9899 = vmax.f32 %v9897, 0.0
        %v9900 = vmul.f32 %v9898, %v8268
        %v9901 = vmul.f32 %v9899, %v8273
        %v9902 = vsel %vm8245, %v9900, 0.0
        %v9903 = vsel %vm8245, %v9901, 0.0
        %v9904 = vadd.f32 %v9902, %v9903
        %v9905 = vrot.slane %v9904, 4
        %v9906 = vadd.f32 %v9904, %v9905
        %v9907 = vrot.slane %v9906, 2
        %v9908 = vadd.f32 %v9906, %v9907
        %v9909 = vrot.slane %v9908, 1
        %v9910 = vadd.f32 %v9908, %v9909
        %v9911 = vmul.f32 %v9910, 0.25
        %v9912 = vpack.c.bf16 %v9911, %v9911
        %v9913 = vld [vmem:[%s59] sm:$0xf]
        %v9914 = vld [vmem:[%s59 + $0x4] sm:$0xf]
        %v9915 = vld [vmem:[%s59 + $0x8] sm:$0xf]
        %v9916 = vld [vmem:[%s59 + $0xc] sm:$0xf]
        %v9917 = vld [vmem:[%s59 + $0x10] sm:$0xf]
        %v9918 = vld [vmem:[%s59 + $0x14] sm:$0xf]
        %v9919 = vld [vmem:[%s59 + $0x18] sm:$0xf]
        %v9920 = vld [vmem:[%s59 + $0x1c] sm:$0xf]
        %v9921 = vld [vmem:[%s61] sm:$0x1]
        %v9930 = vunpack.c.l.b16 %v9913
        %v9931 = vunpack.c.l.b16 %v9914
        %v9932 = vunpack.c.l.b16 %v9915
        %v9933 = vunpack.c.l.b16 %v9916
        %v9934 = vunpack.c.l.b16 %v9917
        %v9935 = vunpack.c.l.b16 %v9918
        %v9936 = vunpack.c.l.b16 %v9919
        %v9937 = vunpack.c.l.b16 %v9920
        %v9938 = vpack.c.b16 %v9931, %v9930
        %v9939 = vpack.c.b16 %v9933, %v9932
        %v9940 = vpack.c.b16 %v9935, %v9934
        %v9941 = vpack.c.b16 %v9937, %v9936
        %v9947 = vsel %vm8245, %v9912, 0
        %9949 = vmatpush.bf16.msra.mxu0 0
        %9950 = vmatpush.bf16.msra.mxu0 0
        %9951 = vmatpush.bf16.msra.mxu0 0
        %9952 = vmatpush.bf16.msra.mxu0 0
        %9953 = vmatpush.bf16.msra.mxu0 %v9941
        %9954 = vmatpush.bf16.msra.mxu0 %v9940
        %9955 = vmatpush.bf16.msra.mxu0 %v9939
        %9956 = vmatpush.bf16.msra.mxu0 %v9938
        %9957 = vmatmul.bf16.gmra.mxu0 %v9947
        %v9958 = vpop.f32.mrf.mxu0
        %v9959 = vadd.f32 %v9921, %v9958
        %v9960 = vpop.f32.mrf.mxu0
        %9961 = vdwg.mxu0
        %v9962 = vmax.f32 %v9959, 0.0
        %v9963 = vpack.c.bf16 %v9962, %v9962
        %v9964 = vld [vmem:[%s63] sm:$0xf]
        %v9965 = vld [vmem:[%s63 + $0x4] sm:$0xf]
        %v9966 = vld [vmem:[%s65] sm:$0x1]
        %v9969 = vunpack.c.l.b16 %v9964
        %v9970 = vunpack.c.l.b16 %v9965
        %v9971 = vpack.c.b16 %v9970, %v9969
        %v9974 = vsel %vm4348, %v9963, 0
        %9976 = vmatpush.bf16.msra.mxu0 0
        %9977 = vmatpush.bf16.msra.mxu0 0
        %9978 = vmatpush.bf16.msra.mxu0 0
        %9979 = vmatpush.bf16.msra.mxu0 0
        %9980 = vmatpush.bf16.msra.mxu0 0
        %9981 = vmatpush.bf16.msra.mxu0 0
        %9982 = vmatpush.bf16.msra.mxu0 0
        %9983 = vmatpush.bf16.msra.mxu0 %v9971
        %9984 = vmatmul.bf16.gmra.mxu0 %v9974
        %v9985 = vpop.f32.mrf.mxu0
        %v9986 = vadd.f32 %v9966, %v9985
        %v9987 = vpop.f32.mrf.mxu0
        %9988 = vdwg.mxu0
        %vm9989 = vcmask 8192
        %9990 = vst.msk [vmem:[%s1006] sm:$0x1] %vm9989, %v9986
        %s9991 = sand.u32 %s787, 1
        %s9992 = scalar_lea.sflag [#allocation6], %s9991
        %s9993 = sand.u32 %s787, 1
        %s9994 = scalar_lea.vmem [#allocation5], %s9993
        // Predicated region
        $region153: #{forward.1} parent=151 // pred_check
          %p9995 = pneg %p797
        $region154: #{forward.1} parent=151 // pred_check_branch
          %9997 = sbr.rel (%p9995) target = $region156
        $region155: #{forward.1} parent=151 // pred_region
          %9999 = vsyncadd %s9992, 0
          %s10000 = scalar_lea.hbm %s67, %s81
          %s10002 = sshll.u32 %s9994, 4
          %s10003 = int_to_ptr.vmem [resolvable:$true] %s10002
          %s10004 = sshll.u32 %s10000, 4
          %s10005 = int_to_ptr.hbm [resolvable:$true] %s10004
          %10007 = dma.vmem_to_hbm [thread:$0]  %s10003, 16, %s10005, %s9992
        $region156: #{forward.1} parent=151 // pred_fallthru
          _
      $region152: #{forward.1} parent=5 // pred_fallthru
        _
      %p10008 = scmp.le.s32.totalorder 2, %s76
      // Predicated region
      $region157: #{forward.1} parent=5 // pred_check
        %p10009 = pneg %p10008
      $region158: #{forward.1} parent=5 // pred_check_branch
        %10011 = sbr.rel (%p10009) target = $region160
      $region159: #{forward.1} parent=5 // pred_region
        %s10012 = ssub.s32 %s76, 2
        // Predicated region
        $region161: #{forward.1} parent=159 // pred_check
          %p10013 = pneg %p803
        $region162: #{forward.1} parent=159 // pred_check_branch
          %10015 = sbr.rel (%p10013) target = $region164
        $region163: #{forward.1} parent=159 // pred_region
          %s10016 = sand.u32 %s788, 1
          %s10017 = scalar_lea.sflag [#allocation6], %s10016
          %s10018 = sand.u32 %s788, 1
          %s10019 = scalar_lea.vmem [#allocation5], %s10018
          %10021 = dma.done %s10017, 16
        $region164: #{forward.1} parent=159 // pred_fallthru
          _
      $region160: #{forward.1} parent=5 // pred_fallthru
        _
    $region6: #{forward.1} parent=1 // loop_footer
      %s80 = sadd.s32 1, %s76
    $region7: #{forward.1} parent=1 // loop_footer_branch
      %75 = sbr.rel target = $region3
    $region8: #{forward.1} parent=1 // loop_exit
      _
    %10022 = vsyncpa [#allocation6], 1
    %s10023 = scalar_lea.sflag [#allocation6], 1
    %10024 = vsyncpa %s10023, 1

</llo_original>
